<compile_context>
chip_gen: v7x
topology: tpu7x:2x2x1
jax: 0.10.0
libtpu: 0.0.40
codegen_flags: <defaults>
</compile_context>

<pallas_src>
import math

import jax
import jax.numpy as jnp
import numpy as np
from jax.experimental import pallas as pl
from jax.experimental.pallas import tpu as pltpu


# ----------------------------------------------------------------------------
# Model configuration (small, consistent with VGGNet2C(in_channels, num_classes))
# ----------------------------------------------------------------------------
IN_CHANNELS = 4
NUM_CLASSES = 10
POOL_HW = 7                      # AdaptiveAvgPool2d((7, 7))
HIDDEN = 4096                    # MLPBlock hidden width
TK = 1024                        # streamed hidden-dim tile (review: 512 -> 1024)
NCORE = 2                        # dense2/dense3 column split (v7x dual-TC)
HALF = HIDDEN // NCORE
LANE = 128
BATCH_PAD = 16                   # review: pad batch to >=16 (bf16 sublane packing)


def _round_up(x, m):
    return ((x + m - 1) // m) * m


# ----------------------------------------------------------------------------
# Adaptive average pooling expressed as a (shape-only) constant matrix
# ----------------------------------------------------------------------------
def _adaptive_pool_matrix(in_size, out_size):
    """A[i, h] = 1/len(bin_i) if h in bin_i else 0 (PyTorch adaptive binning)."""
    A = np.zeros((out_size, in_size), np.float32)
    for i in range(out_size):
        s = (i * in_size) // out_size
        e = -((-(i + 1) * in_size) // out_size)      # ceil((i+1)*in/out)
        A[i, s:e] = 1.0 / (e - s)
    return A


def build_pool_matrix(C, H, W):
    """(C*H*W, round_up(C*49, 128)) matrix mapping NCHW-flat -> pooled (c,i,j)-flat."""
    Ah = _adaptive_pool_matrix(H, POOL_HW)
    Aw = _adaptive_pool_matrix(W, POOL_HW)
    P = np.einsum("ih,jw->hwij", Ah, Aw).reshape(H * W, POOL_HW * POOL_HW)
    Pblk = np.kron(np.eye(C, dtype=np.float32), P)   # block-diagonal over channels
    k1 = C * POOL_HW * POOL_HW
    k1p = _round_up(k1, LANE)
    Ppad = np.zeros((C * H * W, k1p), np.float32)
    Ppad[:, :k1] = Pblk
    # Kept f32: exact averaging reciprocals (review correctness concern).
    return jnp.asarray(Ppad)


# ----------------------------------------------------------------------------
# Fused Pallas kernel: pool -> dense1+ReLU -> dense2+ReLU -> dense3 (per half)
# ----------------------------------------------------------------------------
def _vgg2c_kernel(x_ref, p_ref, w1_ref, b1_ref, w2_ref, b2_ref, w3_ref,
                  o_ref, pooled_scr, acc_scr):
    k = pl.program_id(1)                      # streamed hidden-dim tile index

    @pl.when(k == 0)
    def _prologue():
        # AdaptiveAvgPool2d((7,7)) + flatten, as a single f32 MXU matmul.
        pooled = jnp.dot(x_ref[...], p_ref[...],
                         preferred_element_type=jnp.float32)
        pooled_scr[...] = pooled.astype(jnp.bfloat16)   # cast once, reuse as MXU LHS

    # dense1 tile k: h1_k = relu(pooled @ W1^T[:, k*TK:(k+1)*TK] + b1_tile)
    h1_k = jnp.dot(pooled_scr[...], w1_ref[...],
                   preferred_element_type=jnp.float32)
    h1_k = jnp.maximum(h1_k + b1_ref[...], 0.0)          # Dropout(0.5): identity (eval)
    h1_k = h1_k.astype(jnp.bfloat16)

    # dense2 partial product (this core's column half) over hidden tile k.
    part = jnp.dot(h1_k, w2_ref[...], preferred_element_type=jnp.float32)

    @pl.when(k == 0)
    def _init():
        acc_scr[...] = part                  # direct write: no zero + readback

    @pl.when(k != 0)
    def _accumulate():
        acc_scr[...] += part

    @pl.when(k == pl.num_programs(1) - 1)
    def _epilogue():
        h2 = jnp.maximum(acc_scr[...] + b2_ref[...], 0.0)   # Dropout: identity
        h2 = h2.astype(jnp.bfloat16)
        # dense3 over this core's row-half of W3^T; b3 added in the wrapper
        # after the two partials are summed.
        y = jnp.dot(h2, w3_ref[...], preferred_element_type=jnp.float32)
        o_ref[0] = y.astype(o_ref.dtype)


def _fused_call(m_pad, chw, k1p, ncls_pad):
    assert HIDDEN % TK == 0 and HIDDEN % NCORE == 0
    nk = HIDDEN // TK
    grid_spec = pltpu.PrefetchScalarGridSpec(
        num_scalar_prefetch=0,
        grid=(NCORE, nk),
        in_specs=[
            pl.BlockSpec((m_pad, chw), lambda c, k: (0, 0)),       # x (NCHW-flat)
            pl.BlockSpec((chw, k1p), lambda c, k: (0, 0)),         # pooling matrix
            pl.BlockSpec((k1p, TK), lambda c, k: (0, k)),          # W1^T column tile
            pl.BlockSpec((1, TK), lambda c, k: (0, k)),            # b1 tile
            pl.BlockSpec((TK, HALF), lambda c, k: (k, c)),         # W2^T (row tile, col half)
            pl.BlockSpec((1, HALF), lambda c, k: (0, c)),          # b2 half
            pl.BlockSpec((HALF, ncls_pad), lambda c, k: (c, 0)),   # W3^T row half
        ],
        out_specs=pl.BlockSpec((1, m_pad, ncls_pad), lambda c, k: (c, 0, 0)),
        scratch_shapes=[
            pltpu.VMEM((m_pad, k1p), jnp.bfloat16),   # pooled activations (bf16)
            pltpu.VMEM((m_pad, HALF), jnp.float32),   # dense2 f32 accumulator (half)
        ],
    )
    return pl.pallas_call(
        _vgg2c_kernel,
        out_shape=jax.ShapeDtypeStruct((NCORE, m_pad, ncls_pad), jnp.float32),
        grid_spec=grid_spec,
        compiler_params=pltpu.CompilerParams(
            # outer axis megacore-parallel (v7x), inner axis is the reduction
            dimension_semantics=("parallel", "arbitrary"),
            vmem_limit_bytes=32 * 1024 * 1024,   # explicit limit (v5e default is 16 MiB)
        ),
    )


# ----------------------------------------------------------------------------
# Parameters
# ----------------------------------------------------------------------------
def init_params(key):
    """f32 master parameters, PyTorch nn.Linear default (uniform) init."""
    ks = jax.random.split(key, 6)

    def linear(kw, kb, fan_in, fan_out):
        bound = 1.0 / math.sqrt(fan_in)
        w = jax.random.uniform(kw, (fan_out, fan_in), jnp.float32, -bound, bound)
        b = jax.random.uniform(kb, (fan_out,), jnp.float32, -bound, bound)
        return w, b

    k1 = POOL_HW * POOL_HW * IN_CHANNELS
    W1, b1 = linear(ks[0], ks[1], k1, HIDDEN)
    W2, b2 = linear(ks[2], ks[3], HIDDEN, HIDDEN)
    W3, b3 = linear(ks[4], ks[5], HIDDEN, NUM_CLASSES)
    return (W1, b1, W2, b2, W3, b3)


def prepare_params(params):
    """One-time layout prep: transpose, zero-pad to lane multiples, cast to bf16."""
    W1, b1, W2, b2, W3, b3 = params
    k1 = W1.shape[1]
    k1p = _round_up(k1, LANE)
    ncp = _round_up(NUM_CLASSES, LANE)
    w1t = jnp.zeros((k1p, HIDDEN), jnp.bfloat16).at[:k1, :].set(
        W1.T.astype(jnp.bfloat16))
    w2t = W2.T.astype(jnp.bfloat16)
    w3t = jnp.zeros((HIDDEN, ncp), jnp.bfloat16).at[:, :NUM_CLASSES].set(
        W3.T.astype(jnp.bfloat16))
    b1r = b1.reshape(1, HIDDEN).astype(jnp.float32)
    b2r = b2.reshape(1, HIDDEN).astype(jnp.float32)
    b3r = b3.astype(jnp.float32)              # added in the wrapper (post partial-sum)
    return (w1t, b1r, w2t, b2r, w3t, b3r)


# ----------------------------------------------------------------------------
# Forward (mirrors VGGNet2C.forward, eval mode)
# ----------------------------------------------------------------------------
def vggnet2c_forward(x_nchw, prepared, pool_mat):
    w1t, b1r, w2t, b2r, w3t, b3r = prepared
    N, C, H, W = x_nchw.shape
    chw = C * H * W
    m_pad = _round_up(max(N, BATCH_PAD), BATCH_PAD)
    x_flat = x_nchw.reshape(N, chw).astype(jnp.float32)
    x_pad = jnp.zeros((m_pad, chw), jnp.float32).at[:N, :].set(x_flat)
    call = _fused_call(m_pad, chw, pool_mat.shape[1], w3t.shape[1])
    partial = call(x_pad, pool_mat, w1t, b1r, w2t, b2r, w3t)   # (2, m_pad, ncp)
    logits = (partial[0] + partial[1])[:N, :NUM_CLASSES] + b3r
    return logits


# ----------------------------------------------------------------------------
# Pure-JAX reference (same bf16 cast points as the kernel) for a sanity check
# ----------------------------------------------------------------------------
def reference_forward(x_nchw, params):
    W1, b1, W2, b2, W3, b3 = params
    N, C, H, W = x_nchw.shape
    Ah = jnp.asarray(_adaptive_pool_matrix(H, POOL_HW))
    Aw = jnp.asarray(_adaptive_pool_matrix(W, POOL_HW))
    pooled = jnp.einsum("ih,nchw,jw->ncij", Ah, x_nchw.astype(jnp.float32), Aw)
    h = pooled.reshape(N, -1)
    bf = jnp.bfloat16
    h1 = jnp.maximum(
        jnp.dot(h.astype(bf), W1.T.astype(bf),
                preferred_element_type=jnp.float32) + b1, 0.0)
    h2 = jnp.maximum(
        jnp.dot(h1.astype(bf), W2.T.astype(bf),
                preferred_element_type=jnp.float32) + b2, 0.0)
    return jnp.dot(h2.astype(bf), W3.T.astype(bf),
                   preferred_element_type=jnp.float32) + b3


# ----------------------------------------------------------------------------
# Main
# ----------------------------------------------------------------------------
if __name__ == "__main__":
    key = jax.random.PRNGKey(0)
    kp, kx = jax.random.split(key)

    params = init_params(kp)
    prepared = prepare_params(params)

    x = jax.random.normal(kx, (2, IN_CHANNELS, 16, 16), jnp.float32)  # NCHW
    pool_mat = build_pool_matrix(IN_CHANNELS, 16, 16)

    fwd = jax.jit(vggnet2c_forward)
    out = jax.block_until_ready(fwd(x, prepared, pool_mat))

    assert out.shape == (2, NUM_CLASSES), out.shape
    assert bool(jnp.all(jnp.isfinite(out)))

    ref = reference_forward(x, params)
    max_err = float(jnp.max(jnp.abs(out - ref)))
    assert bool(jnp.allclose(out, ref, rtol=2e-2, atol=2e-2)), max_err

    print("KERNEL_OK")
</pallas_src>

<mosaic_0001>
module attributes {stable_mosaic.version = 11 : i64} {
  func.func @_vgg2c_kernel(%arg0: i32, %arg1: i32, %arg2: memref<16x1024xf32, #tpu.memory_space<vmem>>, %arg3: memref<1024x256xf32, #tpu.memory_space<vmem>>, %arg4: memref<256x1024xbf16, #tpu.memory_space<vmem>>, %arg5: memref<1x1024xf32, #tpu.memory_space<vmem>>, %arg6: memref<1024x2048xbf16, #tpu.memory_space<vmem>>, %arg7: memref<1x2048xf32, #tpu.memory_space<vmem>>, %arg8: memref<2048x128xbf16, #tpu.memory_space<vmem>>, %arg9: memref<1x16x128xf32, #tpu.memory_space<vmem>>, %arg10: memref<16x256xbf16, #tpu.memory_space<vmem>>, %arg11: memref<16x2048xf32, #tpu.memory_space<vmem>>) attributes {dimension_semantics = [#tpu.dimension_semantics<parallel>, #tpu.dimension_semantics<arbitrary>], iteration_bounds = array<i64: 2, 4>, scalar_prefetch = 0 : i64, scratch_operands = 2 : i64, tpu.core_type = #tpu.core_type<tc>, window_params = [{pipeline_mode = #tpu.pipeline_mode<synchronous>, transform_indices = @transform_0, window_bounds = array<i64: 16, 1024>}, {pipeline_mode = #tpu.pipeline_mode<synchronous>, transform_indices = @transform_1, window_bounds = array<i64: 1024, 256>}, {transform_indices = @transform_2, window_bounds = array<i64: 256, 1024>}, {transform_indices = @transform_3, window_bounds = array<i64: 1, 1024>}, {transform_indices = @transform_4, window_bounds = array<i64: 1024, 2048>}, {transform_indices = @transform_5, window_bounds = array<i64: 1, 2048>}, {transform_indices = @transform_6, window_bounds = array<i64: 2048, 128>}, {transform_indices = @transform_7, window_bounds = array<i64: 1, 16, 128>}]} {
    %c0_i32 = arith.constant 0 : i32
    %0 = arith.cmpi eq, %arg1, %c0_i32 : i32
    %1 = arith.extui %0 : i1 to i32
    %c0_i32_0 = arith.constant 0 : i32
    %2 = arith.cmpi ne, %1, %c0_i32_0 : i32
    scf.if %2 {
      %c0_15 = arith.constant 0 : index
      %c0_16 = arith.constant 0 : index
      %23 = vector.load %arg2[%c0_15, %c0_16] : memref<16x1024xf32, #tpu.memory_space<vmem>>, vector<16x1024xf32>
      %c0_17 = arith.constant 0 : index
      %c0_18 = arith.constant 0 : index
      %24 = vector.load %arg3[%c0_17, %c0_18] : memref<1024x256xf32, #tpu.memory_space<vmem>>, vector<1024x256xf32>
      %cst_19 = arith.constant dense<0.000000e+00> : vector<16x256xf32>
      %25 = tpu.matmul %23, %24, %cst_19 {dimension_numbers = #tpu.dot_dimension_numbers<[1], [0], [0], [1], [0, 0, 1, 1], [], []>} : vector<16x1024xf32>, vector<1024x256xf32>, vector<16x256xf32> -> vector<16x256xf32>
      %26 = arith.truncf %25 : vector<16x256xf32> to vector<16x256xbf16>
      %c0_20 = arith.constant 0 : index
      %c0_21 = arith.constant 0 : index
      %27 = vector.load %arg10[%c0_20, %c0_21] : memref<16x256xbf16, #tpu.memory_space<vmem>>, vector<16x256xbf16>
      tpu.vector_store %arg10[%c0_20, %c0_21], %26 {strides = array<i32>} : memref<16x256xbf16, #tpu.memory_space<vmem>>, vector<16x256xbf16>,
    } else {
    }
    %c0 = arith.constant 0 : index
    %c0_1 = arith.constant 0 : index
    %3 = vector.load %arg10[%c0, %c0_1] : memref<16x256xbf16, #tpu.memory_space<vmem>>, vector<16x256xbf16>
    %c0_2 = arith.constant 0 : index
    %c0_3 = arith.constant 0 : index
    %4 = vector.load %arg4[%c0_2, %c0_3] : memref<256x1024xbf16, #tpu.memory_space<vmem>>, vector<256x1024xbf16>
    %cst = arith.constant dense<0.000000e+00> : vector<16x1024xf32>
    %5 = tpu.matmul %3, %4, %cst {dimension_numbers = #tpu.dot_dimension_numbers<[1], [0], [0], [1], [0, 0, 1, 1], [], []>} : vector<16x256xbf16>, vector<256x1024xbf16>, vector<16x1024xf32> -> vector<16x1024xf32>
    %c0_4 = arith.constant 0 : index
    %c0_5 = arith.constant 0 : index
    %6 = vector.load %arg5[%c0_4, %c0_5] : memref<1x1024xf32, #tpu.memory_space<vmem>>, vector<1x1024xf32>
    %7 = vector.broadcast %6 : vector<1x1024xf32> to vector<16x1024xf32>
    %8 = arith.addf %5, %7 : vector<16x1024xf32>
    %cst_6 = arith.constant 0.000000e+00 : f32
    %9 = vector.broadcast %cst_6 : f32 to vector<16x1024xf32>
    %10 = arith.maximumf %8, %9 : vector<16x1024xf32>
    %11 = arith.truncf %10 : vector<16x1024xf32> to vector<16x1024xbf16>
    %c0_7 = arith.constant 0 : index
    %c0_8 = arith.constant 0 : index
    %12 = vector.load %arg6[%c0_7, %c0_8] : memref<1024x2048xbf16, #tpu.memory_space<vmem>>, vector<1024x2048xbf16>
    %cst_9 = arith.constant dense<0.000000e+00> : vector<16x2048xf32>
    %13 = tpu.matmul %11, %12, %cst_9 {dimension_numbers = #tpu.dot_dimension_numbers<[1], [0], [0], [1], [0, 0, 1, 1], [], []>} : vector<16x1024xbf16>, vector<1024x2048xbf16>, vector<16x2048xf32> -> vector<16x2048xf32>
    %c0_i32_10 = arith.constant 0 : i32
    %14 = arith.cmpi eq, %arg1, %c0_i32_10 : i32
    %15 = arith.extui %14 : i1 to i32
    %c0_i32_11 = arith.constant 0 : i32
    %16 = arith.cmpi ne, %15, %c0_i32_11 : i32
    scf.if %16 {
      %c0_15 = arith.constant 0 : index
      %c0_16 = arith.constant 0 : index
      %23 = vector.load %arg11[%c0_15, %c0_16] : memref<16x2048xf32, #tpu.memory_space<vmem>>, vector<16x2048xf32>
      tpu.vector_store %arg11[%c0_15, %c0_16], %13 {strides = array<i32>} : memref<16x2048xf32, #tpu.memory_space<vmem>>, vector<16x2048xf32>,
    } else {
    }
    %c0_i32_12 = arith.constant 0 : i32
    %17 = arith.cmpi ne, %arg1, %c0_i32_12 : i32
    %18 = arith.extui %17 : i1 to i32
    %c0_i32_13 = arith.constant 0 : i32
    %19 = arith.cmpi ne, %18, %c0_i32_13 : i32
    scf.if %19 {
      %c0_15 = arith.constant 0 : index
      %c0_16 = arith.constant 0 : index
      %23 = vector.load %arg11[%c0_15, %c0_16] : memref<16x2048xf32, #tpu.memory_space<vmem>>, vector<16x2048xf32>
      %24 = arith.addf %23, %13 : vector<16x2048xf32>
      %c0_17 = arith.constant 0 : index
      %c0_18 = arith.constant 0 : index
      %25 = vector.load %arg11[%c0_17, %c0_18] : memref<16x2048xf32, #tpu.memory_space<vmem>>, vector<16x2048xf32>
      tpu.vector_store %arg11[%c0_17, %c0_18], %24 {strides = array<i32>} : memref<16x2048xf32, #tpu.memory_space<vmem>>, vector<16x2048xf32>,
    } else {
    }
    %c3_i32 = arith.constant 3 : i32
    %20 = arith.cmpi eq, %arg1, %c3_i32 : i32
    %21 = arith.extui %20 : i1 to i32
    %c0_i32_14 = arith.constant 0 : i32
    %22 = arith.cmpi ne, %21, %c0_i32_14 : i32
    scf.if %22 {
      %c0_15 = arith.constant 0 : index
      %c0_16 = arith.constant 0 : index
      %23 = vector.load %arg11[%c0_15, %c0_16] : memref<16x2048xf32, #tpu.memory_space<vmem>>, vector<16x2048xf32>
      %c0_17 = arith.constant 0 : index
      %c0_18 = arith.constant 0 : index
      %24 = vector.load %arg7[%c0_17, %c0_18] : memref<1x2048xf32, #tpu.memory_space<vmem>>, vector<1x2048xf32>
      %25 = vector.broadcast %24 : vector<1x2048xf32> to vector<16x2048xf32>
      %26 = arith.addf %23, %25 : vector<16x2048xf32>
      %cst_19 = arith.constant 0.000000e+00 : f32
      %27 = vector.broadcast %cst_19 : f32 to vector<16x2048xf32>
      %28 = arith.maximumf %26, %27 : vector<16x2048xf32>
      %29 = arith.truncf %28 : vector<16x2048xf32> to vector<16x2048xbf16>
      %c0_20 = arith.constant 0 : index
      %c0_21 = arith.constant 0 : index
      %30 = vector.load %arg8[%c0_20, %c0_21] : memref<2048x128xbf16, #tpu.memory_space<vmem>>, vector<2048x128xbf16>
      %cst_22 = arith.constant dense<0.000000e+00> : vector<16x128xf32>
      %31 = tpu.matmul %29, %30, %cst_22 {dimension_numbers = #tpu.dot_dimension_numbers<[1], [0], [0], [1], [0, 0, 1, 1], [], []>} : vector<16x2048xbf16>, vector<2048x128xbf16>, vector<16x128xf32> -> vector<16x128xf32>
      %c0_23 = arith.constant 0 : index
      %c0_24 = arith.constant 0 : index
      %c0_25 = arith.constant 0 : index
      %32 = vector.load %arg9[%c0_23, %c0_24, %c0_25] : memref<1x16x128xf32, #tpu.memory_space<vmem>>, vector<1x16x128xf32>
      %33 = vector.shape_cast %32 : vector<1x16x128xf32> to vector<16x128xf32>
      %34 = vector.shape_cast %31 : vector<16x128xf32> to vector<1x16x128xf32>
      tpu.vector_store %arg9[%c0_23, %c0_24, %c0_25], %34 {strides = array<i32>} : memref<1x16x128xf32, #tpu.memory_space<vmem>>, vector<1x16x128xf32>,
    } else {
    }
    return
  }
  func.func @transform_0(%arg0: i32, %arg1: i32) -> (i32, i32) {
    %c0_i32 = arith.constant 0 : i32
    %c0_i32_0 = arith.constant 0 : i32
    %c0_i32_1 = arith.constant 0 : i32
    return %c0_i32, %c0_i32_0 : i32, i32
  }
  func.func @transform_1(%arg0: i32, %arg1: i32) -> (i32, i32) {
    %c0_i32 = arith.constant 0 : i32
    %c0_i32_0 = arith.constant 0 : i32
    %c0_i32_1 = arith.constant 0 : i32
    return %c0_i32, %c0_i32_0 : i32, i32
  }
  func.func @transform_2(%arg0: i32, %arg1: i32) -> (i32, i32) {
    %c0_i32 = arith.constant 0 : i32
    %c0_i32_0 = arith.constant 0 : i32
    return %c0_i32, %arg1 : i32, i32
  }
  func.func @transform_3(%arg0: i32, %arg1: i32) -> (i32, i32) {
    %c0_i32 = arith.constant 0 : i32
    %c0_i32_0 = arith.constant 0 : i32
    return %c0_i32, %arg1 : i32, i32
  }
  func.func @transform_4(%arg0: i32, %arg1: i32) -> (i32, i32) {
    %c0_i32 = arith.constant 0 : i32
    return %arg1, %arg0 : i32, i32
  }
  func.func @transform_5(%arg0: i32, %arg1: i32) -> (i32, i32) {
    %c0_i32 = arith.constant 0 : i32
    %c0_i32_0 = arith.constant 0 : i32
    return %c0_i32, %arg0 : i32, i32
  }
  func.func @transform_6(%arg0: i32, %arg1: i32) -> (i32, i32) {
    %c0_i32 = arith.constant 0 : i32
    %c0_i32_0 = arith.constant 0 : i32
    return %arg0, %c0_i32 : i32, i32
  }
  func.func @transform_7(%arg0: i32, %arg1: i32) -> (i32, i32, i32) {
    %c0_i32 = arith.constant 0 : i32
    %c0_i32_0 = arith.constant 0 : i32
    %c0_i32_1 = arith.constant 0 : i32
    return %arg0, %c0_i32, %c0_i32_0 : i32, i32, i32
  }
}

</mosaic_0001>

<llo_original>
// kernel: vggnet2c_forward.1
$region0: #{vggnet2c_forward.1}
  #allocation0 [shape = 'u32[]', space=smem, size = 0x4, offset = 0x4, fixed_abs, tag = 'smem constant byte address 0x4 - core index']
  #allocation1 [shape = 'u32[144,128]{1,0:T(1,128)}', space=vmem, size = 0x12000, scoped, tag = 'internal scratch']
  #allocation2 [shape = 'bf16[16,256]{1,0:T(16,128)(2,1)}', space=vmem, size = 0x2000, scoped, tag = 'scratch operand']
  #allocation3 [shape = 'f32[16,2048]{1,0:T(8,128)}', space=vmem, size = 0x20000, scoped, tag = 'scratch operand']
  %s0 = inlined_call_operand.vmem [shape: f32[16,1024], index: 0, kind: input, shape index: {}]
  %s1 = inlined_call_operand.hbm [shape: f32[1024,256], index: 1, kind: input, shape index: {}]
  %s2 = inlined_call_operand.hbm [shape: bf16[256,4096], index: 2, kind: input, shape index: {}]
  %s3 = inlined_call_operand.hbm [shape: f32[1,4096], index: 3, kind: input, shape index: {}]
  %s4 = inlined_call_operand.hbm [shape: bf16[4096,4096], index: 4, kind: input, shape index: {}]
  %s5 = inlined_call_operand.hbm [shape: f32[1,4096], index: 5, kind: input, shape index: {}]
  %s6 = inlined_call_operand.hbm [shape: bf16[4096,128], index: 6, kind: input, shape index: {}]
  %s7 = inlined_call_operand.vmem [shape: f32[2,16,128], index: 7, kind: output, shape index: {}]
  %s8 = sld [smem:[#allocation0]]
  $region101: #{vggnet2c_forward.1} parent=0
    _
  %s10 = ssub.s32 1, %s8
  %s11 = scalar_select 0, %s10, %s8
  $region1: #{vggnet2c_forward.1} parent=0
    #allocation4 [shape = 'u8[1048576]{0}', space=vmem, size = 0x100000, scoped, tag = 'input window, operand 1, single buffered']
    #allocation5 [shape = 's32[2]{0}', space=sflag, size = 0x8, scoped, tag = 'scoped memory for vggnet2c_forward.1']
    #allocation6 [shape = 'u8[1048576]{0}', space=vmem, size = 0x100000, scoped, tag = 'input window, operand 2']
    #allocation7 [shape = 's32[2]{0}', space=sflag, size = 0x8, scoped, tag = 'scoped memory for vggnet2c_forward.1']
    #allocation8 [shape = 'u8[8192]{0}', space=vmem, size = 0x2000, scoped, tag = 'input window, operand 3']
    #allocation9 [shape = 'u8[8388608]{0}', space=vmem, size = 0x800000, scoped, tag = 'input window, operand 4']
    #allocation10 [shape = 's32[2]{0}', space=sflag, size = 0x8, scoped, tag = 'scoped memory for vggnet2c_forward.1']
    #allocation11 [shape = 'u8[16384]{0}', space=vmem, size = 0x4000, scoped, tag = 'input window, operand 5']
    #allocation12 [shape = 'u8[1048576]{0}', space=vmem, size = 0x100000, scoped, tag = 'input window, operand 6']
    #allocation13 [shape = 's32[2]{0}', space=sflag, size = 0x8, scoped, tag = 'scoped memory for vggnet2c_forward.1']
    %12 = vsyncpa [#allocation5], 0
    %13 = vsyncpa [#allocation7], 0
    %s14 = scalar_lea.sflag [#allocation7], 1
    %15 = vsyncpa %s14, 0
    %16 = vsyncpa [#allocation10], 0
    %s17 = scalar_lea.sflag [#allocation10], 1
    %18 = vsyncpa %s17, 0
    %19 = vsyncpa [#allocation13], 0
    %s20 = scalar_lea.sflag [#allocation13], 1
    %21 = vsyncpa %s20, 0
    loop: start=0, step=1, limit=10
    $region2: #{vggnet2c_forward.1} parent=1 // loop_pre_header
      _
    $region3: #{vggnet2c_forward.1} parent=1 // loop_header
      %s23 = sphi 0, %s27
      %p24 = scmp.ge.s32.totalorder %s23, 10
      %s30 = sphi 0, %s42
      %s31 = sphi 0, %s38
      %s32 = sphi 0, %s30
      %s33 = sphi 0, %s31
      %s34 = sphi 0, %s32
      %s35 = sphi 0, %s33
      %s43 = sphi 0, %s43
      %s45 = sphi 0, %s43
      %s46 = sphi 0, %s45
      %s60 = sphi 0, %s46
      %s64 = sphi 0, %s64
      %s66 = sphi 0, %s64
      %s67 = sphi 0, %s66
      %s81 = sphi 0, %s67
      %s87 = sphi 0, %s89
      %s90 = sphi 0, %s87
      %s91 = sphi 0, %s90
      %s107 = sphi 0, %s91
      %s113 = sphi 0, %s115
      %s116 = sphi 0, %s113
      %s117 = sphi 0, %s116
      %s133 = sphi 0, %s117
      %s141 = sphi 0, %s143
      %s144 = sphi 0, %s141
      %s145 = sphi 0, %s144
      %s161 = sphi 0, %s145
      %s167 = sphi 0, %s169
      %s170 = sphi 0, %s167
      %s171 = sphi 0, %s170
      %s187 = sphi 0, %s171
      %s193 = sphi 0, %s195
      %s196 = sphi 0, %s193
      %s197 = sphi 0, %s196
      %s213 = sphi 0, %s197
      %s219 = sphi 0, %s221
      %s222 = sphi 0, %s219
      %s223 = sphi 0, %s222
      %s239 = sphi 0, %s223
    $region4: #{vggnet2c_forward.1} parent=1 // loop_header_branch
      %26 = sbr.rel (%p24) target = $region8
    $region5: #{vggnet2c_forward.1} parent=1 // loop_body
      %s28 = ssub.s32 %s23, 1
      %s29 = ssub.s32 %s23, 2
      %s36 = sadd.s32 1, %s31
      %p37 = scmp.ge.s32.totalorder %s36, 4
      %s38 = scalar_select %p37, 0, %s36
      %s39 = sadd.s32 1, %s30
      %s40 = scalar_select %p37, %s39, %s30
      %p41 = scmp.ge.s32.totalorder %s40, 2
      %s42 = scalar_select %p41, 0, %s40
      %s44 = sadd.s32 %s43, 1
      %p47 = scmp.eq.s32.totalorder %s23, 7
      %p48 = scmp.ne.s32.totalorder %s43, %s45
      %p49 = scmp.eq.s32.totalorder %s23, 0
      %p50 = por %p48, %p49
      %p51 = scmp.ne.s32.totalorder %s43, %s45
      %p52 = scmp.eq.s32.totalorder %s28, 7
      %p53 = por %p51, %p52
      %p54 = scmp.ne.s32.totalorder %s45, %s46
      %p55 = scmp.eq.s32.totalorder %s28, 0
      %p56 = por %p54, %p55
      %p57 = scmp.ne.s32.totalorder %s45, %s46
      %p58 = scmp.eq.s32.totalorder %s29, 7
      %p59 = por %p57, %p58
      %p61 = scmp.ne.s32.totalorder %s46, %s60
      %p62 = scmp.eq.s32.totalorder %s29, 0
      %p63 = por %p61, %p62
      %s65 = sadd.s32 %s64, 1
      %p68 = scmp.eq.s32.totalorder %s23, 7
      %p69 = scmp.ne.s32.totalorder %s64, %s66
      %p70 = scmp.eq.s32.totalorder %s23, 0
      %p71 = por %p69, %p70
      %p72 = scmp.ne.s32.totalorder %s64, %s66
      %p73 = scmp.eq.s32.totalorder %s28, 7
      %p74 = por %p72, %p73
      %p75 = scmp.ne.s32.totalorder %s66, %s67
      %p76 = scmp.eq.s32.totalorder %s28, 0
      %p77 = por %p75, %p76
      %p78 = scmp.ne.s32.totalorder %s66, %s67
      %p79 = scmp.eq.s32.totalorder %s29, 7
      %p80 = por %p78, %p79
      %p82 = scmp.ne.s32.totalorder %s67, %s81
      %p83 = scmp.eq.s32.totalorder %s29, 0
      %p84 = por %p82, %p83
      %s85 = ssub.s32 %s31, %s38
      %p86 = scmp.eq.s32.totalorder %s85, 0
      %s88 = sadd.s32 %s87, 1
      %s89 = scalar_select %p86, %s87, %s88
      %p92 = pneg %p86
      %p93 = scmp.eq.s32.totalorder %s23, 7
      %p94 = por %p92, %p93
      %p95 = scmp.ne.s32.totalorder %s87, %s90
      %p96 = scmp.eq.s32.totalorder %s23, 0
      %p97 = por %p95, %p96
      %p98 = scmp.ne.s32.totalorder %s87, %s90
      %p99 = scmp.eq.s32.totalorder %s28, 7
      %p100 = por %p98, %p99
      %p101 = scmp.ne.s32.totalorder %s90, %s91
      %p102 = scmp.eq.s32.totalorder %s28, 0
      %p103 = por %p101, %p102
      %p104 = scmp.ne.s32.totalorder %s90, %s91
      %p105 = scmp.eq.s32.totalorder %s29, 7
      %p106 = por %p104, %p105
      %p108 = scmp.ne.s32.totalorder %s91, %s107
      %p109 = scmp.eq.s32.totalorder %s29, 0
      %p110 = por %p108, %p109
      %s111 = ssub.s32 %s31, %s38
      %p112 = scmp.eq.s32.totalorder %s111, 0
      %s114 = sadd.s32 %s113, 1
      %s115 = scalar_select %p112, %s113, %s114
      %p118 = pneg %p112
      %p119 = scmp.eq.s32.totalorder %s23, 7
      %p120 = por %p118, %p119
      %p121 = scmp.ne.s32.totalorder %s113, %s116
      %p122 = scmp.eq.s32.totalorder %s23, 0
      %p123 = por %p121, %p122
      %p124 = scmp.ne.s32.totalorder %s113, %s116
      %p125 = scmp.eq.s32.totalorder %s28, 7
      %p126 = por %p124, %p125
      %p127 = scmp.ne.s32.totalorder %s116, %s117
      %p128 = scmp.eq.s32.totalorder %s28, 0
      %p129 = por %p127, %p128
      %p130 = scmp.ne.s32.totalorder %s116, %s117
      %p131 = scmp.eq.s32.totalorder %s29, 7
      %p132 = por %p130, %p131
      %p134 = scmp.ne.s32.totalorder %s117, %s133
      %p135 = scmp.eq.s32.totalorder %s29, 0
      %p136 = por %p134, %p135
      %s137 = ssub.s32 %s31, %s38
      %s138 = ssub.s32 %s30, %s42
      %s139 = sor.u32 %s137, %s138
      %p140 = scmp.eq.s32.totalorder %s139, 0
      %s142 = sadd.s32 %s141, 1
      %s143 = scalar_select %p140, %s141, %s142
      %p146 = pneg %p140
      %p147 = scmp.eq.s32.totalorder %s23, 7
      %p148 = por %p146, %p147
      %p149 = scmp.ne.s32.totalorder %s141, %s144
      %p150 = scmp.eq.s32.totalorder %s23, 0
      %p151 = por %p149, %p150
      %p152 = scmp.ne.s32.totalorder %s141, %s144
      %p153 = scmp.eq.s32.totalorder %s28, 7
      %p154 = por %p152, %p153
      %p155 = scmp.ne.s32.totalorder %s144, %s145
      %p156 = scmp.eq.s32.totalorder %s28, 0
      %p157 = por %p155, %p156
      %p158 = scmp.ne.s32.totalorder %s144, %s145
      %p159 = scmp.eq.s32.totalorder %s29, 7
      %p160 = por %p158, %p159
      %p162 = scmp.ne.s32.totalorder %s145, %s161
      %p163 = scmp.eq.s32.totalorder %s29, 0
      %p164 = por %p162, %p163
      %s165 = ssub.s32 %s30, %s42
      %p166 = scmp.eq.s32.totalorder %s165, 0
      %s168 = sadd.s32 %s167, 1
      %s169 = scalar_select %p166, %s167, %s168
      %p172 = pneg %p166
      %p173 = scmp.eq.s32.totalorder %s23, 7
      %p174 = por %p172, %p173
      %p175 = scmp.ne.s32.totalorder %s167, %s170
      %p176 = scmp.eq.s32.totalorder %s23, 0
      %p177 = por %p175, %p176
      %p178 = scmp.ne.s32.totalorder %s167, %s170
      %p179 = scmp.eq.s32.totalorder %s28, 7
      %p180 = por %p178, %p179
      %p181 = scmp.ne.s32.totalorder %s170, %s171
      %p182 = scmp.eq.s32.totalorder %s28, 0
      %p183 = por %p181, %p182
      %p184 = scmp.ne.s32.totalorder %s170, %s171
      %p185 = scmp.eq.s32.totalorder %s29, 7
      %p186 = por %p184, %p185
      %p188 = scmp.ne.s32.totalorder %s171, %s187
      %p189 = scmp.eq.s32.totalorder %s29, 0
      %p190 = por %p188, %p189
      %s191 = ssub.s32 %s30, %s42
      %p192 = scmp.eq.s32.totalorder %s191, 0
      %s194 = sadd.s32 %s193, 1
      %s195 = scalar_select %p192, %s193, %s194
      %p198 = pneg %p192
      %p199 = scmp.eq.s32.totalorder %s23, 7
      %p200 = por %p198, %p199
      %p201 = scmp.ne.s32.totalorder %s193, %s196
      %p202 = scmp.eq.s32.totalorder %s23, 0
      %p203 = por %p201, %p202
      %p204 = scmp.ne.s32.totalorder %s193, %s196
      %p205 = scmp.eq.s32.totalorder %s28, 7
      %p206 = por %p204, %p205
      %p207 = scmp.ne.s32.totalorder %s196, %s197
      %p208 = scmp.eq.s32.totalorder %s28, 0
      %p209 = por %p207, %p208
      %p210 = scmp.ne.s32.totalorder %s196, %s197
      %p211 = scmp.eq.s32.totalorder %s29, 7
      %p212 = por %p210, %p211
      %p214 = scmp.ne.s32.totalorder %s197, %s213
      %p215 = scmp.eq.s32.totalorder %s29, 0
      %p216 = por %p214, %p215
      %s217 = ssub.s32 %s30, %s42
      %p218 = scmp.eq.s32.totalorder %s217, 0
      %s220 = sadd.s32 %s219, 1
      %s221 = scalar_select %p218, %s219, %s220
      %p224 = pneg %p218
      %p225 = scmp.eq.s32.totalorder %s23, 7
      %p226 = por %p224, %p225
      %p227 = scmp.ne.s32.totalorder %s219, %s222
      %p228 = scmp.eq.s32.totalorder %s23, 0
      %p229 = por %p227, %p228
      %p230 = scmp.ne.s32.totalorder %s219, %s222
      %p231 = scmp.eq.s32.totalorder %s28, 7
      %p232 = por %p230, %p231
      %p233 = scmp.ne.s32.totalorder %s222, %s223
      %p234 = scmp.eq.s32.totalorder %s28, 0
      %p235 = por %p233, %p234
      %p236 = scmp.ne.s32.totalorder %s222, %s223
      %p237 = scmp.eq.s32.totalorder %s29, 7
      %p238 = por %p236, %p237
      %p240 = scmp.ne.s32.totalorder %s223, %s239
      %p241 = scmp.eq.s32.totalorder %s29, 0
      %p242 = por %p240, %p241
      %p243 = scmp.le.s32.totalorder 1, %s23
      %p244 = scmp.lt.s32.totalorder %s23, 9
      %p245 = pnand %p243, %p244
      %p246 = pneg %p245
      // Predicated region
      $region9: #{vggnet2c_forward.1} parent=5 // pred_check
        _
      $region10: #{vggnet2c_forward.1} parent=5 // pred_check_branch
        %248 = sbr.rel (%p245) target = $region12
      $region11: #{vggnet2c_forward.1} parent=5 // pred_region
        %s249 = ssub.s32 %s23, 1
        // Predicated region
        $region13: #{vggnet2c_forward.1} parent=11 // pred_check
          %p250 = pneg %p56
        $region14: #{vggnet2c_forward.1} parent=11 // pred_check_branch
          %252 = sbr.rel (%p250) target = $region16
        $region15: #{vggnet2c_forward.1} parent=11 // pred_region
          _
        $region16: #{vggnet2c_forward.1} parent=11 // pred_fallthru
          _
        // Predicated region
        $region17: #{vggnet2c_forward.1} parent=11 // pred_check
          %p253 = pneg %p77
        $region18: #{vggnet2c_forward.1} parent=11 // pred_check_branch
          %255 = sbr.rel (%p253) target = $region20
        $region19: #{vggnet2c_forward.1} parent=11 // pred_region
          %s257 = ssub.s32 32768, 32768
          %258 = vsyncadd [#allocation5], %s257
          %s259 = sshll.u32 [#allocation4], 4
          %s260 = int_to_ptr.vmem [resolvable:$true] %s259
          %265 = dma.hbm_to_vmem [thread:$0]  %s1, 32768, %s260, [#allocation5], 256, 256, 16
        $region20: #{vggnet2c_forward.1} parent=11 // pred_fallthru
          _
      $region12: #{vggnet2c_forward.1} parent=5 // pred_fallthru
        _
      %p266 = scmp.lt.s32.totalorder %s23, 8
      // Predicated region
      $region21: #{vggnet2c_forward.1} parent=5 // pred_check
        %p267 = pneg %p266
      $region22: #{vggnet2c_forward.1} parent=5 // pred_check_branch
        %269 = sbr.rel (%p267) target = $region24
      $region23: #{vggnet2c_forward.1} parent=5 // pred_region
        // Predicated region
        $region25: #{vggnet2c_forward.1} parent=23 // pred_check
          %p270 = pneg %p97
        $region26: #{vggnet2c_forward.1} parent=23 // pred_check_branch
          %272 = sbr.rel (%p270) target = $region28
        $region27: #{vggnet2c_forward.1} parent=23 // pred_region
          %s273 = sand.u32 %s23, 1
          %s274 = scalar_lea.sflag [#allocation7], %s273
          %s275 = sand.u32 %s87, 1
          %s276 = smul.addr %s275, 1024
          %s277 = scalar_lea.vmem [#allocation6], %s276
          %s278 = smul.u32 8, %s31
          %s280 = ssub.s32 16384, 16384
          %281 = vsyncadd %s274, %s280
          %s282 = smul.addr %s278, 64
          %s283 = scalar_lea.hbm %s2, %s282
          %s284 = sshll.u32 %s277, 4
          %s285 = int_to_ptr.vmem [resolvable:$true] %s284
          %290 = dma.hbm_to_vmem [thread:$0]  %s283, 16384, %s285, %s274, 2048, 512, 32
        $region28: #{vggnet2c_forward.1} parent=23 // pred_fallthru
          _
        // Predicated region
        $region29: #{vggnet2c_forward.1} parent=23 // pred_check
          %p291 = pneg %p123
        $region30: #{vggnet2c_forward.1} parent=23 // pred_check_branch
          %293 = sbr.rel (%p291) target = $region32
        $region31: #{vggnet2c_forward.1} parent=23 // pred_region
          %s294 = sand.u32 %s23, 1
          %s295 = scalar_lea.sflag [#allocation7], %s294
          %s296 = sand.u32 %s113, 1
          %s297 = smul.addr %s296, 8
          %s298 = scalar_lea.vmem [#allocation8], %s297
          %s299 = smul.u32 8, %s31
          %s301 = ssub.s32 128, 128
          %302 = vsyncadd %s295, %s301
          %s303 = smul.addr %s299, 16
          %s304 = scalar_lea.hbm %s3, %s303
          %s306 = sshll.u32 %s298, 4
          %s307 = int_to_ptr.vmem [resolvable:$true] %s306
          %309 = dma.hbm_to_vmem [thread:$0]  %s304, 128, %s307, %s295
        $region32: #{vggnet2c_forward.1} parent=23 // pred_fallthru
          _
        // Predicated region
        $region33: #{vggnet2c_forward.1} parent=23 // pred_check
          %p310 = pneg %p151
        $region34: #{vggnet2c_forward.1} parent=23 // pred_check_branch
          %312 = sbr.rel (%p310) target = $region36
        $region35: #{vggnet2c_forward.1} parent=23 // pred_region
          %s313 = sand.u32 %s23, 1
          %s314 = scalar_lea.sflag [#allocation10], %s313
          %s315 = sand.u32 %s141, 1
          %s316 = smul.addr %s315, 8192
          %s317 = scalar_lea.vmem [#allocation9], %s316
          %s318 = smul.u32 128, %s31
          %s319 = smul.u32 16, %s30
          %s321 = ssub.s32 131072, 131072
          %322 = vsyncadd %s314, %s321
          %s323 = smul.addr %s318, 32
          %s324 = sadd.s32 %s319, %s323
          %s325 = smul.addr %s324, 64
          %s326 = scalar_lea.hbm %s4, %s325
          %s327 = sshll.u32 %s317, 4
          %s328 = int_to_ptr.vmem [resolvable:$true] %s327
          %333 = dma.hbm_to_vmem [thread:$0]  %s326, 131072, %s328, %s314, 2048, 1024, 64
        $region36: #{vggnet2c_forward.1} parent=23 // pred_fallthru
          _
        // Predicated region
        $region37: #{vggnet2c_forward.1} parent=23 // pred_check
          %p334 = pneg %p177
        $region38: #{vggnet2c_forward.1} parent=23 // pred_check_branch
          %336 = sbr.rel (%p334) target = $region40
        $region39: #{vggnet2c_forward.1} parent=23 // pred_region
          %s337 = sand.u32 %s23, 1
          %s338 = scalar_lea.sflag [#allocation10], %s337
          %s339 = sand.u32 %s167, 1
          %s340 = smul.addr %s339, 16
          %s341 = scalar_lea.vmem [#allocation11], %s340
          %s342 = smul.u32 16, %s30
          %s344 = ssub.s32 256, 256
          %345 = vsyncadd %s338, %s344
          %s346 = smul.addr %s342, 16
          %s347 = scalar_lea.hbm %s5, %s346
          %s349 = sshll.u32 %s341, 4
          %s350 = int_to_ptr.vmem [resolvable:$true] %s349
          %352 = dma.hbm_to_vmem [thread:$0]  %s347, 256, %s350, %s338
        $region40: #{vggnet2c_forward.1} parent=23 // pred_fallthru
          _
        // Predicated region
        $region41: #{vggnet2c_forward.1} parent=23 // pred_check
          %p353 = pneg %p203
        $region42: #{vggnet2c_forward.1} parent=23 // pred_check_branch
          %355 = sbr.rel (%p353) target = $region44
        $region43: #{vggnet2c_forward.1} parent=23 // pred_region
          %s356 = sand.u32 %s193, 1
          %s357 = scalar_lea.sflag [#allocation13], %s356
          %s358 = sand.u32 %s193, 1
          %s359 = smul.addr %s358, 1024
          %s360 = scalar_lea.vmem [#allocation12], %s359
          %s361 = smul.u32 256, %s30
          %s363 = ssub.s32 16384, 16384
          %364 = vsyncadd %s357, %s363
          %s365 = smul.addr %s361, 64
          %s366 = scalar_lea.hbm %s6, %s365
          %s367 = sshll.u32 %s360, 4
          %s368 = int_to_ptr.vmem [resolvable:$true] %s367
          %373 = dma.hbm_to_vmem [thread:$0]  %s366, 16384, %s368, %s357, 64, 64, 4
        $region44: #{vggnet2c_forward.1} parent=23 // pred_fallthru
          _
      $region24: #{vggnet2c_forward.1} parent=5 // pred_fallthru
        _
      %p374 = scmp.le.s32.totalorder 1, %s23
      %p375 = scmp.lt.s32.totalorder %s23, 9
      %p376 = pnand %p374, %p375
      %p377 = pneg %p376
      // Predicated region
      $region45: #{vggnet2c_forward.1} parent=5 // pred_check
        _
      $region46: #{vggnet2c_forward.1} parent=5 // pred_check_branch
        %379 = sbr.rel (%p376) target = $region48
      $region47: #{vggnet2c_forward.1} parent=5 // pred_region
        %s380 = ssub.s32 %s23, 1
        // Predicated region
        $region49: #{vggnet2c_forward.1} parent=47 // pred_check
          %p381 = pneg %p77
        $region50: #{vggnet2c_forward.1} parent=47 // pred_check_branch
          %383 = sbr.rel (%p381) target = $region52
        $region51: #{vggnet2c_forward.1} parent=47 // pred_region
          %384 = dma.done [#allocation5], 32768
        $region52: #{vggnet2c_forward.1} parent=47 // pred_fallthru
          _
        %s385 = sand.u32 %s28, 1
        %s386 = scalar_lea.sflag [#allocation7], %s385
        %s387 = sand.u32 %s90, 1
        %s388 = smul.addr %s387, 1024
        %s389 = scalar_lea.vmem [#allocation6], %s388
        // Predicated region
        $region53: #{vggnet2c_forward.1} parent=47 // pred_check
          %p390 = pneg %p103
        $region54: #{vggnet2c_forward.1} parent=47 // pred_check_branch
          %392 = sbr.rel (%p390) target = $region56
        $region55: #{vggnet2c_forward.1} parent=47 // pred_region
          %393 = dma.done %s386, 16384
        $region56: #{vggnet2c_forward.1} parent=47 // pred_fallthru
          _
        %s394 = sand.u32 %s28, 1
        %s395 = scalar_lea.sflag [#allocation7], %s394
        %s396 = sand.u32 %s116, 1
        %s397 = smul.addr %s396, 8
        %s398 = scalar_lea.vmem [#allocation8], %s397
        // Predicated region
        $region57: #{vggnet2c_forward.1} parent=47 // pred_check
          %p399 = pneg %p129
        $region58: #{vggnet2c_forward.1} parent=47 // pred_check_branch
          %401 = sbr.rel (%p399) target = $region60
        $region59: #{vggnet2c_forward.1} parent=47 // pred_region
          %402 = dma.done %s395, 128
        $region60: #{vggnet2c_forward.1} parent=47 // pred_fallthru
          _
        %s403 = sand.u32 %s28, 1
        %s404 = scalar_lea.sflag [#allocation10], %s403
        %s405 = sand.u32 %s144, 1
        %s406 = smul.addr %s405, 8192
        %s407 = scalar_lea.vmem [#allocation9], %s406
        // Predicated region
        $region61: #{vggnet2c_forward.1} parent=47 // pred_check
          %p408 = pneg %p157
        $region62: #{vggnet2c_forward.1} parent=47 // pred_check_branch
          %410 = sbr.rel (%p408) target = $region64
        $region63: #{vggnet2c_forward.1} parent=47 // pred_region
          %411 = dma.done %s404, 131072
        $region64: #{vggnet2c_forward.1} parent=47 // pred_fallthru
          _
        %s412 = sand.u32 %s28, 1
        %s413 = scalar_lea.sflag [#allocation10], %s412
        %s414 = sand.u32 %s170, 1
        %s415 = smul.addr %s414, 16
        %s416 = scalar_lea.vmem [#allocation11], %s415
        // Predicated region
        $region65: #{vggnet2c_forward.1} parent=47 // pred_check
          %p417 = pneg %p183
        $region66: #{vggnet2c_forward.1} parent=47 // pred_check_branch
          %419 = sbr.rel (%p417) target = $region68
        $region67: #{vggnet2c_forward.1} parent=47 // pred_region
          %420 = dma.done %s413, 256
        $region68: #{vggnet2c_forward.1} parent=47 // pred_fallthru
          _
        %s421 = sand.u32 %s196, 1
        %s422 = scalar_lea.sflag [#allocation13], %s421
        %s423 = sand.u32 %s196, 1
        %s424 = smul.addr %s423, 1024
        %s425 = scalar_lea.vmem [#allocation12], %s424
        // Predicated region
        $region69: #{vggnet2c_forward.1} parent=47 // pred_check
          %p426 = pneg %p209
        $region70: #{vggnet2c_forward.1} parent=47 // pred_check_branch
          %428 = sbr.rel (%p426) target = $region72
        $region71: #{vggnet2c_forward.1} parent=47 // pred_region
          %429 = dma.done %s422, 16384
        $region72: #{vggnet2c_forward.1} parent=47 // pred_fallthru
          _
        %p430 = pneg %p56
        %p431 = pneg %p53
        %p432 = pneg %p77
        %p433 = pneg %p74
        %s434 = sand.u32 %s28, 1
        %s435 = scalar_lea.sflag [#allocation7], %s434
        %s436 = sand.u32 %s90, 1
        %s437 = smul.addr %s436, 1024
        %s438 = scalar_lea.vmem [#allocation6], %s437
        %p439 = pneg %p103
        %p440 = pneg %p100
        %s441 = sand.u32 %s28, 1
        %s442 = scalar_lea.sflag [#allocation7], %s441
        %s443 = sand.u32 %s116, 1
        %s444 = smul.addr %s443, 8
        %s445 = scalar_lea.vmem [#allocation8], %s444
        %p446 = pneg %p129
        %p447 = pneg %p126
        %s448 = sand.u32 %s28, 1
        %s449 = scalar_lea.sflag [#allocation10], %s448
        %s450 = sand.u32 %s144, 1
        %s451 = smul.addr %s450, 8192
        %s452 = scalar_lea.vmem [#allocation9], %s451
        %p453 = pneg %p157
        %p454 = pneg %p154
        %s455 = sand.u32 %s28, 1
        %s456 = scalar_lea.sflag [#allocation10], %s455
        %s457 = sand.u32 %s170, 1
        %s458 = smul.addr %s457, 16
        %s459 = scalar_lea.vmem [#allocation11], %s458
        %p460 = pneg %p183
        %p461 = pneg %p180
        %s462 = sand.u32 %s196, 1
        %s463 = scalar_lea.sflag [#allocation13], %s462
        %s464 = sand.u32 %s196, 1
        %s465 = smul.addr %s464, 1024
        %s466 = scalar_lea.vmem [#allocation12], %s465
        %p467 = pneg %p209
        %p468 = pneg %p206
        %p469 = pneg %p235
        %p470 = pneg %p232
        %p471 = scmp.lt.s32.totalorder %s32, 1
        %s472 = scalar_select %p471, %s32, 1
        %s473 = smul.addr %s472, 2
        %s474 = smul.addr %s473, 8
        %s475 = scalar_lea.vmem %s7, %s474
        %s476 = smul.u32 8, %s33
        %s477 = smul.u32 8, %s33
        %s478 = smul.u32 128, %s33
        %s479 = smul.u32 16, %s32
        %s480 = smul.u32 16, %s32
        %s481 = smul.u32 256, %s32
        %p482 = scmp.lt.s32.totalorder %s32, 1
        %s483 = scalar_select %p482, %s32, 1
        %s484 = smul.addr %s483, 2
        %s485 = smul.addr %s484, 8
        %s486 = scalar_lea.vmem %s7, %s485
        %p488 = scmp.eq.s32.totalorder %s33, 0
        // Predicated region
        $region73: #{vggnet2c_forward.1} parent=47 // pred_check
          %p489 = pneg %p488
        $region74: #{vggnet2c_forward.1} parent=47 // pred_check_branch
          %491 = sbr.rel (%p489) target = $region76
        $region75: #{vggnet2c_forward.1} parent=47 // pred_region
          %v492 = vld [vmem:[%s0] sm:$0xff]
          %v493 = vld [vmem:[%s0 + $0x8] sm:$0xff]
          %v494 = vld [vmem:[%s0 + $0x10] sm:$0xff]
          %v495 = vld [vmem:[%s0 + $0x18] sm:$0xff]
          %v496 = vld [vmem:[%s0 + $0x20] sm:$0xff]
          %v497 = vld [vmem:[%s0 + $0x28] sm:$0xff]
          %v498 = vld [vmem:[%s0 + $0x30] sm:$0xff]
          %v499 = vld [vmem:[%s0 + $0x38] sm:$0xff]
          %v500 = vld [vmem:[%s0 + $0x40] sm:$0xff]
          %v501 = vld [vmem:[%s0 + $0x48] sm:$0xff]
          %v502 = vld [vmem:[%s0 + $0x50] sm:$0xff]
          %v503 = vld [vmem:[%s0 + $0x58] sm:$0xff]
          %v504 = vld [vmem:[%s0 + $0x60] sm:$0xff]
          %v505 = vld [vmem:[%s0 + $0x68] sm:$0xff]
          %v506 = vld [vmem:[%s0 + $0x70] sm:$0xff]
          %v507 = vld [vmem:[%s0 + $0x78] sm:$0xff]
          %v508 = vld [vmem:[#allocation4] sm:$0xff]
          %v509 = vld [vmem:[#allocation4 + $0x8] sm:$0xff]
          %v510 = vld [vmem:[#allocation4 + $0x10] sm:$0xff]
          %v511 = vld [vmem:[#allocation4 + $0x18] sm:$0xff]
          %v512 = vld [vmem:[#allocation4 + $0x20] sm:$0xff]
          %v513 = vld [vmem:[#allocation4 + $0x28] sm:$0xff]
          %v514 = vld [vmem:[#allocation4 + $0x30] sm:$0xff]
          %v515 = vld [vmem:[#allocation4 + $0x38] sm:$0xff]
          %v516 = vld [vmem:[#allocation4 + $0x40] sm:$0xff]
          %v517 = vld [vmem:[#allocation4 + $0x48] sm:$0xff]
          %v518 = vld [vmem:[#allocation4 + $0x50] sm:$0xff]
          %v519 = vld [vmem:[#allocation4 + $0x58] sm:$0xff]
          %v520 = vld [vmem:[#allocation4 + $0x60] sm:$0xff]
          %v521 = vld [vmem:[#allocation4 + $0x68] sm:$0xff]
          %v522 = vld [vmem:[#allocation4 + $0x70] sm:$0xff]
          %v523 = vld [vmem:[#allocation4 + $0x78] sm:$0xff]
          %v524 = vld [vmem:[#allocation4 + $0x80] sm:$0xff]
          %v525 = vld [vmem:[#allocation4 + $0x88] sm:$0xff]
          %v526 = vld [vmem:[#allocation4 + $0x90] sm:$0xff]
          %v527 = vld [vmem:[#allocation4 + $0x98] sm:$0xff]
          %v528 = vld [vmem:[#allocation4 + $0xa0] sm:$0xff]
          %v529 = vld [vmem:[#allocation4 + $0xa8] sm:$0xff]
          %v530 = vld [vmem:[#allocation4 + $0xb0] sm:$0xff]
          %v531 = vld [vmem:[#allocation4 + $0xb8] sm:$0xff]
          %v532 = vld [vmem:[#allocation4 + $0xc0] sm:$0xff]
          %v533 = vld [vmem:[#allocation4 + $0xc8] sm:$0xff]
          %v534 = vld [vmem:[#allocation4 + $0xd0] sm:$0xff]
          %v535 = vld [vmem:[#allocation4 + $0xd8] sm:$0xff]
          %v536 = vld [vmem:[#allocation4 + $0xe0] sm:$0xff]
          %v537 = vld [vmem:[#allocation4 + $0xe8] sm:$0xff]
          %v538 = vld [vmem:[#allocation4 + $0xf0] sm:$0xff]
          %v539 = vld [vmem:[#allocation4 + $0xf8] sm:$0xff]
          %v540 = vld [vmem:[#allocation4 + $0x100] sm:$0xff]
          %v541 = vld [vmem:[#allocation4 + $0x108] sm:$0xff]
          %v542 = vld [vmem:[#allocation4 + $0x110] sm:$0xff]
          %v543 = vld [vmem:[#allocation4 + $0x118] sm:$0xff]
          %v544 = vld [vmem:[#allocation4 + $0x120] sm:$0xff]
          %v545 = vld [vmem:[#allocation4 + $0x128] sm:$0xff]
          %v546 = vld [vmem:[#allocation4 + $0x130] sm:$0xff]
          %v547 = vld [vmem:[#allocation4 + $0x138] sm:$0xff]
          %v548 = vld [vmem:[#allocation4 + $0x140] sm:$0xff]
          %v549 = vld [vmem:[#allocation4 + $0x148] sm:$0xff]
          %v550 = vld [vmem:[#allocation4 + $0x150] sm:$0xff]
          %v551 = vld [vmem:[#allocation4 + $0x158] sm:$0xff]
          %v552 = vld [vmem:[#allocation4 + $0x160] sm:$0xff]
          %v553 = vld [vmem:[#allocation4 + $0x168] sm:$0xff]
          %v554 = vld [vmem:[#allocation4 + $0x170] sm:$0xff]
          %v555 = vld [vmem:[#allocation4 + $0x178] sm:$0xff]
          %v556 = vld [vmem:[#allocation4 + $0x180] sm:$0xff]
          %v557 = vld [vmem:[#allocation4 + $0x188] sm:$0xff]
          %v558 = vld [vmem:[#allocation4 + $0x190] sm:$0xff]
          %v559 = vld [vmem:[#allocation4 + $0x198] sm:$0xff]
          %v560 = vld [vmem:[#allocation4 + $0x1a0] sm:$0xff]
          %v561 = vld [vmem:[#allocation4 + $0x1a8] sm:$0xff]
          %v562 = vld [vmem:[#allocation4 + $0x1b0] sm:$0xff]
          %v563 = vld [vmem:[#allocation4 + $0x1b8] sm:$0xff]
          %v564 = vld [vmem:[#allocation4 + $0x1c0] sm:$0xff]
          %v565 = vld [vmem:[#allocation4 + $0x1c8] sm:$0xff]
          %v566 = vld [vmem:[#allocation4 + $0x1d0] sm:$0xff]
          %v567 = vld [vmem:[#allocation4 + $0x1d8] sm:$0xff]
          %v568 = vld [vmem:[#allocation4 + $0x1e0] sm:$0xff]
          %v569 = vld [vmem:[#allocation4 + $0x1e8] sm:$0xff]
          %v570 = vld [vmem:[#allocation4 + $0x1f0] sm:$0xff]
          %v571 = vld [vmem:[#allocation4 + $0x1f8] sm:$0xff]
          %v572 = vld [vmem:[#allocation4 + $0x200] sm:$0xff]
          %v573 = vld [vmem:[#allocation4 + $0x208] sm:$0xff]
          %v574 = vld [vmem:[#allocation4 + $0x210] sm:$0xff]
          %v575 = vld [vmem:[#allocation4 + $0x218] sm:$0xff]
          %v576 = vld [vmem:[#allocation4 + $0x220] sm:$0xff]
          %v577 = vld [vmem:[#allocation4 + $0x228] sm:$0xff]
          %v578 = vld [vmem:[#allocation4 + $0x230] sm:$0xff]
          %v579 = vld [vmem:[#allocation4 + $0x238] sm:$0xff]
          %v580 = vld [vmem:[#allocation4 + $0x240] sm:$0xff]
          %v581 = vld [vmem:[#allocation4 + $0x248] sm:$0xff]
          %v582 = vld [vmem:[#allocation4 + $0x250] sm:$0xff]
          %v583 = vld [vmem:[#allocation4 + $0x258] sm:$0xff]
          %v584 = vld [vmem:[#allocation4 + $0x260] sm:$0xff]
          %v585 = vld [vmem:[#allocation4 + $0x268] sm:$0xff]
          %v586 = vld [vmem:[#allocation4 + $0x270] sm:$0xff]
          %v587 = vld [vmem:[#allocation4 + $0x278] sm:$0xff]
          %v588 = vld [vmem:[#allocation4 + $0x280] sm:$0xff]
          %v589 = vld [vmem:[#allocation4 + $0x288] sm:$0xff]
          %v590 = vld [vmem:[#allocation4 + $0x290] sm:$0xff]
          %v591 = vld [vmem:[#allocation4 + $0x298] sm:$0xff]
          %v592 = vld [vmem:[#allocation4 + $0x2a0] sm:$0xff]
          %v593 = vld [vmem:[#allocation4 + $0x2a8] sm:$0xff]
          %v594 = vld [vmem:[#allocation4 + $0x2b0] sm:$0xff]
          %v595 = vld [vmem:[#allocation4 + $0x2b8] sm:$0xff]
          %v596 = vld [vmem:[#allocation4 + $0x2c0] sm:$0xff]
          %v597 = vld [vmem:[#allocation4 + $0x2c8] sm:$0xff]
          %v598 = vld [vmem:[#allocation4 + $0x2d0] sm:$0xff]
          %v599 = vld [vmem:[#allocation4 + $0x2d8] sm:$0xff]
          %v600 = vld [vmem:[#allocation4 + $0x2e0] sm:$0xff]
          %v601 = vld [vmem:[#allocation4 + $0x2e8] sm:$0xff]
          %v602 = vld [vmem:[#allocation4 + $0x2f0] sm:$0xff]
          %v603 = vld [vmem:[#allocation4 + $0x2f8] sm:$0xff]
          %v604 = vld [vmem:[#allocation4 + $0x300] sm:$0xff]
          %v605 = vld [vmem:[#allocation4 + $0x308] sm:$0xff]
          %v606 = vld [vmem:[#allocation4 + $0x310] sm:$0xff]
          %v607 = vld [vmem:[#allocation4 + $0x318] sm:$0xff]
          %v608 = vld [vmem:[#allocation4 + $0x320] sm:$0xff]
          %v609 = vld [vmem:[#allocation4 + $0x328] sm:$0xff]
          %v610 = vld [vmem:[#allocation4 + $0x330] sm:$0xff]
          %v611 = vld [vmem:[#allocation4 + $0x338] sm:$0xff]
          %v612 = vld [vmem:[#allocation4 + $0x340] sm:$0xff]
          %v613 = vld [vmem:[#allocation4 + $0x348] sm:$0xff]
          %v614 = vld [vmem:[#allocation4 + $0x350] sm:$0xff]
          %v615 = vld [vmem:[#allocation4 + $0x358] sm:$0xff]
          %v616 = vld [vmem:[#allocation4 + $0x360] sm:$0xff]
          %v617 = vld [vmem:[#allocation4 + $0x368] sm:$0xff]
          %v618 = vld [vmem:[#allocation4 + $0x370] sm:$0xff]
          %v619 = vld [vmem:[#allocation4 + $0x378] sm:$0xff]
          %v620 = vld [vmem:[#allocation4 + $0x380] sm:$0xff]
          %v621 = vld [vmem:[#allocation4 + $0x388] sm:$0xff]
          %v622 = vld [vmem:[#allocation4 + $0x390] sm:$0xff]
          %v623 = vld [vmem:[#allocation4 + $0x398] sm:$0xff]
          %v624 = vld [vmem:[#allocation4 + $0x3a0] sm:$0xff]
          %v625 = vld [vmem:[#allocation4 + $0x3a8] sm:$0xff]
          %v626 = vld [vmem:[#allocation4 + $0x3b0] sm:$0xff]
          %v627 = vld [vmem:[#allocation4 + $0x3b8] sm:$0xff]
          %v628 = vld [vmem:[#allocation4 + $0x3c0] sm:$0xff]
          %v629 = vld [vmem:[#allocation4 + $0x3c8] sm:$0xff]
          %v630 = vld [vmem:[#allocation4 + $0x3d0] sm:$0xff]
          %v631 = vld [vmem:[#allocation4 + $0x3d8] sm:$0xff]
          %v632 = vld [vmem:[#allocation4 + $0x3e0] sm:$0xff]
          %v633 = vld [vmem:[#allocation4 + $0x3e8] sm:$0xff]
          %v634 = vld [vmem:[#allocation4 + $0x3f0] sm:$0xff]
          %v635 = vld [vmem:[#allocation4 + $0x3f8] sm:$0xff]
          %v636 = vld [vmem:[#allocation4 + $0x400] sm:$0xff]
          %v637 = vld [vmem:[#allocation4 + $0x408] sm:$0xff]
          %v638 = vld [vmem:[#allocation4 + $0x410] sm:$0xff]
          %v639 = vld [vmem:[#allocation4 + $0x418] sm:$0xff]
          %v640 = vld [vmem:[#allocation4 + $0x420] sm:$0xff]
          %v641 = vld [vmem:[#allocation4 + $0x428] sm:$0xff]
          %v642 = vld [vmem:[#allocation4 + $0x430] sm:$0xff]
          %v643 = vld [vmem:[#allocation4 + $0x438] sm:$0xff]
          %v644 = vld [vmem:[#allocation4 + $0x440] sm:$0xff]
          %v645 = vld [vmem:[#allocation4 + $0x448] sm:$0xff]
          %v646 = vld [vmem:[#allocation4 + $0x450] sm:$0xff]
          %v647 = vld [vmem:[#allocation4 + $0x458] sm:$0xff]
          %v648 = vld [vmem:[#allocation4 + $0x460] sm:$0xff]
          %v649 = vld [vmem:[#allocation4 + $0x468] sm:$0xff]
          %v650 = vld [vmem:[#allocation4 + $0x470] sm:$0xff]
          %v651 = vld [vmem:[#allocation4 + $0x478] sm:$0xff]
          %v652 = vld [vmem:[#allocation4 + $0x480] sm:$0xff]
          %v653 = vld [vmem:[#allocation4 + $0x488] sm:$0xff]
          %v654 = vld [vmem:[#allocation4 + $0x490] sm:$0xff]
          %v655 = vld [vmem:[#allocation4 + $0x498] sm:$0xff]
          %v656 = vld [vmem:[#allocation4 + $0x4a0] sm:$0xff]
          %v657 = vld [vmem:[#allocation4 + $0x4a8] sm:$0xff]
          %v658 = vld [vmem:[#allocation4 + $0x4b0] sm:$0xff]
          %v659 = vld [vmem:[#allocation4 + $0x4b8] sm:$0xff]
          %v660 = vld [vmem:[#allocation4 + $0x4c0] sm:$0xff]
          %v661 = vld [vmem:[#allocation4 + $0x4c8] sm:$0xff]
          %v662 = vld [vmem:[#allocation4 + $0x4d0] sm:$0xff]
          %v663 = vld [vmem:[#allocation4 + $0x4d8] sm:$0xff]
          %v664 = vld [vmem:[#allocation4 + $0x4e0] sm:$0xff]
          %v665 = vld [vmem:[#allocation4 + $0x4e8] sm:$0xff]
          %v666 = vld [vmem:[#allocation4 + $0x4f0] sm:$0xff]
          %v667 = vld [vmem:[#allocation4 + $0x4f8] sm:$0xff]
          %v668 = vld [vmem:[#allocation4 + $0x500] sm:$0xff]
          %v669 = vld [vmem:[#allocation4 + $0x508] sm:$0xff]
          %v670 = vld [vmem:[#allocation4 + $0x510] sm:$0xff]
          %v671 = vld [vmem:[#allocation4 + $0x518] sm:$0xff]
          %v672 = vld [vmem:[#allocation4 + $0x520] sm:$0xff]
          %v673 = vld [vmem:[#allocation4 + $0x528] sm:$0xff]
          %v674 = vld [vmem:[#allocation4 + $0x530] sm:$0xff]
          %v675 = vld [vmem:[#allocation4 + $0x538] sm:$0xff]
          %v676 = vld [vmem:[#allocation4 + $0x540] sm:$0xff]
          %v677 = vld [vmem:[#allocation4 + $0x548] sm:$0xff]
          %v678 = vld [vmem:[#allocation4 + $0x550] sm:$0xff]
          %v679 = vld [vmem:[#allocation4 + $0x558] sm:$0xff]
          %v680 = vld [vmem:[#allocation4 + $0x560] sm:$0xff]
          %v681 = vld [vmem:[#allocation4 + $0x568] sm:$0xff]
          %v682 = vld [vmem:[#allocation4 + $0x570] sm:$0xff]
          %v683 = vld [vmem:[#allocation4 + $0x578] sm:$0xff]
          %v684 = vld [vmem:[#allocation4 + $0x580] sm:$0xff]
          %v685 = vld [vmem:[#allocation4 + $0x588] sm:$0xff]
          %v686 = vld [vmem:[#allocation4 + $0x590] sm:$0xff]
          %v687 = vld [vmem:[#allocation4 + $0x598] sm:$0xff]
          %v688 = vld [vmem:[#allocation4 + $0x5a0] sm:$0xff]
          %v689 = vld [vmem:[#allocation4 + $0x5a8] sm:$0xff]
          %v690 = vld [vmem:[#allocation4 + $0x5b0] sm:$0xff]
          %v691 = vld [vmem:[#allocation4 + $0x5b8] sm:$0xff]
          %v692 = vld [vmem:[#allocation4 + $0x5c0] sm:$0xff]
          %v693 = vld [vmem:[#allocation4 + $0x5c8] sm:$0xff]
          %v694 = vld [vmem:[#allocation4 + $0x5d0] sm:$0xff]
          %v695 = vld [vmem:[#allocation4 + $0x5d8] sm:$0xff]
          %v696 = vld [vmem:[#allocation4 + $0x5e0] sm:$0xff]
          %v697 = vld [vmem:[#allocation4 + $0x5e8] sm:$0xff]
          %v698 = vld [vmem:[#allocation4 + $0x5f0] sm:$0xff]
          %v699 = vld [vmem:[#allocation4 + $0x5f8] sm:$0xff]
          %v700 = vld [vmem:[#allocation4 + $0x600] sm:$0xff]
          %v701 = vld [vmem:[#allocation4 + $0x608] sm:$0xff]
          %v702 = vld [vmem:[#allocation4 + $0x610] sm:$0xff]
          %v703 = vld [vmem:[#allocation4 + $0x618] sm:$0xff]
          %v704 = vld [vmem:[#allocation4 + $0x620] sm:$0xff]
          %v705 = vld [vmem:[#allocation4 + $0x628] sm:$0xff]
          %v706 = vld [vmem:[#allocation4 + $0x630] sm:$0xff]
          %v707 = vld [vmem:[#allocation4 + $0x638] sm:$0xff]
          %v708 = vld [vmem:[#allocation4 + $0x640] sm:$0xff]
          %v709 = vld [vmem:[#allocation4 + $0x648] sm:$0xff]
          %v710 = vld [vmem:[#allocation4 + $0x650] sm:$0xff]
          %v711 = vld [vmem:[#allocation4 + $0x658] sm:$0xff]
          %v712 = vld [vmem:[#allocation4 + $0x660] sm:$0xff]
          %v713 = vld [vmem:[#allocation4 + $0x668] sm:$0xff]
          %v714 = vld [vmem:[#allocation4 + $0x670] sm:$0xff]
          %v715 = vld [vmem:[#allocation4 + $0x678] sm:$0xff]
          %v716 = vld [vmem:[#allocation4 + $0x680] sm:$0xff]
          %v717 = vld [vmem:[#allocation4 + $0x688] sm:$0xff]
          %v718 = vld [vmem:[#allocation4 + $0x690] sm:$0xff]
          %v719 = vld [vmem:[#allocation4 + $0x698] sm:$0xff]
          %v720 = vld [vmem:[#allocation4 + $0x6a0] sm:$0xff]
          %v721 = vld [vmem:[#allocation4 + $0x6a8] sm:$0xff]
          %v722 = vld [vmem:[#allocation4 + $0x6b0] sm:$0xff]
          %v723 = vld [vmem:[#allocation4 + $0x6b8] sm:$0xff]
          %v724 = vld [vmem:[#allocation4 + $0x6c0] sm:$0xff]
          %v725 = vld [vmem:[#allocation4 + $0x6c8] sm:$0xff]
          %v726 = vld [vmem:[#allocation4 + $0x6d0] sm:$0xff]
          %v727 = vld [vmem:[#allocation4 + $0x6d8] sm:$0xff]
          %v728 = vld [vmem:[#allocation4 + $0x6e0] sm:$0xff]
          %v729 = vld [vmem:[#allocation4 + $0x6e8] sm:$0xff]
          %v730 = vld [vmem:[#allocation4 + $0x6f0] sm:$0xff]
          %v731 = vld [vmem:[#allocation4 + $0x6f8] sm:$0xff]
          %v732 = vld [vmem:[#allocation4 + $0x700] sm:$0xff]
          %v733 = vld [vmem:[#allocation4 + $0x708] sm:$0xff]
          %v734 = vld [vmem:[#allocation4 + $0x710] sm:$0xff]
          %v735 = vld [vmem:[#allocation4 + $0x718] sm:$0xff]
          %v736 = vld [vmem:[#allocation4 + $0x720] sm:$0xff]
          %v737 = vld [vmem:[#allocation4 + $0x728] sm:$0xff]
          %v738 = vld [vmem:[#allocation4 + $0x730] sm:$0xff]
          %v739 = vld [vmem:[#allocation4 + $0x738] sm:$0xff]
          %v740 = vld [vmem:[#allocation4 + $0x740] sm:$0xff]
          %v741 = vld [vmem:[#allocation4 + $0x748] sm:$0xff]
          %v742 = vld [vmem:[#allocation4 + $0x750] sm:$0xff]
          %v743 = vld [vmem:[#allocation4 + $0x758] sm:$0xff]
          %v744 = vld [vmem:[#allocation4 + $0x760] sm:$0xff]
          %v745 = vld [vmem:[#allocation4 + $0x768] sm:$0xff]
          %v746 = vld [vmem:[#allocation4 + $0x770] sm:$0xff]
          %v747 = vld [vmem:[#allocation4 + $0x778] sm:$0xff]
          %v748 = vld [vmem:[#allocation4 + $0x780] sm:$0xff]
          %v749 = vld [vmem:[#allocation4 + $0x788] sm:$0xff]
          %v750 = vld [vmem:[#allocation4 + $0x790] sm:$0xff]
          %v751 = vld [vmem:[#allocation4 + $0x798] sm:$0xff]
          %v752 = vld [vmem:[#allocation4 + $0x7a0] sm:$0xff]
          %v753 = vld [vmem:[#allocation4 + $0x7a8] sm:$0xff]
          %v754 = vld [vmem:[#allocation4 + $0x7b0] sm:$0xff]
          %v755 = vld [vmem:[#allocation4 + $0x7b8] sm:$0xff]
          %v756 = vld [vmem:[#allocation4 + $0x7c0] sm:$0xff]
          %v757 = vld [vmem:[#allocation4 + $0x7c8] sm:$0xff]
          %v758 = vld [vmem:[#allocation4 + $0x7d0] sm:$0xff]
          %v759 = vld [vmem:[#allocation4 + $0x7d8] sm:$0xff]
          %v760 = vld [vmem:[#allocation4 + $0x7e0] sm:$0xff]
          %v761 = vld [vmem:[#allocation4 + $0x7e8] sm:$0xff]
          %v762 = vld [vmem:[#allocation4 + $0x7f0] sm:$0xff]
          %v763 = vld [vmem:[#allocation4 + $0x7f8] sm:$0xff]
          %764 = vmatprep.subr.mxu0 %v509
          %765 = vmatpush1.msra.mxu0 %v508
          %766 = vmatprep.subr.mxu0 %v511
          %767 = vmatpush1.msra.mxu0 %v510
          %768 = vmatprep.subr.mxu0 %v513
          %769 = vmatpush1.msra.mxu0 %v512
          %770 = vmatprep.subr.mxu0 %v515
          %771 = vmatpush1.msra.mxu0 %v514
          %772 = vmatprep.subr.mxu0 %v517
          %773 = vmatpush1.msra.mxu0 %v516
          %774 = vmatprep.subr.mxu0 %v519
          %775 = vmatpush1.msra.mxu0 %v518
          %776 = vmatprep.subr.mxu0 %v521
          %777 = vmatpush1.msra.mxu0 %v520
          %778 = vmatprep.subr.mxu0 %v523
          %779 = vmatpush1.msra.mxu0 %v522
          %780 = vmatprep.subr.mxu0 %v525
          %781 = vmatpush1.msra.mxu0 %v524
          %782 = vmatprep.subr.mxu0 %v527
          %783 = vmatpush1.msra.mxu0 %v526
          %784 = vmatprep.subr.mxu0 %v529
          %785 = vmatpush1.msra.mxu0 %v528
          %786 = vmatprep.subr.mxu0 %v531
          %787 = vmatpush1.msra.mxu0 %v530
          %788 = vmatprep.subr.mxu0 %v533
          %789 = vmatpush1.msra.mxu0 %v532
          %790 = vmatprep.subr.mxu0 %v535
          %791 = vmatpush1.msra.mxu0 %v534
          %792 = vmatprep.subr.mxu0 %v537
          %793 = vmatpush1.msra.mxu0 %v536
          %794 = vmatprep.subr.mxu0 %v539
          %795 = vmatpush1.msra.mxu0 %v538
          %796 = vmatprep.subr.mxu0 %v541
          %797 = vmatpush1.msra.mxu0 %v540
          %798 = vmatprep.subr.mxu0 %v543
          %799 = vmatpush1.msra.mxu0 %v542
          %800 = vmatprep.subr.mxu0 %v545
          %801 = vmatpush1.msra.mxu0 %v544
          %802 = vmatprep.subr.mxu0 %v547
          %803 = vmatpush1.msra.mxu0 %v546
          %804 = vmatprep.subr.mxu0 %v549
          %805 = vmatpush1.msra.mxu0 %v548
          %806 = vmatprep.subr.mxu0 %v551
          %807 = vmatpush1.msra.mxu0 %v550
          %808 = vmatprep.subr.mxu0 %v553
          %809 = vmatpush1.msra.mxu0 %v552
          %810 = vmatprep.subr.mxu0 %v555
          %811 = vmatpush1.msra.mxu0 %v554
          %812 = vmatprep.subr.mxu0 %v557
          %813 = vmatpush1.msra.mxu0 %v556
          %814 = vmatprep.subr.mxu0 %v559
          %815 = vmatpush1.msra.mxu0 %v558
          %816 = vmatprep.subr.mxu0 %v561
          %817 = vmatpush1.msra.mxu0 %v560
          %818 = vmatprep.subr.mxu0 %v563
          %819 = vmatpush1.msra.mxu0 %v562
          %820 = vmatprep.subr.mxu0 %v565
          %821 = vmatpush1.msra.mxu0 %v564
          %822 = vmatprep.subr.mxu0 %v567
          %823 = vmatpush1.msra.mxu0 %v566
          %824 = vmatprep.subr.mxu0 %v569
          %825 = vmatpush1.msra.mxu0 %v568
          %826 = vmatprep.subr.mxu0 %v571
          %827 = vmatpush1.msra.mxu0 %v570
          %828 = vmatprep.mubr.f32.mxu0 %v493
          %829 = vmatmul.mubr.f32.gmra.mrb[0].mxu0 %v492
          %v830 = vpop.f32.mrb[0].mxu0
          %v831 = vadd.f32 0.0, %v830
          %v832 = vpop.f32.mrb[0].mxu0
          %v833 = vadd.f32 0.0, %v832
          %834 = vmatprep.mubr.f32.mxu0 %v501
          %835 = vmatmul.mubr.f32.gmra.mrb[0].mxu0 %v500
          %v836 = vpop.f32.mrb[0].mxu0
          %v837 = vadd.f32 0.0, %v836
          %v838 = vpop.f32.mrb[0].mxu0
          %v839 = vadd.f32 0.0, %v838
          %840 = vdwg.mxu0
          %841 = vmatprep.subr.mxu0 %v573
          %842 = vmatpush1.msra.mxu0 %v572
          %843 = vmatprep.subr.mxu0 %v575
          %844 = vmatpush1.msra.mxu0 %v574
          %845 = vmatprep.subr.mxu0 %v577
          %846 = vmatpush1.msra.mxu0 %v576
          %847 = vmatprep.subr.mxu0 %v579
          %848 = vmatpush1.msra.mxu0 %v578
          %849 = vmatprep.subr.mxu0 %v581
          %850 = vmatpush1.msra.mxu0 %v580
          %851 = vmatprep.subr.mxu0 %v583
          %852 = vmatpush1.msra.mxu0 %v582
          %853 = vmatprep.subr.mxu0 %v585
          %854 = vmatpush1.msra.mxu0 %v584
          %855 = vmatprep.subr.mxu0 %v587
          %856 = vmatpush1.msra.mxu0 %v586
          %857 = vmatprep.subr.mxu0 %v589
          %858 = vmatpush1.msra.mxu0 %v588
          %859 = vmatprep.subr.mxu0 %v591
          %860 = vmatpush1.msra.mxu0 %v590
          %861 = vmatprep.subr.mxu0 %v593
          %862 = vmatpush1.msra.mxu0 %v592
          %863 = vmatprep.subr.mxu0 %v595
          %864 = vmatpush1.msra.mxu0 %v594
          %865 = vmatprep.subr.mxu0 %v597
          %866 = vmatpush1.msra.mxu0 %v596
          %867 = vmatprep.subr.mxu0 %v599
          %868 = vmatpush1.msra.mxu0 %v598
          %869 = vmatprep.subr.mxu0 %v601
          %870 = vmatpush1.msra.mxu0 %v600
          %871 = vmatprep.subr.mxu0 %v603
          %872 = vmatpush1.msra.mxu0 %v602
          %873 = vmatprep.subr.mxu0 %v605
          %874 = vmatpush1.msra.mxu0 %v604
          %875 = vmatprep.subr.mxu0 %v607
          %876 = vmatpush1.msra.mxu0 %v606
          %877 = vmatprep.subr.mxu0 %v609
          %878 = vmatpush1.msra.mxu0 %v608
          %879 = vmatprep.subr.mxu0 %v611
          %880 = vmatpush1.msra.mxu0 %v610
          %881 = vmatprep.subr.mxu0 %v613
          %882 = vmatpush1.msra.mxu0 %v612
          %883 = vmatprep.subr.mxu0 %v615
          %884 = vmatpush1.msra.mxu0 %v614
          %885 = vmatprep.subr.mxu0 %v617
          %886 = vmatpush1.msra.mxu0 %v616
          %887 = vmatprep.subr.mxu0 %v619
          %888 = vmatpush1.msra.mxu0 %v618
          %889 = vmatprep.subr.mxu0 %v621
          %890 = vmatpush1.msra.mxu0 %v620
          %891 = vmatprep.subr.mxu0 %v623
          %892 = vmatpush1.msra.mxu0 %v622
          %893 = vmatprep.subr.mxu0 %v625
          %894 = vmatpush1.msra.mxu0 %v624
          %895 = vmatprep.subr.mxu0 %v627
          %896 = vmatpush1.msra.mxu0 %v626
          %897 = vmatprep.subr.mxu0 %v629
          %898 = vmatpush1.msra.mxu0 %v628
          %899 = vmatprep.subr.mxu0 %v631
          %900 = vmatpush1.msra.mxu0 %v630
          %901 = vmatprep.subr.mxu0 %v633
          %902 = vmatpush1.msra.mxu0 %v632
          %903 = vmatprep.subr.mxu0 %v635
          %904 = vmatpush1.msra.mxu0 %v634
          %905 = vmatprep.mubr.f32.mxu0 %v495
          %906 = vmatmul.mubr.f32.gmra.mrb[0].mxu0 %v494
          %v907 = vpop.f32.mrb[0].mxu0
          %v908 = vadd.f32 %v831, %v907
          %v909 = vpop.f32.mrb[0].mxu0
          %v910 = vadd.f32 %v833, %v909
          %911 = vmatprep.mubr.f32.mxu0 %v503
          %912 = vmatmul.mubr.f32.gmra.mrb[0].mxu0 %v502
          %v913 = vpop.f32.mrb[0].mxu0
          %v914 = vadd.f32 %v837, %v913
          %v915 = vpop.f32.mrb[0].mxu0
          %v916 = vadd.f32 %v839, %v915
          %917 = vdwg.mxu0
          %918 = vmatprep.subr.mxu0 %v637
          %919 = vmatpush1.msra.mxu0 %v636
          %920 = vmatprep.subr.mxu0 %v639
          %921 = vmatpush1.msra.mxu0 %v638
          %922 = vmatprep.subr.mxu0 %v641
          %923 = vmatpush1.msra.mxu0 %v640
          %924 = vmatprep.subr.mxu0 %v643
          %925 = vmatpush1.msra.mxu0 %v642
          %926 = vmatprep.subr.mxu0 %v645
          %927 = vmatpush1.msra.mxu0 %v644
          %928 = vmatprep.subr.mxu0 %v647
          %929 = vmatpush1.msra.mxu0 %v646
          %930 = vmatprep.subr.mxu0 %v649
          %931 = vmatpush1.msra.mxu0 %v648
          %932 = vmatprep.subr.mxu0 %v651
          %933 = vmatpush1.msra.mxu0 %v650
          %934 = vmatprep.subr.mxu0 %v653
          %935 = vmatpush1.msra.mxu0 %v652
          %936 = vmatprep.subr.mxu0 %v655
          %937 = vmatpush1.msra.mxu0 %v654
          %938 = vmatprep.subr.mxu0 %v657
          %939 = vmatpush1.msra.mxu0 %v656
          %940 = vmatprep.subr.mxu0 %v659
          %941 = vmatpush1.msra.mxu0 %v658
          %942 = vmatprep.subr.mxu0 %v661
          %943 = vmatpush1.msra.mxu0 %v660
          %944 = vmatprep.subr.mxu0 %v663
          %945 = vmatpush1.msra.mxu0 %v662
          %946 = vmatprep.subr.mxu0 %v665
          %947 = vmatpush1.msra.mxu0 %v664
          %948 = vmatprep.subr.mxu0 %v667
          %949 = vmatpush1.msra.mxu0 %v666
          %950 = vmatprep.subr.mxu0 %v669
          %951 = vmatpush1.msra.mxu0 %v668
          %952 = vmatprep.subr.mxu0 %v671
          %953 = vmatpush1.msra.mxu0 %v670
          %954 = vmatprep.subr.mxu0 %v673
          %955 = vmatpush1.msra.mxu0 %v672
          %956 = vmatprep.subr.mxu0 %v675
          %957 = vmatpush1.msra.mxu0 %v674
          %958 = vmatprep.subr.mxu0 %v677
          %959 = vmatpush1.msra.mxu0 %v676
          %960 = vmatprep.subr.mxu0 %v679
          %961 = vmatpush1.msra.mxu0 %v678
          %962 = vmatprep.subr.mxu0 %v681
          %963 = vmatpush1.msra.mxu0 %v680
          %964 = vmatprep.subr.mxu0 %v683
          %965 = vmatpush1.msra.mxu0 %v682
          %966 = vmatprep.subr.mxu0 %v685
          %967 = vmatpush1.msra.mxu0 %v684
          %968 = vmatprep.subr.mxu0 %v687
          %969 = vmatpush1.msra.mxu0 %v686
          %970 = vmatprep.subr.mxu0 %v689
          %971 = vmatpush1.msra.mxu0 %v688
          %972 = vmatprep.subr.mxu0 %v691
          %973 = vmatpush1.msra.mxu0 %v690
          %974 = vmatprep.subr.mxu0 %v693
          %975 = vmatpush1.msra.mxu0 %v692
          %976 = vmatprep.subr.mxu0 %v695
          %977 = vmatpush1.msra.mxu0 %v694
          %978 = vmatprep.subr.mxu0 %v697
          %979 = vmatpush1.msra.mxu0 %v696
          %980 = vmatprep.subr.mxu0 %v699
          %981 = vmatpush1.msra.mxu0 %v698
          %982 = vmatprep.mubr.f32.mxu0 %v497
          %983 = vmatmul.mubr.f32.gmra.mrb[0].mxu0 %v496
          %v984 = vpop.f32.mrb[0].mxu0
          %v985 = vadd.f32 %v908, %v984
          %v986 = vpop.f32.mrb[0].mxu0
          %v987 = vadd.f32 %v910, %v986
          %988 = vmatprep.mubr.f32.mxu0 %v505
          %989 = vmatmul.mubr.f32.gmra.mrb[0].mxu0 %v504
          %v990 = vpop.f32.mrb[0].mxu0
          %v991 = vadd.f32 %v914, %v990
          %v992 = vpop.f32.mrb[0].mxu0
          %v993 = vadd.f32 %v916, %v992
          %994 = vdwg.mxu0
          %995 = vmatprep.subr.mxu0 %v701
          %996 = vmatpush1.msra.mxu0 %v700
          %997 = vmatprep.subr.mxu0 %v703
          %998 = vmatpush1.msra.mxu0 %v702
          %999 = vmatprep.subr.mxu0 %v705
          %1000 = vmatpush1.msra.mxu0 %v704
          %1001 = vmatprep.subr.mxu0 %v707
          %1002 = vmatpush1.msra.mxu0 %v706
          %1003 = vmatprep.subr.mxu0 %v709
          %1004 = vmatpush1.msra.mxu0 %v708
          %1005 = vmatprep.subr.mxu0 %v711
          %1006 = vmatpush1.msra.mxu0 %v710
          %1007 = vmatprep.subr.mxu0 %v713
          %1008 = vmatpush1.msra.mxu0 %v712
          %1009 = vmatprep.subr.mxu0 %v715
          %1010 = vmatpush1.msra.mxu0 %v714
          %1011 = vmatprep.subr.mxu0 %v717
          %1012 = vmatpush1.msra.mxu0 %v716
          %1013 = vmatprep.subr.mxu0 %v719
          %1014 = vmatpush1.msra.mxu0 %v718
          %1015 = vmatprep.subr.mxu0 %v721
          %1016 = vmatpush1.msra.mxu0 %v720
          %1017 = vmatprep.subr.mxu0 %v723
          %1018 = vmatpush1.msra.mxu0 %v722
          %1019 = vmatprep.subr.mxu0 %v725
          %1020 = vmatpush1.msra.mxu0 %v724
          %1021 = vmatprep.subr.mxu0 %v727
          %1022 = vmatpush1.msra.mxu0 %v726
          %1023 = vmatprep.subr.mxu0 %v729
          %1024 = vmatpush1.msra.mxu0 %v728
          %1025 = vmatprep.subr.mxu0 %v731
          %1026 = vmatpush1.msra.mxu0 %v730
          %1027 = vmatprep.subr.mxu0 %v733
          %1028 = vmatpush1.msra.mxu0 %v732
          %1029 = vmatprep.subr.mxu0 %v735
          %1030 = vmatpush1.msra.mxu0 %v734
          %1031 = vmatprep.subr.mxu0 %v737
          %1032 = vmatpush1.msra.mxu0 %v736
          %1033 = vmatprep.subr.mxu0 %v739
          %1034 = vmatpush1.msra.mxu0 %v738
          %1035 = vmatprep.subr.mxu0 %v741
          %1036 = vmatpush1.msra.mxu0 %v740
          %1037 = vmatprep.subr.mxu0 %v743
          %1038 = vmatpush1.msra.mxu0 %v742
          %1039 = vmatprep.subr.mxu0 %v745
          %1040 = vmatpush1.msra.mxu0 %v744
          %1041 = vmatprep.subr.mxu0 %v747
          %1042 = vmatpush1.msra.mxu0 %v746
          %1043 = vmatprep.subr.mxu0 %v749
          %1044 = vmatpush1.msra.mxu0 %v748
          %1045 = vmatprep.subr.mxu0 %v751
          %1046 = vmatpush1.msra.mxu0 %v750
          %1047 = vmatprep.subr.mxu0 %v753
          %1048 = vmatpush1.msra.mxu0 %v752
          %1049 = vmatprep.subr.mxu0 %v755
          %1050 = vmatpush1.msra.mxu0 %v754
          %1051 = vmatprep.subr.mxu0 %v757
          %1052 = vmatpush1.msra.mxu0 %v756
          %1053 = vmatprep.subr.mxu0 %v759
          %1054 = vmatpush1.msra.mxu0 %v758
          %1055 = vmatprep.subr.mxu0 %v761
          %1056 = vmatpush1.msra.mxu0 %v760
          %1057 = vmatprep.subr.mxu0 %v763
          %1058 = vmatpush1.msra.mxu0 %v762
          %1059 = vmatprep.mubr.f32.mxu0 %v499
          %1060 = vmatmul.mubr.f32.gmra.mrb[0].mxu0 %v498
          %v1061 = vpop.f32.mrb[0].mxu0
          %v1062 = vadd.f32 %v985, %v1061
          %v1063 = vpop.f32.mrb[0].mxu0
          %v1064 = vadd.f32 %v987, %v1063
          %1065 = vmatprep.mubr.f32.mxu0 %v507
          %1066 = vmatmul.mubr.f32.gmra.mrb[0].mxu0 %v506
          %v1067 = vpop.f32.mrb[0].mxu0
          %v1068 = vadd.f32 %v991, %v1067
          %v1069 = vpop.f32.mrb[0].mxu0
          %v1070 = vadd.f32 %v993, %v1069
          %1071 = vdwg.mxu0
          %v1072 = vpack.c.bf16 %v1068, %v1062
          %v1073 = vpack.c.bf16 %v1070, %v1064
          %1074 = vst [vmem:[#allocation2] sm:$0xff] %v1072
          %1075 = vst [vmem:[#allocation2 + $0x8] sm:$0xff] %v1073
        $region76: #{vggnet2c_forward.1} parent=47 // pred_fallthru
          _
        %v1076 = vld [vmem:[#allocation2] sm:$0xff]
        %v1077 = vld [vmem:[#allocation2 + $0x8] sm:$0xff]
        %v1078 = vld [vmem:[%s389] sm:$0xff]
        %v1079 = vld [vmem:[%s389 + $0x8] sm:$0xff]
        %v1080 = vld [vmem:[%s389 + $0x10] sm:$0xff]
        %v1081 = vld [vmem:[%s389 + $0x18] sm:$0xff]
        %v1082 = vld [vmem:[%s389 + $0x20] sm:$0xff]
        %v1083 = vld [vmem:[%s389 + $0x28] sm:$0xff]
        %v1084 = vld [vmem:[%s389 + $0x30] sm:$0xff]
        %v1085 = vld [vmem:[%s389 + $0x38] sm:$0xff]
        %v1086 = vld [vmem:[%s389 + $0x40] sm:$0xff]
        %v1087 = vld [vmem:[%s389 + $0x48] sm:$0xff]
        %v1088 = vld [vmem:[%s389 + $0x50] sm:$0xff]
        %v1089 = vld [vmem:[%s389 + $0x58] sm:$0xff]
        %v1090 = vld [vmem:[%s389 + $0x60] sm:$0xff]
        %v1091 = vld [vmem:[%s389 + $0x68] sm:$0xff]
        %v1092 = vld [vmem:[%s389 + $0x70] sm:$0xff]
        %v1093 = vld [vmem:[%s389 + $0x78] sm:$0xff]
        %v1094 = vld [vmem:[%s389 + $0x80] sm:$0xff]
        %v1095 = vld [vmem:[%s389 + $0x88] sm:$0xff]
        %v1096 = vld [vmem:[%s389 + $0x90] sm:$0xff]
        %v1097 = vld [vmem:[%s389 + $0x98] sm:$0xff]
        %v1098 = vld [vmem:[%s389 + $0xa0] sm:$0xff]
        %v1099 = vld [vmem:[%s389 + $0xa8] sm:$0xff]
        %v1100 = vld [vmem:[%s389 + $0xb0] sm:$0xff]
        %v1101 = vld [vmem:[%s389 + $0xb8] sm:$0xff]
        %v1102 = vld [vmem:[%s389 + $0xc0] sm:$0xff]
        %v1103 = vld [vmem:[%s389 + $0xc8] sm:$0xff]
        %v1104 = vld [vmem:[%s389 + $0xd0] sm:$0xff]
        %v1105 = vld [vmem:[%s389 + $0xd8] sm:$0xff]
        %v1106 = vld [vmem:[%s389 + $0xe0] sm:$0xff]
        %v1107 = vld [vmem:[%s389 + $0xe8] sm:$0xff]
        %v1108 = vld [vmem:[%s389 + $0xf0] sm:$0xff]
        %v1109 = vld [vmem:[%s389 + $0xf8] sm:$0xff]
        %v1110 = vld [vmem:[%s389 + $0x100] sm:$0xff]
        %v1111 = vld [vmem:[%s389 + $0x108] sm:$0xff]
        %v1112 = vld [vmem:[%s389 + $0x110] sm:$0xff]
        %v1113 = vld [vmem:[%s389 + $0x118] sm:$0xff]
        %v1114 = vld [vmem:[%s389 + $0x120] sm:$0xff]
        %v1115 = vld [vmem:[%s389 + $0x128] sm:$0xff]
        %v1116 = vld [vmem:[%s389 + $0x130] sm:$0xff]
        %v1117 = vld [vmem:[%s389 + $0x138] sm:$0xff]
        %v1118 = vld [vmem:[%s389 + $0x140] sm:$0xff]
        %v1119 = vld [vmem:[%s389 + $0x148] sm:$0xff]
        %v1120 = vld [vmem:[%s389 + $0x150] sm:$0xff]
        %v1121 = vld [vmem:[%s389 + $0x158] sm:$0xff]
        %v1122 = vld [vmem:[%s389 + $0x160] sm:$0xff]
        %v1123 = vld [vmem:[%s389 + $0x168] sm:$0xff]
        %v1124 = vld [vmem:[%s389 + $0x170] sm:$0xff]
        %v1125 = vld [vmem:[%s389 + $0x178] sm:$0xff]
        %v1126 = vld [vmem:[%s389 + $0x180] sm:$0xff]
        %v1127 = vld [vmem:[%s389 + $0x188] sm:$0xff]
        %v1128 = vld [vmem:[%s389 + $0x190] sm:$0xff]
        %v1129 = vld [vmem:[%s389 + $0x198] sm:$0xff]
        %v1130 = vld [vmem:[%s389 + $0x1a0] sm:$0xff]
        %v1131 = vld [vmem:[%s389 + $0x1a8] sm:$0xff]
        %v1132 = vld [vmem:[%s389 + $0x1b0] sm:$0xff]
        %v1133 = vld [vmem:[%s389 + $0x1b8] sm:$0xff]
        %v1134 = vld [vmem:[%s389 + $0x1c0] sm:$0xff]
        %v1135 = vld [vmem:[%s389 + $0x1c8] sm:$0xff]
        %v1136 = vld [vmem:[%s389 + $0x1d0] sm:$0xff]
        %v1137 = vld [vmem:[%s389 + $0x1d8] sm:$0xff]
        %v1138 = vld [vmem:[%s389 + $0x1e0] sm:$0xff]
        %v1139 = vld [vmem:[%s389 + $0x1e8] sm:$0xff]
        %v1140 = vld [vmem:[%s389 + $0x1f0] sm:$0xff]
        %v1141 = vld [vmem:[%s389 + $0x1f8] sm:$0xff]
        %v1142 = vld [vmem:[%s389 + $0x200] sm:$0xff]
        %v1143 = vld [vmem:[%s389 + $0x208] sm:$0xff]
        %v1144 = vld [vmem:[%s389 + $0x210] sm:$0xff]
        %v1145 = vld [vmem:[%s389 + $0x218] sm:$0xff]
        %v1146 = vld [vmem:[%s389 + $0x220] sm:$0xff]
        %v1147 = vld [vmem:[%s389 + $0x228] sm:$0xff]
        %v1148 = vld [vmem:[%s389 + $0x230] sm:$0xff]
        %v1149 = vld [vmem:[%s389 + $0x238] sm:$0xff]
        %v1150 = vld [vmem:[%s389 + $0x240] sm:$0xff]
        %v1151 = vld [vmem:[%s389 + $0x248] sm:$0xff]
        %v1152 = vld [vmem:[%s389 + $0x250] sm:$0xff]
        %v1153 = vld [vmem:[%s389 + $0x258] sm:$0xff]
        %v1154 = vld [vmem:[%s389 + $0x260] sm:$0xff]
        %v1155 = vld [vmem:[%s389 + $0x268] sm:$0xff]
        %v1156 = vld [vmem:[%s389 + $0x270] sm:$0xff]
        %v1157 = vld [vmem:[%s389 + $0x278] sm:$0xff]
        %v1158 = vld [vmem:[%s389 + $0x280] sm:$0xff]
        %v1159 = vld [vmem:[%s389 + $0x288] sm:$0xff]
        %v1160 = vld [vmem:[%s389 + $0x290] sm:$0xff]
        %v1161 = vld [vmem:[%s389 + $0x298] sm:$0xff]
        %v1162 = vld [vmem:[%s389 + $0x2a0] sm:$0xff]
        %v1163 = vld [vmem:[%s389 + $0x2a8] sm:$0xff]
        %v1164 = vld [vmem:[%s389 + $0x2b0] sm:$0xff]
        %v1165 = vld [vmem:[%s389 + $0x2b8] sm:$0xff]
        %v1166 = vld [vmem:[%s389 + $0x2c0] sm:$0xff]
        %v1167 = vld [vmem:[%s389 + $0x2c8] sm:$0xff]
        %v1168 = vld [vmem:[%s389 + $0x2d0] sm:$0xff]
        %v1169 = vld [vmem:[%s389 + $0x2d8] sm:$0xff]
        %v1170 = vld [vmem:[%s389 + $0x2e0] sm:$0xff]
        %v1171 = vld [vmem:[%s389 + $0x2e8] sm:$0xff]
        %v1172 = vld [vmem:[%s389 + $0x2f0] sm:$0xff]
        %v1173 = vld [vmem:[%s389 + $0x2f8] sm:$0xff]
        %v1174 = vld [vmem:[%s389 + $0x300] sm:$0xff]
        %v1175 = vld [vmem:[%s389 + $0x308] sm:$0xff]
        %v1176 = vld [vmem:[%s389 + $0x310] sm:$0xff]
        %v1177 = vld [vmem:[%s389 + $0x318] sm:$0xff]
        %v1178 = vld [vmem:[%s389 + $0x320] sm:$0xff]
        %v1179 = vld [vmem:[%s389 + $0x328] sm:$0xff]
        %v1180 = vld [vmem:[%s389 + $0x330] sm:$0xff]
        %v1181 = vld [vmem:[%s389 + $0x338] sm:$0xff]
        %v1182 = vld [vmem:[%s389 + $0x340] sm:$0xff]
        %v1183 = vld [vmem:[%s389 + $0x348] sm:$0xff]
        %v1184 = vld [vmem:[%s389 + $0x350] sm:$0xff]
        %v1185 = vld [vmem:[%s389 + $0x358] sm:$0xff]
        %v1186 = vld [vmem:[%s389 + $0x360] sm:$0xff]
        %v1187 = vld [vmem:[%s389 + $0x368] sm:$0xff]
        %v1188 = vld [vmem:[%s389 + $0x370] sm:$0xff]
        %v1189 = vld [vmem:[%s389 + $0x378] sm:$0xff]
        %v1190 = vld [vmem:[%s389 + $0x380] sm:$0xff]
        %v1191 = vld [vmem:[%s389 + $0x388] sm:$0xff]
        %v1192 = vld [vmem:[%s389 + $0x390] sm:$0xff]
        %v1193 = vld [vmem:[%s389 + $0x398] sm:$0xff]
        %v1194 = vld [vmem:[%s389 + $0x3a0] sm:$0xff]
        %v1195 = vld [vmem:[%s389 + $0x3a8] sm:$0xff]
        %v1196 = vld [vmem:[%s389 + $0x3b0] sm:$0xff]
        %v1197 = vld [vmem:[%s389 + $0x3b8] sm:$0xff]
        %v1198 = vld [vmem:[%s389 + $0x3c0] sm:$0xff]
        %v1199 = vld [vmem:[%s389 + $0x3c8] sm:$0xff]
        %v1200 = vld [vmem:[%s389 + $0x3d0] sm:$0xff]
        %v1201 = vld [vmem:[%s389 + $0x3d8] sm:$0xff]
        %v1202 = vld [vmem:[%s389 + $0x3e0] sm:$0xff]
        %v1203 = vld [vmem:[%s389 + $0x3e8] sm:$0xff]
        %v1204 = vld [vmem:[%s389 + $0x3f0] sm:$0xff]
        %v1205 = vld [vmem:[%s389 + $0x3f8] sm:$0xff]
        %v1206 = vld [vmem:[%s398] sm:$0xff]
        %v1208 = vlaneseq
        %v1209 = vshrl.u32 %v1208, 7
        %v1210 = vsub.s32 0, %v1209
        %v1211 = vrot.slane %v1206, %v1210
        %v1212 = vlaneseq
        %v1213 = vshrl.u32 %v1212, 7
        %v1214 = vsub.s32 1, %v1213
        %v1215 = vrot.slane %v1206, %v1214
        %v1216 = vlaneseq
        %v1217 = vshrl.u32 %v1216, 7
        %v1218 = vsub.s32 2, %v1217
        %v1219 = vrot.slane %v1206, %v1218
        %v1220 = vlaneseq
        %v1221 = vshrl.u32 %v1220, 7
        %v1222 = vsub.s32 3, %v1221
        %v1223 = vrot.slane %v1206, %v1222
        %v1224 = vlaneseq
        %v1225 = vshrl.u32 %v1224, 7
        %v1226 = vsub.s32 4, %v1225
        %v1227 = vrot.slane %v1206, %v1226
        %v1228 = vlaneseq
        %v1229 = vshrl.u32 %v1228, 7
        %v1230 = vsub.s32 5, %v1229
        %v1231 = vrot.slane %v1206, %v1230
        %v1232 = vlaneseq
        %v1233 = vshrl.u32 %v1232, 7
        %v1234 = vsub.s32 6, %v1233
        %v1235 = vrot.slane %v1206, %v1234
        %v1236 = vlaneseq
        %v1237 = vshrl.u32 %v1236, 7
        %v1238 = vsub.s32 7, %v1237
        %v1239 = vrot.slane %v1206, %v1238
        %v1376 = vunpack.c.l.b16 %v1078
        %v1377 = vunpack.c.h.b16 %v1078
        %v1378 = vunpack.c.l.b16 %v1079
        %v1379 = vunpack.c.h.b16 %v1079
        %v1380 = vunpack.c.l.b16 %v1080
        %v1381 = vunpack.c.h.b16 %v1080
        %v1382 = vunpack.c.l.b16 %v1081
        %v1383 = vunpack.c.h.b16 %v1081
        %v1384 = vunpack.c.l.b16 %v1082
        %v1385 = vunpack.c.h.b16 %v1082
        %v1386 = vunpack.c.l.b16 %v1083
        %v1387 = vunpack.c.h.b16 %v1083
        %v1388 = vunpack.c.l.b16 %v1084
        %v1389 = vunpack.c.h.b16 %v1084
        %v1390 = vunpack.c.l.b16 %v1085
        %v1391 = vunpack.c.h.b16 %v1085
        %v1392 = vunpack.c.l.b16 %v1086
        %v1393 = vunpack.c.h.b16 %v1086
        %v1394 = vunpack.c.l.b16 %v1087
        %v1395 = vunpack.c.h.b16 %v1087
        %v1396 = vunpack.c.l.b16 %v1088
        %v1397 = vunpack.c.h.b16 %v1088
        %v1398 = vunpack.c.l.b16 %v1089
        %v1399 = vunpack.c.h.b16 %v1089
        %v1400 = vunpack.c.l.b16 %v1090
        %v1401 = vunpack.c.h.b16 %v1090
        %v1402 = vunpack.c.l.b16 %v1091
        %v1403 = vunpack.c.h.b16 %v1091
        %v1404 = vunpack.c.l.b16 %v1092
        %v1405 = vunpack.c.h.b16 %v1092
        %v1406 = vunpack.c.l.b16 %v1093
        %v1407 = vunpack.c.h.b16 %v1093
        %v1408 = vunpack.c.l.b16 %v1094
        %v1409 = vunpack.c.h.b16 %v1094
        %v1410 = vunpack.c.l.b16 %v1095
        %v1411 = vunpack.c.h.b16 %v1095
        %v1412 = vunpack.c.l.b16 %v1096
        %v1413 = vunpack.c.h.b16 %v1096
        %v1414 = vunpack.c.l.b16 %v1097
        %v1415 = vunpack.c.h.b16 %v1097
        %v1416 = vunpack.c.l.b16 %v1098
        %v1417 = vunpack.c.h.b16 %v1098
        %v1418 = vunpack.c.l.b16 %v1099
        %v1419 = vunpack.c.h.b16 %v1099
        %v1420 = vunpack.c.l.b16 %v1100
        %v1421 = vunpack.c.h.b16 %v1100
        %v1422 = vunpack.c.l.b16 %v1101
        %v1423 = vunpack.c.h.b16 %v1101
        %v1424 = vunpack.c.l.b16 %v1102
        %v1425 = vunpack.c.h.b16 %v1102
        %v1426 = vunpack.c.l.b16 %v1103
        %v1427 = vunpack.c.h.b16 %v1103
        %v1428 = vunpack.c.l.b16 %v1104
        %v1429 = vunpack.c.h.b16 %v1104
        %v1430 = vunpack.c.l.b16 %v1105
        %v1431 = vunpack.c.h.b16 %v1105
        %v1432 = vunpack.c.l.b16 %v1106
        %v1433 = vunpack.c.h.b16 %v1106
        %v1434 = vunpack.c.l.b16 %v1107
        %v1435 = vunpack.c.h.b16 %v1107
        %v1436 = vunpack.c.l.b16 %v1108
        %v1437 = vunpack.c.h.b16 %v1108
        %v1438 = vunpack.c.l.b16 %v1109
        %v1439 = vunpack.c.h.b16 %v1109
        %v1440 = vunpack.c.l.b16 %v1110
        %v1441 = vunpack.c.h.b16 %v1110
        %v1442 = vunpack.c.l.b16 %v1111
        %v1443 = vunpack.c.h.b16 %v1111
        %v1444 = vunpack.c.l.b16 %v1112
        %v1445 = vunpack.c.h.b16 %v1112
        %v1446 = vunpack.c.l.b16 %v1113
        %v1447 = vunpack.c.h.b16 %v1113
        %v1448 = vunpack.c.l.b16 %v1114
        %v1449 = vunpack.c.h.b16 %v1114
        %v1450 = vunpack.c.l.b16 %v1115
        %v1451 = vunpack.c.h.b16 %v1115
        %v1452 = vunpack.c.l.b16 %v1116
        %v1453 = vunpack.c.h.b16 %v1116
        %v1454 = vunpack.c.l.b16 %v1117
        %v1455 = vunpack.c.h.b16 %v1117
        %v1456 = vunpack.c.l.b16 %v1118
        %v1457 = vunpack.c.h.b16 %v1118
        %v1458 = vunpack.c.l.b16 %v1119
        %v1459 = vunpack.c.h.b16 %v1119
        %v1460 = vunpack.c.l.b16 %v1120
        %v1461 = vunpack.c.h.b16 %v1120
        %v1462 = vunpack.c.l.b16 %v1121
        %v1463 = vunpack.c.h.b16 %v1121
        %v1464 = vunpack.c.l.b16 %v1122
        %v1465 = vunpack.c.h.b16 %v1122
        %v1466 = vunpack.c.l.b16 %v1123
        %v1467 = vunpack.c.h.b16 %v1123
        %v1468 = vunpack.c.l.b16 %v1124
        %v1469 = vunpack.c.h.b16 %v1124
        %v1470 = vunpack.c.l.b16 %v1125
        %v1471 = vunpack.c.h.b16 %v1125
        %v1472 = vunpack.c.l.b16 %v1126
        %v1473 = vunpack.c.h.b16 %v1126
        %v1474 = vunpack.c.l.b16 %v1127
        %v1475 = vunpack.c.h.b16 %v1127
        %v1476 = vunpack.c.l.b16 %v1128
        %v1477 = vunpack.c.h.b16 %v1128
        %v1478 = vunpack.c.l.b16 %v1129
        %v1479 = vunpack.c.h.b16 %v1129
        %v1480 = vunpack.c.l.b16 %v1130
        %v1481 = vunpack.c.h.b16 %v1130
        %v1482 = vunpack.c.l.b16 %v1131
        %v1483 = vunpack.c.h.b16 %v1131
        %v1484 = vunpack.c.l.b16 %v1132
        %v1485 = vunpack.c.h.b16 %v1132
        %v1486 = vunpack.c.l.b16 %v1133
        %v1487 = vunpack.c.h.b16 %v1133
        %v1488 = vunpack.c.l.b16 %v1134
        %v1489 = vunpack.c.h.b16 %v1134
        %v1490 = vunpack.c.l.b16 %v1135
        %v1491 = vunpack.c.h.b16 %v1135
        %v1492 = vunpack.c.l.b16 %v1136
        %v1493 = vunpack.c.h.b16 %v1136
        %v1494 = vunpack.c.l.b16 %v1137
        %v1495 = vunpack.c.h.b16 %v1137
        %v1496 = vunpack.c.l.b16 %v1138
        %v1497 = vunpack.c.h.b16 %v1138
        %v1498 = vunpack.c.l.b16 %v1139
        %v1499 = vunpack.c.h.b16 %v1139
        %v1500 = vunpack.c.l.b16 %v1140
        %v1501 = vunpack.c.h.b16 %v1140
        %v1502 = vunpack.c.l.b16 %v1141
        %v1503 = vunpack.c.h.b16 %v1141
        %v1504 = vunpack.c.l.b16 %v1142
        %v1505 = vunpack.c.h.b16 %v1142
        %v1506 = vunpack.c.l.b16 %v1143
        %v1507 = vunpack.c.h.b16 %v1143
        %v1508 = vunpack.c.l.b16 %v1144
        %v1509 = vunpack.c.h.b16 %v1144
        %v1510 = vunpack.c.l.b16 %v1145
        %v1511 = vunpack.c.h.b16 %v1145
        %v1512 = vunpack.c.l.b16 %v1146
        %v1513 = vunpack.c.h.b16 %v1146
        %v1514 = vunpack.c.l.b16 %v1147
        %v1515 = vunpack.c.h.b16 %v1147
        %v1516 = vunpack.c.l.b16 %v1148
        %v1517 = vunpack.c.h.b16 %v1148
        %v1518 = vunpack.c.l.b16 %v1149
        %v1519 = vunpack.c.h.b16 %v1149
        %v1520 = vunpack.c.l.b16 %v1150
        %v1521 = vunpack.c.h.b16 %v1150
        %v1522 = vunpack.c.l.b16 %v1151
        %v1523 = vunpack.c.h.b16 %v1151
        %v1524 = vunpack.c.l.b16 %v1152
        %v1525 = vunpack.c.h.b16 %v1152
        %v1526 = vunpack.c.l.b16 %v1153
        %v1527 = vunpack.c.h.b16 %v1153
        %v1528 = vunpack.c.l.b16 %v1154
        %v1529 = vunpack.c.h.b16 %v1154
        %v1530 = vunpack.c.l.b16 %v1155
        %v1531 = vunpack.c.h.b16 %v1155
        %v1532 = vunpack.c.l.b16 %v1156
        %v1533 = vunpack.c.h.b16 %v1156
        %v1534 = vunpack.c.l.b16 %v1157
        %v1535 = vunpack.c.h.b16 %v1157
        %v1536 = vunpack.c.l.b16 %v1158
        %v1537 = vunpack.c.h.b16 %v1158
        %v1538 = vunpack.c.l.b16 %v1159
        %v1539 = vunpack.c.h.b16 %v1159
        %v1540 = vunpack.c.l.b16 %v1160
        %v1541 = vunpack.c.h.b16 %v1160
        %v1542 = vunpack.c.l.b16 %v1161
        %v1543 = vunpack.c.h.b16 %v1161
        %v1544 = vunpack.c.l.b16 %v1162
        %v1545 = vunpack.c.h.b16 %v1162
        %v1546 = vunpack.c.l.b16 %v1163
        %v1547 = vunpack.c.h.b16 %v1163
        %v1548 = vunpack.c.l.b16 %v1164
        %v1549 = vunpack.c.h.b16 %v1164
        %v1550 = vunpack.c.l.b16 %v1165
        %v1551 = vunpack.c.h.b16 %v1165
        %v1552 = vunpack.c.l.b16 %v1166
        %v1553 = vunpack.c.h.b16 %v1166
        %v1554 = vunpack.c.l.b16 %v1167
        %v1555 = vunpack.c.h.b16 %v1167
        %v1556 = vunpack.c.l.b16 %v1168
        %v1557 = vunpack.c.h.b16 %v1168
        %v1558 = vunpack.c.l.b16 %v1169
        %v1559 = vunpack.c.h.b16 %v1169
        %v1560 = vunpack.c.l.b16 %v1170
        %v1561 = vunpack.c.h.b16 %v1170
        %v1562 = vunpack.c.l.b16 %v1171
        %v1563 = vunpack.c.h.b16 %v1171
        %v1564 = vunpack.c.l.b16 %v1172
        %v1565 = vunpack.c.h.b16 %v1172
        %v1566 = vunpack.c.l.b16 %v1173
        %v1567 = vunpack.c.h.b16 %v1173
        %v1568 = vunpack.c.l.b16 %v1174
        %v1569 = vunpack.c.h.b16 %v1174
        %v1570 = vunpack.c.l.b16 %v1175
        %v1571 = vunpack.c.h.b16 %v1175
        %v1572 = vunpack.c.l.b16 %v1176
        %v1573 = vunpack.c.h.b16 %v1176
        %v1574 = vunpack.c.l.b16 %v1177
        %v1575 = vunpack.c.h.b16 %v1177
        %v1576 = vunpack.c.l.b16 %v1178
        %v1577 = vunpack.c.h.b16 %v1178
        %v1578 = vunpack.c.l.b16 %v1179
        %v1579 = vunpack.c.h.b16 %v1179
        %v1580 = vunpack.c.l.b16 %v1180
        %v1581 = vunpack.c.h.b16 %v1180
        %v1582 = vunpack.c.l.b16 %v1181
        %v1583 = vunpack.c.h.b16 %v1181
        %v1584 = vunpack.c.l.b16 %v1182
        %v1585 = vunpack.c.h.b16 %v1182
        %v1586 = vunpack.c.l.b16 %v1183
        %v1587 = vunpack.c.h.b16 %v1183
        %v1588 = vunpack.c.l.b16 %v1184
        %v1589 = vunpack.c.h.b16 %v1184
        %v1590 = vunpack.c.l.b16 %v1185
        %v1591 = vunpack.c.h.b16 %v1185
        %v1592 = vunpack.c.l.b16 %v1186
        %v1593 = vunpack.c.h.b16 %v1186
        %v1594 = vunpack.c.l.b16 %v1187
        %v1595 = vunpack.c.h.b16 %v1187
        %v1596 = vunpack.c.l.b16 %v1188
        %v1597 = vunpack.c.h.b16 %v1188
        %v1598 = vunpack.c.l.b16 %v1189
        %v1599 = vunpack.c.h.b16 %v1189
        %v1600 = vunpack.c.l.b16 %v1190
        %v1601 = vunpack.c.h.b16 %v1190
        %v1602 = vunpack.c.l.b16 %v1191
        %v1603 = vunpack.c.h.b16 %v1191
        %v1604 = vunpack.c.l.b16 %v1192
        %v1605 = vunpack.c.h.b16 %v1192
        %v1606 = vunpack.c.l.b16 %v1193
        %v1607 = vunpack.c.h.b16 %v1193
        %v1608 = vunpack.c.l.b16 %v1194
        %v1609 = vunpack.c.h.b16 %v1194
        %v1610 = vunpack.c.l.b16 %v1195
        %v1611 = vunpack.c.h.b16 %v1195
        %v1612 = vunpack.c.l.b16 %v1196
        %v1613 = vunpack.c.h.b16 %v1196
        %v1614 = vunpack.c.l.b16 %v1197
        %v1615 = vunpack.c.h.b16 %v1197
        %v1616 = vunpack.c.l.b16 %v1198
        %v1617 = vunpack.c.h.b16 %v1198
        %v1618 = vunpack.c.l.b16 %v1199
        %v1619 = vunpack.c.h.b16 %v1199
        %v1620 = vunpack.c.l.b16 %v1200
        %v1621 = vunpack.c.h.b16 %v1200
        %v1622 = vunpack.c.l.b16 %v1201
        %v1623 = vunpack.c.h.b16 %v1201
        %v1624 = vunpack.c.l.b16 %v1202
        %v1625 = vunpack.c.h.b16 %v1202
        %v1626 = vunpack.c.l.b16 %v1203
        %v1627 = vunpack.c.h.b16 %v1203
        %v1628 = vunpack.c.l.b16 %v1204
        %v1629 = vunpack.c.h.b16 %v1204
        %v1630 = vunpack.c.l.b16 %v1205
        %v1631 = vunpack.c.h.b16 %v1205
        %v1632 = vpack.c.b16 %v1384, %v1376
        %v1633 = vpack.c.b16 %v1385, %v1377
        %v1634 = vpack.c.b16 %v1386, %v1378
        %v1635 = vpack.c.b16 %v1387, %v1379
        %v1636 = vpack.c.b16 %v1388, %v1380
        %v1637 = vpack.c.b16 %v1389, %v1381
        %v1638 = vpack.c.b16 %v1390, %v1382
        %v1639 = vpack.c.b16 %v1391, %v1383
        %v1640 = vpack.c.b16 %v1400, %v1392
        %v1641 = vpack.c.b16 %v1401, %v1393
        %v1642 = vpack.c.b16 %v1402, %v1394
        %v1643 = vpack.c.b16 %v1403, %v1395
        %v1644 = vpack.c.b16 %v1404, %v1396
        %v1645 = vpack.c.b16 %v1405, %v1397
        %v1646 = vpack.c.b16 %v1406, %v1398
        %v1647 = vpack.c.b16 %v1407, %v1399
        %v1648 = vpack.c.b16 %v1416, %v1408
        %v1649 = vpack.c.b16 %v1417, %v1409
        %v1650 = vpack.c.b16 %v1418, %v1410
        %v1651 = vpack.c.b16 %v1419, %v1411
        %v1652 = vpack.c.b16 %v1420, %v1412
        %v1653 = vpack.c.b16 %v1421, %v1413
        %v1654 = vpack.c.b16 %v1422, %v1414
        %v1655 = vpack.c.b16 %v1423, %v1415
        %v1656 = vpack.c.b16 %v1432, %v1424
        %v1657 = vpack.c.b16 %v1433, %v1425
        %v1658 = vpack.c.b16 %v1434, %v1426
        %v1659 = vpack.c.b16 %v1435, %v1427
        %v1660 = vpack.c.b16 %v1436, %v1428
        %v1661 = vpack.c.b16 %v1437, %v1429
        %v1662 = vpack.c.b16 %v1438, %v1430
        %v1663 = vpack.c.b16 %v1439, %v1431
        %v1664 = vpack.c.b16 %v1448, %v1440
        %v1665 = vpack.c.b16 %v1449, %v1441
        %v1666 = vpack.c.b16 %v1450, %v1442
        %v1667 = vpack.c.b16 %v1451, %v1443
        %v1668 = vpack.c.b16 %v1452, %v1444
        %v1669 = vpack.c.b16 %v1453, %v1445
        %v1670 = vpack.c.b16 %v1454, %v1446
        %v1671 = vpack.c.b16 %v1455, %v1447
        %v1672 = vpack.c.b16 %v1464, %v1456
        %v1673 = vpack.c.b16 %v1465, %v1457
        %v1674 = vpack.c.b16 %v1466, %v1458
        %v1675 = vpack.c.b16 %v1467, %v1459
        %v1676 = vpack.c.b16 %v1468, %v1460
        %v1677 = vpack.c.b16 %v1469, %v1461
        %v1678 = vpack.c.b16 %v1470, %v1462
        %v1679 = vpack.c.b16 %v1471, %v1463
        %v1680 = vpack.c.b16 %v1480, %v1472
        %v1681 = vpack.c.b16 %v1481, %v1473
        %v1682 = vpack.c.b16 %v1482, %v1474
        %v1683 = vpack.c.b16 %v1483, %v1475
        %v1684 = vpack.c.b16 %v1484, %v1476
        %v1685 = vpack.c.b16 %v1485, %v1477
        %v1686 = vpack.c.b16 %v1486, %v1478
        %v1687 = vpack.c.b16 %v1487, %v1479
        %v1688 = vpack.c.b16 %v1496, %v1488
        %v1689 = vpack.c.b16 %v1497, %v1489
        %v1690 = vpack.c.b16 %v1498, %v1490
        %v1691 = vpack.c.b16 %v1499, %v1491
        %v1692 = vpack.c.b16 %v1500, %v1492
        %v1693 = vpack.c.b16 %v1501, %v1493
        %v1694 = vpack.c.b16 %v1502, %v1494
        %v1695 = vpack.c.b16 %v1503, %v1495
        %v1696 = vpack.c.b16 %v1512, %v1504
        %v1697 = vpack.c.b16 %v1513, %v1505
        %v1698 = vpack.c.b16 %v1514, %v1506
        %v1699 = vpack.c.b16 %v1515, %v1507
        %v1700 = vpack.c.b16 %v1516, %v1508
        %v1701 = vpack.c.b16 %v1517, %v1509
        %v1702 = vpack.c.b16 %v1518, %v1510
        %v1703 = vpack.c.b16 %v1519, %v1511
        %v1704 = vpack.c.b16 %v1528, %v1520
        %v1705 = vpack.c.b16 %v1529, %v1521
        %v1706 = vpack.c.b16 %v1530, %v1522
        %v1707 = vpack.c.b16 %v1531, %v1523
        %v1708 = vpack.c.b16 %v1532, %v1524
        %v1709 = vpack.c.b16 %v1533, %v1525
        %v1710 = vpack.c.b16 %v1534, %v1526
        %v1711 = vpack.c.b16 %v1535, %v1527
        %v1712 = vpack.c.b16 %v1544, %v1536
        %v1713 = vpack.c.b16 %v1545, %v1537
        %v1714 = vpack.c.b16 %v1546, %v1538
        %v1715 = vpack.c.b16 %v1547, %v1539
        %v1716 = vpack.c.b16 %v1548, %v1540
        %v1717 = vpack.c.b16 %v1549, %v1541
        %v1718 = vpack.c.b16 %v1550, %v1542
        %v1719 = vpack.c.b16 %v1551, %v1543
        %v1720 = vpack.c.b16 %v1560, %v1552
        %v1721 = vpack.c.b16 %v1561, %v1553
        %v1722 = vpack.c.b16 %v1562, %v1554
        %v1723 = vpack.c.b16 %v1563, %v1555
        %v1724 = vpack.c.b16 %v1564, %v1556
        %v1725 = vpack.c.b16 %v1565, %v1557
        %v1726 = vpack.c.b16 %v1566, %v1558
        %v1727 = vpack.c.b16 %v1567, %v1559
        %v1728 = vpack.c.b16 %v1576, %v1568
        %v1729 = vpack.c.b16 %v1577, %v1569
        %v1730 = vpack.c.b16 %v1578, %v1570
        %v1731 = vpack.c.b16 %v1579, %v1571
        %v1732 = vpack.c.b16 %v1580, %v1572
        %v1733 = vpack.c.b16 %v1581, %v1573
        %v1734 = vpack.c.b16 %v1582, %v1574
        %v1735 = vpack.c.b16 %v1583, %v1575
        %v1736 = vpack.c.b16 %v1592, %v1584
        %v1737 = vpack.c.b16 %v1593, %v1585
        %v1738 = vpack.c.b16 %v1594, %v1586
        %v1739 = vpack.c.b16 %v1595, %v1587
        %v1740 = vpack.c.b16 %v1596, %v1588
        %v1741 = vpack.c.b16 %v1597, %v1589
        %v1742 = vpack.c.b16 %v1598, %v1590
        %v1743 = vpack.c.b16 %v1599, %v1591
        %v1744 = vpack.c.b16 %v1608, %v1600
        %v1745 = vpack.c.b16 %v1609, %v1601
        %v1746 = vpack.c.b16 %v1610, %v1602
        %v1747 = vpack.c.b16 %v1611, %v1603
        %v1748 = vpack.c.b16 %v1612, %v1604
        %v1749 = vpack.c.b16 %v1613, %v1605
        %v1750 = vpack.c.b16 %v1614, %v1606
        %v1751 = vpack.c.b16 %v1615, %v1607
        %v1752 = vpack.c.b16 %v1624, %v1616
        %v1753 = vpack.c.b16 %v1625, %v1617
        %v1754 = vpack.c.b16 %v1626, %v1618
        %v1755 = vpack.c.b16 %v1627, %v1619
        %v1756 = vpack.c.b16 %v1628, %v1620
        %v1757 = vpack.c.b16 %v1629, %v1621
        %v1758 = vpack.c.b16 %v1630, %v1622
        %v1759 = vpack.c.b16 %v1631, %v1623
        %1888 = vmatprep.subr.bf16.mxu0 %v1633
        %1889 = vmatpush1.bf16.msra.mxu0 %v1632
        %1890 = vmatprep.subr.bf16.mxu0 %v1641
        %1891 = vmatpush1.bf16.msra.mxu0 %v1640
        %1892 = vmatprep.subr.bf16.mxu0 %v1649
        %1893 = vmatpush1.bf16.msra.mxu0 %v1648
        %1894 = vmatprep.subr.bf16.mxu0 %v1657
        %1895 = vmatpush1.bf16.msra.mxu0 %v1656
        %1896 = vmatprep.subr.bf16.mxu0 %v1665
        %1897 = vmatpush1.bf16.msra.mxu0 %v1664
        %1898 = vmatprep.subr.bf16.mxu0 %v1673
        %1899 = vmatpush1.bf16.msra.mxu0 %v1672
        %1900 = vmatprep.subr.bf16.mxu0 %v1681
        %1901 = vmatpush1.bf16.msra.mxu0 %v1680
        %1902 = vmatprep.subr.bf16.mxu0 %v1689
        %1903 = vmatpush1.bf16.msra.mxu0 %v1688
        %1904 = vmatprep.subr.bf16.mxu0 %v1697
        %1905 = vmatpush1.bf16.msra.mxu0 %v1696
        %1906 = vmatprep.subr.bf16.mxu0 %v1705
        %1907 = vmatpush1.bf16.msra.mxu0 %v1704
        %1908 = vmatprep.subr.bf16.mxu0 %v1713
        %1909 = vmatpush1.bf16.msra.mxu0 %v1712
        %1910 = vmatprep.subr.bf16.mxu0 %v1721
        %1911 = vmatpush1.bf16.msra.mxu0 %v1720
        %1912 = vmatprep.subr.bf16.mxu0 %v1729
        %1913 = vmatpush1.bf16.msra.mxu0 %v1728
        %1914 = vmatprep.subr.bf16.mxu0 %v1737
        %1915 = vmatpush1.bf16.msra.mxu0 %v1736
        %1916 = vmatprep.subr.bf16.mxu0 %v1745
        %1917 = vmatpush1.bf16.msra.mxu0 %v1744
        %1918 = vmatprep.subr.bf16.mxu0 %v1753
        %1919 = vmatpush1.bf16.msra.mxu0 %v1752
        %1920 = vmatprep.mubr.bf16.mxu0 %v1077
        %1921 = vmatmul.mubr.bf16.gmra.mrb[0].mxu0 %v1076
        %v1922 = vpop.f32.mrb[0].mxu0
        %v1923 = vadd.f32 %v1211, %v1922
        %v1924 = vpop.f32.mrb[0].mxu0
        %v1925 = vadd.f32 %v1215, %v1924
        %v1926 = vpop.f32.mrb[0].mxu0
        %v1927 = vadd.f32 %v1211, %v1926
        %v1928 = vpop.f32.mrb[0].mxu0
        %v1929 = vadd.f32 %v1215, %v1928
        %1930 = vdwg.mxu0
        %1931 = vmatprep.subr.bf16.mxu0 %v1635
        %1932 = vmatpush1.bf16.msra.mxu0 %v1634
        %1933 = vmatprep.subr.bf16.mxu0 %v1643
        %1934 = vmatpush1.bf16.msra.mxu0 %v1642
        %1935 = vmatprep.subr.bf16.mxu0 %v1651
        %1936 = vmatpush1.bf16.msra.mxu0 %v1650
        %1937 = vmatprep.subr.bf16.mxu0 %v1659
        %1938 = vmatpush1.bf16.msra.mxu0 %v1658
        %1939 = vmatprep.subr.bf16.mxu0 %v1667
        %1940 = vmatpush1.bf16.msra.mxu0 %v1666
        %1941 = vmatprep.subr.bf16.mxu0 %v1675
        %1942 = vmatpush1.bf16.msra.mxu0 %v1674
        %1943 = vmatprep.subr.bf16.mxu0 %v1683
        %1944 = vmatpush1.bf16.msra.mxu0 %v1682
        %1945 = vmatprep.subr.bf16.mxu0 %v1691
        %1946 = vmatpush1.bf16.msra.mxu0 %v1690
        %1947 = vmatprep.subr.bf16.mxu0 %v1699
        %1948 = vmatpush1.bf16.msra.mxu0 %v1698
        %1949 = vmatprep.subr.bf16.mxu0 %v1707
        %1950 = vmatpush1.bf16.msra.mxu0 %v1706
        %1951 = vmatprep.subr.bf16.mxu0 %v1715
        %1952 = vmatpush1.bf16.msra.mxu0 %v1714
        %1953 = vmatprep.subr.bf16.mxu0 %v1723
        %1954 = vmatpush1.bf16.msra.mxu0 %v1722
        %1955 = vmatprep.subr.bf16.mxu0 %v1731
        %1956 = vmatpush1.bf16.msra.mxu0 %v1730
        %1957 = vmatprep.subr.bf16.mxu0 %v1739
        %1958 = vmatpush1.bf16.msra.mxu0 %v1738
        %1959 = vmatprep.subr.bf16.mxu0 %v1747
        %1960 = vmatpush1.bf16.msra.mxu0 %v1746
        %1961 = vmatprep.subr.bf16.mxu0 %v1755
        %1962 = vmatpush1.bf16.msra.mxu0 %v1754
        %1963 = vmatprep.mubr.bf16.mxu0 %v1077
        %1964 = vmatmul.mubr.bf16.gmra.mrb[0].mxu0 %v1076
        %v1965 = vpop.f32.mrb[0].mxu0
        %v1966 = vadd.f32 %v1219, %v1965
        %v1967 = vpop.f32.mrb[0].mxu0
        %v1968 = vadd.f32 %v1223, %v1967
        %v1969 = vpop.f32.mrb[0].mxu0
        %v1970 = vadd.f32 %v1219, %v1969
        %v1971 = vpop.f32.mrb[0].mxu0
        %v1972 = vadd.f32 %v1223, %v1971
        %1973 = vdwg.mxu0
        %1974 = vmatprep.subr.bf16.mxu0 %v1637
        %1975 = vmatpush1.bf16.msra.mxu0 %v1636
        %1976 = vmatprep.subr.bf16.mxu0 %v1645
        %1977 = vmatpush1.bf16.msra.mxu0 %v1644
        %1978 = vmatprep.subr.bf16.mxu0 %v1653
        %1979 = vmatpush1.bf16.msra.mxu0 %v1652
        %1980 = vmatprep.subr.bf16.mxu0 %v1661
        %1981 = vmatpush1.bf16.msra.mxu0 %v1660
        %1982 = vmatprep.subr.bf16.mxu0 %v1669
        %1983 = vmatpush1.bf16.msra.mxu0 %v1668
        %1984 = vmatprep.subr.bf16.mxu0 %v1677
        %1985 = vmatpush1.bf16.msra.mxu0 %v1676
        %1986 = vmatprep.subr.bf16.mxu0 %v1685
        %1987 = vmatpush1.bf16.msra.mxu0 %v1684
        %1988 = vmatprep.subr.bf16.mxu0 %v1693
        %1989 = vmatpush1.bf16.msra.mxu0 %v1692
        %1990 = vmatprep.subr.bf16.mxu0 %v1701
        %1991 = vmatpush1.bf16.msra.mxu0 %v1700
        %1992 = vmatprep.subr.bf16.mxu0 %v1709
        %1993 = vmatpush1.bf16.msra.mxu0 %v1708
        %1994 = vmatprep.subr.bf16.mxu0 %v1717
        %1995 = vmatpush1.bf16.msra.mxu0 %v1716
        %1996 = vmatprep.subr.bf16.mxu0 %v1725
        %1997 = vmatpush1.bf16.msra.mxu0 %v1724
        %1998 = vmatprep.subr.bf16.mxu0 %v1733
        %1999 = vmatpush1.bf16.msra.mxu0 %v1732
        %2000 = vmatprep.subr.bf16.mxu0 %v1741
        %2001 = vmatpush1.bf16.msra.mxu0 %v1740
        %2002 = vmatprep.subr.bf16.mxu0 %v1749
        %2003 = vmatpush1.bf16.msra.mxu0 %v1748
        %2004 = vmatprep.subr.bf16.mxu0 %v1757
        %2005 = vmatpush1.bf16.msra.mxu0 %v1756
        %2006 = vmatprep.mubr.bf16.mxu0 %v1077
        %2007 = vmatmul.mubr.bf16.gmra.mrb[0].mxu0 %v1076
        %v2008 = vpop.f32.mrb[0].mxu0
        %v2009 = vadd.f32 %v1227, %v2008
        %v2010 = vpop.f32.mrb[0].mxu0
        %v2011 = vadd.f32 %v1231, %v2010
        %v2012 = vpop.f32.mrb[0].mxu0
        %v2013 = vadd.f32 %v1227, %v2012
        %v2014 = vpop.f32.mrb[0].mxu0
        %v2015 = vadd.f32 %v1231, %v2014
        %2016 = vdwg.mxu0
        %2017 = vmatprep.subr.bf16.mxu0 %v1639
        %2018 = vmatpush1.bf16.msra.mxu0 %v1638
        %2019 = vmatprep.subr.bf16.mxu0 %v1647
        %2020 = vmatpush1.bf16.msra.mxu0 %v1646
        %2021 = vmatprep.subr.bf16.mxu0 %v1655
        %2022 = vmatpush1.bf16.msra.mxu0 %v1654
        %2023 = vmatprep.subr.bf16.mxu0 %v1663
        %2024 = vmatpush1.bf16.msra.mxu0 %v1662
        %2025 = vmatprep.subr.bf16.mxu0 %v1671
        %2026 = vmatpush1.bf16.msra.mxu0 %v1670
        %2027 = vmatprep.subr.bf16.mxu0 %v1679
        %2028 = vmatpush1.bf16.msra.mxu0 %v1678
        %2029 = vmatprep.subr.bf16.mxu0 %v1687
        %2030 = vmatpush1.bf16.msra.mxu0 %v1686
        %2031 = vmatprep.subr.bf16.mxu0 %v1695
        %2032 = vmatpush1.bf16.msra.mxu0 %v1694
        %2033 = vmatprep.subr.bf16.mxu0 %v1703
        %2034 = vmatpush1.bf16.msra.mxu0 %v1702
        %2035 = vmatprep.subr.bf16.mxu0 %v1711
        %2036 = vmatpush1.bf16.msra.mxu0 %v1710
        %2037 = vmatprep.subr.bf16.mxu0 %v1719
        %2038 = vmatpush1.bf16.msra.mxu0 %v1718
        %2039 = vmatprep.subr.bf16.mxu0 %v1727
        %2040 = vmatpush1.bf16.msra.mxu0 %v1726
        %2041 = vmatprep.subr.bf16.mxu0 %v1735
        %2042 = vmatpush1.bf16.msra.mxu0 %v1734
        %2043 = vmatprep.subr.bf16.mxu0 %v1743
        %2044 = vmatpush1.bf16.msra.mxu0 %v1742
        %2045 = vmatprep.subr.bf16.mxu0 %v1751
        %2046 = vmatpush1.bf16.msra.mxu0 %v1750
        %2047 = vmatprep.subr.bf16.mxu0 %v1759
        %2048 = vmatpush1.bf16.msra.mxu0 %v1758
        %2049 = vmatprep.mubr.bf16.mxu0 %v1077
        %2050 = vmatmul.mubr.bf16.gmra.mrb[0].mxu0 %v1076
        %v2051 = vpop.f32.mrb[0].mxu0
        %v2052 = vadd.f32 %v1235, %v2051
        %v2053 = vpop.f32.mrb[0].mxu0
        %v2054 = vadd.f32 %v1239, %v2053
        %v2055 = vpop.f32.mrb[0].mxu0
        %v2056 = vadd.f32 %v1235, %v2055
        %v2057 = vpop.f32.mrb[0].mxu0
        %v2058 = vadd.f32 %v1239, %v2057
        %2059 = vdwg.mxu0
        %v2060 = vmax.f32 %v1923, 0.0
        %v2061 = vmax.f32 %v1925, 0.0
        %v2062 = vmax.f32 %v1966, 0.0
        %v2063 = vmax.f32 %v1968, 0.0
        %v2064 = vmax.f32 %v2009, 0.0
        %v2065 = vmax.f32 %v2011, 0.0
        %v2066 = vmax.f32 %v2052, 0.0
        %v2067 = vmax.f32 %v2054, 0.0
        %v2068 = vmax.f32 %v1927, 0.0
        %v2069 = vmax.f32 %v1929, 0.0
        %v2070 = vmax.f32 %v1970, 0.0
        %v2071 = vmax.f32 %v1972, 0.0
        %v2072 = vmax.f32 %v2013, 0.0
        %v2073 = vmax.f32 %v2015, 0.0
        %v2074 = vmax.f32 %v2056, 0.0
        %v2075 = vmax.f32 %v2058, 0.0
        %v2076 = vpack.c.bf16 %v2068, %v2060
        %v2077 = vpack.c.bf16 %v2069, %v2061
        %v2078 = vpack.c.bf16 %v2070, %v2062
        %v2079 = vpack.c.bf16 %v2071, %v2063
        %v2080 = vpack.c.bf16 %v2072, %v2064
        %v2081 = vpack.c.bf16 %v2073, %v2065
        %v2082 = vpack.c.bf16 %v2074, %v2066
        %v2083 = vpack.c.bf16 %v2075, %v2067
        %v2084 = vld [vmem:[%s407] sm:$0xff]
        %v2085 = vld [vmem:[%s407 + $0x8] sm:$0xff]
        %v2086 = vld [vmem:[%s407 + $0x10] sm:$0xff]
        %v2087 = vld [vmem:[%s407 + $0x18] sm:$0xff]
        %v2088 = vld [vmem:[%s407 + $0x20] sm:$0xff]
        %v2089 = vld [vmem:[%s407 + $0x28] sm:$0xff]
        %v2090 = vld [vmem:[%s407 + $0x30] sm:$0xff]
        %v2091 = vld [vmem:[%s407 + $0x38] sm:$0xff]
        %v2092 = vld [vmem:[%s407 + $0x40] sm:$0xff]
        %v2093 = vld [vmem:[%s407 + $0x48] sm:$0xff]
        %v2094 = vld [vmem:[%s407 + $0x50] sm:$0xff]
        %v2095 = vld [vmem:[%s407 + $0x58] sm:$0xff]
        %v2096 = vld [vmem:[%s407 + $0x60] sm:$0xff]
        %v2097 = vld [vmem:[%s407 + $0x68] sm:$0xff]
        %v2098 = vld [vmem:[%s407 + $0x70] sm:$0xff]
        %v2099 = vld [vmem:[%s407 + $0x78] sm:$0xff]
        %v2100 = vld [vmem:[%s407 + $0x80] sm:$0xff]
        %v2101 = vld [vmem:[%s407 + $0x88] sm:$0xff]
        %v2102 = vld [vmem:[%s407 + $0x90] sm:$0xff]
        %v2103 = vld [vmem:[%s407 + $0x98] sm:$0xff]
        %v2104 = vld [vmem:[%s407 + $0xa0] sm:$0xff]
        %v2105 = vld [vmem:[%s407 + $0xa8] sm:$0xff]
        %v2106 = vld [vmem:[%s407 + $0xb0] sm:$0xff]
        %v2107 = vld [vmem:[%s407 + $0xb8] sm:$0xff]
        %v2108 = vld [vmem:[%s407 + $0xc0] sm:$0xff]
        %v2109 = vld [vmem:[%s407 + $0xc8] sm:$0xff]
        %v2110 = vld [vmem:[%s407 + $0xd0] sm:$0xff]
        %v2111 = vld [vmem:[%s407 + $0xd8] sm:$0xff]
        %v2112 = vld [vmem:[%s407 + $0xe0] sm:$0xff]
        %v2113 = vld [vmem:[%s407 + $0xe8] sm:$0xff]
        %v2114 = vld [vmem:[%s407 + $0xf0] sm:$0xff]
        %v2115 = vld [vmem:[%s407 + $0xf8] sm:$0xff]
        %v2116 = vld [vmem:[%s407 + $0x100] sm:$0xff]
        %v2117 = vld [vmem:[%s407 + $0x108] sm:$0xff]
        %v2118 = vld [vmem:[%s407 + $0x110] sm:$0xff]
        %v2119 = vld [vmem:[%s407 + $0x118] sm:$0xff]
        %v2120 = vld [vmem:[%s407 + $0x120] sm:$0xff]
        %v2121 = vld [vmem:[%s407 + $0x128] sm:$0xff]
        %v2122 = vld [vmem:[%s407 + $0x130] sm:$0xff]
        %v2123 = vld [vmem:[%s407 + $0x138] sm:$0xff]
        %v2124 = vld [vmem:[%s407 + $0x140] sm:$0xff]
        %v2125 = vld [vmem:[%s407 + $0x148] sm:$0xff]
        %v2126 = vld [vmem:[%s407 + $0x150] sm:$0xff]
        %v2127 = vld [vmem:[%s407 + $0x158] sm:$0xff]
        %v2128 = vld [vmem:[%s407 + $0x160] sm:$0xff]
        %v2129 = vld [vmem:[%s407 + $0x168] sm:$0xff]
        %v2130 = vld [vmem:[%s407 + $0x170] sm:$0xff]
        %v2131 = vld [vmem:[%s407 + $0x178] sm:$0xff]
        %v2132 = vld [vmem:[%s407 + $0x180] sm:$0xff]
        %v2133 = vld [vmem:[%s407 + $0x188] sm:$0xff]
        %v2134 = vld [vmem:[%s407 + $0x190] sm:$0xff]
        %v2135 = vld [vmem:[%s407 + $0x198] sm:$0xff]
        %v2136 = vld [vmem:[%s407 + $0x1a0] sm:$0xff]
        %v2137 = vld [vmem:[%s407 + $0x1a8] sm:$0xff]
        %v2138 = vld [vmem:[%s407 + $0x1b0] sm:$0xff]
        %v2139 = vld [vmem:[%s407 + $0x1b8] sm:$0xff]
        %v2140 = vld [vmem:[%s407 + $0x1c0] sm:$0xff]
        %v2141 = vld [vmem:[%s407 + $0x1c8] sm:$0xff]
        %v2142 = vld [vmem:[%s407 + $0x1d0] sm:$0xff]
        %v2143 = vld [vmem:[%s407 + $0x1d8] sm:$0xff]
        %v2144 = vld [vmem:[%s407 + $0x1e0] sm:$0xff]
        %v2145 = vld [vmem:[%s407 + $0x1e8] sm:$0xff]
        %v2146 = vld [vmem:[%s407 + $0x1f0] sm:$0xff]
        %v2147 = vld [vmem:[%s407 + $0x1f8] sm:$0xff]
        %v2148 = vld [vmem:[%s407 + $0x200] sm:$0xff]
        %v2149 = vld [vmem:[%s407 + $0x208] sm:$0xff]
        %v2150 = vld [vmem:[%s407 + $0x210] sm:$0xff]
        %v2151 = vld [vmem:[%s407 + $0x218] sm:$0xff]
        %v2152 = vld [vmem:[%s407 + $0x220] sm:$0xff]
        %v2153 = vld [vmem:[%s407 + $0x228] sm:$0xff]
        %v2154 = vld [vmem:[%s407 + $0x230] sm:$0xff]
        %v2155 = vld [vmem:[%s407 + $0x238] sm:$0xff]
        %v2156 = vld [vmem:[%s407 + $0x240] sm:$0xff]
        %v2157 = vld [vmem:[%s407 + $0x248] sm:$0xff]
        %v2158 = vld [vmem:[%s407 + $0x250] sm:$0xff]
        %v2159 = vld [vmem:[%s407 + $0x258] sm:$0xff]
        %v2160 = vld [vmem:[%s407 + $0x260] sm:$0xff]
        %v2161 = vld [vmem:[%s407 + $0x268] sm:$0xff]
        %v2162 = vld [vmem:[%s407 + $0x270] sm:$0xff]
        %v2163 = vld [vmem:[%s407 + $0x278] sm:$0xff]
        %v2164 = vld [vmem:[%s407 + $0x280] sm:$0xff]
        %v2165 = vld [vmem:[%s407 + $0x288] sm:$0xff]
        %v2166 = vld [vmem:[%s407 + $0x290] sm:$0xff]
        %v2167 = vld [vmem:[%s407 + $0x298] sm:$0xff]
        %v2168 = vld [vmem:[%s407 + $0x2a0] sm:$0xff]
        %v2169 = vld [vmem:[%s407 + $0x2a8] sm:$0xff]
        %v2170 = vld [vmem:[%s407 + $0x2b0] sm:$0xff]
        %v2171 = vld [vmem:[%s407 + $0x2b8] sm:$0xff]
        %v2172 = vld [vmem:[%s407 + $0x2c0] sm:$0xff]
        %v2173 = vld [vmem:[%s407 + $0x2c8] sm:$0xff]
        %v2174 = vld [vmem:[%s407 + $0x2d0] sm:$0xff]
        %v2175 = vld [vmem:[%s407 + $0x2d8] sm:$0xff]
        %v2176 = vld [vmem:[%s407 + $0x2e0] sm:$0xff]
        %v2177 = vld [vmem:[%s407 + $0x2e8] sm:$0xff]
        %v2178 = vld [vmem:[%s407 + $0x2f0] sm:$0xff]
        %v2179 = vld [vmem:[%s407 + $0x2f8] sm:$0xff]
        %v2180 = vld [vmem:[%s407 + $0x300] sm:$0xff]
        %v2181 = vld [vmem:[%s407 + $0x308] sm:$0xff]
        %v2182 = vld [vmem:[%s407 + $0x310] sm:$0xff]
        %v2183 = vld [vmem:[%s407 + $0x318] sm:$0xff]
        %v2184 = vld [vmem:[%s407 + $0x320] sm:$0xff]
        %v2185 = vld [vmem:[%s407 + $0x328] sm:$0xff]
        %v2186 = vld [vmem:[%s407 + $0x330] sm:$0xff]
        %v2187 = vld [vmem:[%s407 + $0x338] sm:$0xff]
        %v2188 = vld [vmem:[%s407 + $0x340] sm:$0xff]
        %v2189 = vld [vmem:[%s407 + $0x348] sm:$0xff]
        %v2190 = vld [vmem:[%s407 + $0x350] sm:$0xff]
        %v2191 = vld [vmem:[%s407 + $0x358] sm:$0xff]
        %v2192 = vld [vmem:[%s407 + $0x360] sm:$0xff]
        %v2193 = vld [vmem:[%s407 + $0x368] sm:$0xff]
        %v2194 = vld [vmem:[%s407 + $0x370] sm:$0xff]
        %v2195 = vld [vmem:[%s407 + $0x378] sm:$0xff]
        %v2196 = vld [vmem:[%s407 + $0x380] sm:$0xff]
        %v2197 = vld [vmem:[%s407 + $0x388] sm:$0xff]
        %v2198 = vld [vmem:[%s407 + $0x390] sm:$0xff]
        %v2199 = vld [vmem:[%s407 + $0x398] sm:$0xff]
        %v2200 = vld [vmem:[%s407 + $0x3a0] sm:$0xff]
        %v2201 = vld [vmem:[%s407 + $0x3a8] sm:$0xff]
        %v2202 = vld [vmem:[%s407 + $0x3b0] sm:$0xff]
        %v2203 = vld [vmem:[%s407 + $0x3b8] sm:$0xff]
        %v2204 = vld [vmem:[%s407 + $0x3c0] sm:$0xff]
        %v2205 = vld [vmem:[%s407 + $0x3c8] sm:$0xff]
        %v2206 = vld [vmem:[%s407 + $0x3d0] sm:$0xff]
        %v2207 = vld [vmem:[%s407 + $0x3d8] sm:$0xff]
        %v2208 = vld [vmem:[%s407 + $0x3e0] sm:$0xff]
        %v2209 = vld [vmem:[%s407 + $0x3e8] sm:$0xff]
        %v2210 = vld [vmem:[%s407 + $0x3f0] sm:$0xff]
        %v2211 = vld [vmem:[%s407 + $0x3f8] sm:$0xff]
        %v2212 = vld [vmem:[%s407 + $0x400] sm:$0xff]
        %v2213 = vld [vmem:[%s407 + $0x408] sm:$0xff]
        %v2214 = vld [vmem:[%s407 + $0x410] sm:$0xff]
        %v2215 = vld [vmem:[%s407 + $0x418] sm:$0xff]
        %v2216 = vld [vmem:[%s407 + $0x420] sm:$0xff]
        %v2217 = vld [vmem:[%s407 + $0x428] sm:$0xff]
        %v2218 = vld [vmem:[%s407 + $0x430] sm:$0xff]
        %v2219 = vld [vmem:[%s407 + $0x438] sm:$0xff]
        %v2220 = vld [vmem:[%s407 + $0x440] sm:$0xff]
        %v2221 = vld [vmem:[%s407 + $0x448] sm:$0xff]
        %v2222 = vld [vmem:[%s407 + $0x450] sm:$0xff]
        %v2223 = vld [vmem:[%s407 + $0x458] sm:$0xff]
        %v2224 = vld [vmem:[%s407 + $0x460] sm:$0xff]
        %v2225 = vld [vmem:[%s407 + $0x468] sm:$0xff]
        %v2226 = vld [vmem:[%s407 + $0x470] sm:$0xff]
        %v2227 = vld [vmem:[%s407 + $0x478] sm:$0xff]
        %v2228 = vld [vmem:[%s407 + $0x480] sm:$0xff]
        %v2229 = vld [vmem:[%s407 + $0x488] sm:$0xff]
        %v2230 = vld [vmem:[%s407 + $0x490] sm:$0xff]
        %v2231 = vld [vmem:[%s407 + $0x498] sm:$0xff]
        %v2232 = vld [vmem:[%s407 + $0x4a0] sm:$0xff]
        %v2233 = vld [vmem:[%s407 + $0x4a8] sm:$0xff]
        %v2234 = vld [vmem:[%s407 + $0x4b0] sm:$0xff]
        %v2235 = vld [vmem:[%s407 + $0x4b8] sm:$0xff]
        %v2236 = vld [vmem:[%s407 + $0x4c0] sm:$0xff]
        %v2237 = vld [vmem:[%s407 + $0x4c8] sm:$0xff]
        %v2238 = vld [vmem:[%s407 + $0x4d0] sm:$0xff]
        %v2239 = vld [vmem:[%s407 + $0x4d8] sm:$0xff]
        %v2240 = vld [vmem:[%s407 + $0x4e0] sm:$0xff]
        %v2241 = vld [vmem:[%s407 + $0x4e8] sm:$0xff]
        %v2242 = vld [vmem:[%s407 + $0x4f0] sm:$0xff]
        %v2243 = vld [vmem:[%s407 + $0x4f8] sm:$0xff]
        %v2244 = vld [vmem:[%s407 + $0x500] sm:$0xff]
        %v2245 = vld [vmem:[%s407 + $0x508] sm:$0xff]
        %v2246 = vld [vmem:[%s407 + $0x510] sm:$0xff]
        %v2247 = vld [vmem:[%s407 + $0x518] sm:$0xff]
        %v2248 = vld [vmem:[%s407 + $0x520] sm:$0xff]
        %v2249 = vld [vmem:[%s407 + $0x528] sm:$0xff]
        %v2250 = vld [vmem:[%s407 + $0x530] sm:$0xff]
        %v2251 = vld [vmem:[%s407 + $0x538] sm:$0xff]
        %v2252 = vld [vmem:[%s407 + $0x540] sm:$0xff]
        %v2253 = vld [vmem:[%s407 + $0x548] sm:$0xff]
        %v2254 = vld [vmem:[%s407 + $0x550] sm:$0xff]
        %v2255 = vld [vmem:[%s407 + $0x558] sm:$0xff]
        %v2256 = vld [vmem:[%s407 + $0x560] sm:$0xff]
        %v2257 = vld [vmem:[%s407 + $0x568] sm:$0xff]
        %v2258 = vld [vmem:[%s407 + $0x570] sm:$0xff]
        %v2259 = vld [vmem:[%s407 + $0x578] sm:$0xff]
        %v2260 = vld [vmem:[%s407 + $0x580] sm:$0xff]
        %v2261 = vld [vmem:[%s407 + $0x588] sm:$0xff]
        %v2262 = vld [vmem:[%s407 + $0x590] sm:$0xff]
        %v2263 = vld [vmem:[%s407 + $0x598] sm:$0xff]
        %v2264 = vld [vmem:[%s407 + $0x5a0] sm:$0xff]
        %v2265 = vld [vmem:[%s407 + $0x5a8] sm:$0xff]
        %v2266 = vld [vmem:[%s407 + $0x5b0] sm:$0xff]
        %v2267 = vld [vmem:[%s407 + $0x5b8] sm:$0xff]
        %v2268 = vld [vmem:[%s407 + $0x5c0] sm:$0xff]
        %v2269 = vld [vmem:[%s407 + $0x5c8] sm:$0xff]
        %v2270 = vld [vmem:[%s407 + $0x5d0] sm:$0xff]
        %v2271 = vld [vmem:[%s407 + $0x5d8] sm:$0xff]
        %v2272 = vld [vmem:[%s407 + $0x5e0] sm:$0xff]
        %v2273 = vld [vmem:[%s407 + $0x5e8] sm:$0xff]
        %v2274 = vld [vmem:[%s407 + $0x5f0] sm:$0xff]
        %v2275 = vld [vmem:[%s407 + $0x5f8] sm:$0xff]
        %v2276 = vld [vmem:[%s407 + $0x600] sm:$0xff]
        %v2277 = vld [vmem:[%s407 + $0x608] sm:$0xff]
        %v2278 = vld [vmem:[%s407 + $0x610] sm:$0xff]
        %v2279 = vld [vmem:[%s407 + $0x618] sm:$0xff]
        %v2280 = vld [vmem:[%s407 + $0x620] sm:$0xff]
        %v2281 = vld [vmem:[%s407 + $0x628] sm:$0xff]
        %v2282 = vld [vmem:[%s407 + $0x630] sm:$0xff]
        %v2283 = vld [vmem:[%s407 + $0x638] sm:$0xff]
        %v2284 = vld [vmem:[%s407 + $0x640] sm:$0xff]
        %v2285 = vld [vmem:[%s407 + $0x648] sm:$0xff]
        %v2286 = vld [vmem:[%s407 + $0x650] sm:$0xff]
        %v2287 = vld [vmem:[%s407 + $0x658] sm:$0xff]
        %v2288 = vld [vmem:[%s407 + $0x660] sm:$0xff]
        %v2289 = vld [vmem:[%s407 + $0x668] sm:$0xff]
        %v2290 = vld [vmem:[%s407 + $0x670] sm:$0xff]
        %v2291 = vld [vmem:[%s407 + $0x678] sm:$0xff]
        %v2292 = vld [vmem:[%s407 + $0x680] sm:$0xff]
        %v2293 = vld [vmem:[%s407 + $0x688] sm:$0xff]
        %v2294 = vld [vmem:[%s407 + $0x690] sm:$0xff]
        %v2295 = vld [vmem:[%s407 + $0x698] sm:$0xff]
        %v2296 = vld [vmem:[%s407 + $0x6a0] sm:$0xff]
        %v2297 = vld [vmem:[%s407 + $0x6a8] sm:$0xff]
        %v2298 = vld [vmem:[%s407 + $0x6b0] sm:$0xff]
        %v2299 = vld [vmem:[%s407 + $0x6b8] sm:$0xff]
        %v2300 = vld [vmem:[%s407 + $0x6c0] sm:$0xff]
        %v2301 = vld [vmem:[%s407 + $0x6c8] sm:$0xff]
        %v2302 = vld [vmem:[%s407 + $0x6d0] sm:$0xff]
        %v2303 = vld [vmem:[%s407 + $0x6d8] sm:$0xff]
        %v2304 = vld [vmem:[%s407 + $0x6e0] sm:$0xff]
        %v2305 = vld [vmem:[%s407 + $0x6e8] sm:$0xff]
        %v2306 = vld [vmem:[%s407 + $0x6f0] sm:$0xff]
        %v2307 = vld [vmem:[%s407 + $0x6f8] sm:$0xff]
        %v2308 = vld [vmem:[%s407 + $0x700] sm:$0xff]
        %v2309 = vld [vmem:[%s407 + $0x708] sm:$0xff]
        %v2310 = vld [vmem:[%s407 + $0x710] sm:$0xff]
        %v2311 = vld [vmem:[%s407 + $0x718] sm:$0xff]
        %v2312 = vld [vmem:[%s407 + $0x720] sm:$0xff]
        %v2313 = vld [vmem:[%s407 + $0x728] sm:$0xff]
        %v2314 = vld [vmem:[%s407 + $0x730] sm:$0xff]
        %v2315 = vld [vmem:[%s407 + $0x738] sm:$0xff]
        %v2316 = vld [vmem:[%s407 + $0x740] sm:$0xff]
        %v2317 = vld [vmem:[%s407 + $0x748] sm:$0xff]
        %v2318 = vld [vmem:[%s407 + $0x750] sm:$0xff]
        %v2319 = vld [vmem:[%s407 + $0x758] sm:$0xff]
        %v2320 = vld [vmem:[%s407 + $0x760] sm:$0xff]
        %v2321 = vld [vmem:[%s407 + $0x768] sm:$0xff]
        %v2322 = vld [vmem:[%s407 + $0x770] sm:$0xff]
        %v2323 = vld [vmem:[%s407 + $0x778] sm:$0xff]
        %v2324 = vld [vmem:[%s407 + $0x780] sm:$0xff]
        %v2325 = vld [vmem:[%s407 + $0x788] sm:$0xff]
        %v2326 = vld [vmem:[%s407 + $0x790] sm:$0xff]
        %v2327 = vld [vmem:[%s407 + $0x798] sm:$0xff]
        %v2328 = vld [vmem:[%s407 + $0x7a0] sm:$0xff]
        %v2329 = vld [vmem:[%s407 + $0x7a8] sm:$0xff]
        %v2330 = vld [vmem:[%s407 + $0x7b0] sm:$0xff]
        %v2331 = vld [vmem:[%s407 + $0x7b8] sm:$0xff]
        %v2332 = vld [vmem:[%s407 + $0x7c0] sm:$0xff]
        %v2333 = vld [vmem:[%s407 + $0x7c8] sm:$0xff]
        %v2334 = vld [vmem:[%s407 + $0x7d0] sm:$0xff]
        %v2335 = vld [vmem:[%s407 + $0x7d8] sm:$0xff]
        %v2336 = vld [vmem:[%s407 + $0x7e0] sm:$0xff]
        %v2337 = vld [vmem:[%s407 + $0x7e8] sm:$0xff]
        %v2338 = vld [vmem:[%s407 + $0x7f0] sm:$0xff]
        %v2339 = vld [vmem:[%s407 + $0x7f8] sm:$0xff]
        %v2340 = vld [vmem:[%s407 + $0x800] sm:$0xff]
        %v2341 = vld [vmem:[%s407 + $0x808] sm:$0xff]
        %v2342 = vld [vmem:[%s407 + $0x810] sm:$0xff]
        %v2343 = vld [vmem:[%s407 + $0x818] sm:$0xff]
        %v2344 = vld [vmem:[%s407 + $0x820] sm:$0xff]
        %v2345 = vld [vmem:[%s407 + $0x828] sm:$0xff]
        %v2346 = vld [vmem:[%s407 + $0x830] sm:$0xff]
        %v2347 = vld [vmem:[%s407 + $0x838] sm:$0xff]
        %v2348 = vld [vmem:[%s407 + $0x840] sm:$0xff]
        %v2349 = vld [vmem:[%s407 + $0x848] sm:$0xff]
        %v2350 = vld [vmem:[%s407 + $0x850] sm:$0xff]
        %v2351 = vld [vmem:[%s407 + $0x858] sm:$0xff]
        %v2352 = vld [vmem:[%s407 + $0x860] sm:$0xff]
        %v2353 = vld [vmem:[%s407 + $0x868] sm:$0xff]
        %v2354 = vld [vmem:[%s407 + $0x870] sm:$0xff]
        %v2355 = vld [vmem:[%s407 + $0x878] sm:$0xff]
        %v2356 = vld [vmem:[%s407 + $0x880] sm:$0xff]
        %v2357 = vld [vmem:[%s407 + $0x888] sm:$0xff]
        %v2358 = vld [vmem:[%s407 + $0x890] sm:$0xff]
        %v2359 = vld [vmem:[%s407 + $0x898] sm:$0xff]
        %v2360 = vld [vmem:[%s407 + $0x8a0] sm:$0xff]
        %v2361 = vld [vmem:[%s407 + $0x8a8] sm:$0xff]
        %v2362 = vld [vmem:[%s407 + $0x8b0] sm:$0xff]
        %v2363 = vld [vmem:[%s407 + $0x8b8] sm:$0xff]
        %v2364 = vld [vmem:[%s407 + $0x8c0] sm:$0xff]
        %v2365 = vld [vmem:[%s407 + $0x8c8] sm:$0xff]
        %v2366 = vld [vmem:[%s407 + $0x8d0] sm:$0xff]
        %v2367 = vld [vmem:[%s407 + $0x8d8] sm:$0xff]
        %v2368 = vld [vmem:[%s407 + $0x8e0] sm:$0xff]
        %v2369 = vld [vmem:[%s407 + $0x8e8] sm:$0xff]
        %v2370 = vld [vmem:[%s407 + $0x8f0] sm:$0xff]
        %v2371 = vld [vmem:[%s407 + $0x8f8] sm:$0xff]
        %v2372 = vld [vmem:[%s407 + $0x900] sm:$0xff]
        %v2373 = vld [vmem:[%s407 + $0x908] sm:$0xff]
        %v2374 = vld [vmem:[%s407 + $0x910] sm:$0xff]
        %v2375 = vld [vmem:[%s407 + $0x918] sm:$0xff]
        %v2376 = vld [vmem:[%s407 + $0x920] sm:$0xff]
        %v2377 = vld [vmem:[%s407 + $0x928] sm:$0xff]
        %v2378 = vld [vmem:[%s407 + $0x930] sm:$0xff]
        %v2379 = vld [vmem:[%s407 + $0x938] sm:$0xff]
        %v2380 = vld [vmem:[%s407 + $0x940] sm:$0xff]
        %v2381 = vld [vmem:[%s407 + $0x948] sm:$0xff]
        %v2382 = vld [vmem:[%s407 + $0x950] sm:$0xff]
        %v2383 = vld [vmem:[%s407 + $0x958] sm:$0xff]
        %v2384 = vld [vmem:[%s407 + $0x960] sm:$0xff]
        %v2385 = vld [vmem:[%s407 + $0x968] sm:$0xff]
        %v2386 = vld [vmem:[%s407 + $0x970] sm:$0xff]
        %v2387 = vld [vmem:[%s407 + $0x978] sm:$0xff]
        %v2388 = vld [vmem:[%s407 + $0x980] sm:$0xff]
        %v2389 = vld [vmem:[%s407 + $0x988] sm:$0xff]
        %v2390 = vld [vmem:[%s407 + $0x990] sm:$0xff]
        %v2391 = vld [vmem:[%s407 + $0x998] sm:$0xff]
        %v2392 = vld [vmem:[%s407 + $0x9a0] sm:$0xff]
        %v2393 = vld [vmem:[%s407 + $0x9a8] sm:$0xff]
        %v2394 = vld [vmem:[%s407 + $0x9b0] sm:$0xff]
        %v2395 = vld [vmem:[%s407 + $0x9b8] sm:$0xff]
        %v2396 = vld [vmem:[%s407 + $0x9c0] sm:$0xff]
        %v2397 = vld [vmem:[%s407 + $0x9c8] sm:$0xff]
        %v2398 = vld [vmem:[%s407 + $0x9d0] sm:$0xff]
        %v2399 = vld [vmem:[%s407 + $0x9d8] sm:$0xff]
        %v2400 = vld [vmem:[%s407 + $0x9e0] sm:$0xff]
        %v2401 = vld [vmem:[%s407 + $0x9e8] sm:$0xff]
        %v2402 = vld [vmem:[%s407 + $0x9f0] sm:$0xff]
        %v2403 = vld [vmem:[%s407 + $0x9f8] sm:$0xff]
        %v2404 = vld [vmem:[%s407 + $0xa00] sm:$0xff]
        %v2405 = vld [vmem:[%s407 + $0xa08] sm:$0xff]
        %v2406 = vld [vmem:[%s407 + $0xa10] sm:$0xff]
        %v2407 = vld [vmem:[%s407 + $0xa18] sm:$0xff]
        %v2408 = vld [vmem:[%s407 + $0xa20] sm:$0xff]
        %v2409 = vld [vmem:[%s407 + $0xa28] sm:$0xff]
        %v2410 = vld [vmem:[%s407 + $0xa30] sm:$0xff]
        %v2411 = vld [vmem:[%s407 + $0xa38] sm:$0xff]
        %v2412 = vld [vmem:[%s407 + $0xa40] sm:$0xff]
        %v2413 = vld [vmem:[%s407 + $0xa48] sm:$0xff]
        %v2414 = vld [vmem:[%s407 + $0xa50] sm:$0xff]
        %v2415 = vld [vmem:[%s407 + $0xa58] sm:$0xff]
        %v2416 = vld [vmem:[%s407 + $0xa60] sm:$0xff]
        %v2417 = vld [vmem:[%s407 + $0xa68] sm:$0xff]
        %v2418 = vld [vmem:[%s407 + $0xa70] sm:$0xff]
        %v2419 = vld [vmem:[%s407 + $0xa78] sm:$0xff]
        %v2420 = vld [vmem:[%s407 + $0xa80] sm:$0xff]
        %v2421 = vld [vmem:[%s407 + $0xa88] sm:$0xff]
        %v2422 = vld [vmem:[%s407 + $0xa90] sm:$0xff]
        %v2423 = vld [vmem:[%s407 + $0xa98] sm:$0xff]
        %v2424 = vld [vmem:[%s407 + $0xaa0] sm:$0xff]
        %v2425 = vld [vmem:[%s407 + $0xaa8] sm:$0xff]
        %v2426 = vld [vmem:[%s407 + $0xab0] sm:$0xff]
        %v2427 = vld [vmem:[%s407 + $0xab8] sm:$0xff]
        %v2428 = vld [vmem:[%s407 + $0xac0] sm:$0xff]
        %v2429 = vld [vmem:[%s407 + $0xac8] sm:$0xff]
        %v2430 = vld [vmem:[%s407 + $0xad0] sm:$0xff]
        %v2431 = vld [vmem:[%s407 + $0xad8] sm:$0xff]
        %v2432 = vld [vmem:[%s407 + $0xae0] sm:$0xff]
        %v2433 = vld [vmem:[%s407 + $0xae8] sm:$0xff]
        %v2434 = vld [vmem:[%s407 + $0xaf0] sm:$0xff]
        %v2435 = vld [vmem:[%s407 + $0xaf8] sm:$0xff]
        %v2436 = vld [vmem:[%s407 + $0xb00] sm:$0xff]
        %v2437 = vld [vmem:[%s407 + $0xb08] sm:$0xff]
        %v2438 = vld [vmem:[%s407 + $0xb10] sm:$0xff]
        %v2439 = vld [vmem:[%s407 + $0xb18] sm:$0xff]
        %v2440 = vld [vmem:[%s407 + $0xb20] sm:$0xff]
        %v2441 = vld [vmem:[%s407 + $0xb28] sm:$0xff]
        %v2442 = vld [vmem:[%s407 + $0xb30] sm:$0xff]
        %v2443 = vld [vmem:[%s407 + $0xb38] sm:$0xff]
        %v2444 = vld [vmem:[%s407 + $0xb40] sm:$0xff]
        %v2445 = vld [vmem:[%s407 + $0xb48] sm:$0xff]
        %v2446 = vld [vmem:[%s407 + $0xb50] sm:$0xff]
        %v2447 = vld [vmem:[%s407 + $0xb58] sm:$0xff]
        %v2448 = vld [vmem:[%s407 + $0xb60] sm:$0xff]
        %v2449 = vld [vmem:[%s407 + $0xb68] sm:$0xff]
        %v2450 = vld [vmem:[%s407 + $0xb70] sm:$0xff]
        %v2451 = vld [vmem:[%s407 + $0xb78] sm:$0xff]
        %v2452 = vld [vmem:[%s407 + $0xb80] sm:$0xff]
        %v2453 = vld [vmem:[%s407 + $0xb88] sm:$0xff]
        %v2454 = vld [vmem:[%s407 + $0xb90] sm:$0xff]
        %v2455 = vld [vmem:[%s407 + $0xb98] sm:$0xff]
        %v2456 = vld [vmem:[%s407 + $0xba0] sm:$0xff]
        %v2457 = vld [vmem:[%s407 + $0xba8] sm:$0xff]
        %v2458 = vld [vmem:[%s407 + $0xbb0] sm:$0xff]
        %v2459 = vld [vmem:[%s407 + $0xbb8] sm:$0xff]
        %v2460 = vld [vmem:[%s407 + $0xbc0] sm:$0xff]
        %v2461 = vld [vmem:[%s407 + $0xbc8] sm:$0xff]
        %v2462 = vld [vmem:[%s407 + $0xbd0] sm:$0xff]
        %v2463 = vld [vmem:[%s407 + $0xbd8] sm:$0xff]
        %v2464 = vld [vmem:[%s407 + $0xbe0] sm:$0xff]
        %v2465 = vld [vmem:[%s407 + $0xbe8] sm:$0xff]
        %v2466 = vld [vmem:[%s407 + $0xbf0] sm:$0xff]
        %v2467 = vld [vmem:[%s407 + $0xbf8] sm:$0xff]
        %v2468 = vld [vmem:[%s407 + $0xc00] sm:$0xff]
        %v2469 = vld [vmem:[%s407 + $0xc08] sm:$0xff]
        %v2470 = vld [vmem:[%s407 + $0xc10] sm:$0xff]
        %v2471 = vld [vmem:[%s407 + $0xc18] sm:$0xff]
        %v2472 = vld [vmem:[%s407 + $0xc20] sm:$0xff]
        %v2473 = vld [vmem:[%s407 + $0xc28] sm:$0xff]
        %v2474 = vld [vmem:[%s407 + $0xc30] sm:$0xff]
        %v2475 = vld [vmem:[%s407 + $0xc38] sm:$0xff]
        %v2476 = vld [vmem:[%s407 + $0xc40] sm:$0xff]
        %v2477 = vld [vmem:[%s407 + $0xc48] sm:$0xff]
        %v2478 = vld [vmem:[%s407 + $0xc50] sm:$0xff]
        %v2479 = vld [vmem:[%s407 + $0xc58] sm:$0xff]
        %v2480 = vld [vmem:[%s407 + $0xc60] sm:$0xff]
        %v2481 = vld [vmem:[%s407 + $0xc68] sm:$0xff]
        %v2482 = vld [vmem:[%s407 + $0xc70] sm:$0xff]
        %v2483 = vld [vmem:[%s407 + $0xc78] sm:$0xff]
        %v2484 = vld [vmem:[%s407 + $0xc80] sm:$0xff]
        %v2485 = vld [vmem:[%s407 + $0xc88] sm:$0xff]
        %v2486 = vld [vmem:[%s407 + $0xc90] sm:$0xff]
        %v2487 = vld [vmem:[%s407 + $0xc98] sm:$0xff]
        %v2488 = vld [vmem:[%s407 + $0xca0] sm:$0xff]
        %v2489 = vld [vmem:[%s407 + $0xca8] sm:$0xff]
        %v2490 = vld [vmem:[%s407 + $0xcb0] sm:$0xff]
        %v2491 = vld [vmem:[%s407 + $0xcb8] sm:$0xff]
        %v2492 = vld [vmem:[%s407 + $0xcc0] sm:$0xff]
        %v2493 = vld [vmem:[%s407 + $0xcc8] sm:$0xff]
        %v2494 = vld [vmem:[%s407 + $0xcd0] sm:$0xff]
        %v2495 = vld [vmem:[%s407 + $0xcd8] sm:$0xff]
        %v2496 = vld [vmem:[%s407 + $0xce0] sm:$0xff]
        %v2497 = vld [vmem:[%s407 + $0xce8] sm:$0xff]
        %v2498 = vld [vmem:[%s407 + $0xcf0] sm:$0xff]
        %v2499 = vld [vmem:[%s407 + $0xcf8] sm:$0xff]
        %v2500 = vld [vmem:[%s407 + $0xd00] sm:$0xff]
        %v2501 = vld [vmem:[%s407 + $0xd08] sm:$0xff]
        %v2502 = vld [vmem:[%s407 + $0xd10] sm:$0xff]
        %v2503 = vld [vmem:[%s407 + $0xd18] sm:$0xff]
        %v2504 = vld [vmem:[%s407 + $0xd20] sm:$0xff]
        %v2505 = vld [vmem:[%s407 + $0xd28] sm:$0xff]
        %v2506 = vld [vmem:[%s407 + $0xd30] sm:$0xff]
        %v2507 = vld [vmem:[%s407 + $0xd38] sm:$0xff]
        %v2508 = vld [vmem:[%s407 + $0xd40] sm:$0xff]
        %v2509 = vld [vmem:[%s407 + $0xd48] sm:$0xff]
        %v2510 = vld [vmem:[%s407 + $0xd50] sm:$0xff]
        %v2511 = vld [vmem:[%s407 + $0xd58] sm:$0xff]
        %v2512 = vld [vmem:[%s407 + $0xd60] sm:$0xff]
        %v2513 = vld [vmem:[%s407 + $0xd68] sm:$0xff]
        %v2514 = vld [vmem:[%s407 + $0xd70] sm:$0xff]
        %v2515 = vld [vmem:[%s407 + $0xd78] sm:$0xff]
        %v2516 = vld [vmem:[%s407 + $0xd80] sm:$0xff]
        %v2517 = vld [vmem:[%s407 + $0xd88] sm:$0xff]
        %v2518 = vld [vmem:[%s407 + $0xd90] sm:$0xff]
        %v2519 = vld [vmem:[%s407 + $0xd98] sm:$0xff]
        %v2520 = vld [vmem:[%s407 + $0xda0] sm:$0xff]
        %v2521 = vld [vmem:[%s407 + $0xda8] sm:$0xff]
        %v2522 = vld [vmem:[%s407 + $0xdb0] sm:$0xff]
        %v2523 = vld [vmem:[%s407 + $0xdb8] sm:$0xff]
        %v2524 = vld [vmem:[%s407 + $0xdc0] sm:$0xff]
        %v2525 = vld [vmem:[%s407 + $0xdc8] sm:$0xff]
        %v2526 = vld [vmem:[%s407 + $0xdd0] sm:$0xff]
        %v2527 = vld [vmem:[%s407 + $0xdd8] sm:$0xff]
        %v2528 = vld [vmem:[%s407 + $0xde0] sm:$0xff]
        %v2529 = vld [vmem:[%s407 + $0xde8] sm:$0xff]
        %v2530 = vld [vmem:[%s407 + $0xdf0] sm:$0xff]
        %v2531 = vld [vmem:[%s407 + $0xdf8] sm:$0xff]
        %v2532 = vld [vmem:[%s407 + $0xe00] sm:$0xff]
        %v2533 = vld [vmem:[%s407 + $0xe08] sm:$0xff]
        %v2534 = vld [vmem:[%s407 + $0xe10] sm:$0xff]
        %v2535 = vld [vmem:[%s407 + $0xe18] sm:$0xff]
        %v2536 = vld [vmem:[%s407 + $0xe20] sm:$0xff]
        %v2537 = vld [vmem:[%s407 + $0xe28] sm:$0xff]
        %v2538 = vld [vmem:[%s407 + $0xe30] sm:$0xff]
        %v2539 = vld [vmem:[%s407 + $0xe38] sm:$0xff]
        %v2540 = vld [vmem:[%s407 + $0xe40] sm:$0xff]
        %v2541 = vld [vmem:[%s407 + $0xe48] sm:$0xff]
        %v2542 = vld [vmem:[%s407 + $0xe50] sm:$0xff]
        %v2543 = vld [vmem:[%s407 + $0xe58] sm:$0xff]
        %v2544 = vld [vmem:[%s407 + $0xe60] sm:$0xff]
        %v2545 = vld [vmem:[%s407 + $0xe68] sm:$0xff]
        %v2546 = vld [vmem:[%s407 + $0xe70] sm:$0xff]
        %v2547 = vld [vmem:[%s407 + $0xe78] sm:$0xff]
        %v2548 = vld [vmem:[%s407 + $0xe80] sm:$0xff]
        %v2549 = vld [vmem:[%s407 + $0xe88] sm:$0xff]
        %v2550 = vld [vmem:[%s407 + $0xe90] sm:$0xff]
        %v2551 = vld [vmem:[%s407 + $0xe98] sm:$0xff]
        %v2552 = vld [vmem:[%s407 + $0xea0] sm:$0xff]
        %v2553 = vld [vmem:[%s407 + $0xea8] sm:$0xff]
        %v2554 = vld [vmem:[%s407 + $0xeb0] sm:$0xff]
        %v2555 = vld [vmem:[%s407 + $0xeb8] sm:$0xff]
        %v2556 = vld [vmem:[%s407 + $0xec0] sm:$0xff]
        %v2557 = vld [vmem:[%s407 + $0xec8] sm:$0xff]
        %v2558 = vld [vmem:[%s407 + $0xed0] sm:$0xff]
        %v2559 = vld [vmem:[%s407 + $0xed8] sm:$0xff]
        %v2560 = vld [vmem:[%s407 + $0xee0] sm:$0xff]
        %v2561 = vld [vmem:[%s407 + $0xee8] sm:$0xff]
        %v2562 = vld [vmem:[%s407 + $0xef0] sm:$0xff]
        %v2563 = vld [vmem:[%s407 + $0xef8] sm:$0xff]
        %v2564 = vld [vmem:[%s407 + $0xf00] sm:$0xff]
        %v2565 = vld [vmem:[%s407 + $0xf08] sm:$0xff]
        %v2566 = vld [vmem:[%s407 + $0xf10] sm:$0xff]
        %v2567 = vld [vmem:[%s407 + $0xf18] sm:$0xff]
        %v2568 = vld [vmem:[%s407 + $0xf20] sm:$0xff]
        %v2569 = vld [vmem:[%s407 + $0xf28] sm:$0xff]
        %v2570 = vld [vmem:[%s407 + $0xf30] sm:$0xff]
        %v2571 = vld [vmem:[%s407 + $0xf38] sm:$0xff]
        %v2572 = vld [vmem:[%s407 + $0xf40] sm:$0xff]
        %v2573 = vld [vmem:[%s407 + $0xf48] sm:$0xff]
        %v2574 = vld [vmem:[%s407 + $0xf50] sm:$0xff]
        %v2575 = vld [vmem:[%s407 + $0xf58] sm:$0xff]
        %v2576 = vld [vmem:[%s407 + $0xf60] sm:$0xff]
        %v2577 = vld [vmem:[%s407 + $0xf68] sm:$0xff]
        %v2578 = vld [vmem:[%s407 + $0xf70] sm:$0xff]
        %v2579 = vld [vmem:[%s407 + $0xf78] sm:$0xff]
        %v2580 = vld [vmem:[%s407 + $0xf80] sm:$0xff]
        %v2581 = vld [vmem:[%s407 + $0xf88] sm:$0xff]
        %v2582 = vld [vmem:[%s407 + $0xf90] sm:$0xff]
        %v2583 = vld [vmem:[%s407 + $0xf98] sm:$0xff]
        %v2584 = vld [vmem:[%s407 + $0xfa0] sm:$0xff]
        %v2585 = vld [vmem:[%s407 + $0xfa8] sm:$0xff]
        %v2586 = vld [vmem:[%s407 + $0xfb0] sm:$0xff]
        %v2587 = vld [vmem:[%s407 + $0xfb8] sm:$0xff]
        %v2588 = vld [vmem:[%s407 + $0xfc0] sm:$0xff]
        %v2589 = vld [vmem:[%s407 + $0xfc8] sm:$0xff]
        %v2590 = vld [vmem:[%s407 + $0xfd0] sm:$0xff]
        %v2591 = vld [vmem:[%s407 + $0xfd8] sm:$0xff]
        %v2592 = vld [vmem:[%s407 + $0xfe0] sm:$0xff]
        %v2593 = vld [vmem:[%s407 + $0xfe8] sm:$0xff]
        %v2594 = vld [vmem:[%s407 + $0xff0] sm:$0xff]
        %v2595 = vld [vmem:[%s407 + $0xff8] sm:$0xff]
        %v2596 = vld [vmem:[%s407 + $0x1000] sm:$0xff]
        %v2597 = vld [vmem:[%s407 + $0x1008] sm:$0xff]
        %v2598 = vld [vmem:[%s407 + $0x1010] sm:$0xff]
        %v2599 = vld [vmem:[%s407 + $0x1018] sm:$0xff]
        %v2600 = vld [vmem:[%s407 + $0x1020] sm:$0xff]
        %v2601 = vld [vmem:[%s407 + $0x1028] sm:$0xff]
        %v2602 = vld [vmem:[%s407 + $0x1030] sm:$0xff]
        %v2603 = vld [vmem:[%s407 + $0x1038] sm:$0xff]
        %v2604 = vld [vmem:[%s407 + $0x1040] sm:$0xff]
        %v2605 = vld [vmem:[%s407 + $0x1048] sm:$0xff]
        %v2606 = vld [vmem:[%s407 + $0x1050] sm:$0xff]
        %v2607 = vld [vmem:[%s407 + $0x1058] sm:$0xff]
        %v2608 = vld [vmem:[%s407 + $0x1060] sm:$0xff]
        %v2609 = vld [vmem:[%s407 + $0x1068] sm:$0xff]
        %v2610 = vld [vmem:[%s407 + $0x1070] sm:$0xff]
        %v2611 = vld [vmem:[%s407 + $0x1078] sm:$0xff]
        %v2612 = vld [vmem:[%s407 + $0x1080] sm:$0xff]
        %v2613 = vld [vmem:[%s407 + $0x1088] sm:$0xff]
        %v2614 = vld [vmem:[%s407 + $0x1090] sm:$0xff]
        %v2615 = vld [vmem:[%s407 + $0x1098] sm:$0xff]
        %v2616 = vld [vmem:[%s407 + $0x10a0] sm:$0xff]
        %v2617 = vld [vmem:[%s407 + $0x10a8] sm:$0xff]
        %v2618 = vld [vmem:[%s407 + $0x10b0] sm:$0xff]
        %v2619 = vld [vmem:[%s407 + $0x10b8] sm:$0xff]
        %v2620 = vld [vmem:[%s407 + $0x10c0] sm:$0xff]
        %v2621 = vld [vmem:[%s407 + $0x10c8] sm:$0xff]
        %v2622 = vld [vmem:[%s407 + $0x10d0] sm:$0xff]
        %v2623 = vld [vmem:[%s407 + $0x10d8] sm:$0xff]
        %v2624 = vld [vmem:[%s407 + $0x10e0] sm:$0xff]
        %v2625 = vld [vmem:[%s407 + $0x10e8] sm:$0xff]
        %v2626 = vld [vmem:[%s407 + $0x10f0] sm:$0xff]
        %v2627 = vld [vmem:[%s407 + $0x10f8] sm:$0xff]
        %v2628 = vld [vmem:[%s407 + $0x1100] sm:$0xff]
        %v2629 = vld [vmem:[%s407 + $0x1108] sm:$0xff]
        %v2630 = vld [vmem:[%s407 + $0x1110] sm:$0xff]
        %v2631 = vld [vmem:[%s407 + $0x1118] sm:$0xff]
        %v2632 = vld [vmem:[%s407 + $0x1120] sm:$0xff]
        %v2633 = vld [vmem:[%s407 + $0x1128] sm:$0xff]
        %v2634 = vld [vmem:[%s407 + $0x1130] sm:$0xff]
        %v2635 = vld [vmem:[%s407 + $0x1138] sm:$0xff]
        %v2636 = vld [vmem:[%s407 + $0x1140] sm:$0xff]
        %v2637 = vld [vmem:[%s407 + $0x1148] sm:$0xff]
        %v2638 = vld [vmem:[%s407 + $0x1150] sm:$0xff]
        %v2639 = vld [vmem:[%s407 + $0x1158] sm:$0xff]
        %v2640 = vld [vmem:[%s407 + $0x1160] sm:$0xff]
        %v2641 = vld [vmem:[%s407 + $0x1168] sm:$0xff]
        %v2642 = vld [vmem:[%s407 + $0x1170] sm:$0xff]
        %v2643 = vld [vmem:[%s407 + $0x1178] sm:$0xff]
        %v2644 = vld [vmem:[%s407 + $0x1180] sm:$0xff]
        %v2645 = vld [vmem:[%s407 + $0x1188] sm:$0xff]
        %v2646 = vld [vmem:[%s407 + $0x1190] sm:$0xff]
        %v2647 = vld [vmem:[%s407 + $0x1198] sm:$0xff]
        %v2648 = vld [vmem:[%s407 + $0x11a0] sm:$0xff]
        %v2649 = vld [vmem:[%s407 + $0x11a8] sm:$0xff]
        %v2650 = vld [vmem:[%s407 + $0x11b0] sm:$0xff]
        %v2651 = vld [vmem:[%s407 + $0x11b8] sm:$0xff]
        %v2652 = vld [vmem:[%s407 + $0x11c0] sm:$0xff]
        %v2653 = vld [vmem:[%s407 + $0x11c8] sm:$0xff]
        %v2654 = vld [vmem:[%s407 + $0x11d0] sm:$0xff]
        %v2655 = vld [vmem:[%s407 + $0x11d8] sm:$0xff]
        %v2656 = vld [vmem:[%s407 + $0x11e0] sm:$0xff]
        %v2657 = vld [vmem:[%s407 + $0x11e8] sm:$0xff]
        %v2658 = vld [vmem:[%s407 + $0x11f0] sm:$0xff]
        %v2659 = vld [vmem:[%s407 + $0x11f8] sm:$0xff]
        %v2660 = vld [vmem:[%s407 + $0x1200] sm:$0xff]
        %v2661 = vld [vmem:[%s407 + $0x1208] sm:$0xff]
        %v2662 = vld [vmem:[%s407 + $0x1210] sm:$0xff]
        %v2663 = vld [vmem:[%s407 + $0x1218] sm:$0xff]
        %v2664 = vld [vmem:[%s407 + $0x1220] sm:$0xff]
        %v2665 = vld [vmem:[%s407 + $0x1228] sm:$0xff]
        %v2666 = vld [vmem:[%s407 + $0x1230] sm:$0xff]
        %v2667 = vld [vmem:[%s407 + $0x1238] sm:$0xff]
        %v2668 = vld [vmem:[%s407 + $0x1240] sm:$0xff]
        %v2669 = vld [vmem:[%s407 + $0x1248] sm:$0xff]
        %v2670 = vld [vmem:[%s407 + $0x1250] sm:$0xff]
        %v2671 = vld [vmem:[%s407 + $0x1258] sm:$0xff]
        %v2672 = vld [vmem:[%s407 + $0x1260] sm:$0xff]
        %v2673 = vld [vmem:[%s407 + $0x1268] sm:$0xff]
        %v2674 = vld [vmem:[%s407 + $0x1270] sm:$0xff]
        %v2675 = vld [vmem:[%s407 + $0x1278] sm:$0xff]
        %v2676 = vld [vmem:[%s407 + $0x1280] sm:$0xff]
        %v2677 = vld [vmem:[%s407 + $0x1288] sm:$0xff]
        %v2678 = vld [vmem:[%s407 + $0x1290] sm:$0xff]
        %v2679 = vld [vmem:[%s407 + $0x1298] sm:$0xff]
        %v2680 = vld [vmem:[%s407 + $0x12a0] sm:$0xff]
        %v2681 = vld [vmem:[%s407 + $0x12a8] sm:$0xff]
        %v2682 = vld [vmem:[%s407 + $0x12b0] sm:$0xff]
        %v2683 = vld [vmem:[%s407 + $0x12b8] sm:$0xff]
        %v2684 = vld [vmem:[%s407 + $0x12c0] sm:$0xff]
        %v2685 = vld [vmem:[%s407 + $0x12c8] sm:$0xff]
        %v2686 = vld [vmem:[%s407 + $0x12d0] sm:$0xff]
        %v2687 = vld [vmem:[%s407 + $0x12d8] sm:$0xff]
        %v2688 = vld [vmem:[%s407 + $0x12e0] sm:$0xff]
        %v2689 = vld [vmem:[%s407 + $0x12e8] sm:$0xff]
        %v2690 = vld [vmem:[%s407 + $0x12f0] sm:$0xff]
        %v2691 = vld [vmem:[%s407 + $0x12f8] sm:$0xff]
        %v2692 = vld [vmem:[%s407 + $0x1300] sm:$0xff]
        %v2693 = vld [vmem:[%s407 + $0x1308] sm:$0xff]
        %v2694 = vld [vmem:[%s407 + $0x1310] sm:$0xff]
        %v2695 = vld [vmem:[%s407 + $0x1318] sm:$0xff]
        %v2696 = vld [vmem:[%s407 + $0x1320] sm:$0xff]
        %v2697 = vld [vmem:[%s407 + $0x1328] sm:$0xff]
        %v2698 = vld [vmem:[%s407 + $0x1330] sm:$0xff]
        %v2699 = vld [vmem:[%s407 + $0x1338] sm:$0xff]
        %v2700 = vld [vmem:[%s407 + $0x1340] sm:$0xff]
        %v2701 = vld [vmem:[%s407 + $0x1348] sm:$0xff]
        %v2702 = vld [vmem:[%s407 + $0x1350] sm:$0xff]
        %v2703 = vld [vmem:[%s407 + $0x1358] sm:$0xff]
        %v2704 = vld [vmem:[%s407 + $0x1360] sm:$0xff]
        %v2705 = vld [vmem:[%s407 + $0x1368] sm:$0xff]
        %v2706 = vld [vmem:[%s407 + $0x1370] sm:$0xff]
        %v2707 = vld [vmem:[%s407 + $0x1378] sm:$0xff]
        %v2708 = vld [vmem:[%s407 + $0x1380] sm:$0xff]
        %v2709 = vld [vmem:[%s407 + $0x1388] sm:$0xff]
        %v2710 = vld [vmem:[%s407 + $0x1390] sm:$0xff]
        %v2711 = vld [vmem:[%s407 + $0x1398] sm:$0xff]
        %v2712 = vld [vmem:[%s407 + $0x13a0] sm:$0xff]
        %v2713 = vld [vmem:[%s407 + $0x13a8] sm:$0xff]
        %v2714 = vld [vmem:[%s407 + $0x13b0] sm:$0xff]
        %v2715 = vld [vmem:[%s407 + $0x13b8] sm:$0xff]
        %v2716 = vld [vmem:[%s407 + $0x13c0] sm:$0xff]
        %v2717 = vld [vmem:[%s407 + $0x13c8] sm:$0xff]
        %v2718 = vld [vmem:[%s407 + $0x13d0] sm:$0xff]
        %v2719 = vld [vmem:[%s407 + $0x13d8] sm:$0xff]
        %v2720 = vld [vmem:[%s407 + $0x13e0] sm:$0xff]
        %v2721 = vld [vmem:[%s407 + $0x13e8] sm:$0xff]
        %v2722 = vld [vmem:[%s407 + $0x13f0] sm:$0xff]
        %v2723 = vld [vmem:[%s407 + $0x13f8] sm:$0xff]
        %v2724 = vld [vmem:[%s407 + $0x1400] sm:$0xff]
        %v2725 = vld [vmem:[%s407 + $0x1408] sm:$0xff]
        %v2726 = vld [vmem:[%s407 + $0x1410] sm:$0xff]
        %v2727 = vld [vmem:[%s407 + $0x1418] sm:$0xff]
        %v2728 = vld [vmem:[%s407 + $0x1420] sm:$0xff]
        %v2729 = vld [vmem:[%s407 + $0x1428] sm:$0xff]
        %v2730 = vld [vmem:[%s407 + $0x1430] sm:$0xff]
        %v2731 = vld [vmem:[%s407 + $0x1438] sm:$0xff]
        %v2732 = vld [vmem:[%s407 + $0x1440] sm:$0xff]
        %v2733 = vld [vmem:[%s407 + $0x1448] sm:$0xff]
        %v2734 = vld [vmem:[%s407 + $0x1450] sm:$0xff]
        %v2735 = vld [vmem:[%s407 + $0x1458] sm:$0xff]
        %v2736 = vld [vmem:[%s407 + $0x1460] sm:$0xff]
        %v2737 = vld [vmem:[%s407 + $0x1468] sm:$0xff]
        %v2738 = vld [vmem:[%s407 + $0x1470] sm:$0xff]
        %v2739 = vld [vmem:[%s407 + $0x1478] sm:$0xff]
        %v2740 = vld [vmem:[%s407 + $0x1480] sm:$0xff]
        %v2741 = vld [vmem:[%s407 + $0x1488] sm:$0xff]
        %v2742 = vld [vmem:[%s407 + $0x1490] sm:$0xff]
        %v2743 = vld [vmem:[%s407 + $0x1498] sm:$0xff]
        %v2744 = vld [vmem:[%s407 + $0x14a0] sm:$0xff]
        %v2745 = vld [vmem:[%s407 + $0x14a8] sm:$0xff]
        %v2746 = vld [vmem:[%s407 + $0x14b0] sm:$0xff]
        %v2747 = vld [vmem:[%s407 + $0x14b8] sm:$0xff]
        %v2748 = vld [vmem:[%s407 + $0x14c0] sm:$0xff]
        %v2749 = vld [vmem:[%s407 + $0x14c8] sm:$0xff]
        %v2750 = vld [vmem:[%s407 + $0x14d0] sm:$0xff]
        %v2751 = vld [vmem:[%s407 + $0x14d8] sm:$0xff]
        %v2752 = vld [vmem:[%s407 + $0x14e0] sm:$0xff]
        %v2753 = vld [vmem:[%s407 + $0x14e8] sm:$0xff]
        %v2754 = vld [vmem:[%s407 + $0x14f0] sm:$0xff]
        %v2755 = vld [vmem:[%s407 + $0x14f8] sm:$0xff]
        %v2756 = vld [vmem:[%s407 + $0x1500] sm:$0xff]
        %v2757 = vld [vmem:[%s407 + $0x1508] sm:$0xff]
        %v2758 = vld [vmem:[%s407 + $0x1510] sm:$0xff]
        %v2759 = vld [vmem:[%s407 + $0x1518] sm:$0xff]
        %v2760 = vld [vmem:[%s407 + $0x1520] sm:$0xff]
        %v2761 = vld [vmem:[%s407 + $0x1528] sm:$0xff]
        %v2762 = vld [vmem:[%s407 + $0x1530] sm:$0xff]
        %v2763 = vld [vmem:[%s407 + $0x1538] sm:$0xff]
        %v2764 = vld [vmem:[%s407 + $0x1540] sm:$0xff]
        %v2765 = vld [vmem:[%s407 + $0x1548] sm:$0xff]
        %v2766 = vld [vmem:[%s407 + $0x1550] sm:$0xff]
        %v2767 = vld [vmem:[%s407 + $0x1558] sm:$0xff]
        %v2768 = vld [vmem:[%s407 + $0x1560] sm:$0xff]
        %v2769 = vld [vmem:[%s407 + $0x1568] sm:$0xff]
        %v2770 = vld [vmem:[%s407 + $0x1570] sm:$0xff]
        %v2771 = vld [vmem:[%s407 + $0x1578] sm:$0xff]
        %v2772 = vld [vmem:[%s407 + $0x1580] sm:$0xff]
        %v2773 = vld [vmem:[%s407 + $0x1588] sm:$0xff]
        %v2774 = vld [vmem:[%s407 + $0x1590] sm:$0xff]
        %v2775 = vld [vmem:[%s407 + $0x1598] sm:$0xff]
        %v2776 = vld [vmem:[%s407 + $0x15a0] sm:$0xff]
        %v2777 = vld [vmem:[%s407 + $0x15a8] sm:$0xff]
        %v2778 = vld [vmem:[%s407 + $0x15b0] sm:$0xff]
        %v2779 = vld [vmem:[%s407 + $0x15b8] sm:$0xff]
        %v2780 = vld [vmem:[%s407 + $0x15c0] sm:$0xff]
        %v2781 = vld [vmem:[%s407 + $0x15c8] sm:$0xff]
        %v2782 = vld [vmem:[%s407 + $0x15d0] sm:$0xff]
        %v2783 = vld [vmem:[%s407 + $0x15d8] sm:$0xff]
        %v2784 = vld [vmem:[%s407 + $0x15e0] sm:$0xff]
        %v2785 = vld [vmem:[%s407 + $0x15e8] sm:$0xff]
        %v2786 = vld [vmem:[%s407 + $0x15f0] sm:$0xff]
        %v2787 = vld [vmem:[%s407 + $0x15f8] sm:$0xff]
        %v2788 = vld [vmem:[%s407 + $0x1600] sm:$0xff]
        %v2789 = vld [vmem:[%s407 + $0x1608] sm:$0xff]
        %v2790 = vld [vmem:[%s407 + $0x1610] sm:$0xff]
        %v2791 = vld [vmem:[%s407 + $0x1618] sm:$0xff]
        %v2792 = vld [vmem:[%s407 + $0x1620] sm:$0xff]
        %v2793 = vld [vmem:[%s407 + $0x1628] sm:$0xff]
        %v2794 = vld [vmem:[%s407 + $0x1630] sm:$0xff]
        %v2795 = vld [vmem:[%s407 + $0x1638] sm:$0xff]
        %v2796 = vld [vmem:[%s407 + $0x1640] sm:$0xff]
        %v2797 = vld [vmem:[%s407 + $0x1648] sm:$0xff]
        %v2798 = vld [vmem:[%s407 + $0x1650] sm:$0xff]
        %v2799 = vld [vmem:[%s407 + $0x1658] sm:$0xff]
        %v2800 = vld [vmem:[%s407 + $0x1660] sm:$0xff]
        %v2801 = vld [vmem:[%s407 + $0x1668] sm:$0xff]
        %v2802 = vld [vmem:[%s407 + $0x1670] sm:$0xff]
        %v2803 = vld [vmem:[%s407 + $0x1678] sm:$0xff]
        %v2804 = vld [vmem:[%s407 + $0x1680] sm:$0xff]
        %v2805 = vld [vmem:[%s407 + $0x1688] sm:$0xff]
        %v2806 = vld [vmem:[%s407 + $0x1690] sm:$0xff]
        %v2807 = vld [vmem:[%s407 + $0x1698] sm:$0xff]
        %v2808 = vld [vmem:[%s407 + $0x16a0] sm:$0xff]
        %v2809 = vld [vmem:[%s407 + $0x16a8] sm:$0xff]
        %v2810 = vld [vmem:[%s407 + $0x16b0] sm:$0xff]
        %v2811 = vld [vmem:[%s407 + $0x16b8] sm:$0xff]
        %v2812 = vld [vmem:[%s407 + $0x16c0] sm:$0xff]
        %v2813 = vld [vmem:[%s407 + $0x16c8] sm:$0xff]
        %v2814 = vld [vmem:[%s407 + $0x16d0] sm:$0xff]
        %v2815 = vld [vmem:[%s407 + $0x16d8] sm:$0xff]
        %v2816 = vld [vmem:[%s407 + $0x16e0] sm:$0xff]
        %v2817 = vld [vmem:[%s407 + $0x16e8] sm:$0xff]
        %v2818 = vld [vmem:[%s407 + $0x16f0] sm:$0xff]
        %v2819 = vld [vmem:[%s407 + $0x16f8] sm:$0xff]
        %v2820 = vld [vmem:[%s407 + $0x1700] sm:$0xff]
        %v2821 = vld [vmem:[%s407 + $0x1708] sm:$0xff]
        %v2822 = vld [vmem:[%s407 + $0x1710] sm:$0xff]
        %v2823 = vld [vmem:[%s407 + $0x1718] sm:$0xff]
        %v2824 = vld [vmem:[%s407 + $0x1720] sm:$0xff]
        %v2825 = vld [vmem:[%s407 + $0x1728] sm:$0xff]
        %v2826 = vld [vmem:[%s407 + $0x1730] sm:$0xff]
        %v2827 = vld [vmem:[%s407 + $0x1738] sm:$0xff]
        %v2828 = vld [vmem:[%s407 + $0x1740] sm:$0xff]
        %v2829 = vld [vmem:[%s407 + $0x1748] sm:$0xff]
        %v2830 = vld [vmem:[%s407 + $0x1750] sm:$0xff]
        %v2831 = vld [vmem:[%s407 + $0x1758] sm:$0xff]
        %v2832 = vld [vmem:[%s407 + $0x1760] sm:$0xff]
        %v2833 = vld [vmem:[%s407 + $0x1768] sm:$0xff]
        %v2834 = vld [vmem:[%s407 + $0x1770] sm:$0xff]
        %v2835 = vld [vmem:[%s407 + $0x1778] sm:$0xff]
        %v2836 = vld [vmem:[%s407 + $0x1780] sm:$0xff]
        %v2837 = vld [vmem:[%s407 + $0x1788] sm:$0xff]
        %v2838 = vld [vmem:[%s407 + $0x1790] sm:$0xff]
        %v2839 = vld [vmem:[%s407 + $0x1798] sm:$0xff]
        %v2840 = vld [vmem:[%s407 + $0x17a0] sm:$0xff]
        %v2841 = vld [vmem:[%s407 + $0x17a8] sm:$0xff]
        %v2842 = vld [vmem:[%s407 + $0x17b0] sm:$0xff]
        %v2843 = vld [vmem:[%s407 + $0x17b8] sm:$0xff]
        %v2844 = vld [vmem:[%s407 + $0x17c0] sm:$0xff]
        %v2845 = vld [vmem:[%s407 + $0x17c8] sm:$0xff]
        %v2846 = vld [vmem:[%s407 + $0x17d0] sm:$0xff]
        %v2847 = vld [vmem:[%s407 + $0x17d8] sm:$0xff]
        %v2848 = vld [vmem:[%s407 + $0x17e0] sm:$0xff]
        %v2849 = vld [vmem:[%s407 + $0x17e8] sm:$0xff]
        %v2850 = vld [vmem:[%s407 + $0x17f0] sm:$0xff]
        %v2851 = vld [vmem:[%s407 + $0x17f8] sm:$0xff]
        %v2852 = vld [vmem:[%s407 + $0x1800] sm:$0xff]
        %v2853 = vld [vmem:[%s407 + $0x1808] sm:$0xff]
        %v2854 = vld [vmem:[%s407 + $0x1810] sm:$0xff]
        %v2855 = vld [vmem:[%s407 + $0x1818] sm:$0xff]
        %v2856 = vld [vmem:[%s407 + $0x1820] sm:$0xff]
        %v2857 = vld [vmem:[%s407 + $0x1828] sm:$0xff]
        %v2858 = vld [vmem:[%s407 + $0x1830] sm:$0xff]
        %v2859 = vld [vmem:[%s407 + $0x1838] sm:$0xff]
        %v2860 = vld [vmem:[%s407 + $0x1840] sm:$0xff]
        %v2861 = vld [vmem:[%s407 + $0x1848] sm:$0xff]
        %v2862 = vld [vmem:[%s407 + $0x1850] sm:$0xff]
        %v2863 = vld [vmem:[%s407 + $0x1858] sm:$0xff]
        %v2864 = vld [vmem:[%s407 + $0x1860] sm:$0xff]
        %v2865 = vld [vmem:[%s407 + $0x1868] sm:$0xff]
        %v2866 = vld [vmem:[%s407 + $0x1870] sm:$0xff]
        %v2867 = vld [vmem:[%s407 + $0x1878] sm:$0xff]
        %v2868 = vld [vmem:[%s407 + $0x1880] sm:$0xff]
        %v2869 = vld [vmem:[%s407 + $0x1888] sm:$0xff]
        %v2870 = vld [vmem:[%s407 + $0x1890] sm:$0xff]
        %v2871 = vld [vmem:[%s407 + $0x1898] sm:$0xff]
        %v2872 = vld [vmem:[%s407 + $0x18a0] sm:$0xff]
        %v2873 = vld [vmem:[%s407 + $0x18a8] sm:$0xff]
        %v2874 = vld [vmem:[%s407 + $0x18b0] sm:$0xff]
        %v2875 = vld [vmem:[%s407 + $0x18b8] sm:$0xff]
        %v2876 = vld [vmem:[%s407 + $0x18c0] sm:$0xff]
        %v2877 = vld [vmem:[%s407 + $0x18c8] sm:$0xff]
        %v2878 = vld [vmem:[%s407 + $0x18d0] sm:$0xff]
        %v2879 = vld [vmem:[%s407 + $0x18d8] sm:$0xff]
        %v2880 = vld [vmem:[%s407 + $0x18e0] sm:$0xff]
        %v2881 = vld [vmem:[%s407 + $0x18e8] sm:$0xff]
        %v2882 = vld [vmem:[%s407 + $0x18f0] sm:$0xff]
        %v2883 = vld [vmem:[%s407 + $0x18f8] sm:$0xff]
        %v2884 = vld [vmem:[%s407 + $0x1900] sm:$0xff]
        %v2885 = vld [vmem:[%s407 + $0x1908] sm:$0xff]
        %v2886 = vld [vmem:[%s407 + $0x1910] sm:$0xff]
        %v2887 = vld [vmem:[%s407 + $0x1918] sm:$0xff]
        %v2888 = vld [vmem:[%s407 + $0x1920] sm:$0xff]
        %v2889 = vld [vmem:[%s407 + $0x1928] sm:$0xff]
        %v2890 = vld [vmem:[%s407 + $0x1930] sm:$0xff]
        %v2891 = vld [vmem:[%s407 + $0x1938] sm:$0xff]
        %v2892 = vld [vmem:[%s407 + $0x1940] sm:$0xff]
        %v2893 = vld [vmem:[%s407 + $0x1948] sm:$0xff]
        %v2894 = vld [vmem:[%s407 + $0x1950] sm:$0xff]
        %v2895 = vld [vmem:[%s407 + $0x1958] sm:$0xff]
        %v2896 = vld [vmem:[%s407 + $0x1960] sm:$0xff]
        %v2897 = vld [vmem:[%s407 + $0x1968] sm:$0xff]
        %v2898 = vld [vmem:[%s407 + $0x1970] sm:$0xff]
        %v2899 = vld [vmem:[%s407 + $0x1978] sm:$0xff]
        %v2900 = vld [vmem:[%s407 + $0x1980] sm:$0xff]
        %v2901 = vld [vmem:[%s407 + $0x1988] sm:$0xff]
        %v2902 = vld [vmem:[%s407 + $0x1990] sm:$0xff]
        %v2903 = vld [vmem:[%s407 + $0x1998] sm:$0xff]
        %v2904 = vld [vmem:[%s407 + $0x19a0] sm:$0xff]
        %v2905 = vld [vmem:[%s407 + $0x19a8] sm:$0xff]
        %v2906 = vld [vmem:[%s407 + $0x19b0] sm:$0xff]
        %v2907 = vld [vmem:[%s407 + $0x19b8] sm:$0xff]
        %v2908 = vld [vmem:[%s407 + $0x19c0] sm:$0xff]
        %v2909 = vld [vmem:[%s407 + $0x19c8] sm:$0xff]
        %v2910 = vld [vmem:[%s407 + $0x19d0] sm:$0xff]
        %v2911 = vld [vmem:[%s407 + $0x19d8] sm:$0xff]
        %v2912 = vld [vmem:[%s407 + $0x19e0] sm:$0xff]
        %v2913 = vld [vmem:[%s407 + $0x19e8] sm:$0xff]
        %v2914 = vld [vmem:[%s407 + $0x19f0] sm:$0xff]
        %v2915 = vld [vmem:[%s407 + $0x19f8] sm:$0xff]
        %v2916 = vld [vmem:[%s407 + $0x1a00] sm:$0xff]
        %v2917 = vld [vmem:[%s407 + $0x1a08] sm:$0xff]
        %v2918 = vld [vmem:[%s407 + $0x1a10] sm:$0xff]
        %v2919 = vld [vmem:[%s407 + $0x1a18] sm:$0xff]
        %v2920 = vld [vmem:[%s407 + $0x1a20] sm:$0xff]
        %v2921 = vld [vmem:[%s407 + $0x1a28] sm:$0xff]
        %v2922 = vld [vmem:[%s407 + $0x1a30] sm:$0xff]
        %v2923 = vld [vmem:[%s407 + $0x1a38] sm:$0xff]
        %v2924 = vld [vmem:[%s407 + $0x1a40] sm:$0xff]
        %v2925 = vld [vmem:[%s407 + $0x1a48] sm:$0xff]
        %v2926 = vld [vmem:[%s407 + $0x1a50] sm:$0xff]
        %v2927 = vld [vmem:[%s407 + $0x1a58] sm:$0xff]
        %v2928 = vld [vmem:[%s407 + $0x1a60] sm:$0xff]
        %v2929 = vld [vmem:[%s407 + $0x1a68] sm:$0xff]
        %v2930 = vld [vmem:[%s407 + $0x1a70] sm:$0xff]
        %v2931 = vld [vmem:[%s407 + $0x1a78] sm:$0xff]
        %v2932 = vld [vmem:[%s407 + $0x1a80] sm:$0xff]
        %v2933 = vld [vmem:[%s407 + $0x1a88] sm:$0xff]
        %v2934 = vld [vmem:[%s407 + $0x1a90] sm:$0xff]
        %v2935 = vld [vmem:[%s407 + $0x1a98] sm:$0xff]
        %v2936 = vld [vmem:[%s407 + $0x1aa0] sm:$0xff]
        %v2937 = vld [vmem:[%s407 + $0x1aa8] sm:$0xff]
        %v2938 = vld [vmem:[%s407 + $0x1ab0] sm:$0xff]
        %v2939 = vld [vmem:[%s407 + $0x1ab8] sm:$0xff]
        %v2940 = vld [vmem:[%s407 + $0x1ac0] sm:$0xff]
        %v2941 = vld [vmem:[%s407 + $0x1ac8] sm:$0xff]
        %v2942 = vld [vmem:[%s407 + $0x1ad0] sm:$0xff]
        %v2943 = vld [vmem:[%s407 + $0x1ad8] sm:$0xff]
        %v2944 = vld [vmem:[%s407 + $0x1ae0] sm:$0xff]
        %v2945 = vld [vmem:[%s407 + $0x1ae8] sm:$0xff]
        %v2946 = vld [vmem:[%s407 + $0x1af0] sm:$0xff]
        %v2947 = vld [vmem:[%s407 + $0x1af8] sm:$0xff]
        %v2948 = vld [vmem:[%s407 + $0x1b00] sm:$0xff]
        %v2949 = vld [vmem:[%s407 + $0x1b08] sm:$0xff]
        %v2950 = vld [vmem:[%s407 + $0x1b10] sm:$0xff]
        %v2951 = vld [vmem:[%s407 + $0x1b18] sm:$0xff]
        %v2952 = vld [vmem:[%s407 + $0x1b20] sm:$0xff]
        %v2953 = vld [vmem:[%s407 + $0x1b28] sm:$0xff]
        %v2954 = vld [vmem:[%s407 + $0x1b30] sm:$0xff]
        %v2955 = vld [vmem:[%s407 + $0x1b38] sm:$0xff]
        %v2956 = vld [vmem:[%s407 + $0x1b40] sm:$0xff]
        %v2957 = vld [vmem:[%s407 + $0x1b48] sm:$0xff]
        %v2958 = vld [vmem:[%s407 + $0x1b50] sm:$0xff]
        %v2959 = vld [vmem:[%s407 + $0x1b58] sm:$0xff]
        %v2960 = vld [vmem:[%s407 + $0x1b60] sm:$0xff]
        %v2961 = vld [vmem:[%s407 + $0x1b68] sm:$0xff]
        %v2962 = vld [vmem:[%s407 + $0x1b70] sm:$0xff]
        %v2963 = vld [vmem:[%s407 + $0x1b78] sm:$0xff]
        %v2964 = vld [vmem:[%s407 + $0x1b80] sm:$0xff]
        %v2965 = vld [vmem:[%s407 + $0x1b88] sm:$0xff]
        %v2966 = vld [vmem:[%s407 + $0x1b90] sm:$0xff]
        %v2967 = vld [vmem:[%s407 + $0x1b98] sm:$0xff]
        %v2968 = vld [vmem:[%s407 + $0x1ba0] sm:$0xff]
        %v2969 = vld [vmem:[%s407 + $0x1ba8] sm:$0xff]
        %v2970 = vld [vmem:[%s407 + $0x1bb0] sm:$0xff]
        %v2971 = vld [vmem:[%s407 + $0x1bb8] sm:$0xff]
        %v2972 = vld [vmem:[%s407 + $0x1bc0] sm:$0xff]
        %v2973 = vld [vmem:[%s407 + $0x1bc8] sm:$0xff]
        %v2974 = vld [vmem:[%s407 + $0x1bd0] sm:$0xff]
        %v2975 = vld [vmem:[%s407 + $0x1bd8] sm:$0xff]
        %v2976 = vld [vmem:[%s407 + $0x1be0] sm:$0xff]
        %v2977 = vld [vmem:[%s407 + $0x1be8] sm:$0xff]
        %v2978 = vld [vmem:[%s407 + $0x1bf0] sm:$0xff]
        %v2979 = vld [vmem:[%s407 + $0x1bf8] sm:$0xff]
        %v2980 = vld [vmem:[%s407 + $0x1c00] sm:$0xff]
        %v2981 = vld [vmem:[%s407 + $0x1c08] sm:$0xff]
        %v2982 = vld [vmem:[%s407 + $0x1c10] sm:$0xff]
        %v2983 = vld [vmem:[%s407 + $0x1c18] sm:$0xff]
        %v2984 = vld [vmem:[%s407 + $0x1c20] sm:$0xff]
        %v2985 = vld [vmem:[%s407 + $0x1c28] sm:$0xff]
        %v2986 = vld [vmem:[%s407 + $0x1c30] sm:$0xff]
        %v2987 = vld [vmem:[%s407 + $0x1c38] sm:$0xff]
        %v2988 = vld [vmem:[%s407 + $0x1c40] sm:$0xff]
        %v2989 = vld [vmem:[%s407 + $0x1c48] sm:$0xff]
        %v2990 = vld [vmem:[%s407 + $0x1c50] sm:$0xff]
        %v2991 = vld [vmem:[%s407 + $0x1c58] sm:$0xff]
        %v2992 = vld [vmem:[%s407 + $0x1c60] sm:$0xff]
        %v2993 = vld [vmem:[%s407 + $0x1c68] sm:$0xff]
        %v2994 = vld [vmem:[%s407 + $0x1c70] sm:$0xff]
        %v2995 = vld [vmem:[%s407 + $0x1c78] sm:$0xff]
        %v2996 = vld [vmem:[%s407 + $0x1c80] sm:$0xff]
        %v2997 = vld [vmem:[%s407 + $0x1c88] sm:$0xff]
        %v2998 = vld [vmem:[%s407 + $0x1c90] sm:$0xff]
        %v2999 = vld [vmem:[%s407 + $0x1c98] sm:$0xff]
        %v3000 = vld [vmem:[%s407 + $0x1ca0] sm:$0xff]
        %v3001 = vld [vmem:[%s407 + $0x1ca8] sm:$0xff]
        %v3002 = vld [vmem:[%s407 + $0x1cb0] sm:$0xff]
        %v3003 = vld [vmem:[%s407 + $0x1cb8] sm:$0xff]
        %v3004 = vld [vmem:[%s407 + $0x1cc0] sm:$0xff]
        %v3005 = vld [vmem:[%s407 + $0x1cc8] sm:$0xff]
        %v3006 = vld [vmem:[%s407 + $0x1cd0] sm:$0xff]
        %v3007 = vld [vmem:[%s407 + $0x1cd8] sm:$0xff]
        %v3008 = vld [vmem:[%s407 + $0x1ce0] sm:$0xff]
        %v3009 = vld [vmem:[%s407 + $0x1ce8] sm:$0xff]
        %v3010 = vld [vmem:[%s407 + $0x1cf0] sm:$0xff]
        %v3011 = vld [vmem:[%s407 + $0x1cf8] sm:$0xff]
        %v3012 = vld [vmem:[%s407 + $0x1d00] sm:$0xff]
        %v3013 = vld [vmem:[%s407 + $0x1d08] sm:$0xff]
        %v3014 = vld [vmem:[%s407 + $0x1d10] sm:$0xff]
        %v3015 = vld [vmem:[%s407 + $0x1d18] sm:$0xff]
        %v3016 = vld [vmem:[%s407 + $0x1d20] sm:$0xff]
        %v3017 = vld [vmem:[%s407 + $0x1d28] sm:$0xff]
        %v3018 = vld [vmem:[%s407 + $0x1d30] sm:$0xff]
        %v3019 = vld [vmem:[%s407 + $0x1d38] sm:$0xff]
        %v3020 = vld [vmem:[%s407 + $0x1d40] sm:$0xff]
        %v3021 = vld [vmem:[%s407 + $0x1d48] sm:$0xff]
        %v3022 = vld [vmem:[%s407 + $0x1d50] sm:$0xff]
        %v3023 = vld [vmem:[%s407 + $0x1d58] sm:$0xff]
        %v3024 = vld [vmem:[%s407 + $0x1d60] sm:$0xff]
        %v3025 = vld [vmem:[%s407 + $0x1d68] sm:$0xff]
        %v3026 = vld [vmem:[%s407 + $0x1d70] sm:$0xff]
        %v3027 = vld [vmem:[%s407 + $0x1d78] sm:$0xff]
        %v3028 = vld [vmem:[%s407 + $0x1d80] sm:$0xff]
        %v3029 = vld [vmem:[%s407 + $0x1d88] sm:$0xff]
        %v3030 = vld [vmem:[%s407 + $0x1d90] sm:$0xff]
        %v3031 = vld [vmem:[%s407 + $0x1d98] sm:$0xff]
        %v3032 = vld [vmem:[%s407 + $0x1da0] sm:$0xff]
        %v3033 = vld [vmem:[%s407 + $0x1da8] sm:$0xff]
        %v3034 = vld [vmem:[%s407 + $0x1db0] sm:$0xff]
        %v3035 = vld [vmem:[%s407 + $0x1db8] sm:$0xff]
        %v3036 = vld [vmem:[%s407 + $0x1dc0] sm:$0xff]
        %v3037 = vld [vmem:[%s407 + $0x1dc8] sm:$0xff]
        %v3038 = vld [vmem:[%s407 + $0x1dd0] sm:$0xff]
        %v3039 = vld [vmem:[%s407 + $0x1dd8] sm:$0xff]
        %v3040 = vld [vmem:[%s407 + $0x1de0] sm:$0xff]
        %v3041 = vld [vmem:[%s407 + $0x1de8] sm:$0xff]
        %v3042 = vld [vmem:[%s407 + $0x1df0] sm:$0xff]
        %v3043 = vld [vmem:[%s407 + $0x1df8] sm:$0xff]
        %v3044 = vld [vmem:[%s407 + $0x1e00] sm:$0xff]
        %v3045 = vld [vmem:[%s407 + $0x1e08] sm:$0xff]
        %v3046 = vld [vmem:[%s407 + $0x1e10] sm:$0xff]
        %v3047 = vld [vmem:[%s407 + $0x1e18] sm:$0xff]
        %v3048 = vld [vmem:[%s407 + $0x1e20] sm:$0xff]
        %v3049 = vld [vmem:[%s407 + $0x1e28] sm:$0xff]
        %v3050 = vld [vmem:[%s407 + $0x1e30] sm:$0xff]
        %v3051 = vld [vmem:[%s407 + $0x1e38] sm:$0xff]
        %v3052 = vld [vmem:[%s407 + $0x1e40] sm:$0xff]
        %v3053 = vld [vmem:[%s407 + $0x1e48] sm:$0xff]
        %v3054 = vld [vmem:[%s407 + $0x1e50] sm:$0xff]
        %v3055 = vld [vmem:[%s407 + $0x1e58] sm:$0xff]
        %v3056 = vld [vmem:[%s407 + $0x1e60] sm:$0xff]
        %v3057 = vld [vmem:[%s407 + $0x1e68] sm:$0xff]
        %v3058 = vld [vmem:[%s407 + $0x1e70] sm:$0xff]
        %v3059 = vld [vmem:[%s407 + $0x1e78] sm:$0xff]
        %v3060 = vld [vmem:[%s407 + $0x1e80] sm:$0xff]
        %v3061 = vld [vmem:[%s407 + $0x1e88] sm:$0xff]
        %v3062 = vld [vmem:[%s407 + $0x1e90] sm:$0xff]
        %v3063 = vld [vmem:[%s407 + $0x1e98] sm:$0xff]
        %v3064 = vld [vmem:[%s407 + $0x1ea0] sm:$0xff]
        %v3065 = vld [vmem:[%s407 + $0x1ea8] sm:$0xff]
        %v3066 = vld [vmem:[%s407 + $0x1eb0] sm:$0xff]
        %v3067 = vld [vmem:[%s407 + $0x1eb8] sm:$0xff]
        %v3068 = vld [vmem:[%s407 + $0x1ec0] sm:$0xff]
        %v3069 = vld [vmem:[%s407 + $0x1ec8] sm:$0xff]
        %v3070 = vld [vmem:[%s407 + $0x1ed0] sm:$0xff]
        %v3071 = vld [vmem:[%s407 + $0x1ed8] sm:$0xff]
        %v3072 = vld [vmem:[%s407 + $0x1ee0] sm:$0xff]
        %v3073 = vld [vmem:[%s407 + $0x1ee8] sm:$0xff]
        %v3074 = vld [vmem:[%s407 + $0x1ef0] sm:$0xff]
        %v3075 = vld [vmem:[%s407 + $0x1ef8] sm:$0xff]
        %v3076 = vld [vmem:[%s407 + $0x1f00] sm:$0xff]
        %v3077 = vld [vmem:[%s407 + $0x1f08] sm:$0xff]
        %v3078 = vld [vmem:[%s407 + $0x1f10] sm:$0xff]
        %v3079 = vld [vmem:[%s407 + $0x1f18] sm:$0xff]
        %v3080 = vld [vmem:[%s407 + $0x1f20] sm:$0xff]
        %v3081 = vld [vmem:[%s407 + $0x1f28] sm:$0xff]
        %v3082 = vld [vmem:[%s407 + $0x1f30] sm:$0xff]
        %v3083 = vld [vmem:[%s407 + $0x1f38] sm:$0xff]
        %v3084 = vld [vmem:[%s407 + $0x1f40] sm:$0xff]
        %v3085 = vld [vmem:[%s407 + $0x1f48] sm:$0xff]
        %v3086 = vld [vmem:[%s407 + $0x1f50] sm:$0xff]
        %v3087 = vld [vmem:[%s407 + $0x1f58] sm:$0xff]
        %v3088 = vld [vmem:[%s407 + $0x1f60] sm:$0xff]
        %v3089 = vld [vmem:[%s407 + $0x1f68] sm:$0xff]
        %v3090 = vld [vmem:[%s407 + $0x1f70] sm:$0xff]
        %v3091 = vld [vmem:[%s407 + $0x1f78] sm:$0xff]
        %v3092 = vld [vmem:[%s407 + $0x1f80] sm:$0xff]
        %v3093 = vld [vmem:[%s407 + $0x1f88] sm:$0xff]
        %v3094 = vld [vmem:[%s407 + $0x1f90] sm:$0xff]
        %v3095 = vld [vmem:[%s407 + $0x1f98] sm:$0xff]
        %v3096 = vld [vmem:[%s407 + $0x1fa0] sm:$0xff]
        %v3097 = vld [vmem:[%s407 + $0x1fa8] sm:$0xff]
        %v3098 = vld [vmem:[%s407 + $0x1fb0] sm:$0xff]
        %v3099 = vld [vmem:[%s407 + $0x1fb8] sm:$0xff]
        %v3100 = vld [vmem:[%s407 + $0x1fc0] sm:$0xff]
        %v3101 = vld [vmem:[%s407 + $0x1fc8] sm:$0xff]
        %v3102 = vld [vmem:[%s407 + $0x1fd0] sm:$0xff]
        %v3103 = vld [vmem:[%s407 + $0x1fd8] sm:$0xff]
        %v3104 = vld [vmem:[%s407 + $0x1fe0] sm:$0xff]
        %v3105 = vld [vmem:[%s407 + $0x1fe8] sm:$0xff]
        %v3106 = vld [vmem:[%s407 + $0x1ff0] sm:$0xff]
        %v3107 = vld [vmem:[%s407 + $0x1ff8] sm:$0xff]
        %v4132 = vunpack.c.l.b16 %v2084
        %v4133 = vunpack.c.h.b16 %v2084
        %v4134 = vunpack.c.l.b16 %v2085
        %v4135 = vunpack.c.h.b16 %v2085
        %v4136 = vunpack.c.l.b16 %v2086
        %v4137 = vunpack.c.h.b16 %v2086
        %v4138 = vunpack.c.l.b16 %v2087
        %v4139 = vunpack.c.h.b16 %v2087
        %v4140 = vunpack.c.l.b16 %v2088
        %v4141 = vunpack.c.h.b16 %v2088
        %v4142 = vunpack.c.l.b16 %v2089
        %v4143 = vunpack.c.h.b16 %v2089
        %v4144 = vunpack.c.l.b16 %v2090
        %v4145 = vunpack.c.h.b16 %v2090
        %v4146 = vunpack.c.l.b16 %v2091
        %v4147 = vunpack.c.h.b16 %v2091
        %v4148 = vunpack.c.l.b16 %v2092
        %v4149 = vunpack.c.h.b16 %v2092
        %v4150 = vunpack.c.l.b16 %v2093
        %v4151 = vunpack.c.h.b16 %v2093
        %v4152 = vunpack.c.l.b16 %v2094
        %v4153 = vunpack.c.h.b16 %v2094
        %v4154 = vunpack.c.l.b16 %v2095
        %v4155 = vunpack.c.h.b16 %v2095
        %v4156 = vunpack.c.l.b16 %v2096
        %v4157 = vunpack.c.h.b16 %v2096
        %v4158 = vunpack.c.l.b16 %v2097
        %v4159 = vunpack.c.h.b16 %v2097
        %v4160 = vunpack.c.l.b16 %v2098
        %v4161 = vunpack.c.h.b16 %v2098
        %v4162 = vunpack.c.l.b16 %v2099
        %v4163 = vunpack.c.h.b16 %v2099
        %v4164 = vunpack.c.l.b16 %v2100
        %v4165 = vunpack.c.h.b16 %v2100
        %v4166 = vunpack.c.l.b16 %v2101
        %v4167 = vunpack.c.h.b16 %v2101
        %v4168 = vunpack.c.l.b16 %v2102
        %v4169 = vunpack.c.h.b16 %v2102
        %v4170 = vunpack.c.l.b16 %v2103
        %v4171 = vunpack.c.h.b16 %v2103
        %v4172 = vunpack.c.l.b16 %v2104
        %v4173 = vunpack.c.h.b16 %v2104
        %v4174 = vunpack.c.l.b16 %v2105
        %v4175 = vunpack.c.h.b16 %v2105
        %v4176 = vunpack.c.l.b16 %v2106
        %v4177 = vunpack.c.h.b16 %v2106
        %v4178 = vunpack.c.l.b16 %v2107
        %v4179 = vunpack.c.h.b16 %v2107
        %v4180 = vunpack.c.l.b16 %v2108
        %v4181 = vunpack.c.h.b16 %v2108
        %v4182 = vunpack.c.l.b16 %v2109
        %v4183 = vunpack.c.h.b16 %v2109
        %v4184 = vunpack.c.l.b16 %v2110
        %v4185 = vunpack.c.h.b16 %v2110
        %v4186 = vunpack.c.l.b16 %v2111
        %v4187 = vunpack.c.h.b16 %v2111
        %v4188 = vunpack.c.l.b16 %v2112
        %v4189 = vunpack.c.h.b16 %v2112
        %v4190 = vunpack.c.l.b16 %v2113
        %v4191 = vunpack.c.h.b16 %v2113
        %v4192 = vunpack.c.l.b16 %v2114
        %v4193 = vunpack.c.h.b16 %v2114
        %v4194 = vunpack.c.l.b16 %v2115
        %v4195 = vunpack.c.h.b16 %v2115
        %v4196 = vunpack.c.l.b16 %v2116
        %v4197 = vunpack.c.h.b16 %v2116
        %v4198 = vunpack.c.l.b16 %v2117
        %v4199 = vunpack.c.h.b16 %v2117
        %v4200 = vunpack.c.l.b16 %v2118
        %v4201 = vunpack.c.h.b16 %v2118
        %v4202 = vunpack.c.l.b16 %v2119
        %v4203 = vunpack.c.h.b16 %v2119
        %v4204 = vunpack.c.l.b16 %v2120
        %v4205 = vunpack.c.h.b16 %v2120
        %v4206 = vunpack.c.l.b16 %v2121
        %v4207 = vunpack.c.h.b16 %v2121
        %v4208 = vunpack.c.l.b16 %v2122
        %v4209 = vunpack.c.h.b16 %v2122
        %v4210 = vunpack.c.l.b16 %v2123
        %v4211 = vunpack.c.h.b16 %v2123
        %v4212 = vunpack.c.l.b16 %v2124
        %v4213 = vunpack.c.h.b16 %v2124
        %v4214 = vunpack.c.l.b16 %v2125
        %v4215 = vunpack.c.h.b16 %v2125
        %v4216 = vunpack.c.l.b16 %v2126
        %v4217 = vunpack.c.h.b16 %v2126
        %v4218 = vunpack.c.l.b16 %v2127
        %v4219 = vunpack.c.h.b16 %v2127
        %v4220 = vunpack.c.l.b16 %v2128
        %v4221 = vunpack.c.h.b16 %v2128
        %v4222 = vunpack.c.l.b16 %v2129
        %v4223 = vunpack.c.h.b16 %v2129
        %v4224 = vunpack.c.l.b16 %v2130
        %v4225 = vunpack.c.h.b16 %v2130
        %v4226 = vunpack.c.l.b16 %v2131
        %v4227 = vunpack.c.h.b16 %v2131
        %v4228 = vunpack.c.l.b16 %v2132
        %v4229 = vunpack.c.h.b16 %v2132
        %v4230 = vunpack.c.l.b16 %v2133
        %v4231 = vunpack.c.h.b16 %v2133
        %v4232 = vunpack.c.l.b16 %v2134
        %v4233 = vunpack.c.h.b16 %v2134
        %v4234 = vunpack.c.l.b16 %v2135
        %v4235 = vunpack.c.h.b16 %v2135
        %v4236 = vunpack.c.l.b16 %v2136
        %v4237 = vunpack.c.h.b16 %v2136
        %v4238 = vunpack.c.l.b16 %v2137
        %v4239 = vunpack.c.h.b16 %v2137
        %v4240 = vunpack.c.l.b16 %v2138
        %v4241 = vunpack.c.h.b16 %v2138
        %v4242 = vunpack.c.l.b16 %v2139
        %v4243 = vunpack.c.h.b16 %v2139
        %v4244 = vunpack.c.l.b16 %v2140
        %v4245 = vunpack.c.h.b16 %v2140
        %v4246 = vunpack.c.l.b16 %v2141
        %v4247 = vunpack.c.h.b16 %v2141
        %v4248 = vunpack.c.l.b16 %v2142
        %v4249 = vunpack.c.h.b16 %v2142
        %v4250 = vunpack.c.l.b16 %v2143
        %v4251 = vunpack.c.h.b16 %v2143
        %v4252 = vunpack.c.l.b16 %v2144
        %v4253 = vunpack.c.h.b16 %v2144
        %v4254 = vunpack.c.l.b16 %v2145
        %v4255 = vunpack.c.h.b16 %v2145
        %v4256 = vunpack.c.l.b16 %v2146
        %v4257 = vunpack.c.h.b16 %v2146
        %v4258 = vunpack.c.l.b16 %v2147
        %v4259 = vunpack.c.h.b16 %v2147
        %v4260 = vunpack.c.l.b16 %v2148
        %v4261 = vunpack.c.h.b16 %v2148
        %v4262 = vunpack.c.l.b16 %v2149
        %v4263 = vunpack.c.h.b16 %v2149
        %v4264 = vunpack.c.l.b16 %v2150
        %v4265 = vunpack.c.h.b16 %v2150
        %v4266 = vunpack.c.l.b16 %v2151
        %v4267 = vunpack.c.h.b16 %v2151
        %v4268 = vunpack.c.l.b16 %v2152
        %v4269 = vunpack.c.h.b16 %v2152
        %v4270 = vunpack.c.l.b16 %v2153
        %v4271 = vunpack.c.h.b16 %v2153
        %v4272 = vunpack.c.l.b16 %v2154
        %v4273 = vunpack.c.h.b16 %v2154
        %v4274 = vunpack.c.l.b16 %v2155
        %v4275 = vunpack.c.h.b16 %v2155
        %v4276 = vunpack.c.l.b16 %v2156
        %v4277 = vunpack.c.h.b16 %v2156
        %v4278 = vunpack.c.l.b16 %v2157
        %v4279 = vunpack.c.h.b16 %v2157
        %v4280 = vunpack.c.l.b16 %v2158
        %v4281 = vunpack.c.h.b16 %v2158
        %v4282 = vunpack.c.l.b16 %v2159
        %v4283 = vunpack.c.h.b16 %v2159
        %v4284 = vunpack.c.l.b16 %v2160
        %v4285 = vunpack.c.h.b16 %v2160
        %v4286 = vunpack.c.l.b16 %v2161
        %v4287 = vunpack.c.h.b16 %v2161
        %v4288 = vunpack.c.l.b16 %v2162
        %v4289 = vunpack.c.h.b16 %v2162
        %v4290 = vunpack.c.l.b16 %v2163
        %v4291 = vunpack.c.h.b16 %v2163
        %v4292 = vunpack.c.l.b16 %v2164
        %v4293 = vunpack.c.h.b16 %v2164
        %v4294 = vunpack.c.l.b16 %v2165
        %v4295 = vunpack.c.h.b16 %v2165
        %v4296 = vunpack.c.l.b16 %v2166
        %v4297 = vunpack.c.h.b16 %v2166
        %v4298 = vunpack.c.l.b16 %v2167
        %v4299 = vunpack.c.h.b16 %v2167
        %v4300 = vunpack.c.l.b16 %v2168
        %v4301 = vunpack.c.h.b16 %v2168
        %v4302 = vunpack.c.l.b16 %v2169
        %v4303 = vunpack.c.h.b16 %v2169
        %v4304 = vunpack.c.l.b16 %v2170
        %v4305 = vunpack.c.h.b16 %v2170
        %v4306 = vunpack.c.l.b16 %v2171
        %v4307 = vunpack.c.h.b16 %v2171
        %v4308 = vunpack.c.l.b16 %v2172
        %v4309 = vunpack.c.h.b16 %v2172
        %v4310 = vunpack.c.l.b16 %v2173
        %v4311 = vunpack.c.h.b16 %v2173
        %v4312 = vunpack.c.l.b16 %v2174
        %v4313 = vunpack.c.h.b16 %v2174
        %v4314 = vunpack.c.l.b16 %v2175
        %v4315 = vunpack.c.h.b16 %v2175
        %v4316 = vunpack.c.l.b16 %v2176
        %v4317 = vunpack.c.h.b16 %v2176
        %v4318 = vunpack.c.l.b16 %v2177
        %v4319 = vunpack.c.h.b16 %v2177
        %v4320 = vunpack.c.l.b16 %v2178
        %v4321 = vunpack.c.h.b16 %v2178
        %v4322 = vunpack.c.l.b16 %v2179
        %v4323 = vunpack.c.h.b16 %v2179
        %v4324 = vunpack.c.l.b16 %v2180
        %v4325 = vunpack.c.h.b16 %v2180
        %v4326 = vunpack.c.l.b16 %v2181
        %v4327 = vunpack.c.h.b16 %v2181
        %v4328 = vunpack.c.l.b16 %v2182
        %v4329 = vunpack.c.h.b16 %v2182
        %v4330 = vunpack.c.l.b16 %v2183
        %v4331 = vunpack.c.h.b16 %v2183
        %v4332 = vunpack.c.l.b16 %v2184
        %v4333 = vunpack.c.h.b16 %v2184
        %v4334 = vunpack.c.l.b16 %v2185
        %v4335 = vunpack.c.h.b16 %v2185
        %v4336 = vunpack.c.l.b16 %v2186
        %v4337 = vunpack.c.h.b16 %v2186
        %v4338 = vunpack.c.l.b16 %v2187
        %v4339 = vunpack.c.h.b16 %v2187
        %v4340 = vunpack.c.l.b16 %v2188
        %v4341 = vunpack.c.h.b16 %v2188
        %v4342 = vunpack.c.l.b16 %v2189
        %v4343 = vunpack.c.h.b16 %v2189
        %v4344 = vunpack.c.l.b16 %v2190
        %v4345 = vunpack.c.h.b16 %v2190
        %v4346 = vunpack.c.l.b16 %v2191
        %v4347 = vunpack.c.h.b16 %v2191
        %v4348 = vunpack.c.l.b16 %v2192
        %v4349 = vunpack.c.h.b16 %v2192
        %v4350 = vunpack.c.l.b16 %v2193
        %v4351 = vunpack.c.h.b16 %v2193
        %v4352 = vunpack.c.l.b16 %v2194
        %v4353 = vunpack.c.h.b16 %v2194
        %v4354 = vunpack.c.l.b16 %v2195
        %v4355 = vunpack.c.h.b16 %v2195
        %v4356 = vunpack.c.l.b16 %v2196
        %v4357 = vunpack.c.h.b16 %v2196
        %v4358 = vunpack.c.l.b16 %v2197
        %v4359 = vunpack.c.h.b16 %v2197
        %v4360 = vunpack.c.l.b16 %v2198
        %v4361 = vunpack.c.h.b16 %v2198
        %v4362 = vunpack.c.l.b16 %v2199
        %v4363 = vunpack.c.h.b16 %v2199
        %v4364 = vunpack.c.l.b16 %v2200
        %v4365 = vunpack.c.h.b16 %v2200
        %v4366 = vunpack.c.l.b16 %v2201
        %v4367 = vunpack.c.h.b16 %v2201
        %v4368 = vunpack.c.l.b16 %v2202
        %v4369 = vunpack.c.h.b16 %v2202
        %v4370 = vunpack.c.l.b16 %v2203
        %v4371 = vunpack.c.h.b16 %v2203
        %v4372 = vunpack.c.l.b16 %v2204
        %v4373 = vunpack.c.h.b16 %v2204
        %v4374 = vunpack.c.l.b16 %v2205
        %v4375 = vunpack.c.h.b16 %v2205
        %v4376 = vunpack.c.l.b16 %v2206
        %v4377 = vunpack.c.h.b16 %v2206
        %v4378 = vunpack.c.l.b16 %v2207
        %v4379 = vunpack.c.h.b16 %v2207
        %v4380 = vunpack.c.l.b16 %v2208
        %v4381 = vunpack.c.h.b16 %v2208
        %v4382 = vunpack.c.l.b16 %v2209
        %v4383 = vunpack.c.h.b16 %v2209
        %v4384 = vunpack.c.l.b16 %v2210
        %v4385 = vunpack.c.h.b16 %v2210
        %v4386 = vunpack.c.l.b16 %v2211
        %v4387 = vunpack.c.h.b16 %v2211
        %v4388 = vunpack.c.l.b16 %v2212
        %v4389 = vunpack.c.h.b16 %v2212
        %v4390 = vunpack.c.l.b16 %v2213
        %v4391 = vunpack.c.h.b16 %v2213
        %v4392 = vunpack.c.l.b16 %v2214
        %v4393 = vunpack.c.h.b16 %v2214
        %v4394 = vunpack.c.l.b16 %v2215
        %v4395 = vunpack.c.h.b16 %v2215
        %v4396 = vunpack.c.l.b16 %v2216
        %v4397 = vunpack.c.h.b16 %v2216
        %v4398 = vunpack.c.l.b16 %v2217
        %v4399 = vunpack.c.h.b16 %v2217
        %v4400 = vunpack.c.l.b16 %v2218
        %v4401 = vunpack.c.h.b16 %v2218
        %v4402 = vunpack.c.l.b16 %v2219
        %v4403 = vunpack.c.h.b16 %v2219
        %v4404 = vunpack.c.l.b16 %v2220
        %v4405 = vunpack.c.h.b16 %v2220
        %v4406 = vunpack.c.l.b16 %v2221
        %v4407 = vunpack.c.h.b16 %v2221
        %v4408 = vunpack.c.l.b16 %v2222
        %v4409 = vunpack.c.h.b16 %v2222
        %v4410 = vunpack.c.l.b16 %v2223
        %v4411 = vunpack.c.h.b16 %v2223
        %v4412 = vunpack.c.l.b16 %v2224
        %v4413 = vunpack.c.h.b16 %v2224
        %v4414 = vunpack.c.l.b16 %v2225
        %v4415 = vunpack.c.h.b16 %v2225
        %v4416 = vunpack.c.l.b16 %v2226
        %v4417 = vunpack.c.h.b16 %v2226
        %v4418 = vunpack.c.l.b16 %v2227
        %v4419 = vunpack.c.h.b16 %v2227
        %v4420 = vunpack.c.l.b16 %v2228
        %v4421 = vunpack.c.h.b16 %v2228
        %v4422 = vunpack.c.l.b16 %v2229
        %v4423 = vunpack.c.h.b16 %v2229
        %v4424 = vunpack.c.l.b16 %v2230
        %v4425 = vunpack.c.h.b16 %v2230
        %v4426 = vunpack.c.l.b16 %v2231
        %v4427 = vunpack.c.h.b16 %v2231
        %v4428 = vunpack.c.l.b16 %v2232
        %v4429 = vunpack.c.h.b16 %v2232
        %v4430 = vunpack.c.l.b16 %v2233
        %v4431 = vunpack.c.h.b16 %v2233
        %v4432 = vunpack.c.l.b16 %v2234
        %v4433 = vunpack.c.h.b16 %v2234
        %v4434 = vunpack.c.l.b16 %v2235
        %v4435 = vunpack.c.h.b16 %v2235
        %v4436 = vunpack.c.l.b16 %v2236
        %v4437 = vunpack.c.h.b16 %v2236
        %v4438 = vunpack.c.l.b16 %v2237
        %v4439 = vunpack.c.h.b16 %v2237
        %v4440 = vunpack.c.l.b16 %v2238
        %v4441 = vunpack.c.h.b16 %v2238
        %v4442 = vunpack.c.l.b16 %v2239
        %v4443 = vunpack.c.h.b16 %v2239
        %v4444 = vunpack.c.l.b16 %v2240
        %v4445 = vunpack.c.h.b16 %v2240
        %v4446 = vunpack.c.l.b16 %v2241
        %v4447 = vunpack.c.h.b16 %v2241
        %v4448 = vunpack.c.l.b16 %v2242
        %v4449 = vunpack.c.h.b16 %v2242
        %v4450 = vunpack.c.l.b16 %v2243
        %v4451 = vunpack.c.h.b16 %v2243
        %v4452 = vunpack.c.l.b16 %v2244
        %v4453 = vunpack.c.h.b16 %v2244
        %v4454 = vunpack.c.l.b16 %v2245
        %v4455 = vunpack.c.h.b16 %v2245
        %v4456 = vunpack.c.l.b16 %v2246
        %v4457 = vunpack.c.h.b16 %v2246
        %v4458 = vunpack.c.l.b16 %v2247
        %v4459 = vunpack.c.h.b16 %v2247
        %v4460 = vunpack.c.l.b16 %v2248
        %v4461 = vunpack.c.h.b16 %v2248
        %v4462 = vunpack.c.l.b16 %v2249
        %v4463 = vunpack.c.h.b16 %v2249
        %v4464 = vunpack.c.l.b16 %v2250
        %v4465 = vunpack.c.h.b16 %v2250
        %v4466 = vunpack.c.l.b16 %v2251
        %v4467 = vunpack.c.h.b16 %v2251
        %v4468 = vunpack.c.l.b16 %v2252
        %v4469 = vunpack.c.h.b16 %v2252
        %v4470 = vunpack.c.l.b16 %v2253
        %v4471 = vunpack.c.h.b16 %v2253
        %v4472 = vunpack.c.l.b16 %v2254
        %v4473 = vunpack.c.h.b16 %v2254
        %v4474 = vunpack.c.l.b16 %v2255
        %v4475 = vunpack.c.h.b16 %v2255
        %v4476 = vunpack.c.l.b16 %v2256
        %v4477 = vunpack.c.h.b16 %v2256
        %v4478 = vunpack.c.l.b16 %v2257
        %v4479 = vunpack.c.h.b16 %v2257
        %v4480 = vunpack.c.l.b16 %v2258
        %v4481 = vunpack.c.h.b16 %v2258
        %v4482 = vunpack.c.l.b16 %v2259
        %v4483 = vunpack.c.h.b16 %v2259
        %v4484 = vunpack.c.l.b16 %v2260
        %v4485 = vunpack.c.h.b16 %v2260
        %v4486 = vunpack.c.l.b16 %v2261
        %v4487 = vunpack.c.h.b16 %v2261
        %v4488 = vunpack.c.l.b16 %v2262
        %v4489 = vunpack.c.h.b16 %v2262
        %v4490 = vunpack.c.l.b16 %v2263
        %v4491 = vunpack.c.h.b16 %v2263
        %v4492 = vunpack.c.l.b16 %v2264
        %v4493 = vunpack.c.h.b16 %v2264
        %v4494 = vunpack.c.l.b16 %v2265
        %v4495 = vunpack.c.h.b16 %v2265
        %v4496 = vunpack.c.l.b16 %v2266
        %v4497 = vunpack.c.h.b16 %v2266
        %v4498 = vunpack.c.l.b16 %v2267
        %v4499 = vunpack.c.h.b16 %v2267
        %v4500 = vunpack.c.l.b16 %v2268
        %v4501 = vunpack.c.h.b16 %v2268
        %v4502 = vunpack.c.l.b16 %v2269
        %v4503 = vunpack.c.h.b16 %v2269
        %v4504 = vunpack.c.l.b16 %v2270
        %v4505 = vunpack.c.h.b16 %v2270
        %v4506 = vunpack.c.l.b16 %v2271
        %v4507 = vunpack.c.h.b16 %v2271
        %v4508 = vunpack.c.l.b16 %v2272
        %v4509 = vunpack.c.h.b16 %v2272
        %v4510 = vunpack.c.l.b16 %v2273
        %v4511 = vunpack.c.h.b16 %v2273
        %v4512 = vunpack.c.l.b16 %v2274
        %v4513 = vunpack.c.h.b16 %v2274
        %v4514 = vunpack.c.l.b16 %v2275
        %v4515 = vunpack.c.h.b16 %v2275
        %v4516 = vunpack.c.l.b16 %v2276
        %v4517 = vunpack.c.h.b16 %v2276
        %v4518 = vunpack.c.l.b16 %v2277
        %v4519 = vunpack.c.h.b16 %v2277
        %v4520 = vunpack.c.l.b16 %v2278
        %v4521 = vunpack.c.h.b16 %v2278
        %v4522 = vunpack.c.l.b16 %v2279
        %v4523 = vunpack.c.h.b16 %v2279
        %v4524 = vunpack.c.l.b16 %v2280
        %v4525 = vunpack.c.h.b16 %v2280
        %v4526 = vunpack.c.l.b16 %v2281
        %v4527 = vunpack.c.h.b16 %v2281
        %v4528 = vunpack.c.l.b16 %v2282
        %v4529 = vunpack.c.h.b16 %v2282
        %v4530 = vunpack.c.l.b16 %v2283
        %v4531 = vunpack.c.h.b16 %v2283
        %v4532 = vunpack.c.l.b16 %v2284
        %v4533 = vunpack.c.h.b16 %v2284
        %v4534 = vunpack.c.l.b16 %v2285
        %v4535 = vunpack.c.h.b16 %v2285
        %v4536 = vunpack.c.l.b16 %v2286
        %v4537 = vunpack.c.h.b16 %v2286
        %v4538 = vunpack.c.l.b16 %v2287
        %v4539 = vunpack.c.h.b16 %v2287
        %v4540 = vunpack.c.l.b16 %v2288
        %v4541 = vunpack.c.h.b16 %v2288
        %v4542 = vunpack.c.l.b16 %v2289
        %v4543 = vunpack.c.h.b16 %v2289
        %v4544 = vunpack.c.l.b16 %v2290
        %v4545 = vunpack.c.h.b16 %v2290
        %v4546 = vunpack.c.l.b16 %v2291
        %v4547 = vunpack.c.h.b16 %v2291
        %v4548 = vunpack.c.l.b16 %v2292
        %v4549 = vunpack.c.h.b16 %v2292
        %v4550 = vunpack.c.l.b16 %v2293
        %v4551 = vunpack.c.h.b16 %v2293
        %v4552 = vunpack.c.l.b16 %v2294
        %v4553 = vunpack.c.h.b16 %v2294
        %v4554 = vunpack.c.l.b16 %v2295
        %v4555 = vunpack.c.h.b16 %v2295
        %v4556 = vunpack.c.l.b16 %v2296
        %v4557 = vunpack.c.h.b16 %v2296
        %v4558 = vunpack.c.l.b16 %v2297
        %v4559 = vunpack.c.h.b16 %v2297
        %v4560 = vunpack.c.l.b16 %v2298
        %v4561 = vunpack.c.h.b16 %v2298
        %v4562 = vunpack.c.l.b16 %v2299
        %v4563 = vunpack.c.h.b16 %v2299
        %v4564 = vunpack.c.l.b16 %v2300
        %v4565 = vunpack.c.h.b16 %v2300
        %v4566 = vunpack.c.l.b16 %v2301
        %v4567 = vunpack.c.h.b16 %v2301
        %v4568 = vunpack.c.l.b16 %v2302
        %v4569 = vunpack.c.h.b16 %v2302
        %v4570 = vunpack.c.l.b16 %v2303
        %v4571 = vunpack.c.h.b16 %v2303
        %v4572 = vunpack.c.l.b16 %v2304
        %v4573 = vunpack.c.h.b16 %v2304
        %v4574 = vunpack.c.l.b16 %v2305
        %v4575 = vunpack.c.h.b16 %v2305
        %v4576 = vunpack.c.l.b16 %v2306
        %v4577 = vunpack.c.h.b16 %v2306
        %v4578 = vunpack.c.l.b16 %v2307
        %v4579 = vunpack.c.h.b16 %v2307
        %v4580 = vunpack.c.l.b16 %v2308
        %v4581 = vunpack.c.h.b16 %v2308
        %v4582 = vunpack.c.l.b16 %v2309
        %v4583 = vunpack.c.h.b16 %v2309
        %v4584 = vunpack.c.l.b16 %v2310
        %v4585 = vunpack.c.h.b16 %v2310
        %v4586 = vunpack.c.l.b16 %v2311
        %v4587 = vunpack.c.h.b16 %v2311
        %v4588 = vunpack.c.l.b16 %v2312
        %v4589 = vunpack.c.h.b16 %v2312
        %v4590 = vunpack.c.l.b16 %v2313
        %v4591 = vunpack.c.h.b16 %v2313
        %v4592 = vunpack.c.l.b16 %v2314
        %v4593 = vunpack.c.h.b16 %v2314
        %v4594 = vunpack.c.l.b16 %v2315
        %v4595 = vunpack.c.h.b16 %v2315
        %v4596 = vunpack.c.l.b16 %v2316
        %v4597 = vunpack.c.h.b16 %v2316
        %v4598 = vunpack.c.l.b16 %v2317
        %v4599 = vunpack.c.h.b16 %v2317
        %v4600 = vunpack.c.l.b16 %v2318
        %v4601 = vunpack.c.h.b16 %v2318
        %v4602 = vunpack.c.l.b16 %v2319
        %v4603 = vunpack.c.h.b16 %v2319
        %v4604 = vunpack.c.l.b16 %v2320
        %v4605 = vunpack.c.h.b16 %v2320
        %v4606 = vunpack.c.l.b16 %v2321
        %v4607 = vunpack.c.h.b16 %v2321
        %v4608 = vunpack.c.l.b16 %v2322
        %v4609 = vunpack.c.h.b16 %v2322
        %v4610 = vunpack.c.l.b16 %v2323
        %v4611 = vunpack.c.h.b16 %v2323
        %v4612 = vunpack.c.l.b16 %v2324
        %v4613 = vunpack.c.h.b16 %v2324
        %v4614 = vunpack.c.l.b16 %v2325
        %v4615 = vunpack.c.h.b16 %v2325
        %v4616 = vunpack.c.l.b16 %v2326
        %v4617 = vunpack.c.h.b16 %v2326
        %v4618 = vunpack.c.l.b16 %v2327
        %v4619 = vunpack.c.h.b16 %v2327
        %v4620 = vunpack.c.l.b16 %v2328
        %v4621 = vunpack.c.h.b16 %v2328
        %v4622 = vunpack.c.l.b16 %v2329
        %v4623 = vunpack.c.h.b16 %v2329
        %v4624 = vunpack.c.l.b16 %v2330
        %v4625 = vunpack.c.h.b16 %v2330
        %v4626 = vunpack.c.l.b16 %v2331
        %v4627 = vunpack.c.h.b16 %v2331
        %v4628 = vunpack.c.l.b16 %v2332
        %v4629 = vunpack.c.h.b16 %v2332
        %v4630 = vunpack.c.l.b16 %v2333
        %v4631 = vunpack.c.h.b16 %v2333
        %v4632 = vunpack.c.l.b16 %v2334
        %v4633 = vunpack.c.h.b16 %v2334
        %v4634 = vunpack.c.l.b16 %v2335
        %v4635 = vunpack.c.h.b16 %v2335
        %v4636 = vunpack.c.l.b16 %v2336
        %v4637 = vunpack.c.h.b16 %v2336
        %v4638 = vunpack.c.l.b16 %v2337
        %v4639 = vunpack.c.h.b16 %v2337
        %v4640 = vunpack.c.l.b16 %v2338
        %v4641 = vunpack.c.h.b16 %v2338
        %v4642 = vunpack.c.l.b16 %v2339
        %v4643 = vunpack.c.h.b16 %v2339
        %v4644 = vunpack.c.l.b16 %v2340
        %v4645 = vunpack.c.h.b16 %v2340
        %v4646 = vunpack.c.l.b16 %v2341
        %v4647 = vunpack.c.h.b16 %v2341
        %v4648 = vunpack.c.l.b16 %v2342
        %v4649 = vunpack.c.h.b16 %v2342
        %v4650 = vunpack.c.l.b16 %v2343
        %v4651 = vunpack.c.h.b16 %v2343
        %v4652 = vunpack.c.l.b16 %v2344
        %v4653 = vunpack.c.h.b16 %v2344
        %v4654 = vunpack.c.l.b16 %v2345
        %v4655 = vunpack.c.h.b16 %v2345
        %v4656 = vunpack.c.l.b16 %v2346
        %v4657 = vunpack.c.h.b16 %v2346
        %v4658 = vunpack.c.l.b16 %v2347
        %v4659 = vunpack.c.h.b16 %v2347
        %v4660 = vunpack.c.l.b16 %v2348
        %v4661 = vunpack.c.h.b16 %v2348
        %v4662 = vunpack.c.l.b16 %v2349
        %v4663 = vunpack.c.h.b16 %v2349
        %v4664 = vunpack.c.l.b16 %v2350
        %v4665 = vunpack.c.h.b16 %v2350
        %v4666 = vunpack.c.l.b16 %v2351
        %v4667 = vunpack.c.h.b16 %v2351
        %v4668 = vunpack.c.l.b16 %v2352
        %v4669 = vunpack.c.h.b16 %v2352
        %v4670 = vunpack.c.l.b16 %v2353
        %v4671 = vunpack.c.h.b16 %v2353
        %v4672 = vunpack.c.l.b16 %v2354
        %v4673 = vunpack.c.h.b16 %v2354
        %v4674 = vunpack.c.l.b16 %v2355
        %v4675 = vunpack.c.h.b16 %v2355
        %v4676 = vunpack.c.l.b16 %v2356
        %v4677 = vunpack.c.h.b16 %v2356
        %v4678 = vunpack.c.l.b16 %v2357
        %v4679 = vunpack.c.h.b16 %v2357
        %v4680 = vunpack.c.l.b16 %v2358
        %v4681 = vunpack.c.h.b16 %v2358
        %v4682 = vunpack.c.l.b16 %v2359
        %v4683 = vunpack.c.h.b16 %v2359
        %v4684 = vunpack.c.l.b16 %v2360
        %v4685 = vunpack.c.h.b16 %v2360
        %v4686 = vunpack.c.l.b16 %v2361
        %v4687 = vunpack.c.h.b16 %v2361
        %v4688 = vunpack.c.l.b16 %v2362
        %v4689 = vunpack.c.h.b16 %v2362
        %v4690 = vunpack.c.l.b16 %v2363
        %v4691 = vunpack.c.h.b16 %v2363
        %v4692 = vunpack.c.l.b16 %v2364
        %v4693 = vunpack.c.h.b16 %v2364
        %v4694 = vunpack.c.l.b16 %v2365
        %v4695 = vunpack.c.h.b16 %v2365
        %v4696 = vunpack.c.l.b16 %v2366
        %v4697 = vunpack.c.h.b16 %v2366
        %v4698 = vunpack.c.l.b16 %v2367
        %v4699 = vunpack.c.h.b16 %v2367
        %v4700 = vunpack.c.l.b16 %v2368
        %v4701 = vunpack.c.h.b16 %v2368
        %v4702 = vunpack.c.l.b16 %v2369
        %v4703 = vunpack.c.h.b16 %v2369
        %v4704 = vunpack.c.l.b16 %v2370
        %v4705 = vunpack.c.h.b16 %v2370
        %v4706 = vunpack.c.l.b16 %v2371
        %v4707 = vunpack.c.h.b16 %v2371
        %v4708 = vunpack.c.l.b16 %v2372
        %v4709 = vunpack.c.h.b16 %v2372
        %v4710 = vunpack.c.l.b16 %v2373
        %v4711 = vunpack.c.h.b16 %v2373
        %v4712 = vunpack.c.l.b16 %v2374
        %v4713 = vunpack.c.h.b16 %v2374
        %v4714 = vunpack.c.l.b16 %v2375
        %v4715 = vunpack.c.h.b16 %v2375
        %v4716 = vunpack.c.l.b16 %v2376
        %v4717 = vunpack.c.h.b16 %v2376
        %v4718 = vunpack.c.l.b16 %v2377
        %v4719 = vunpack.c.h.b16 %v2377
        %v4720 = vunpack.c.l.b16 %v2378
        %v4721 = vunpack.c.h.b16 %v2378
        %v4722 = vunpack.c.l.b16 %v2379
        %v4723 = vunpack.c.h.b16 %v2379
        %v4724 = vunpack.c.l.b16 %v2380
        %v4725 = vunpack.c.h.b16 %v2380
        %v4726 = vunpack.c.l.b16 %v2381
        %v4727 = vunpack.c.h.b16 %v2381
        %v4728 = vunpack.c.l.b16 %v2382
        %v4729 = vunpack.c.h.b16 %v2382
        %v4730 = vunpack.c.l.b16 %v2383
        %v4731 = vunpack.c.h.b16 %v2383
        %v4732 = vunpack.c.l.b16 %v2384
        %v4733 = vunpack.c.h.b16 %v2384
        %v4734 = vunpack.c.l.b16 %v2385
        %v4735 = vunpack.c.h.b16 %v2385
        %v4736 = vunpack.c.l.b16 %v2386
        %v4737 = vunpack.c.h.b16 %v2386
        %v4738 = vunpack.c.l.b16 %v2387
        %v4739 = vunpack.c.h.b16 %v2387
        %v4740 = vunpack.c.l.b16 %v2388
        %v4741 = vunpack.c.h.b16 %v2388
        %v4742 = vunpack.c.l.b16 %v2389
        %v4743 = vunpack.c.h.b16 %v2389
        %v4744 = vunpack.c.l.b16 %v2390
        %v4745 = vunpack.c.h.b16 %v2390
        %v4746 = vunpack.c.l.b16 %v2391
        %v4747 = vunpack.c.h.b16 %v2391
        %v4748 = vunpack.c.l.b16 %v2392
        %v4749 = vunpack.c.h.b16 %v2392
        %v4750 = vunpack.c.l.b16 %v2393
        %v4751 = vunpack.c.h.b16 %v2393
        %v4752 = vunpack.c.l.b16 %v2394
        %v4753 = vunpack.c.h.b16 %v2394
        %v4754 = vunpack.c.l.b16 %v2395
        %v4755 = vunpack.c.h.b16 %v2395
        %v4756 = vunpack.c.l.b16 %v2396
        %v4757 = vunpack.c.h.b16 %v2396
        %v4758 = vunpack.c.l.b16 %v2397
        %v4759 = vunpack.c.h.b16 %v2397
        %v4760 = vunpack.c.l.b16 %v2398
        %v4761 = vunpack.c.h.b16 %v2398
        %v4762 = vunpack.c.l.b16 %v2399
        %v4763 = vunpack.c.h.b16 %v2399
        %v4764 = vunpack.c.l.b16 %v2400
        %v4765 = vunpack.c.h.b16 %v2400
        %v4766 = vunpack.c.l.b16 %v2401
        %v4767 = vunpack.c.h.b16 %v2401
        %v4768 = vunpack.c.l.b16 %v2402
        %v4769 = vunpack.c.h.b16 %v2402
        %v4770 = vunpack.c.l.b16 %v2403
        %v4771 = vunpack.c.h.b16 %v2403
        %v4772 = vunpack.c.l.b16 %v2404
        %v4773 = vunpack.c.h.b16 %v2404
        %v4774 = vunpack.c.l.b16 %v2405
        %v4775 = vunpack.c.h.b16 %v2405
        %v4776 = vunpack.c.l.b16 %v2406
        %v4777 = vunpack.c.h.b16 %v2406
        %v4778 = vunpack.c.l.b16 %v2407
        %v4779 = vunpack.c.h.b16 %v2407
        %v4780 = vunpack.c.l.b16 %v2408
        %v4781 = vunpack.c.h.b16 %v2408
        %v4782 = vunpack.c.l.b16 %v2409
        %v4783 = vunpack.c.h.b16 %v2409
        %v4784 = vunpack.c.l.b16 %v2410
        %v4785 = vunpack.c.h.b16 %v2410
        %v4786 = vunpack.c.l.b16 %v2411
        %v4787 = vunpack.c.h.b16 %v2411
        %v4788 = vunpack.c.l.b16 %v2412
        %v4789 = vunpack.c.h.b16 %v2412
        %v4790 = vunpack.c.l.b16 %v2413
        %v4791 = vunpack.c.h.b16 %v2413
        %v4792 = vunpack.c.l.b16 %v2414
        %v4793 = vunpack.c.h.b16 %v2414
        %v4794 = vunpack.c.l.b16 %v2415
        %v4795 = vunpack.c.h.b16 %v2415
        %v4796 = vunpack.c.l.b16 %v2416
        %v4797 = vunpack.c.h.b16 %v2416
        %v4798 = vunpack.c.l.b16 %v2417
        %v4799 = vunpack.c.h.b16 %v2417
        %v4800 = vunpack.c.l.b16 %v2418
        %v4801 = vunpack.c.h.b16 %v2418
        %v4802 = vunpack.c.l.b16 %v2419
        %v4803 = vunpack.c.h.b16 %v2419
        %v4804 = vunpack.c.l.b16 %v2420
        %v4805 = vunpack.c.h.b16 %v2420
        %v4806 = vunpack.c.l.b16 %v2421
        %v4807 = vunpack.c.h.b16 %v2421
        %v4808 = vunpack.c.l.b16 %v2422
        %v4809 = vunpack.c.h.b16 %v2422
        %v4810 = vunpack.c.l.b16 %v2423
        %v4811 = vunpack.c.h.b16 %v2423
        %v4812 = vunpack.c.l.b16 %v2424
        %v4813 = vunpack.c.h.b16 %v2424
        %v4814 = vunpack.c.l.b16 %v2425
        %v4815 = vunpack.c.h.b16 %v2425
        %v4816 = vunpack.c.l.b16 %v2426
        %v4817 = vunpack.c.h.b16 %v2426
        %v4818 = vunpack.c.l.b16 %v2427
        %v4819 = vunpack.c.h.b16 %v2427
        %v4820 = vunpack.c.l.b16 %v2428
        %v4821 = vunpack.c.h.b16 %v2428
        %v4822 = vunpack.c.l.b16 %v2429
        %v4823 = vunpack.c.h.b16 %v2429
        %v4824 = vunpack.c.l.b16 %v2430
        %v4825 = vunpack.c.h.b16 %v2430
        %v4826 = vunpack.c.l.b16 %v2431
        %v4827 = vunpack.c.h.b16 %v2431
        %v4828 = vunpack.c.l.b16 %v2432
        %v4829 = vunpack.c.h.b16 %v2432
        %v4830 = vunpack.c.l.b16 %v2433
        %v4831 = vunpack.c.h.b16 %v2433
        %v4832 = vunpack.c.l.b16 %v2434
        %v4833 = vunpack.c.h.b16 %v2434
        %v4834 = vunpack.c.l.b16 %v2435
        %v4835 = vunpack.c.h.b16 %v2435
        %v4836 = vunpack.c.l.b16 %v2436
        %v4837 = vunpack.c.h.b16 %v2436
        %v4838 = vunpack.c.l.b16 %v2437
        %v4839 = vunpack.c.h.b16 %v2437
        %v4840 = vunpack.c.l.b16 %v2438
        %v4841 = vunpack.c.h.b16 %v2438
        %v4842 = vunpack.c.l.b16 %v2439
        %v4843 = vunpack.c.h.b16 %v2439
        %v4844 = vunpack.c.l.b16 %v2440
        %v4845 = vunpack.c.h.b16 %v2440
        %v4846 = vunpack.c.l.b16 %v2441
        %v4847 = vunpack.c.h.b16 %v2441
        %v4848 = vunpack.c.l.b16 %v2442
        %v4849 = vunpack.c.h.b16 %v2442
        %v4850 = vunpack.c.l.b16 %v2443
        %v4851 = vunpack.c.h.b16 %v2443
        %v4852 = vunpack.c.l.b16 %v2444
        %v4853 = vunpack.c.h.b16 %v2444
        %v4854 = vunpack.c.l.b16 %v2445
        %v4855 = vunpack.c.h.b16 %v2445
        %v4856 = vunpack.c.l.b16 %v2446
        %v4857 = vunpack.c.h.b16 %v2446
        %v4858 = vunpack.c.l.b16 %v2447
        %v4859 = vunpack.c.h.b16 %v2447
        %v4860 = vunpack.c.l.b16 %v2448
        %v4861 = vunpack.c.h.b16 %v2448
        %v4862 = vunpack.c.l.b16 %v2449
        %v4863 = vunpack.c.h.b16 %v2449
        %v4864 = vunpack.c.l.b16 %v2450
        %v4865 = vunpack.c.h.b16 %v2450
        %v4866 = vunpack.c.l.b16 %v2451
        %v4867 = vunpack.c.h.b16 %v2451
        %v4868 = vunpack.c.l.b16 %v2452
        %v4869 = vunpack.c.h.b16 %v2452
        %v4870 = vunpack.c.l.b16 %v2453
        %v4871 = vunpack.c.h.b16 %v2453
        %v4872 = vunpack.c.l.b16 %v2454
        %v4873 = vunpack.c.h.b16 %v2454
        %v4874 = vunpack.c.l.b16 %v2455
        %v4875 = vunpack.c.h.b16 %v2455
        %v4876 = vunpack.c.l.b16 %v2456
        %v4877 = vunpack.c.h.b16 %v2456
        %v4878 = vunpack.c.l.b16 %v2457
        %v4879 = vunpack.c.h.b16 %v2457
        %v4880 = vunpack.c.l.b16 %v2458
        %v4881 = vunpack.c.h.b16 %v2458
        %v4882 = vunpack.c.l.b16 %v2459
        %v4883 = vunpack.c.h.b16 %v2459
        %v4884 = vunpack.c.l.b16 %v2460
        %v4885 = vunpack.c.h.b16 %v2460
        %v4886 = vunpack.c.l.b16 %v2461
        %v4887 = vunpack.c.h.b16 %v2461
        %v4888 = vunpack.c.l.b16 %v2462
        %v4889 = vunpack.c.h.b16 %v2462
        %v4890 = vunpack.c.l.b16 %v2463
        %v4891 = vunpack.c.h.b16 %v2463
        %v4892 = vunpack.c.l.b16 %v2464
        %v4893 = vunpack.c.h.b16 %v2464
        %v4894 = vunpack.c.l.b16 %v2465
        %v4895 = vunpack.c.h.b16 %v2465
        %v4896 = vunpack.c.l.b16 %v2466
        %v4897 = vunpack.c.h.b16 %v2466
        %v4898 = vunpack.c.l.b16 %v2467
        %v4899 = vunpack.c.h.b16 %v2467
        %v4900 = vunpack.c.l.b16 %v2468
        %v4901 = vunpack.c.h.b16 %v2468
        %v4902 = vunpack.c.l.b16 %v2469
        %v4903 = vunpack.c.h.b16 %v2469
        %v4904 = vunpack.c.l.b16 %v2470
        %v4905 = vunpack.c.h.b16 %v2470
        %v4906 = vunpack.c.l.b16 %v2471
        %v4907 = vunpack.c.h.b16 %v2471
        %v4908 = vunpack.c.l.b16 %v2472
        %v4909 = vunpack.c.h.b16 %v2472
        %v4910 = vunpack.c.l.b16 %v2473
        %v4911 = vunpack.c.h.b16 %v2473
        %v4912 = vunpack.c.l.b16 %v2474
        %v4913 = vunpack.c.h.b16 %v2474
        %v4914 = vunpack.c.l.b16 %v2475
        %v4915 = vunpack.c.h.b16 %v2475
        %v4916 = vunpack.c.l.b16 %v2476
        %v4917 = vunpack.c.h.b16 %v2476
        %v4918 = vunpack.c.l.b16 %v2477
        %v4919 = vunpack.c.h.b16 %v2477
        %v4920 = vunpack.c.l.b16 %v2478
        %v4921 = vunpack.c.h.b16 %v2478
        %v4922 = vunpack.c.l.b16 %v2479
        %v4923 = vunpack.c.h.b16 %v2479
        %v4924 = vunpack.c.l.b16 %v2480
        %v4925 = vunpack.c.h.b16 %v2480
        %v4926 = vunpack.c.l.b16 %v2481
        %v4927 = vunpack.c.h.b16 %v2481
        %v4928 = vunpack.c.l.b16 %v2482
        %v4929 = vunpack.c.h.b16 %v2482
        %v4930 = vunpack.c.l.b16 %v2483
        %v4931 = vunpack.c.h.b16 %v2483
        %v4932 = vunpack.c.l.b16 %v2484
        %v4933 = vunpack.c.h.b16 %v2484
        %v4934 = vunpack.c.l.b16 %v2485
        %v4935 = vunpack.c.h.b16 %v2485
        %v4936 = vunpack.c.l.b16 %v2486
        %v4937 = vunpack.c.h.b16 %v2486
        %v4938 = vunpack.c.l.b16 %v2487
        %v4939 = vunpack.c.h.b16 %v2487
        %v4940 = vunpack.c.l.b16 %v2488
        %v4941 = vunpack.c.h.b16 %v2488
        %v4942 = vunpack.c.l.b16 %v2489
        %v4943 = vunpack.c.h.b16 %v2489
        %v4944 = vunpack.c.l.b16 %v2490
        %v4945 = vunpack.c.h.b16 %v2490
        %v4946 = vunpack.c.l.b16 %v2491
        %v4947 = vunpack.c.h.b16 %v2491
        %v4948 = vunpack.c.l.b16 %v2492
        %v4949 = vunpack.c.h.b16 %v2492
        %v4950 = vunpack.c.l.b16 %v2493
        %v4951 = vunpack.c.h.b16 %v2493
        %v4952 = vunpack.c.l.b16 %v2494
        %v4953 = vunpack.c.h.b16 %v2494
        %v4954 = vunpack.c.l.b16 %v2495
        %v4955 = vunpack.c.h.b16 %v2495
        %v4956 = vunpack.c.l.b16 %v2496
        %v4957 = vunpack.c.h.b16 %v2496
        %v4958 = vunpack.c.l.b16 %v2497
        %v4959 = vunpack.c.h.b16 %v2497
        %v4960 = vunpack.c.l.b16 %v2498
        %v4961 = vunpack.c.h.b16 %v2498
        %v4962 = vunpack.c.l.b16 %v2499
        %v4963 = vunpack.c.h.b16 %v2499
        %v4964 = vunpack.c.l.b16 %v2500
        %v4965 = vunpack.c.h.b16 %v2500
        %v4966 = vunpack.c.l.b16 %v2501
        %v4967 = vunpack.c.h.b16 %v2501
        %v4968 = vunpack.c.l.b16 %v2502
        %v4969 = vunpack.c.h.b16 %v2502
        %v4970 = vunpack.c.l.b16 %v2503
        %v4971 = vunpack.c.h.b16 %v2503
        %v4972 = vunpack.c.l.b16 %v2504
        %v4973 = vunpack.c.h.b16 %v2504
        %v4974 = vunpack.c.l.b16 %v2505
        %v4975 = vunpack.c.h.b16 %v2505
        %v4976 = vunpack.c.l.b16 %v2506
        %v4977 = vunpack.c.h.b16 %v2506
        %v4978 = vunpack.c.l.b16 %v2507
        %v4979 = vunpack.c.h.b16 %v2507
        %v4980 = vunpack.c.l.b16 %v2508
        %v4981 = vunpack.c.h.b16 %v2508
        %v4982 = vunpack.c.l.b16 %v2509
        %v4983 = vunpack.c.h.b16 %v2509
        %v4984 = vunpack.c.l.b16 %v2510
        %v4985 = vunpack.c.h.b16 %v2510
        %v4986 = vunpack.c.l.b16 %v2511
        %v4987 = vunpack.c.h.b16 %v2511
        %v4988 = vunpack.c.l.b16 %v2512
        %v4989 = vunpack.c.h.b16 %v2512
        %v4990 = vunpack.c.l.b16 %v2513
        %v4991 = vunpack.c.h.b16 %v2513
        %v4992 = vunpack.c.l.b16 %v2514
        %v4993 = vunpack.c.h.b16 %v2514
        %v4994 = vunpack.c.l.b16 %v2515
        %v4995 = vunpack.c.h.b16 %v2515
        %v4996 = vunpack.c.l.b16 %v2516
        %v4997 = vunpack.c.h.b16 %v2516
        %v4998 = vunpack.c.l.b16 %v2517
        %v4999 = vunpack.c.h.b16 %v2517
        %v5000 = vunpack.c.l.b16 %v2518
        %v5001 = vunpack.c.h.b16 %v2518
        %v5002 = vunpack.c.l.b16 %v2519
        %v5003 = vunpack.c.h.b16 %v2519
        %v5004 = vunpack.c.l.b16 %v2520
        %v5005 = vunpack.c.h.b16 %v2520
        %v5006 = vunpack.c.l.b16 %v2521
        %v5007 = vunpack.c.h.b16 %v2521
        %v5008 = vunpack.c.l.b16 %v2522
        %v5009 = vunpack.c.h.b16 %v2522
        %v5010 = vunpack.c.l.b16 %v2523
        %v5011 = vunpack.c.h.b16 %v2523
        %v5012 = vunpack.c.l.b16 %v2524
        %v5013 = vunpack.c.h.b16 %v2524
        %v5014 = vunpack.c.l.b16 %v2525
        %v5015 = vunpack.c.h.b16 %v2525
        %v5016 = vunpack.c.l.b16 %v2526
        %v5017 = vunpack.c.h.b16 %v2526
        %v5018 = vunpack.c.l.b16 %v2527
        %v5019 = vunpack.c.h.b16 %v2527
        %v5020 = vunpack.c.l.b16 %v2528
        %v5021 = vunpack.c.h.b16 %v2528
        %v5022 = vunpack.c.l.b16 %v2529
        %v5023 = vunpack.c.h.b16 %v2529
        %v5024 = vunpack.c.l.b16 %v2530
        %v5025 = vunpack.c.h.b16 %v2530
        %v5026 = vunpack.c.l.b16 %v2531
        %v5027 = vunpack.c.h.b16 %v2531
        %v5028 = vunpack.c.l.b16 %v2532
        %v5029 = vunpack.c.h.b16 %v2532
        %v5030 = vunpack.c.l.b16 %v2533
        %v5031 = vunpack.c.h.b16 %v2533
        %v5032 = vunpack.c.l.b16 %v2534
        %v5033 = vunpack.c.h.b16 %v2534
        %v5034 = vunpack.c.l.b16 %v2535
        %v5035 = vunpack.c.h.b16 %v2535
        %v5036 = vunpack.c.l.b16 %v2536
        %v5037 = vunpack.c.h.b16 %v2536
        %v5038 = vunpack.c.l.b16 %v2537
        %v5039 = vunpack.c.h.b16 %v2537
        %v5040 = vunpack.c.l.b16 %v2538
        %v5041 = vunpack.c.h.b16 %v2538
        %v5042 = vunpack.c.l.b16 %v2539
        %v5043 = vunpack.c.h.b16 %v2539
        %v5044 = vunpack.c.l.b16 %v2540
        %v5045 = vunpack.c.h.b16 %v2540
        %v5046 = vunpack.c.l.b16 %v2541
        %v5047 = vunpack.c.h.b16 %v2541
        %v5048 = vunpack.c.l.b16 %v2542
        %v5049 = vunpack.c.h.b16 %v2542
        %v5050 = vunpack.c.l.b16 %v2543
        %v5051 = vunpack.c.h.b16 %v2543
        %v5052 = vunpack.c.l.b16 %v2544
        %v5053 = vunpack.c.h.b16 %v2544
        %v5054 = vunpack.c.l.b16 %v2545
        %v5055 = vunpack.c.h.b16 %v2545
        %v5056 = vunpack.c.l.b16 %v2546
        %v5057 = vunpack.c.h.b16 %v2546
        %v5058 = vunpack.c.l.b16 %v2547
        %v5059 = vunpack.c.h.b16 %v2547
        %v5060 = vunpack.c.l.b16 %v2548
        %v5061 = vunpack.c.h.b16 %v2548
        %v5062 = vunpack.c.l.b16 %v2549
        %v5063 = vunpack.c.h.b16 %v2549
        %v5064 = vunpack.c.l.b16 %v2550
        %v5065 = vunpack.c.h.b16 %v2550
        %v5066 = vunpack.c.l.b16 %v2551
        %v5067 = vunpack.c.h.b16 %v2551
        %v5068 = vunpack.c.l.b16 %v2552
        %v5069 = vunpack.c.h.b16 %v2552
        %v5070 = vunpack.c.l.b16 %v2553
        %v5071 = vunpack.c.h.b16 %v2553
        %v5072 = vunpack.c.l.b16 %v2554
        %v5073 = vunpack.c.h.b16 %v2554
        %v5074 = vunpack.c.l.b16 %v2555
        %v5075 = vunpack.c.h.b16 %v2555
        %v5076 = vunpack.c.l.b16 %v2556
        %v5077 = vunpack.c.h.b16 %v2556
        %v5078 = vunpack.c.l.b16 %v2557
        %v5079 = vunpack.c.h.b16 %v2557
        %v5080 = vunpack.c.l.b16 %v2558
        %v5081 = vunpack.c.h.b16 %v2558
        %v5082 = vunpack.c.l.b16 %v2559
        %v5083 = vunpack.c.h.b16 %v2559
        %v5084 = vunpack.c.l.b16 %v2560
        %v5085 = vunpack.c.h.b16 %v2560
        %v5086 = vunpack.c.l.b16 %v2561
        %v5087 = vunpack.c.h.b16 %v2561
        %v5088 = vunpack.c.l.b16 %v2562
        %v5089 = vunpack.c.h.b16 %v2562
        %v5090 = vunpack.c.l.b16 %v2563
        %v5091 = vunpack.c.h.b16 %v2563
        %v5092 = vunpack.c.l.b16 %v2564
        %v5093 = vunpack.c.h.b16 %v2564
        %v5094 = vunpack.c.l.b16 %v2565
        %v5095 = vunpack.c.h.b16 %v2565
        %v5096 = vunpack.c.l.b16 %v2566
        %v5097 = vunpack.c.h.b16 %v2566
        %v5098 = vunpack.c.l.b16 %v2567
        %v5099 = vunpack.c.h.b16 %v2567
        %v5100 = vunpack.c.l.b16 %v2568
        %v5101 = vunpack.c.h.b16 %v2568
        %v5102 = vunpack.c.l.b16 %v2569
        %v5103 = vunpack.c.h.b16 %v2569
        %v5104 = vunpack.c.l.b16 %v2570
        %v5105 = vunpack.c.h.b16 %v2570
        %v5106 = vunpack.c.l.b16 %v2571
        %v5107 = vunpack.c.h.b16 %v2571
        %v5108 = vunpack.c.l.b16 %v2572
        %v5109 = vunpack.c.h.b16 %v2572
        %v5110 = vunpack.c.l.b16 %v2573
        %v5111 = vunpack.c.h.b16 %v2573
        %v5112 = vunpack.c.l.b16 %v2574
        %v5113 = vunpack.c.h.b16 %v2574
        %v5114 = vunpack.c.l.b16 %v2575
        %v5115 = vunpack.c.h.b16 %v2575
        %v5116 = vunpack.c.l.b16 %v2576
        %v5117 = vunpack.c.h.b16 %v2576
        %v5118 = vunpack.c.l.b16 %v2577
        %v5119 = vunpack.c.h.b16 %v2577
        %v5120 = vunpack.c.l.b16 %v2578
        %v5121 = vunpack.c.h.b16 %v2578
        %v5122 = vunpack.c.l.b16 %v2579
        %v5123 = vunpack.c.h.b16 %v2579
        %v5124 = vunpack.c.l.b16 %v2580
        %v5125 = vunpack.c.h.b16 %v2580
        %v5126 = vunpack.c.l.b16 %v2581
        %v5127 = vunpack.c.h.b16 %v2581
        %v5128 = vunpack.c.l.b16 %v2582
        %v5129 = vunpack.c.h.b16 %v2582
        %v5130 = vunpack.c.l.b16 %v2583
        %v5131 = vunpack.c.h.b16 %v2583
        %v5132 = vunpack.c.l.b16 %v2584
        %v5133 = vunpack.c.h.b16 %v2584
        %v5134 = vunpack.c.l.b16 %v2585
        %v5135 = vunpack.c.h.b16 %v2585
        %v5136 = vunpack.c.l.b16 %v2586
        %v5137 = vunpack.c.h.b16 %v2586
        %v5138 = vunpack.c.l.b16 %v2587
        %v5139 = vunpack.c.h.b16 %v2587
        %v5140 = vunpack.c.l.b16 %v2588
        %v5141 = vunpack.c.h.b16 %v2588
        %v5142 = vunpack.c.l.b16 %v2589
        %v5143 = vunpack.c.h.b16 %v2589
        %v5144 = vunpack.c.l.b16 %v2590
        %v5145 = vunpack.c.h.b16 %v2590
        %v5146 = vunpack.c.l.b16 %v2591
        %v5147 = vunpack.c.h.b16 %v2591
        %v5148 = vunpack.c.l.b16 %v2592
        %v5149 = vunpack.c.h.b16 %v2592
        %v5150 = vunpack.c.l.b16 %v2593
        %v5151 = vunpack.c.h.b16 %v2593
        %v5152 = vunpack.c.l.b16 %v2594
        %v5153 = vunpack.c.h.b16 %v2594
        %v5154 = vunpack.c.l.b16 %v2595
        %v5155 = vunpack.c.h.b16 %v2595
        %v5156 = vunpack.c.l.b16 %v2596
        %v5157 = vunpack.c.h.b16 %v2596
        %v5158 = vunpack.c.l.b16 %v2597
        %v5159 = vunpack.c.h.b16 %v2597
        %v5160 = vunpack.c.l.b16 %v2598
        %v5161 = vunpack.c.h.b16 %v2598
        %v5162 = vunpack.c.l.b16 %v2599
        %v5163 = vunpack.c.h.b16 %v2599
        %v5164 = vunpack.c.l.b16 %v2600
        %v5165 = vunpack.c.h.b16 %v2600
        %v5166 = vunpack.c.l.b16 %v2601
        %v5167 = vunpack.c.h.b16 %v2601
        %v5168 = vunpack.c.l.b16 %v2602
        %v5169 = vunpack.c.h.b16 %v2602
        %v5170 = vunpack.c.l.b16 %v2603
        %v5171 = vunpack.c.h.b16 %v2603
        %v5172 = vunpack.c.l.b16 %v2604
        %v5173 = vunpack.c.h.b16 %v2604
        %v5174 = vunpack.c.l.b16 %v2605
        %v5175 = vunpack.c.h.b16 %v2605
        %v5176 = vunpack.c.l.b16 %v2606
        %v5177 = vunpack.c.h.b16 %v2606
        %v5178 = vunpack.c.l.b16 %v2607
        %v5179 = vunpack.c.h.b16 %v2607
        %v5180 = vunpack.c.l.b16 %v2608
        %v5181 = vunpack.c.h.b16 %v2608
        %v5182 = vunpack.c.l.b16 %v2609
        %v5183 = vunpack.c.h.b16 %v2609
        %v5184 = vunpack.c.l.b16 %v2610
        %v5185 = vunpack.c.h.b16 %v2610
        %v5186 = vunpack.c.l.b16 %v2611
        %v5187 = vunpack.c.h.b16 %v2611
        %v5188 = vunpack.c.l.b16 %v2612
        %v5189 = vunpack.c.h.b16 %v2612
        %v5190 = vunpack.c.l.b16 %v2613
        %v5191 = vunpack.c.h.b16 %v2613
        %v5192 = vunpack.c.l.b16 %v2614
        %v5193 = vunpack.c.h.b16 %v2614
        %v5194 = vunpack.c.l.b16 %v2615
        %v5195 = vunpack.c.h.b16 %v2615
        %v5196 = vunpack.c.l.b16 %v2616
        %v5197 = vunpack.c.h.b16 %v2616
        %v5198 = vunpack.c.l.b16 %v2617
        %v5199 = vunpack.c.h.b16 %v2617
        %v5200 = vunpack.c.l.b16 %v2618
        %v5201 = vunpack.c.h.b16 %v2618
        %v5202 = vunpack.c.l.b16 %v2619
        %v5203 = vunpack.c.h.b16 %v2619
        %v5204 = vunpack.c.l.b16 %v2620
        %v5205 = vunpack.c.h.b16 %v2620
        %v5206 = vunpack.c.l.b16 %v2621
        %v5207 = vunpack.c.h.b16 %v2621
        %v5208 = vunpack.c.l.b16 %v2622
        %v5209 = vunpack.c.h.b16 %v2622
        %v5210 = vunpack.c.l.b16 %v2623
        %v5211 = vunpack.c.h.b16 %v2623
        %v5212 = vunpack.c.l.b16 %v2624
        %v5213 = vunpack.c.h.b16 %v2624
        %v5214 = vunpack.c.l.b16 %v2625
        %v5215 = vunpack.c.h.b16 %v2625
        %v5216 = vunpack.c.l.b16 %v2626
        %v5217 = vunpack.c.h.b16 %v2626
        %v5218 = vunpack.c.l.b16 %v2627
        %v5219 = vunpack.c.h.b16 %v2627
        %v5220 = vunpack.c.l.b16 %v2628
        %v5221 = vunpack.c.h.b16 %v2628
        %v5222 = vunpack.c.l.b16 %v2629
        %v5223 = vunpack.c.h.b16 %v2629
        %v5224 = vunpack.c.l.b16 %v2630
        %v5225 = vunpack.c.h.b16 %v2630
        %v5226 = vunpack.c.l.b16 %v2631
        %v5227 = vunpack.c.h.b16 %v2631
        %v5228 = vunpack.c.l.b16 %v2632
        %v5229 = vunpack.c.h.b16 %v2632
        %v5230 = vunpack.c.l.b16 %v2633
        %v5231 = vunpack.c.h.b16 %v2633
        %v5232 = vunpack.c.l.b16 %v2634
        %v5233 = vunpack.c.h.b16 %v2634
        %v5234 = vunpack.c.l.b16 %v2635
        %v5235 = vunpack.c.h.b16 %v2635
        %v5236 = vunpack.c.l.b16 %v2636
        %v5237 = vunpack.c.h.b16 %v2636
        %v5238 = vunpack.c.l.b16 %v2637
        %v5239 = vunpack.c.h.b16 %v2637
        %v5240 = vunpack.c.l.b16 %v2638
        %v5241 = vunpack.c.h.b16 %v2638
        %v5242 = vunpack.c.l.b16 %v2639
        %v5243 = vunpack.c.h.b16 %v2639
        %v5244 = vunpack.c.l.b16 %v2640
        %v5245 = vunpack.c.h.b16 %v2640
        %v5246 = vunpack.c.l.b16 %v2641
        %v5247 = vunpack.c.h.b16 %v2641
        %v5248 = vunpack.c.l.b16 %v2642
        %v5249 = vunpack.c.h.b16 %v2642
        %v5250 = vunpack.c.l.b16 %v2643
        %v5251 = vunpack.c.h.b16 %v2643
        %v5252 = vunpack.c.l.b16 %v2644
        %v5253 = vunpack.c.h.b16 %v2644
        %v5254 = vunpack.c.l.b16 %v2645
        %v5255 = vunpack.c.h.b16 %v2645
        %v5256 = vunpack.c.l.b16 %v2646
        %v5257 = vunpack.c.h.b16 %v2646
        %v5258 = vunpack.c.l.b16 %v2647
        %v5259 = vunpack.c.h.b16 %v2647
        %v5260 = vunpack.c.l.b16 %v2648
        %v5261 = vunpack.c.h.b16 %v2648
        %v5262 = vunpack.c.l.b16 %v2649
        %v5263 = vunpack.c.h.b16 %v2649
        %v5264 = vunpack.c.l.b16 %v2650
        %v5265 = vunpack.c.h.b16 %v2650
        %v5266 = vunpack.c.l.b16 %v2651
        %v5267 = vunpack.c.h.b16 %v2651
        %v5268 = vunpack.c.l.b16 %v2652
        %v5269 = vunpack.c.h.b16 %v2652
        %v5270 = vunpack.c.l.b16 %v2653
        %v5271 = vunpack.c.h.b16 %v2653
        %v5272 = vunpack.c.l.b16 %v2654
        %v5273 = vunpack.c.h.b16 %v2654
        %v5274 = vunpack.c.l.b16 %v2655
        %v5275 = vunpack.c.h.b16 %v2655
        %v5276 = vunpack.c.l.b16 %v2656
        %v5277 = vunpack.c.h.b16 %v2656
        %v5278 = vunpack.c.l.b16 %v2657
        %v5279 = vunpack.c.h.b16 %v2657
        %v5280 = vunpack.c.l.b16 %v2658
        %v5281 = vunpack.c.h.b16 %v2658
        %v5282 = vunpack.c.l.b16 %v2659
        %v5283 = vunpack.c.h.b16 %v2659
        %v5284 = vunpack.c.l.b16 %v2660
        %v5285 = vunpack.c.h.b16 %v2660
        %v5286 = vunpack.c.l.b16 %v2661
        %v5287 = vunpack.c.h.b16 %v2661
        %v5288 = vunpack.c.l.b16 %v2662
        %v5289 = vunpack.c.h.b16 %v2662
        %v5290 = vunpack.c.l.b16 %v2663
        %v5291 = vunpack.c.h.b16 %v2663
        %v5292 = vunpack.c.l.b16 %v2664
        %v5293 = vunpack.c.h.b16 %v2664
        %v5294 = vunpack.c.l.b16 %v2665
        %v5295 = vunpack.c.h.b16 %v2665
        %v5296 = vunpack.c.l.b16 %v2666
        %v5297 = vunpack.c.h.b16 %v2666
        %v5298 = vunpack.c.l.b16 %v2667
        %v5299 = vunpack.c.h.b16 %v2667
        %v5300 = vunpack.c.l.b16 %v2668
        %v5301 = vunpack.c.h.b16 %v2668
        %v5302 = vunpack.c.l.b16 %v2669
        %v5303 = vunpack.c.h.b16 %v2669
        %v5304 = vunpack.c.l.b16 %v2670
        %v5305 = vunpack.c.h.b16 %v2670
        %v5306 = vunpack.c.l.b16 %v2671
        %v5307 = vunpack.c.h.b16 %v2671
        %v5308 = vunpack.c.l.b16 %v2672
        %v5309 = vunpack.c.h.b16 %v2672
        %v5310 = vunpack.c.l.b16 %v2673
        %v5311 = vunpack.c.h.b16 %v2673
        %v5312 = vunpack.c.l.b16 %v2674
        %v5313 = vunpack.c.h.b16 %v2674
        %v5314 = vunpack.c.l.b16 %v2675
        %v5315 = vunpack.c.h.b16 %v2675
        %v5316 = vunpack.c.l.b16 %v2676
        %v5317 = vunpack.c.h.b16 %v2676
        %v5318 = vunpack.c.l.b16 %v2677
        %v5319 = vunpack.c.h.b16 %v2677
        %v5320 = vunpack.c.l.b16 %v2678
        %v5321 = vunpack.c.h.b16 %v2678
        %v5322 = vunpack.c.l.b16 %v2679
        %v5323 = vunpack.c.h.b16 %v2679
        %v5324 = vunpack.c.l.b16 %v2680
        %v5325 = vunpack.c.h.b16 %v2680
        %v5326 = vunpack.c.l.b16 %v2681
        %v5327 = vunpack.c.h.b16 %v2681
        %v5328 = vunpack.c.l.b16 %v2682
        %v5329 = vunpack.c.h.b16 %v2682
        %v5330 = vunpack.c.l.b16 %v2683
        %v5331 = vunpack.c.h.b16 %v2683
        %v5332 = vunpack.c.l.b16 %v2684
        %v5333 = vunpack.c.h.b16 %v2684
        %v5334 = vunpack.c.l.b16 %v2685
        %v5335 = vunpack.c.h.b16 %v2685
        %v5336 = vunpack.c.l.b16 %v2686
        %v5337 = vunpack.c.h.b16 %v2686
        %v5338 = vunpack.c.l.b16 %v2687
        %v5339 = vunpack.c.h.b16 %v2687
        %v5340 = vunpack.c.l.b16 %v2688
        %v5341 = vunpack.c.h.b16 %v2688
        %v5342 = vunpack.c.l.b16 %v2689
        %v5343 = vunpack.c.h.b16 %v2689
        %v5344 = vunpack.c.l.b16 %v2690
        %v5345 = vunpack.c.h.b16 %v2690
        %v5346 = vunpack.c.l.b16 %v2691
        %v5347 = vunpack.c.h.b16 %v2691
        %v5348 = vunpack.c.l.b16 %v2692
        %v5349 = vunpack.c.h.b16 %v2692
        %v5350 = vunpack.c.l.b16 %v2693
        %v5351 = vunpack.c.h.b16 %v2693
        %v5352 = vunpack.c.l.b16 %v2694
        %v5353 = vunpack.c.h.b16 %v2694
        %v5354 = vunpack.c.l.b16 %v2695
        %v5355 = vunpack.c.h.b16 %v2695
        %v5356 = vunpack.c.l.b16 %v2696
        %v5357 = vunpack.c.h.b16 %v2696
        %v5358 = vunpack.c.l.b16 %v2697
        %v5359 = vunpack.c.h.b16 %v2697
        %v5360 = vunpack.c.l.b16 %v2698
        %v5361 = vunpack.c.h.b16 %v2698
        %v5362 = vunpack.c.l.b16 %v2699
        %v5363 = vunpack.c.h.b16 %v2699
        %v5364 = vunpack.c.l.b16 %v2700
        %v5365 = vunpack.c.h.b16 %v2700
        %v5366 = vunpack.c.l.b16 %v2701
        %v5367 = vunpack.c.h.b16 %v2701
        %v5368 = vunpack.c.l.b16 %v2702
        %v5369 = vunpack.c.h.b16 %v2702
        %v5370 = vunpack.c.l.b16 %v2703
        %v5371 = vunpack.c.h.b16 %v2703
        %v5372 = vunpack.c.l.b16 %v2704
        %v5373 = vunpack.c.h.b16 %v2704
        %v5374 = vunpack.c.l.b16 %v2705
        %v5375 = vunpack.c.h.b16 %v2705
        %v5376 = vunpack.c.l.b16 %v2706
        %v5377 = vunpack.c.h.b16 %v2706
        %v5378 = vunpack.c.l.b16 %v2707
        %v5379 = vunpack.c.h.b16 %v2707
        %v5380 = vunpack.c.l.b16 %v2708
        %v5381 = vunpack.c.h.b16 %v2708
        %v5382 = vunpack.c.l.b16 %v2709
        %v5383 = vunpack.c.h.b16 %v2709
        %v5384 = vunpack.c.l.b16 %v2710
        %v5385 = vunpack.c.h.b16 %v2710
        %v5386 = vunpack.c.l.b16 %v2711
        %v5387 = vunpack.c.h.b16 %v2711
        %v5388 = vunpack.c.l.b16 %v2712
        %v5389 = vunpack.c.h.b16 %v2712
        %v5390 = vunpack.c.l.b16 %v2713
        %v5391 = vunpack.c.h.b16 %v2713
        %v5392 = vunpack.c.l.b16 %v2714
        %v5393 = vunpack.c.h.b16 %v2714
        %v5394 = vunpack.c.l.b16 %v2715
        %v5395 = vunpack.c.h.b16 %v2715
        %v5396 = vunpack.c.l.b16 %v2716
        %v5397 = vunpack.c.h.b16 %v2716
        %v5398 = vunpack.c.l.b16 %v2717
        %v5399 = vunpack.c.h.b16 %v2717
        %v5400 = vunpack.c.l.b16 %v2718
        %v5401 = vunpack.c.h.b16 %v2718
        %v5402 = vunpack.c.l.b16 %v2719
        %v5403 = vunpack.c.h.b16 %v2719
        %v5404 = vunpack.c.l.b16 %v2720
        %v5405 = vunpack.c.h.b16 %v2720
        %v5406 = vunpack.c.l.b16 %v2721
        %v5407 = vunpack.c.h.b16 %v2721
        %v5408 = vunpack.c.l.b16 %v2722
        %v5409 = vunpack.c.h.b16 %v2722
        %v5410 = vunpack.c.l.b16 %v2723
        %v5411 = vunpack.c.h.b16 %v2723
        %v5412 = vunpack.c.l.b16 %v2724
        %v5413 = vunpack.c.h.b16 %v2724
        %v5414 = vunpack.c.l.b16 %v2725
        %v5415 = vunpack.c.h.b16 %v2725
        %v5416 = vunpack.c.l.b16 %v2726
        %v5417 = vunpack.c.h.b16 %v2726
        %v5418 = vunpack.c.l.b16 %v2727
        %v5419 = vunpack.c.h.b16 %v2727
        %v5420 = vunpack.c.l.b16 %v2728
        %v5421 = vunpack.c.h.b16 %v2728
        %v5422 = vunpack.c.l.b16 %v2729
        %v5423 = vunpack.c.h.b16 %v2729
        %v5424 = vunpack.c.l.b16 %v2730
        %v5425 = vunpack.c.h.b16 %v2730
        %v5426 = vunpack.c.l.b16 %v2731
        %v5427 = vunpack.c.h.b16 %v2731
        %v5428 = vunpack.c.l.b16 %v2732
        %v5429 = vunpack.c.h.b16 %v2732
        %v5430 = vunpack.c.l.b16 %v2733
        %v5431 = vunpack.c.h.b16 %v2733
        %v5432 = vunpack.c.l.b16 %v2734
        %v5433 = vunpack.c.h.b16 %v2734
        %v5434 = vunpack.c.l.b16 %v2735
        %v5435 = vunpack.c.h.b16 %v2735
        %v5436 = vunpack.c.l.b16 %v2736
        %v5437 = vunpack.c.h.b16 %v2736
        %v5438 = vunpack.c.l.b16 %v2737
        %v5439 = vunpack.c.h.b16 %v2737
        %v5440 = vunpack.c.l.b16 %v2738
        %v5441 = vunpack.c.h.b16 %v2738
        %v5442 = vunpack.c.l.b16 %v2739
        %v5443 = vunpack.c.h.b16 %v2739
        %v5444 = vunpack.c.l.b16 %v2740
        %v5445 = vunpack.c.h.b16 %v2740
        %v5446 = vunpack.c.l.b16 %v2741
        %v5447 = vunpack.c.h.b16 %v2741
        %v5448 = vunpack.c.l.b16 %v2742
        %v5449 = vunpack.c.h.b16 %v2742
        %v5450 = vunpack.c.l.b16 %v2743
        %v5451 = vunpack.c.h.b16 %v2743
        %v5452 = vunpack.c.l.b16 %v2744
        %v5453 = vunpack.c.h.b16 %v2744
        %v5454 = vunpack.c.l.b16 %v2745
        %v5455 = vunpack.c.h.b16 %v2745
        %v5456 = vunpack.c.l.b16 %v2746
        %v5457 = vunpack.c.h.b16 %v2746
        %v5458 = vunpack.c.l.b16 %v2747
        %v5459 = vunpack.c.h.b16 %v2747
        %v5460 = vunpack.c.l.b16 %v2748
        %v5461 = vunpack.c.h.b16 %v2748
        %v5462 = vunpack.c.l.b16 %v2749
        %v5463 = vunpack.c.h.b16 %v2749
        %v5464 = vunpack.c.l.b16 %v2750
        %v5465 = vunpack.c.h.b16 %v2750
        %v5466 = vunpack.c.l.b16 %v2751
        %v5467 = vunpack.c.h.b16 %v2751
        %v5468 = vunpack.c.l.b16 %v2752
        %v5469 = vunpack.c.h.b16 %v2752
        %v5470 = vunpack.c.l.b16 %v2753
        %v5471 = vunpack.c.h.b16 %v2753
        %v5472 = vunpack.c.l.b16 %v2754
        %v5473 = vunpack.c.h.b16 %v2754
        %v5474 = vunpack.c.l.b16 %v2755
        %v5475 = vunpack.c.h.b16 %v2755
        %v5476 = vunpack.c.l.b16 %v2756
        %v5477 = vunpack.c.h.b16 %v2756
        %v5478 = vunpack.c.l.b16 %v2757
        %v5479 = vunpack.c.h.b16 %v2757
        %v5480 = vunpack.c.l.b16 %v2758
        %v5481 = vunpack.c.h.b16 %v2758
        %v5482 = vunpack.c.l.b16 %v2759
        %v5483 = vunpack.c.h.b16 %v2759
        %v5484 = vunpack.c.l.b16 %v2760
        %v5485 = vunpack.c.h.b16 %v2760
        %v5486 = vunpack.c.l.b16 %v2761
        %v5487 = vunpack.c.h.b16 %v2761
        %v5488 = vunpack.c.l.b16 %v2762
        %v5489 = vunpack.c.h.b16 %v2762
        %v5490 = vunpack.c.l.b16 %v2763
        %v5491 = vunpack.c.h.b16 %v2763
        %v5492 = vunpack.c.l.b16 %v2764
        %v5493 = vunpack.c.h.b16 %v2764
        %v5494 = vunpack.c.l.b16 %v2765
        %v5495 = vunpack.c.h.b16 %v2765
        %v5496 = vunpack.c.l.b16 %v2766
        %v5497 = vunpack.c.h.b16 %v2766
        %v5498 = vunpack.c.l.b16 %v2767
        %v5499 = vunpack.c.h.b16 %v2767
        %v5500 = vunpack.c.l.b16 %v2768
        %v5501 = vunpack.c.h.b16 %v2768
        %v5502 = vunpack.c.l.b16 %v2769
        %v5503 = vunpack.c.h.b16 %v2769
        %v5504 = vunpack.c.l.b16 %v2770
        %v5505 = vunpack.c.h.b16 %v2770
        %v5506 = vunpack.c.l.b16 %v2771
        %v5507 = vunpack.c.h.b16 %v2771
        %v5508 = vunpack.c.l.b16 %v2772
        %v5509 = vunpack.c.h.b16 %v2772
        %v5510 = vunpack.c.l.b16 %v2773
        %v5511 = vunpack.c.h.b16 %v2773
        %v5512 = vunpack.c.l.b16 %v2774
        %v5513 = vunpack.c.h.b16 %v2774
        %v5514 = vunpack.c.l.b16 %v2775
        %v5515 = vunpack.c.h.b16 %v2775
        %v5516 = vunpack.c.l.b16 %v2776
        %v5517 = vunpack.c.h.b16 %v2776
        %v5518 = vunpack.c.l.b16 %v2777
        %v5519 = vunpack.c.h.b16 %v2777
        %v5520 = vunpack.c.l.b16 %v2778
        %v5521 = vunpack.c.h.b16 %v2778
        %v5522 = vunpack.c.l.b16 %v2779
        %v5523 = vunpack.c.h.b16 %v2779
        %v5524 = vunpack.c.l.b16 %v2780
        %v5525 = vunpack.c.h.b16 %v2780
        %v5526 = vunpack.c.l.b16 %v2781
        %v5527 = vunpack.c.h.b16 %v2781
        %v5528 = vunpack.c.l.b16 %v2782
        %v5529 = vunpack.c.h.b16 %v2782
        %v5530 = vunpack.c.l.b16 %v2783
        %v5531 = vunpack.c.h.b16 %v2783
        %v5532 = vunpack.c.l.b16 %v2784
        %v5533 = vunpack.c.h.b16 %v2784
        %v5534 = vunpack.c.l.b16 %v2785
        %v5535 = vunpack.c.h.b16 %v2785
        %v5536 = vunpack.c.l.b16 %v2786
        %v5537 = vunpack.c.h.b16 %v2786
        %v5538 = vunpack.c.l.b16 %v2787
        %v5539 = vunpack.c.h.b16 %v2787
        %v5540 = vunpack.c.l.b16 %v2788
        %v5541 = vunpack.c.h.b16 %v2788
        %v5542 = vunpack.c.l.b16 %v2789
        %v5543 = vunpack.c.h.b16 %v2789
        %v5544 = vunpack.c.l.b16 %v2790
        %v5545 = vunpack.c.h.b16 %v2790
        %v5546 = vunpack.c.l.b16 %v2791
        %v5547 = vunpack.c.h.b16 %v2791
        %v5548 = vunpack.c.l.b16 %v2792
        %v5549 = vunpack.c.h.b16 %v2792
        %v5550 = vunpack.c.l.b16 %v2793
        %v5551 = vunpack.c.h.b16 %v2793
        %v5552 = vunpack.c.l.b16 %v2794
        %v5553 = vunpack.c.h.b16 %v2794
        %v5554 = vunpack.c.l.b16 %v2795
        %v5555 = vunpack.c.h.b16 %v2795
        %v5556 = vunpack.c.l.b16 %v2796
        %v5557 = vunpack.c.h.b16 %v2796
        %v5558 = vunpack.c.l.b16 %v2797
        %v5559 = vunpack.c.h.b16 %v2797
        %v5560 = vunpack.c.l.b16 %v2798
        %v5561 = vunpack.c.h.b16 %v2798
        %v5562 = vunpack.c.l.b16 %v2799
        %v5563 = vunpack.c.h.b16 %v2799
        %v5564 = vunpack.c.l.b16 %v2800
        %v5565 = vunpack.c.h.b16 %v2800
        %v5566 = vunpack.c.l.b16 %v2801
        %v5567 = vunpack.c.h.b16 %v2801
        %v5568 = vunpack.c.l.b16 %v2802
        %v5569 = vunpack.c.h.b16 %v2802
        %v5570 = vunpack.c.l.b16 %v2803
        %v5571 = vunpack.c.h.b16 %v2803
        %v5572 = vunpack.c.l.b16 %v2804
        %v5573 = vunpack.c.h.b16 %v2804
        %v5574 = vunpack.c.l.b16 %v2805
        %v5575 = vunpack.c.h.b16 %v2805
        %v5576 = vunpack.c.l.b16 %v2806
        %v5577 = vunpack.c.h.b16 %v2806
        %v5578 = vunpack.c.l.b16 %v2807
        %v5579 = vunpack.c.h.b16 %v2807
        %v5580 = vunpack.c.l.b16 %v2808
        %v5581 = vunpack.c.h.b16 %v2808
        %v5582 = vunpack.c.l.b16 %v2809
        %v5583 = vunpack.c.h.b16 %v2809
        %v5584 = vunpack.c.l.b16 %v2810
        %v5585 = vunpack.c.h.b16 %v2810
        %v5586 = vunpack.c.l.b16 %v2811
        %v5587 = vunpack.c.h.b16 %v2811
        %v5588 = vunpack.c.l.b16 %v2812
        %v5589 = vunpack.c.h.b16 %v2812
        %v5590 = vunpack.c.l.b16 %v2813
        %v5591 = vunpack.c.h.b16 %v2813
        %v5592 = vunpack.c.l.b16 %v2814
        %v5593 = vunpack.c.h.b16 %v2814
        %v5594 = vunpack.c.l.b16 %v2815
        %v5595 = vunpack.c.h.b16 %v2815
        %v5596 = vunpack.c.l.b16 %v2816
        %v5597 = vunpack.c.h.b16 %v2816
        %v5598 = vunpack.c.l.b16 %v2817
        %v5599 = vunpack.c.h.b16 %v2817
        %v5600 = vunpack.c.l.b16 %v2818
        %v5601 = vunpack.c.h.b16 %v2818
        %v5602 = vunpack.c.l.b16 %v2819
        %v5603 = vunpack.c.h.b16 %v2819
        %v5604 = vunpack.c.l.b16 %v2820
        %v5605 = vunpack.c.h.b16 %v2820
        %v5606 = vunpack.c.l.b16 %v2821
        %v5607 = vunpack.c.h.b16 %v2821
        %v5608 = vunpack.c.l.b16 %v2822
        %v5609 = vunpack.c.h.b16 %v2822
        %v5610 = vunpack.c.l.b16 %v2823
        %v5611 = vunpack.c.h.b16 %v2823
        %v5612 = vunpack.c.l.b16 %v2824
        %v5613 = vunpack.c.h.b16 %v2824
        %v5614 = vunpack.c.l.b16 %v2825
        %v5615 = vunpack.c.h.b16 %v2825
        %v5616 = vunpack.c.l.b16 %v2826
        %v5617 = vunpack.c.h.b16 %v2826
        %v5618 = vunpack.c.l.b16 %v2827
        %v5619 = vunpack.c.h.b16 %v2827
        %v5620 = vunpack.c.l.b16 %v2828
        %v5621 = vunpack.c.h.b16 %v2828
        %v5622 = vunpack.c.l.b16 %v2829
        %v5623 = vunpack.c.h.b16 %v2829
        %v5624 = vunpack.c.l.b16 %v2830
        %v5625 = vunpack.c.h.b16 %v2830
        %v5626 = vunpack.c.l.b16 %v2831
        %v5627 = vunpack.c.h.b16 %v2831
        %v5628 = vunpack.c.l.b16 %v2832
        %v5629 = vunpack.c.h.b16 %v2832
        %v5630 = vunpack.c.l.b16 %v2833
        %v5631 = vunpack.c.h.b16 %v2833
        %v5632 = vunpack.c.l.b16 %v2834
        %v5633 = vunpack.c.h.b16 %v2834
        %v5634 = vunpack.c.l.b16 %v2835
        %v5635 = vunpack.c.h.b16 %v2835
        %v5636 = vunpack.c.l.b16 %v2836
        %v5637 = vunpack.c.h.b16 %v2836
        %v5638 = vunpack.c.l.b16 %v2837
        %v5639 = vunpack.c.h.b16 %v2837
        %v5640 = vunpack.c.l.b16 %v2838
        %v5641 = vunpack.c.h.b16 %v2838
        %v5642 = vunpack.c.l.b16 %v2839
        %v5643 = vunpack.c.h.b16 %v2839
        %v5644 = vunpack.c.l.b16 %v2840
        %v5645 = vunpack.c.h.b16 %v2840
        %v5646 = vunpack.c.l.b16 %v2841
        %v5647 = vunpack.c.h.b16 %v2841
        %v5648 = vunpack.c.l.b16 %v2842
        %v5649 = vunpack.c.h.b16 %v2842
        %v5650 = vunpack.c.l.b16 %v2843
        %v5651 = vunpack.c.h.b16 %v2843
        %v5652 = vunpack.c.l.b16 %v2844
        %v5653 = vunpack.c.h.b16 %v2844
        %v5654 = vunpack.c.l.b16 %v2845
        %v5655 = vunpack.c.h.b16 %v2845
        %v5656 = vunpack.c.l.b16 %v2846
        %v5657 = vunpack.c.h.b16 %v2846
        %v5658 = vunpack.c.l.b16 %v2847
        %v5659 = vunpack.c.h.b16 %v2847
        %v5660 = vunpack.c.l.b16 %v2848
        %v5661 = vunpack.c.h.b16 %v2848
        %v5662 = vunpack.c.l.b16 %v2849
        %v5663 = vunpack.c.h.b16 %v2849
        %v5664 = vunpack.c.l.b16 %v2850
        %v5665 = vunpack.c.h.b16 %v2850
        %v5666 = vunpack.c.l.b16 %v2851
        %v5667 = vunpack.c.h.b16 %v2851
        %v5668 = vunpack.c.l.b16 %v2852
        %v5669 = vunpack.c.h.b16 %v2852
        %v5670 = vunpack.c.l.b16 %v2853
        %v5671 = vunpack.c.h.b16 %v2853
        %v5672 = vunpack.c.l.b16 %v2854
        %v5673 = vunpack.c.h.b16 %v2854
        %v5674 = vunpack.c.l.b16 %v2855
        %v5675 = vunpack.c.h.b16 %v2855
        %v5676 = vunpack.c.l.b16 %v2856
        %v5677 = vunpack.c.h.b16 %v2856
        %v5678 = vunpack.c.l.b16 %v2857
        %v5679 = vunpack.c.h.b16 %v2857
        %v5680 = vunpack.c.l.b16 %v2858
        %v5681 = vunpack.c.h.b16 %v2858
        %v5682 = vunpack.c.l.b16 %v2859
        %v5683 = vunpack.c.h.b16 %v2859
        %v5684 = vunpack.c.l.b16 %v2860
        %v5685 = vunpack.c.h.b16 %v2860
        %v5686 = vunpack.c.l.b16 %v2861
        %v5687 = vunpack.c.h.b16 %v2861
        %v5688 = vunpack.c.l.b16 %v2862
        %v5689 = vunpack.c.h.b16 %v2862
        %v5690 = vunpack.c.l.b16 %v2863
        %v5691 = vunpack.c.h.b16 %v2863
        %v5692 = vunpack.c.l.b16 %v2864
        %v5693 = vunpack.c.h.b16 %v2864
        %v5694 = vunpack.c.l.b16 %v2865
        %v5695 = vunpack.c.h.b16 %v2865
        %v5696 = vunpack.c.l.b16 %v2866
        %v5697 = vunpack.c.h.b16 %v2866
        %v5698 = vunpack.c.l.b16 %v2867
        %v5699 = vunpack.c.h.b16 %v2867
        %v5700 = vunpack.c.l.b16 %v2868
        %v5701 = vunpack.c.h.b16 %v2868
        %v5702 = vunpack.c.l.b16 %v2869
        %v5703 = vunpack.c.h.b16 %v2869
        %v5704 = vunpack.c.l.b16 %v2870
        %v5705 = vunpack.c.h.b16 %v2870
        %v5706 = vunpack.c.l.b16 %v2871
        %v5707 = vunpack.c.h.b16 %v2871
        %v5708 = vunpack.c.l.b16 %v2872
        %v5709 = vunpack.c.h.b16 %v2872
        %v5710 = vunpack.c.l.b16 %v2873
        %v5711 = vunpack.c.h.b16 %v2873
        %v5712 = vunpack.c.l.b16 %v2874
        %v5713 = vunpack.c.h.b16 %v2874
        %v5714 = vunpack.c.l.b16 %v2875
        %v5715 = vunpack.c.h.b16 %v2875
        %v5716 = vunpack.c.l.b16 %v2876
        %v5717 = vunpack.c.h.b16 %v2876
        %v5718 = vunpack.c.l.b16 %v2877
        %v5719 = vunpack.c.h.b16 %v2877
        %v5720 = vunpack.c.l.b16 %v2878
        %v5721 = vunpack.c.h.b16 %v2878
        %v5722 = vunpack.c.l.b16 %v2879
        %v5723 = vunpack.c.h.b16 %v2879
        %v5724 = vunpack.c.l.b16 %v2880
        %v5725 = vunpack.c.h.b16 %v2880
        %v5726 = vunpack.c.l.b16 %v2881
        %v5727 = vunpack.c.h.b16 %v2881
        %v5728 = vunpack.c.l.b16 %v2882
        %v5729 = vunpack.c.h.b16 %v2882
        %v5730 = vunpack.c.l.b16 %v2883
        %v5731 = vunpack.c.h.b16 %v2883
        %v5732 = vunpack.c.l.b16 %v2884
        %v5733 = vunpack.c.h.b16 %v2884
        %v5734 = vunpack.c.l.b16 %v2885
        %v5735 = vunpack.c.h.b16 %v2885
        %v5736 = vunpack.c.l.b16 %v2886
        %v5737 = vunpack.c.h.b16 %v2886
        %v5738 = vunpack.c.l.b16 %v2887
        %v5739 = vunpack.c.h.b16 %v2887
        %v5740 = vunpack.c.l.b16 %v2888
        %v5741 = vunpack.c.h.b16 %v2888
        %v5742 = vunpack.c.l.b16 %v2889
        %v5743 = vunpack.c.h.b16 %v2889
        %v5744 = vunpack.c.l.b16 %v2890
        %v5745 = vunpack.c.h.b16 %v2890
        %v5746 = vunpack.c.l.b16 %v2891
        %v5747 = vunpack.c.h.b16 %v2891
        %v5748 = vunpack.c.l.b16 %v2892
        %v5749 = vunpack.c.h.b16 %v2892
        %v5750 = vunpack.c.l.b16 %v2893
        %v5751 = vunpack.c.h.b16 %v2893
        %v5752 = vunpack.c.l.b16 %v2894
        %v5753 = vunpack.c.h.b16 %v2894
        %v5754 = vunpack.c.l.b16 %v2895
        %v5755 = vunpack.c.h.b16 %v2895
        %v5756 = vunpack.c.l.b16 %v2896
        %v5757 = vunpack.c.h.b16 %v2896
        %v5758 = vunpack.c.l.b16 %v2897
        %v5759 = vunpack.c.h.b16 %v2897
        %v5760 = vunpack.c.l.b16 %v2898
        %v5761 = vunpack.c.h.b16 %v2898
        %v5762 = vunpack.c.l.b16 %v2899
        %v5763 = vunpack.c.h.b16 %v2899
        %v5764 = vunpack.c.l.b16 %v2900
        %v5765 = vunpack.c.h.b16 %v2900
        %v5766 = vunpack.c.l.b16 %v2901
        %v5767 = vunpack.c.h.b16 %v2901
        %v5768 = vunpack.c.l.b16 %v2902
        %v5769 = vunpack.c.h.b16 %v2902
        %v5770 = vunpack.c.l.b16 %v2903
        %v5771 = vunpack.c.h.b16 %v2903
        %v5772 = vunpack.c.l.b16 %v2904
        %v5773 = vunpack.c.h.b16 %v2904
        %v5774 = vunpack.c.l.b16 %v2905
        %v5775 = vunpack.c.h.b16 %v2905
        %v5776 = vunpack.c.l.b16 %v2906
        %v5777 = vunpack.c.h.b16 %v2906
        %v5778 = vunpack.c.l.b16 %v2907
        %v5779 = vunpack.c.h.b16 %v2907
        %v5780 = vunpack.c.l.b16 %v2908
        %v5781 = vunpack.c.h.b16 %v2908
        %v5782 = vunpack.c.l.b16 %v2909
        %v5783 = vunpack.c.h.b16 %v2909
        %v5784 = vunpack.c.l.b16 %v2910
        %v5785 = vunpack.c.h.b16 %v2910
        %v5786 = vunpack.c.l.b16 %v2911
        %v5787 = vunpack.c.h.b16 %v2911
        %v5788 = vunpack.c.l.b16 %v2912
        %v5789 = vunpack.c.h.b16 %v2912
        %v5790 = vunpack.c.l.b16 %v2913
        %v5791 = vunpack.c.h.b16 %v2913
        %v5792 = vunpack.c.l.b16 %v2914
        %v5793 = vunpack.c.h.b16 %v2914
        %v5794 = vunpack.c.l.b16 %v2915
        %v5795 = vunpack.c.h.b16 %v2915
        %v5796 = vunpack.c.l.b16 %v2916
        %v5797 = vunpack.c.h.b16 %v2916
        %v5798 = vunpack.c.l.b16 %v2917
        %v5799 = vunpack.c.h.b16 %v2917
        %v5800 = vunpack.c.l.b16 %v2918
        %v5801 = vunpack.c.h.b16 %v2918
        %v5802 = vunpack.c.l.b16 %v2919
        %v5803 = vunpack.c.h.b16 %v2919
        %v5804 = vunpack.c.l.b16 %v2920
        %v5805 = vunpack.c.h.b16 %v2920
        %v5806 = vunpack.c.l.b16 %v2921
        %v5807 = vunpack.c.h.b16 %v2921
        %v5808 = vunpack.c.l.b16 %v2922
        %v5809 = vunpack.c.h.b16 %v2922
        %v5810 = vunpack.c.l.b16 %v2923
        %v5811 = vunpack.c.h.b16 %v2923
        %v5812 = vunpack.c.l.b16 %v2924
        %v5813 = vunpack.c.h.b16 %v2924
        %v5814 = vunpack.c.l.b16 %v2925
        %v5815 = vunpack.c.h.b16 %v2925
        %v5816 = vunpack.c.l.b16 %v2926
        %v5817 = vunpack.c.h.b16 %v2926
        %v5818 = vunpack.c.l.b16 %v2927
        %v5819 = vunpack.c.h.b16 %v2927
        %v5820 = vunpack.c.l.b16 %v2928
        %v5821 = vunpack.c.h.b16 %v2928
        %v5822 = vunpack.c.l.b16 %v2929
        %v5823 = vunpack.c.h.b16 %v2929
        %v5824 = vunpack.c.l.b16 %v2930
        %v5825 = vunpack.c.h.b16 %v2930
        %v5826 = vunpack.c.l.b16 %v2931
        %v5827 = vunpack.c.h.b16 %v2931
        %v5828 = vunpack.c.l.b16 %v2932
        %v5829 = vunpack.c.h.b16 %v2932
        %v5830 = vunpack.c.l.b16 %v2933
        %v5831 = vunpack.c.h.b16 %v2933
        %v5832 = vunpack.c.l.b16 %v2934
        %v5833 = vunpack.c.h.b16 %v2934
        %v5834 = vunpack.c.l.b16 %v2935
        %v5835 = vunpack.c.h.b16 %v2935
        %v5836 = vunpack.c.l.b16 %v2936
        %v5837 = vunpack.c.h.b16 %v2936
        %v5838 = vunpack.c.l.b16 %v2937
        %v5839 = vunpack.c.h.b16 %v2937
        %v5840 = vunpack.c.l.b16 %v2938
        %v5841 = vunpack.c.h.b16 %v2938
        %v5842 = vunpack.c.l.b16 %v2939
        %v5843 = vunpack.c.h.b16 %v2939
        %v5844 = vunpack.c.l.b16 %v2940
        %v5845 = vunpack.c.h.b16 %v2940
        %v5846 = vunpack.c.l.b16 %v2941
        %v5847 = vunpack.c.h.b16 %v2941
        %v5848 = vunpack.c.l.b16 %v2942
        %v5849 = vunpack.c.h.b16 %v2942
        %v5850 = vunpack.c.l.b16 %v2943
        %v5851 = vunpack.c.h.b16 %v2943
        %v5852 = vunpack.c.l.b16 %v2944
        %v5853 = vunpack.c.h.b16 %v2944
        %v5854 = vunpack.c.l.b16 %v2945
        %v5855 = vunpack.c.h.b16 %v2945
        %v5856 = vunpack.c.l.b16 %v2946
        %v5857 = vunpack.c.h.b16 %v2946
        %v5858 = vunpack.c.l.b16 %v2947
        %v5859 = vunpack.c.h.b16 %v2947
        %v5860 = vunpack.c.l.b16 %v2948
        %v5861 = vunpack.c.h.b16 %v2948
        %v5862 = vunpack.c.l.b16 %v2949
        %v5863 = vunpack.c.h.b16 %v2949
        %v5864 = vunpack.c.l.b16 %v2950
        %v5865 = vunpack.c.h.b16 %v2950
        %v5866 = vunpack.c.l.b16 %v2951
        %v5867 = vunpack.c.h.b16 %v2951
        %v5868 = vunpack.c.l.b16 %v2952
        %v5869 = vunpack.c.h.b16 %v2952
        %v5870 = vunpack.c.l.b16 %v2953
        %v5871 = vunpack.c.h.b16 %v2953
        %v5872 = vunpack.c.l.b16 %v2954
        %v5873 = vunpack.c.h.b16 %v2954
        %v5874 = vunpack.c.l.b16 %v2955
        %v5875 = vunpack.c.h.b16 %v2955
        %v5876 = vunpack.c.l.b16 %v2956
        %v5877 = vunpack.c.h.b16 %v2956
        %v5878 = vunpack.c.l.b16 %v2957
        %v5879 = vunpack.c.h.b16 %v2957
        %v5880 = vunpack.c.l.b16 %v2958
        %v5881 = vunpack.c.h.b16 %v2958
        %v5882 = vunpack.c.l.b16 %v2959
        %v5883 = vunpack.c.h.b16 %v2959
        %v5884 = vunpack.c.l.b16 %v2960
        %v5885 = vunpack.c.h.b16 %v2960
        %v5886 = vunpack.c.l.b16 %v2961
        %v5887 = vunpack.c.h.b16 %v2961
        %v5888 = vunpack.c.l.b16 %v2962
        %v5889 = vunpack.c.h.b16 %v2962
        %v5890 = vunpack.c.l.b16 %v2963
        %v5891 = vunpack.c.h.b16 %v2963
        %v5892 = vunpack.c.l.b16 %v2964
        %v5893 = vunpack.c.h.b16 %v2964
        %v5894 = vunpack.c.l.b16 %v2965
        %v5895 = vunpack.c.h.b16 %v2965
        %v5896 = vunpack.c.l.b16 %v2966
        %v5897 = vunpack.c.h.b16 %v2966
        %v5898 = vunpack.c.l.b16 %v2967
        %v5899 = vunpack.c.h.b16 %v2967
        %v5900 = vunpack.c.l.b16 %v2968
        %v5901 = vunpack.c.h.b16 %v2968
        %v5902 = vunpack.c.l.b16 %v2969
        %v5903 = vunpack.c.h.b16 %v2969
        %v5904 = vunpack.c.l.b16 %v2970
        %v5905 = vunpack.c.h.b16 %v2970
        %v5906 = vunpack.c.l.b16 %v2971
        %v5907 = vunpack.c.h.b16 %v2971
        %v5908 = vunpack.c.l.b16 %v2972
        %v5909 = vunpack.c.h.b16 %v2972
        %v5910 = vunpack.c.l.b16 %v2973
        %v5911 = vunpack.c.h.b16 %v2973
        %v5912 = vunpack.c.l.b16 %v2974
        %v5913 = vunpack.c.h.b16 %v2974
        %v5914 = vunpack.c.l.b16 %v2975
        %v5915 = vunpack.c.h.b16 %v2975
        %v5916 = vunpack.c.l.b16 %v2976
        %v5917 = vunpack.c.h.b16 %v2976
        %v5918 = vunpack.c.l.b16 %v2977
        %v5919 = vunpack.c.h.b16 %v2977
        %v5920 = vunpack.c.l.b16 %v2978
        %v5921 = vunpack.c.h.b16 %v2978
        %v5922 = vunpack.c.l.b16 %v2979
        %v5923 = vunpack.c.h.b16 %v2979
        %v5924 = vunpack.c.l.b16 %v2980
        %v5925 = vunpack.c.h.b16 %v2980
        %v5926 = vunpack.c.l.b16 %v2981
        %v5927 = vunpack.c.h.b16 %v2981
        %v5928 = vunpack.c.l.b16 %v2982
        %v5929 = vunpack.c.h.b16 %v2982
        %v5930 = vunpack.c.l.b16 %v2983
        %v5931 = vunpack.c.h.b16 %v2983
        %v5932 = vunpack.c.l.b16 %v2984
        %v5933 = vunpack.c.h.b16 %v2984
        %v5934 = vunpack.c.l.b16 %v2985
        %v5935 = vunpack.c.h.b16 %v2985
        %v5936 = vunpack.c.l.b16 %v2986
        %v5937 = vunpack.c.h.b16 %v2986
        %v5938 = vunpack.c.l.b16 %v2987
        %v5939 = vunpack.c.h.b16 %v2987
        %v5940 = vunpack.c.l.b16 %v2988
        %v5941 = vunpack.c.h.b16 %v2988
        %v5942 = vunpack.c.l.b16 %v2989
        %v5943 = vunpack.c.h.b16 %v2989
        %v5944 = vunpack.c.l.b16 %v2990
        %v5945 = vunpack.c.h.b16 %v2990
        %v5946 = vunpack.c.l.b16 %v2991
        %v5947 = vunpack.c.h.b16 %v2991
        %v5948 = vunpack.c.l.b16 %v2992
        %v5949 = vunpack.c.h.b16 %v2992
        %v5950 = vunpack.c.l.b16 %v2993
        %v5951 = vunpack.c.h.b16 %v2993
        %v5952 = vunpack.c.l.b16 %v2994
        %v5953 = vunpack.c.h.b16 %v2994
        %v5954 = vunpack.c.l.b16 %v2995
        %v5955 = vunpack.c.h.b16 %v2995
        %v5956 = vunpack.c.l.b16 %v2996
        %v5957 = vunpack.c.h.b16 %v2996
        %v5958 = vunpack.c.l.b16 %v2997
        %v5959 = vunpack.c.h.b16 %v2997
        %v5960 = vunpack.c.l.b16 %v2998
        %v5961 = vunpack.c.h.b16 %v2998
        %v5962 = vunpack.c.l.b16 %v2999
        %v5963 = vunpack.c.h.b16 %v2999
        %v5964 = vunpack.c.l.b16 %v3000
        %v5965 = vunpack.c.h.b16 %v3000
        %v5966 = vunpack.c.l.b16 %v3001
        %v5967 = vunpack.c.h.b16 %v3001
        %v5968 = vunpack.c.l.b16 %v3002
        %v5969 = vunpack.c.h.b16 %v3002
        %v5970 = vunpack.c.l.b16 %v3003
        %v5971 = vunpack.c.h.b16 %v3003
        %v5972 = vunpack.c.l.b16 %v3004
        %v5973 = vunpack.c.h.b16 %v3004
        %v5974 = vunpack.c.l.b16 %v3005
        %v5975 = vunpack.c.h.b16 %v3005
        %v5976 = vunpack.c.l.b16 %v3006
        %v5977 = vunpack.c.h.b16 %v3006
        %v5978 = vunpack.c.l.b16 %v3007
        %v5979 = vunpack.c.h.b16 %v3007
        %v5980 = vunpack.c.l.b16 %v3008
        %v5981 = vunpack.c.h.b16 %v3008
        %v5982 = vunpack.c.l.b16 %v3009
        %v5983 = vunpack.c.h.b16 %v3009
        %v5984 = vunpack.c.l.b16 %v3010
        %v5985 = vunpack.c.h.b16 %v3010
        %v5986 = vunpack.c.l.b16 %v3011
        %v5987 = vunpack.c.h.b16 %v3011
        %v5988 = vunpack.c.l.b16 %v3012
        %v5989 = vunpack.c.h.b16 %v3012
        %v5990 = vunpack.c.l.b16 %v3013
        %v5991 = vunpack.c.h.b16 %v3013
        %v5992 = vunpack.c.l.b16 %v3014
        %v5993 = vunpack.c.h.b16 %v3014
        %v5994 = vunpack.c.l.b16 %v3015
        %v5995 = vunpack.c.h.b16 %v3015
        %v5996 = vunpack.c.l.b16 %v3016
        %v5997 = vunpack.c.h.b16 %v3016
        %v5998 = vunpack.c.l.b16 %v3017
        %v5999 = vunpack.c.h.b16 %v3017
        %v6000 = vunpack.c.l.b16 %v3018
        %v6001 = vunpack.c.h.b16 %v3018
        %v6002 = vunpack.c.l.b16 %v3019
        %v6003 = vunpack.c.h.b16 %v3019
        %v6004 = vunpack.c.l.b16 %v3020
        %v6005 = vunpack.c.h.b16 %v3020
        %v6006 = vunpack.c.l.b16 %v3021
        %v6007 = vunpack.c.h.b16 %v3021
        %v6008 = vunpack.c.l.b16 %v3022
        %v6009 = vunpack.c.h.b16 %v3022
        %v6010 = vunpack.c.l.b16 %v3023
        %v6011 = vunpack.c.h.b16 %v3023
        %v6012 = vunpack.c.l.b16 %v3024
        %v6013 = vunpack.c.h.b16 %v3024
        %v6014 = vunpack.c.l.b16 %v3025
        %v6015 = vunpack.c.h.b16 %v3025
        %v6016 = vunpack.c.l.b16 %v3026
        %v6017 = vunpack.c.h.b16 %v3026
        %v6018 = vunpack.c.l.b16 %v3027
        %v6019 = vunpack.c.h.b16 %v3027
        %v6020 = vunpack.c.l.b16 %v3028
        %v6021 = vunpack.c.h.b16 %v3028
        %v6022 = vunpack.c.l.b16 %v3029
        %v6023 = vunpack.c.h.b16 %v3029
        %v6024 = vunpack.c.l.b16 %v3030
        %v6025 = vunpack.c.h.b16 %v3030
        %v6026 = vunpack.c.l.b16 %v3031
        %v6027 = vunpack.c.h.b16 %v3031
        %v6028 = vunpack.c.l.b16 %v3032
        %v6029 = vunpack.c.h.b16 %v3032
        %v6030 = vunpack.c.l.b16 %v3033
        %v6031 = vunpack.c.h.b16 %v3033
        %v6032 = vunpack.c.l.b16 %v3034
        %v6033 = vunpack.c.h.b16 %v3034
        %v6034 = vunpack.c.l.b16 %v3035
        %v6035 = vunpack.c.h.b16 %v3035
        %v6036 = vunpack.c.l.b16 %v3036
        %v6037 = vunpack.c.h.b16 %v3036
        %v6038 = vunpack.c.l.b16 %v3037
        %v6039 = vunpack.c.h.b16 %v3037
        %v6040 = vunpack.c.l.b16 %v3038
        %v6041 = vunpack.c.h.b16 %v3038
        %v6042 = vunpack.c.l.b16 %v3039
        %v6043 = vunpack.c.h.b16 %v3039
        %v6044 = vunpack.c.l.b16 %v3040
        %v6045 = vunpack.c.h.b16 %v3040
        %v6046 = vunpack.c.l.b16 %v3041
        %v6047 = vunpack.c.h.b16 %v3041
        %v6048 = vunpack.c.l.b16 %v3042
        %v6049 = vunpack.c.h.b16 %v3042
        %v6050 = vunpack.c.l.b16 %v3043
        %v6051 = vunpack.c.h.b16 %v3043
        %v6052 = vunpack.c.l.b16 %v3044
        %v6053 = vunpack.c.h.b16 %v3044
        %v6054 = vunpack.c.l.b16 %v3045
        %v6055 = vunpack.c.h.b16 %v3045
        %v6056 = vunpack.c.l.b16 %v3046
        %v6057 = vunpack.c.h.b16 %v3046
        %v6058 = vunpack.c.l.b16 %v3047
        %v6059 = vunpack.c.h.b16 %v3047
        %v6060 = vunpack.c.l.b16 %v3048
        %v6061 = vunpack.c.h.b16 %v3048
        %v6062 = vunpack.c.l.b16 %v3049
        %v6063 = vunpack.c.h.b16 %v3049
        %v6064 = vunpack.c.l.b16 %v3050
        %v6065 = vunpack.c.h.b16 %v3050
        %v6066 = vunpack.c.l.b16 %v3051
        %v6067 = vunpack.c.h.b16 %v3051
        %v6068 = vunpack.c.l.b16 %v3052
        %v6069 = vunpack.c.h.b16 %v3052
        %v6070 = vunpack.c.l.b16 %v3053
        %v6071 = vunpack.c.h.b16 %v3053
        %v6072 = vunpack.c.l.b16 %v3054
        %v6073 = vunpack.c.h.b16 %v3054
        %v6074 = vunpack.c.l.b16 %v3055
        %v6075 = vunpack.c.h.b16 %v3055
        %v6076 = vunpack.c.l.b16 %v3056
        %v6077 = vunpack.c.h.b16 %v3056
        %v6078 = vunpack.c.l.b16 %v3057
        %v6079 = vunpack.c.h.b16 %v3057
        %v6080 = vunpack.c.l.b16 %v3058
        %v6081 = vunpack.c.h.b16 %v3058
        %v6082 = vunpack.c.l.b16 %v3059
        %v6083 = vunpack.c.h.b16 %v3059
        %v6084 = vunpack.c.l.b16 %v3060
        %v6085 = vunpack.c.h.b16 %v3060
        %v6086 = vunpack.c.l.b16 %v3061
        %v6087 = vunpack.c.h.b16 %v3061
        %v6088 = vunpack.c.l.b16 %v3062
        %v6089 = vunpack.c.h.b16 %v3062
        %v6090 = vunpack.c.l.b16 %v3063
        %v6091 = vunpack.c.h.b16 %v3063
        %v6092 = vunpack.c.l.b16 %v3064
        %v6093 = vunpack.c.h.b16 %v3064
        %v6094 = vunpack.c.l.b16 %v3065
        %v6095 = vunpack.c.h.b16 %v3065
        %v6096 = vunpack.c.l.b16 %v3066
        %v6097 = vunpack.c.h.b16 %v3066
        %v6098 = vunpack.c.l.b16 %v3067
        %v6099 = vunpack.c.h.b16 %v3067
        %v6100 = vunpack.c.l.b16 %v3068
        %v6101 = vunpack.c.h.b16 %v3068
        %v6102 = vunpack.c.l.b16 %v3069
        %v6103 = vunpack.c.h.b16 %v3069
        %v6104 = vunpack.c.l.b16 %v3070
        %v6105 = vunpack.c.h.b16 %v3070
        %v6106 = vunpack.c.l.b16 %v3071
        %v6107 = vunpack.c.h.b16 %v3071
        %v6108 = vunpack.c.l.b16 %v3072
        %v6109 = vunpack.c.h.b16 %v3072
        %v6110 = vunpack.c.l.b16 %v3073
        %v6111 = vunpack.c.h.b16 %v3073
        %v6112 = vunpack.c.l.b16 %v3074
        %v6113 = vunpack.c.h.b16 %v3074
        %v6114 = vunpack.c.l.b16 %v3075
        %v6115 = vunpack.c.h.b16 %v3075
        %v6116 = vunpack.c.l.b16 %v3076
        %v6117 = vunpack.c.h.b16 %v3076
        %v6118 = vunpack.c.l.b16 %v3077
        %v6119 = vunpack.c.h.b16 %v3077
        %v6120 = vunpack.c.l.b16 %v3078
        %v6121 = vunpack.c.h.b16 %v3078
        %v6122 = vunpack.c.l.b16 %v3079
        %v6123 = vunpack.c.h.b16 %v3079
        %v6124 = vunpack.c.l.b16 %v3080
        %v6125 = vunpack.c.h.b16 %v3080
        %v6126 = vunpack.c.l.b16 %v3081
        %v6127 = vunpack.c.h.b16 %v3081
        %v6128 = vunpack.c.l.b16 %v3082
        %v6129 = vunpack.c.h.b16 %v3082
        %v6130 = vunpack.c.l.b16 %v3083
        %v6131 = vunpack.c.h.b16 %v3083
        %v6132 = vunpack.c.l.b16 %v3084
        %v6133 = vunpack.c.h.b16 %v3084
        %v6134 = vunpack.c.l.b16 %v3085
        %v6135 = vunpack.c.h.b16 %v3085
        %v6136 = vunpack.c.l.b16 %v3086
        %v6137 = vunpack.c.h.b16 %v3086
        %v6138 = vunpack.c.l.b16 %v3087
        %v6139 = vunpack.c.h.b16 %v3087
        %v6140 = vunpack.c.l.b16 %v3088
        %v6141 = vunpack.c.h.b16 %v3088
        %v6142 = vunpack.c.l.b16 %v3089
        %v6143 = vunpack.c.h.b16 %v3089
        %v6144 = vunpack.c.l.b16 %v3090
        %v6145 = vunpack.c.h.b16 %v3090
        %v6146 = vunpack.c.l.b16 %v3091
        %v6147 = vunpack.c.h.b16 %v3091
        %v6148 = vunpack.c.l.b16 %v3092
        %v6149 = vunpack.c.h.b16 %v3092
        %v6150 = vunpack.c.l.b16 %v3093
        %v6151 = vunpack.c.h.b16 %v3093
        %v6152 = vunpack.c.l.b16 %v3094
        %v6153 = vunpack.c.h.b16 %v3094
        %v6154 = vunpack.c.l.b16 %v3095
        %v6155 = vunpack.c.h.b16 %v3095
        %v6156 = vunpack.c.l.b16 %v3096
        %v6157 = vunpack.c.h.b16 %v3096
        %v6158 = vunpack.c.l.b16 %v3097
        %v6159 = vunpack.c.h.b16 %v3097
        %v6160 = vunpack.c.l.b16 %v3098
        %v6161 = vunpack.c.h.b16 %v3098
        %v6162 = vunpack.c.l.b16 %v3099
        %v6163 = vunpack.c.h.b16 %v3099
        %v6164 = vunpack.c.l.b16 %v3100
        %v6165 = vunpack.c.h.b16 %v3100
        %v6166 = vunpack.c.l.b16 %v3101
        %v6167 = vunpack.c.h.b16 %v3101
        %v6168 = vunpack.c.l.b16 %v3102
        %v6169 = vunpack.c.h.b16 %v3102
        %v6170 = vunpack.c.l.b16 %v3103
        %v6171 = vunpack.c.h.b16 %v3103
        %v6172 = vunpack.c.l.b16 %v3104
        %v6173 = vunpack.c.h.b16 %v3104
        %v6174 = vunpack.c.l.b16 %v3105
        %v6175 = vunpack.c.h.b16 %v3105
        %v6176 = vunpack.c.l.b16 %v3106
        %v6177 = vunpack.c.h.b16 %v3106
        %v6178 = vunpack.c.l.b16 %v3107
        %v6179 = vunpack.c.h.b16 %v3107
        %v6180 = vpack.c.b16 %v4148, %v4132
        %v6181 = vpack.c.b16 %v4149, %v4133
        %v6182 = vpack.c.b16 %v4150, %v4134
        %v6183 = vpack.c.b16 %v4151, %v4135
        %v6184 = vpack.c.b16 %v4152, %v4136
        %v6185 = vpack.c.b16 %v4153, %v4137
        %v6186 = vpack.c.b16 %v4154, %v4138
        %v6187 = vpack.c.b16 %v4155, %v4139
        %v6188 = vpack.c.b16 %v4156, %v4140
        %v6189 = vpack.c.b16 %v4157, %v4141
        %v6190 = vpack.c.b16 %v4158, %v4142
        %v6191 = vpack.c.b16 %v4159, %v4143
        %v6192 = vpack.c.b16 %v4160, %v4144
        %v6193 = vpack.c.b16 %v4161, %v4145
        %v6194 = vpack.c.b16 %v4162, %v4146
        %v6195 = vpack.c.b16 %v4163, %v4147
        %v6196 = vpack.c.b16 %v4180, %v4164
        %v6197 = vpack.c.b16 %v4181, %v4165
        %v6198 = vpack.c.b16 %v4182, %v4166
        %v6199 = vpack.c.b16 %v4183, %v4167
        %v6200 = vpack.c.b16 %v4184, %v4168
        %v6201 = vpack.c.b16 %v4185, %v4169
        %v6202 = vpack.c.b16 %v4186, %v4170
        %v6203 = vpack.c.b16 %v4187, %v4171
        %v6204 = vpack.c.b16 %v4188, %v4172
        %v6205 = vpack.c.b16 %v4189, %v4173
        %v6206 = vpack.c.b16 %v4190, %v4174
        %v6207 = vpack.c.b16 %v4191, %v4175
        %v6208 = vpack.c.b16 %v4192, %v4176
        %v6209 = vpack.c.b16 %v4193, %v4177
        %v6210 = vpack.c.b16 %v4194, %v4178
        %v6211 = vpack.c.b16 %v4195, %v4179
        %v6212 = vpack.c.b16 %v4212, %v4196
        %v6213 = vpack.c.b16 %v4213, %v4197
        %v6214 = vpack.c.b16 %v4214, %v4198
        %v6215 = vpack.c.b16 %v4215, %v4199
        %v6216 = vpack.c.b16 %v4216, %v4200
        %v6217 = vpack.c.b16 %v4217, %v4201
        %v6218 = vpack.c.b16 %v4218, %v4202
        %v6219 = vpack.c.b16 %v4219, %v4203
        %v6220 = vpack.c.b16 %v4220, %v4204
        %v6221 = vpack.c.b16 %v4221, %v4205
        %v6222 = vpack.c.b16 %v4222, %v4206
        %v6223 = vpack.c.b16 %v4223, %v4207
        %v6224 = vpack.c.b16 %v4224, %v4208
        %v6225 = vpack.c.b16 %v4225, %v4209
        %v6226 = vpack.c.b16 %v4226, %v4210
        %v6227 = vpack.c.b16 %v4227, %v4211
        %v6228 = vpack.c.b16 %v4244, %v4228
        %v6229 = vpack.c.b16 %v4245, %v4229
        %v6230 = vpack.c.b16 %v4246, %v4230
        %v6231 = vpack.c.b16 %v4247, %v4231
        %v6232 = vpack.c.b16 %v4248, %v4232
        %v6233 = vpack.c.b16 %v4249, %v4233
        %v6234 = vpack.c.b16 %v4250, %v4234
        %v6235 = vpack.c.b16 %v4251, %v4235
        %v6236 = vpack.c.b16 %v4252, %v4236
        %v6237 = vpack.c.b16 %v4253, %v4237
        %v6238 = vpack.c.b16 %v4254, %v4238
        %v6239 = vpack.c.b16 %v4255, %v4239
        %v6240 = vpack.c.b16 %v4256, %v4240
        %v6241 = vpack.c.b16 %v4257, %v4241
        %v6242 = vpack.c.b16 %v4258, %v4242
        %v6243 = vpack.c.b16 %v4259, %v4243
        %v6244 = vpack.c.b16 %v4276, %v4260
        %v6245 = vpack.c.b16 %v4277, %v4261
        %v6246 = vpack.c.b16 %v4278, %v4262
        %v6247 = vpack.c.b16 %v4279, %v4263
        %v6248 = vpack.c.b16 %v4280, %v4264
        %v6249 = vpack.c.b16 %v4281, %v4265
        %v6250 = vpack.c.b16 %v4282, %v4266
        %v6251 = vpack.c.b16 %v4283, %v4267
        %v6252 = vpack.c.b16 %v4284, %v4268
        %v6253 = vpack.c.b16 %v4285, %v4269
        %v6254 = vpack.c.b16 %v4286, %v4270
        %v6255 = vpack.c.b16 %v4287, %v4271
        %v6256 = vpack.c.b16 %v4288, %v4272
        %v6257 = vpack.c.b16 %v4289, %v4273
        %v6258 = vpack.c.b16 %v4290, %v4274
        %v6259 = vpack.c.b16 %v4291, %v4275
        %v6260 = vpack.c.b16 %v4308, %v4292
        %v6261 = vpack.c.b16 %v4309, %v4293
        %v6262 = vpack.c.b16 %v4310, %v4294
        %v6263 = vpack.c.b16 %v4311, %v4295
        %v6264 = vpack.c.b16 %v4312, %v4296
        %v6265 = vpack.c.b16 %v4313, %v4297
        %v6266 = vpack.c.b16 %v4314, %v4298
        %v6267 = vpack.c.b16 %v4315, %v4299
        %v6268 = vpack.c.b16 %v4316, %v4300
        %v6269 = vpack.c.b16 %v4317, %v4301
        %v6270 = vpack.c.b16 %v4318, %v4302
        %v6271 = vpack.c.b16 %v4319, %v4303
        %v6272 = vpack.c.b16 %v4320, %v4304
        %v6273 = vpack.c.b16 %v4321, %v4305
        %v6274 = vpack.c.b16 %v4322, %v4306
        %v6275 = vpack.c.b16 %v4323, %v4307
        %v6276 = vpack.c.b16 %v4340, %v4324
        %v6277 = vpack.c.b16 %v4341, %v4325
        %v6278 = vpack.c.b16 %v4342, %v4326
        %v6279 = vpack.c.b16 %v4343, %v4327
        %v6280 = vpack.c.b16 %v4344, %v4328
        %v6281 = vpack.c.b16 %v4345, %v4329
        %v6282 = vpack.c.b16 %v4346, %v4330
        %v6283 = vpack.c.b16 %v4347, %v4331
        %v6284 = vpack.c.b16 %v4348, %v4332
        %v6285 = vpack.c.b16 %v4349, %v4333
        %v6286 = vpack.c.b16 %v4350, %v4334
        %v6287 = vpack.c.b16 %v4351, %v4335
        %v6288 = vpack.c.b16 %v4352, %v4336
        %v6289 = vpack.c.b16 %v4353, %v4337
        %v6290 = vpack.c.b16 %v4354, %v4338
        %v6291 = vpack.c.b16 %v4355, %v4339
        %v6292 = vpack.c.b16 %v4372, %v4356
        %v6293 = vpack.c.b16 %v4373, %v4357
        %v6294 = vpack.c.b16 %v4374, %v4358
        %v6295 = vpack.c.b16 %v4375, %v4359
        %v6296 = vpack.c.b16 %v4376, %v4360
        %v6297 = vpack.c.b16 %v4377, %v4361
        %v6298 = vpack.c.b16 %v4378, %v4362
        %v6299 = vpack.c.b16 %v4379, %v4363
        %v6300 = vpack.c.b16 %v4380, %v4364
        %v6301 = vpack.c.b16 %v4381, %v4365
        %v6302 = vpack.c.b16 %v4382, %v4366
        %v6303 = vpack.c.b16 %v4383, %v4367
        %v6304 = vpack.c.b16 %v4384, %v4368
        %v6305 = vpack.c.b16 %v4385, %v4369
        %v6306 = vpack.c.b16 %v4386, %v4370
        %v6307 = vpack.c.b16 %v4387, %v4371
        %v6308 = vpack.c.b16 %v4404, %v4388
        %v6309 = vpack.c.b16 %v4405, %v4389
        %v6310 = vpack.c.b16 %v4406, %v4390
        %v6311 = vpack.c.b16 %v4407, %v4391
        %v6312 = vpack.c.b16 %v4408, %v4392
        %v6313 = vpack.c.b16 %v4409, %v4393
        %v6314 = vpack.c.b16 %v4410, %v4394
        %v6315 = vpack.c.b16 %v4411, %v4395
        %v6316 = vpack.c.b16 %v4412, %v4396
        %v6317 = vpack.c.b16 %v4413, %v4397
        %v6318 = vpack.c.b16 %v4414, %v4398
        %v6319 = vpack.c.b16 %v4415, %v4399
        %v6320 = vpack.c.b16 %v4416, %v4400
        %v6321 = vpack.c.b16 %v4417, %v4401
        %v6322 = vpack.c.b16 %v4418, %v4402
        %v6323 = vpack.c.b16 %v4419, %v4403
        %v6324 = vpack.c.b16 %v4436, %v4420
        %v6325 = vpack.c.b16 %v4437, %v4421
        %v6326 = vpack.c.b16 %v4438, %v4422
        %v6327 = vpack.c.b16 %v4439, %v4423
        %v6328 = vpack.c.b16 %v4440, %v4424
        %v6329 = vpack.c.b16 %v4441, %v4425
        %v6330 = vpack.c.b16 %v4442, %v4426
        %v6331 = vpack.c.b16 %v4443, %v4427
        %v6332 = vpack.c.b16 %v4444, %v4428
        %v6333 = vpack.c.b16 %v4445, %v4429
        %v6334 = vpack.c.b16 %v4446, %v4430
        %v6335 = vpack.c.b16 %v4447, %v4431
        %v6336 = vpack.c.b16 %v4448, %v4432
        %v6337 = vpack.c.b16 %v4449, %v4433
        %v6338 = vpack.c.b16 %v4450, %v4434
        %v6339 = vpack.c.b16 %v4451, %v4435
        %v6340 = vpack.c.b16 %v4468, %v4452
        %v6341 = vpack.c.b16 %v4469, %v4453
        %v6342 = vpack.c.b16 %v4470, %v4454
        %v6343 = vpack.c.b16 %v4471, %v4455
        %v6344 = vpack.c.b16 %v4472, %v4456
        %v6345 = vpack.c.b16 %v4473, %v4457
        %v6346 = vpack.c.b16 %v4474, %v4458
        %v6347 = vpack.c.b16 %v4475, %v4459
        %v6348 = vpack.c.b16 %v4476, %v4460
        %v6349 = vpack.c.b16 %v4477, %v4461
        %v6350 = vpack.c.b16 %v4478, %v4462
        %v6351 = vpack.c.b16 %v4479, %v4463
        %v6352 = vpack.c.b16 %v4480, %v4464
        %v6353 = vpack.c.b16 %v4481, %v4465
        %v6354 = vpack.c.b16 %v4482, %v4466
        %v6355 = vpack.c.b16 %v4483, %v4467
        %v6356 = vpack.c.b16 %v4500, %v4484
        %v6357 = vpack.c.b16 %v4501, %v4485
        %v6358 = vpack.c.b16 %v4502, %v4486
        %v6359 = vpack.c.b16 %v4503, %v4487
        %v6360 = vpack.c.b16 %v4504, %v4488
        %v6361 = vpack.c.b16 %v4505, %v4489
        %v6362 = vpack.c.b16 %v4506, %v4490
        %v6363 = vpack.c.b16 %v4507, %v4491
        %v6364 = vpack.c.b16 %v4508, %v4492
        %v6365 = vpack.c.b16 %v4509, %v4493
        %v6366 = vpack.c.b16 %v4510, %v4494
        %v6367 = vpack.c.b16 %v4511, %v4495
        %v6368 = vpack.c.b16 %v4512, %v4496
        %v6369 = vpack.c.b16 %v4513, %v4497
        %v6370 = vpack.c.b16 %v4514, %v4498
        %v6371 = vpack.c.b16 %v4515, %v4499
        %v6372 = vpack.c.b16 %v4532, %v4516
        %v6373 = vpack.c.b16 %v4533, %v4517
        %v6374 = vpack.c.b16 %v4534, %v4518
        %v6375 = vpack.c.b16 %v4535, %v4519
        %v6376 = vpack.c.b16 %v4536, %v4520
        %v6377 = vpack.c.b16 %v4537, %v4521
        %v6378 = vpack.c.b16 %v4538, %v4522
        %v6379 = vpack.c.b16 %v4539, %v4523
        %v6380 = vpack.c.b16 %v4540, %v4524
        %v6381 = vpack.c.b16 %v4541, %v4525
        %v6382 = vpack.c.b16 %v4542, %v4526
        %v6383 = vpack.c.b16 %v4543, %v4527
        %v6384 = vpack.c.b16 %v4544, %v4528
        %v6385 = vpack.c.b16 %v4545, %v4529
        %v6386 = vpack.c.b16 %v4546, %v4530
        %v6387 = vpack.c.b16 %v4547, %v4531
        %v6388 = vpack.c.b16 %v4564, %v4548
        %v6389 = vpack.c.b16 %v4565, %v4549
        %v6390 = vpack.c.b16 %v4566, %v4550
        %v6391 = vpack.c.b16 %v4567, %v4551
        %v6392 = vpack.c.b16 %v4568, %v4552
        %v6393 = vpack.c.b16 %v4569, %v4553
        %v6394 = vpack.c.b16 %v4570, %v4554
        %v6395 = vpack.c.b16 %v4571, %v4555
        %v6396 = vpack.c.b16 %v4572, %v4556
        %v6397 = vpack.c.b16 %v4573, %v4557
        %v6398 = vpack.c.b16 %v4574, %v4558
        %v6399 = vpack.c.b16 %v4575, %v4559
        %v6400 = vpack.c.b16 %v4576, %v4560
        %v6401 = vpack.c.b16 %v4577, %v4561
        %v6402 = vpack.c.b16 %v4578, %v4562
        %v6403 = vpack.c.b16 %v4579, %v4563
        %v6404 = vpack.c.b16 %v4596, %v4580
        %v6405 = vpack.c.b16 %v4597, %v4581
        %v6406 = vpack.c.b16 %v4598, %v4582
        %v6407 = vpack.c.b16 %v4599, %v4583
        %v6408 = vpack.c.b16 %v4600, %v4584
        %v6409 = vpack.c.b16 %v4601, %v4585
        %v6410 = vpack.c.b16 %v4602, %v4586
        %v6411 = vpack.c.b16 %v4603, %v4587
        %v6412 = vpack.c.b16 %v4604, %v4588
        %v6413 = vpack.c.b16 %v4605, %v4589
        %v6414 = vpack.c.b16 %v4606, %v4590
        %v6415 = vpack.c.b16 %v4607, %v4591
        %v6416 = vpack.c.b16 %v4608, %v4592
        %v6417 = vpack.c.b16 %v4609, %v4593
        %v6418 = vpack.c.b16 %v4610, %v4594
        %v6419 = vpack.c.b16 %v4611, %v4595
        %v6420 = vpack.c.b16 %v4628, %v4612
        %v6421 = vpack.c.b16 %v4629, %v4613
        %v6422 = vpack.c.b16 %v4630, %v4614
        %v6423 = vpack.c.b16 %v4631, %v4615
        %v6424 = vpack.c.b16 %v4632, %v4616
        %v6425 = vpack.c.b16 %v4633, %v4617
        %v6426 = vpack.c.b16 %v4634, %v4618
        %v6427 = vpack.c.b16 %v4635, %v4619
        %v6428 = vpack.c.b16 %v4636, %v4620
        %v6429 = vpack.c.b16 %v4637, %v4621
        %v6430 = vpack.c.b16 %v4638, %v4622
        %v6431 = vpack.c.b16 %v4639, %v4623
        %v6432 = vpack.c.b16 %v4640, %v4624
        %v6433 = vpack.c.b16 %v4641, %v4625
        %v6434 = vpack.c.b16 %v4642, %v4626
        %v6435 = vpack.c.b16 %v4643, %v4627
        %v6436 = vpack.c.b16 %v4660, %v4644
        %v6437 = vpack.c.b16 %v4661, %v4645
        %v6438 = vpack.c.b16 %v4662, %v4646
        %v6439 = vpack.c.b16 %v4663, %v4647
        %v6440 = vpack.c.b16 %v4664, %v4648
        %v6441 = vpack.c.b16 %v4665, %v4649
        %v6442 = vpack.c.b16 %v4666, %v4650
        %v6443 = vpack.c.b16 %v4667, %v4651
        %v6444 = vpack.c.b16 %v4668, %v4652
        %v6445 = vpack.c.b16 %v4669, %v4653
        %v6446 = vpack.c.b16 %v4670, %v4654
        %v6447 = vpack.c.b16 %v4671, %v4655
        %v6448 = vpack.c.b16 %v4672, %v4656
        %v6449 = vpack.c.b16 %v4673, %v4657
        %v6450 = vpack.c.b16 %v4674, %v4658
        %v6451 = vpack.c.b16 %v4675, %v4659
        %v6452 = vpack.c.b16 %v4692, %v4676
        %v6453 = vpack.c.b16 %v4693, %v4677
        %v6454 = vpack.c.b16 %v4694, %v4678
        %v6455 = vpack.c.b16 %v4695, %v4679
        %v6456 = vpack.c.b16 %v4696, %v4680
        %v6457 = vpack.c.b16 %v4697, %v4681
        %v6458 = vpack.c.b16 %v4698, %v4682
        %v6459 = vpack.c.b16 %v4699, %v4683
        %v6460 = vpack.c.b16 %v4700, %v4684
        %v6461 = vpack.c.b16 %v4701, %v4685
        %v6462 = vpack.c.b16 %v4702, %v4686
        %v6463 = vpack.c.b16 %v4703, %v4687
        %v6464 = vpack.c.b16 %v4704, %v4688
        %v6465 = vpack.c.b16 %v4705, %v4689
        %v6466 = vpack.c.b16 %v4706, %v4690
        %v6467 = vpack.c.b16 %v4707, %v4691
        %v6468 = vpack.c.b16 %v4724, %v4708
        %v6469 = vpack.c.b16 %v4725, %v4709
        %v6470 = vpack.c.b16 %v4726, %v4710
        %v6471 = vpack.c.b16 %v4727, %v4711
        %v6472 = vpack.c.b16 %v4728, %v4712
        %v6473 = vpack.c.b16 %v4729, %v4713
        %v6474 = vpack.c.b16 %v4730, %v4714
        %v6475 = vpack.c.b16 %v4731, %v4715
        %v6476 = vpack.c.b16 %v4732, %v4716
        %v6477 = vpack.c.b16 %v4733, %v4717
        %v6478 = vpack.c.b16 %v4734, %v4718
        %v6479 = vpack.c.b16 %v4735, %v4719
        %v6480 = vpack.c.b16 %v4736, %v4720
        %v6481 = vpack.c.b16 %v4737, %v4721
        %v6482 = vpack.c.b16 %v4738, %v4722
        %v6483 = vpack.c.b16 %v4739, %v4723
        %v6484 = vpack.c.b16 %v4756, %v4740
        %v6485 = vpack.c.b16 %v4757, %v4741
        %v6486 = vpack.c.b16 %v4758, %v4742
        %v6487 = vpack.c.b16 %v4759, %v4743
        %v6488 = vpack.c.b16 %v4760, %v4744
        %v6489 = vpack.c.b16 %v4761, %v4745
        %v6490 = vpack.c.b16 %v4762, %v4746
        %v6491 = vpack.c.b16 %v4763, %v4747
        %v6492 = vpack.c.b16 %v4764, %v4748
        %v6493 = vpack.c.b16 %v4765, %v4749
        %v6494 = vpack.c.b16 %v4766, %v4750
        %v6495 = vpack.c.b16 %v4767, %v4751
        %v6496 = vpack.c.b16 %v4768, %v4752
        %v6497 = vpack.c.b16 %v4769, %v4753
        %v6498 = vpack.c.b16 %v4770, %v4754
        %v6499 = vpack.c.b16 %v4771, %v4755
        %v6500 = vpack.c.b16 %v4788, %v4772
        %v6501 = vpack.c.b16 %v4789, %v4773
        %v6502 = vpack.c.b16 %v4790, %v4774
        %v6503 = vpack.c.b16 %v4791, %v4775
        %v6504 = vpack.c.b16 %v4792, %v4776
        %v6505 = vpack.c.b16 %v4793, %v4777
        %v6506 = vpack.c.b16 %v4794, %v4778
        %v6507 = vpack.c.b16 %v4795, %v4779
        %v6508 = vpack.c.b16 %v4796, %v4780
        %v6509 = vpack.c.b16 %v4797, %v4781
        %v6510 = vpack.c.b16 %v4798, %v4782
        %v6511 = vpack.c.b16 %v4799, %v4783
        %v6512 = vpack.c.b16 %v4800, %v4784
        %v6513 = vpack.c.b16 %v4801, %v4785
        %v6514 = vpack.c.b16 %v4802, %v4786
        %v6515 = vpack.c.b16 %v4803, %v4787
        %v6516 = vpack.c.b16 %v4820, %v4804
        %v6517 = vpack.c.b16 %v4821, %v4805
        %v6518 = vpack.c.b16 %v4822, %v4806
        %v6519 = vpack.c.b16 %v4823, %v4807
        %v6520 = vpack.c.b16 %v4824, %v4808
        %v6521 = vpack.c.b16 %v4825, %v4809
        %v6522 = vpack.c.b16 %v4826, %v4810
        %v6523 = vpack.c.b16 %v4827, %v4811
        %v6524 = vpack.c.b16 %v4828, %v4812
        %v6525 = vpack.c.b16 %v4829, %v4813
        %v6526 = vpack.c.b16 %v4830, %v4814
        %v6527 = vpack.c.b16 %v4831, %v4815
        %v6528 = vpack.c.b16 %v4832, %v4816
        %v6529 = vpack.c.b16 %v4833, %v4817
        %v6530 = vpack.c.b16 %v4834, %v4818
        %v6531 = vpack.c.b16 %v4835, %v4819
        %v6532 = vpack.c.b16 %v4852, %v4836
        %v6533 = vpack.c.b16 %v4853, %v4837
        %v6534 = vpack.c.b16 %v4854, %v4838
        %v6535 = vpack.c.b16 %v4855, %v4839
        %v6536 = vpack.c.b16 %v4856, %v4840
        %v6537 = vpack.c.b16 %v4857, %v4841
        %v6538 = vpack.c.b16 %v4858, %v4842
        %v6539 = vpack.c.b16 %v4859, %v4843
        %v6540 = vpack.c.b16 %v4860, %v4844
        %v6541 = vpack.c.b16 %v4861, %v4845
        %v6542 = vpack.c.b16 %v4862, %v4846
        %v6543 = vpack.c.b16 %v4863, %v4847
        %v6544 = vpack.c.b16 %v4864, %v4848
        %v6545 = vpack.c.b16 %v4865, %v4849
        %v6546 = vpack.c.b16 %v4866, %v4850
        %v6547 = vpack.c.b16 %v4867, %v4851
        %v6548 = vpack.c.b16 %v4884, %v4868
        %v6549 = vpack.c.b16 %v4885, %v4869
        %v6550 = vpack.c.b16 %v4886, %v4870
        %v6551 = vpack.c.b16 %v4887, %v4871
        %v6552 = vpack.c.b16 %v4888, %v4872
        %v6553 = vpack.c.b16 %v4889, %v4873
        %v6554 = vpack.c.b16 %v4890, %v4874
        %v6555 = vpack.c.b16 %v4891, %v4875
        %v6556 = vpack.c.b16 %v4892, %v4876
        %v6557 = vpack.c.b16 %v4893, %v4877
        %v6558 = vpack.c.b16 %v4894, %v4878
        %v6559 = vpack.c.b16 %v4895, %v4879
        %v6560 = vpack.c.b16 %v4896, %v4880
        %v6561 = vpack.c.b16 %v4897, %v4881
        %v6562 = vpack.c.b16 %v4898, %v4882
        %v6563 = vpack.c.b16 %v4899, %v4883
        %v6564 = vpack.c.b16 %v4916, %v4900
        %v6565 = vpack.c.b16 %v4917, %v4901
        %v6566 = vpack.c.b16 %v4918, %v4902
        %v6567 = vpack.c.b16 %v4919, %v4903
        %v6568 = vpack.c.b16 %v4920, %v4904
        %v6569 = vpack.c.b16 %v4921, %v4905
        %v6570 = vpack.c.b16 %v4922, %v4906
        %v6571 = vpack.c.b16 %v4923, %v4907
        %v6572 = vpack.c.b16 %v4924, %v4908
        %v6573 = vpack.c.b16 %v4925, %v4909
        %v6574 = vpack.c.b16 %v4926, %v4910
        %v6575 = vpack.c.b16 %v4927, %v4911
        %v6576 = vpack.c.b16 %v4928, %v4912
        %v6577 = vpack.c.b16 %v4929, %v4913
        %v6578 = vpack.c.b16 %v4930, %v4914
        %v6579 = vpack.c.b16 %v4931, %v4915
        %v6580 = vpack.c.b16 %v4948, %v4932
        %v6581 = vpack.c.b16 %v4949, %v4933
        %v6582 = vpack.c.b16 %v4950, %v4934
        %v6583 = vpack.c.b16 %v4951, %v4935
        %v6584 = vpack.c.b16 %v4952, %v4936
        %v6585 = vpack.c.b16 %v4953, %v4937
        %v6586 = vpack.c.b16 %v4954, %v4938
        %v6587 = vpack.c.b16 %v4955, %v4939
        %v6588 = vpack.c.b16 %v4956, %v4940
        %v6589 = vpack.c.b16 %v4957, %v4941
        %v6590 = vpack.c.b16 %v4958, %v4942
        %v6591 = vpack.c.b16 %v4959, %v4943
        %v6592 = vpack.c.b16 %v4960, %v4944
        %v6593 = vpack.c.b16 %v4961, %v4945
        %v6594 = vpack.c.b16 %v4962, %v4946
        %v6595 = vpack.c.b16 %v4963, %v4947
        %v6596 = vpack.c.b16 %v4980, %v4964
        %v6597 = vpack.c.b16 %v4981, %v4965
        %v6598 = vpack.c.b16 %v4982, %v4966
        %v6599 = vpack.c.b16 %v4983, %v4967
        %v6600 = vpack.c.b16 %v4984, %v4968
        %v6601 = vpack.c.b16 %v4985, %v4969
        %v6602 = vpack.c.b16 %v4986, %v4970
        %v6603 = vpack.c.b16 %v4987, %v4971
        %v6604 = vpack.c.b16 %v4988, %v4972
        %v6605 = vpack.c.b16 %v4989, %v4973
        %v6606 = vpack.c.b16 %v4990, %v4974
        %v6607 = vpack.c.b16 %v4991, %v4975
        %v6608 = vpack.c.b16 %v4992, %v4976
        %v6609 = vpack.c.b16 %v4993, %v4977
        %v6610 = vpack.c.b16 %v4994, %v4978
        %v6611 = vpack.c.b16 %v4995, %v4979
        %v6612 = vpack.c.b16 %v5012, %v4996
        %v6613 = vpack.c.b16 %v5013, %v4997
        %v6614 = vpack.c.b16 %v5014, %v4998
        %v6615 = vpack.c.b16 %v5015, %v4999
        %v6616 = vpack.c.b16 %v5016, %v5000
        %v6617 = vpack.c.b16 %v5017, %v5001
        %v6618 = vpack.c.b16 %v5018, %v5002
        %v6619 = vpack.c.b16 %v5019, %v5003
        %v6620 = vpack.c.b16 %v5020, %v5004
        %v6621 = vpack.c.b16 %v5021, %v5005
        %v6622 = vpack.c.b16 %v5022, %v5006
        %v6623 = vpack.c.b16 %v5023, %v5007
        %v6624 = vpack.c.b16 %v5024, %v5008
        %v6625 = vpack.c.b16 %v5025, %v5009
        %v6626 = vpack.c.b16 %v5026, %v5010
        %v6627 = vpack.c.b16 %v5027, %v5011
        %v6628 = vpack.c.b16 %v5044, %v5028
        %v6629 = vpack.c.b16 %v5045, %v5029
        %v6630 = vpack.c.b16 %v5046, %v5030
        %v6631 = vpack.c.b16 %v5047, %v5031
        %v6632 = vpack.c.b16 %v5048, %v5032
        %v6633 = vpack.c.b16 %v5049, %v5033
        %v6634 = vpack.c.b16 %v5050, %v5034
        %v6635 = vpack.c.b16 %v5051, %v5035
        %v6636 = vpack.c.b16 %v5052, %v5036
        %v6637 = vpack.c.b16 %v5053, %v5037
        %v6638 = vpack.c.b16 %v5054, %v5038
        %v6639 = vpack.c.b16 %v5055, %v5039
        %v6640 = vpack.c.b16 %v5056, %v5040
        %v6641 = vpack.c.b16 %v5057, %v5041
        %v6642 = vpack.c.b16 %v5058, %v5042
        %v6643 = vpack.c.b16 %v5059, %v5043
        %v6644 = vpack.c.b16 %v5076, %v5060
        %v6645 = vpack.c.b16 %v5077, %v5061
        %v6646 = vpack.c.b16 %v5078, %v5062
        %v6647 = vpack.c.b16 %v5079, %v5063
        %v6648 = vpack.c.b16 %v5080, %v5064
        %v6649 = vpack.c.b16 %v5081, %v5065
        %v6650 = vpack.c.b16 %v5082, %v5066
        %v6651 = vpack.c.b16 %v5083, %v5067
        %v6652 = vpack.c.b16 %v5084, %v5068
        %v6653 = vpack.c.b16 %v5085, %v5069
        %v6654 = vpack.c.b16 %v5086, %v5070
        %v6655 = vpack.c.b16 %v5087, %v5071
        %v6656 = vpack.c.b16 %v5088, %v5072
        %v6657 = vpack.c.b16 %v5089, %v5073
        %v6658 = vpack.c.b16 %v5090, %v5074
        %v6659 = vpack.c.b16 %v5091, %v5075
        %v6660 = vpack.c.b16 %v5108, %v5092
        %v6661 = vpack.c.b16 %v5109, %v5093
        %v6662 = vpack.c.b16 %v5110, %v5094
        %v6663 = vpack.c.b16 %v5111, %v5095
        %v6664 = vpack.c.b16 %v5112, %v5096
        %v6665 = vpack.c.b16 %v5113, %v5097
        %v6666 = vpack.c.b16 %v5114, %v5098
        %v6667 = vpack.c.b16 %v5115, %v5099
        %v6668 = vpack.c.b16 %v5116, %v5100
        %v6669 = vpack.c.b16 %v5117, %v5101
        %v6670 = vpack.c.b16 %v5118, %v5102
        %v6671 = vpack.c.b16 %v5119, %v5103
        %v6672 = vpack.c.b16 %v5120, %v5104
        %v6673 = vpack.c.b16 %v5121, %v5105
        %v6674 = vpack.c.b16 %v5122, %v5106
        %v6675 = vpack.c.b16 %v5123, %v5107
        %v6676 = vpack.c.b16 %v5140, %v5124
        %v6677 = vpack.c.b16 %v5141, %v5125
        %v6678 = vpack.c.b16 %v5142, %v5126
        %v6679 = vpack.c.b16 %v5143, %v5127
        %v6680 = vpack.c.b16 %v5144, %v5128
        %v6681 = vpack.c.b16 %v5145, %v5129
        %v6682 = vpack.c.b16 %v5146, %v5130
        %v6683 = vpack.c.b16 %v5147, %v5131
        %v6684 = vpack.c.b16 %v5148, %v5132
        %v6685 = vpack.c.b16 %v5149, %v5133
        %v6686 = vpack.c.b16 %v5150, %v5134
        %v6687 = vpack.c.b16 %v5151, %v5135
        %v6688 = vpack.c.b16 %v5152, %v5136
        %v6689 = vpack.c.b16 %v5153, %v5137
        %v6690 = vpack.c.b16 %v5154, %v5138
        %v6691 = vpack.c.b16 %v5155, %v5139
        %v6692 = vpack.c.b16 %v5172, %v5156
        %v6693 = vpack.c.b16 %v5173, %v5157
        %v6694 = vpack.c.b16 %v5174, %v5158
        %v6695 = vpack.c.b16 %v5175, %v5159
        %v6696 = vpack.c.b16 %v5176, %v5160
        %v6697 = vpack.c.b16 %v5177, %v5161
        %v6698 = vpack.c.b16 %v5178, %v5162
        %v6699 = vpack.c.b16 %v5179, %v5163
        %v6700 = vpack.c.b16 %v5180, %v5164
        %v6701 = vpack.c.b16 %v5181, %v5165
        %v6702 = vpack.c.b16 %v5182, %v5166
        %v6703 = vpack.c.b16 %v5183, %v5167
        %v6704 = vpack.c.b16 %v5184, %v5168
        %v6705 = vpack.c.b16 %v5185, %v5169
        %v6706 = vpack.c.b16 %v5186, %v5170
        %v6707 = vpack.c.b16 %v5187, %v5171
        %v6708 = vpack.c.b16 %v5204, %v5188
        %v6709 = vpack.c.b16 %v5205, %v5189
        %v6710 = vpack.c.b16 %v5206, %v5190
        %v6711 = vpack.c.b16 %v5207, %v5191
        %v6712 = vpack.c.b16 %v5208, %v5192
        %v6713 = vpack.c.b16 %v5209, %v5193
        %v6714 = vpack.c.b16 %v5210, %v5194
        %v6715 = vpack.c.b16 %v5211, %v5195
        %v6716 = vpack.c.b16 %v5212, %v5196
        %v6717 = vpack.c.b16 %v5213, %v5197
        %v6718 = vpack.c.b16 %v5214, %v5198
        %v6719 = vpack.c.b16 %v5215, %v5199
        %v6720 = vpack.c.b16 %v5216, %v5200
        %v6721 = vpack.c.b16 %v5217, %v5201
        %v6722 = vpack.c.b16 %v5218, %v5202
        %v6723 = vpack.c.b16 %v5219, %v5203
        %v6724 = vpack.c.b16 %v5236, %v5220
        %v6725 = vpack.c.b16 %v5237, %v5221
        %v6726 = vpack.c.b16 %v5238, %v5222
        %v6727 = vpack.c.b16 %v5239, %v5223
        %v6728 = vpack.c.b16 %v5240, %v5224
        %v6729 = vpack.c.b16 %v5241, %v5225
        %v6730 = vpack.c.b16 %v5242, %v5226
        %v6731 = vpack.c.b16 %v5243, %v5227
        %v6732 = vpack.c.b16 %v5244, %v5228
        %v6733 = vpack.c.b16 %v5245, %v5229
        %v6734 = vpack.c.b16 %v5246, %v5230
        %v6735 = vpack.c.b16 %v5247, %v5231
        %v6736 = vpack.c.b16 %v5248, %v5232
        %v6737 = vpack.c.b16 %v5249, %v5233
        %v6738 = vpack.c.b16 %v5250, %v5234
        %v6739 = vpack.c.b16 %v5251, %v5235
        %v6740 = vpack.c.b16 %v5268, %v5252
        %v6741 = vpack.c.b16 %v5269, %v5253
        %v6742 = vpack.c.b16 %v5270, %v5254
        %v6743 = vpack.c.b16 %v5271, %v5255
        %v6744 = vpack.c.b16 %v5272, %v5256
        %v6745 = vpack.c.b16 %v5273, %v5257
        %v6746 = vpack.c.b16 %v5274, %v5258
        %v6747 = vpack.c.b16 %v5275, %v5259
        %v6748 = vpack.c.b16 %v5276, %v5260
        %v6749 = vpack.c.b16 %v5277, %v5261
        %v6750 = vpack.c.b16 %v5278, %v5262
        %v6751 = vpack.c.b16 %v5279, %v5263
        %v6752 = vpack.c.b16 %v5280, %v5264
        %v6753 = vpack.c.b16 %v5281, %v5265
        %v6754 = vpack.c.b16 %v5282, %v5266
        %v6755 = vpack.c.b16 %v5283, %v5267
        %v6756 = vpack.c.b16 %v5300, %v5284
        %v6757 = vpack.c.b16 %v5301, %v5285
        %v6758 = vpack.c.b16 %v5302, %v5286
        %v6759 = vpack.c.b16 %v5303, %v5287
        %v6760 = vpack.c.b16 %v5304, %v5288
        %v6761 = vpack.c.b16 %v5305, %v5289
        %v6762 = vpack.c.b16 %v5306, %v5290
        %v6763 = vpack.c.b16 %v5307, %v5291
        %v6764 = vpack.c.b16 %v5308, %v5292
        %v6765 = vpack.c.b16 %v5309, %v5293
        %v6766 = vpack.c.b16 %v5310, %v5294
        %v6767 = vpack.c.b16 %v5311, %v5295
        %v6768 = vpack.c.b16 %v5312, %v5296
        %v6769 = vpack.c.b16 %v5313, %v5297
        %v6770 = vpack.c.b16 %v5314, %v5298
        %v6771 = vpack.c.b16 %v5315, %v5299
        %v6772 = vpack.c.b16 %v5332, %v5316
        %v6773 = vpack.c.b16 %v5333, %v5317
        %v6774 = vpack.c.b16 %v5334, %v5318
        %v6775 = vpack.c.b16 %v5335, %v5319
        %v6776 = vpack.c.b16 %v5336, %v5320
        %v6777 = vpack.c.b16 %v5337, %v5321
        %v6778 = vpack.c.b16 %v5338, %v5322
        %v6779 = vpack.c.b16 %v5339, %v5323
        %v6780 = vpack.c.b16 %v5340, %v5324
        %v6781 = vpack.c.b16 %v5341, %v5325
        %v6782 = vpack.c.b16 %v5342, %v5326
        %v6783 = vpack.c.b16 %v5343, %v5327
        %v6784 = vpack.c.b16 %v5344, %v5328
        %v6785 = vpack.c.b16 %v5345, %v5329
        %v6786 = vpack.c.b16 %v5346, %v5330
        %v6787 = vpack.c.b16 %v5347, %v5331
        %v6788 = vpack.c.b16 %v5364, %v5348
        %v6789 = vpack.c.b16 %v5365, %v5349
        %v6790 = vpack.c.b16 %v5366, %v5350
        %v6791 = vpack.c.b16 %v5367, %v5351
        %v6792 = vpack.c.b16 %v5368, %v5352
        %v6793 = vpack.c.b16 %v5369, %v5353
        %v6794 = vpack.c.b16 %v5370, %v5354
        %v6795 = vpack.c.b16 %v5371, %v5355
        %v6796 = vpack.c.b16 %v5372, %v5356
        %v6797 = vpack.c.b16 %v5373, %v5357
        %v6798 = vpack.c.b16 %v5374, %v5358
        %v6799 = vpack.c.b16 %v5375, %v5359
        %v6800 = vpack.c.b16 %v5376, %v5360
        %v6801 = vpack.c.b16 %v5377, %v5361
        %v6802 = vpack.c.b16 %v5378, %v5362
        %v6803 = vpack.c.b16 %v5379, %v5363
        %v6804 = vpack.c.b16 %v5396, %v5380
        %v6805 = vpack.c.b16 %v5397, %v5381
        %v6806 = vpack.c.b16 %v5398, %v5382
        %v6807 = vpack.c.b16 %v5399, %v5383
        %v6808 = vpack.c.b16 %v5400, %v5384
        %v6809 = vpack.c.b16 %v5401, %v5385
        %v6810 = vpack.c.b16 %v5402, %v5386
        %v6811 = vpack.c.b16 %v5403, %v5387
        %v6812 = vpack.c.b16 %v5404, %v5388
        %v6813 = vpack.c.b16 %v5405, %v5389
        %v6814 = vpack.c.b16 %v5406, %v5390
        %v6815 = vpack.c.b16 %v5407, %v5391
        %v6816 = vpack.c.b16 %v5408, %v5392
        %v6817 = vpack.c.b16 %v5409, %v5393
        %v6818 = vpack.c.b16 %v5410, %v5394
        %v6819 = vpack.c.b16 %v5411, %v5395
        %v6820 = vpack.c.b16 %v5428, %v5412
        %v6821 = vpack.c.b16 %v5429, %v5413
        %v6822 = vpack.c.b16 %v5430, %v5414
        %v6823 = vpack.c.b16 %v5431, %v5415
        %v6824 = vpack.c.b16 %v5432, %v5416
        %v6825 = vpack.c.b16 %v5433, %v5417
        %v6826 = vpack.c.b16 %v5434, %v5418
        %v6827 = vpack.c.b16 %v5435, %v5419
        %v6828 = vpack.c.b16 %v5436, %v5420
        %v6829 = vpack.c.b16 %v5437, %v5421
        %v6830 = vpack.c.b16 %v5438, %v5422
        %v6831 = vpack.c.b16 %v5439, %v5423
        %v6832 = vpack.c.b16 %v5440, %v5424
        %v6833 = vpack.c.b16 %v5441, %v5425
        %v6834 = vpack.c.b16 %v5442, %v5426
        %v6835 = vpack.c.b16 %v5443, %v5427
        %v6836 = vpack.c.b16 %v5460, %v5444
        %v6837 = vpack.c.b16 %v5461, %v5445
        %v6838 = vpack.c.b16 %v5462, %v5446
        %v6839 = vpack.c.b16 %v5463, %v5447
        %v6840 = vpack.c.b16 %v5464, %v5448
        %v6841 = vpack.c.b16 %v5465, %v5449
        %v6842 = vpack.c.b16 %v5466, %v5450
        %v6843 = vpack.c.b16 %v5467, %v5451
        %v6844 = vpack.c.b16 %v5468, %v5452
        %v6845 = vpack.c.b16 %v5469, %v5453
        %v6846 = vpack.c.b16 %v5470, %v5454
        %v6847 = vpack.c.b16 %v5471, %v5455
        %v6848 = vpack.c.b16 %v5472, %v5456
        %v6849 = vpack.c.b16 %v5473, %v5457
        %v6850 = vpack.c.b16 %v5474, %v5458
        %v6851 = vpack.c.b16 %v5475, %v5459
        %v6852 = vpack.c.b16 %v5492, %v5476
        %v6853 = vpack.c.b16 %v5493, %v5477
        %v6854 = vpack.c.b16 %v5494, %v5478
        %v6855 = vpack.c.b16 %v5495, %v5479
        %v6856 = vpack.c.b16 %v5496, %v5480
        %v6857 = vpack.c.b16 %v5497, %v5481
        %v6858 = vpack.c.b16 %v5498, %v5482
        %v6859 = vpack.c.b16 %v5499, %v5483
        %v6860 = vpack.c.b16 %v5500, %v5484
        %v6861 = vpack.c.b16 %v5501, %v5485
        %v6862 = vpack.c.b16 %v5502, %v5486
        %v6863 = vpack.c.b16 %v5503, %v5487
        %v6864 = vpack.c.b16 %v5504, %v5488
        %v6865 = vpack.c.b16 %v5505, %v5489
        %v6866 = vpack.c.b16 %v5506, %v5490
        %v6867 = vpack.c.b16 %v5507, %v5491
        %v6868 = vpack.c.b16 %v5524, %v5508
        %v6869 = vpack.c.b16 %v5525, %v5509
        %v6870 = vpack.c.b16 %v5526, %v5510
        %v6871 = vpack.c.b16 %v5527, %v5511
        %v6872 = vpack.c.b16 %v5528, %v5512
        %v6873 = vpack.c.b16 %v5529, %v5513
        %v6874 = vpack.c.b16 %v5530, %v5514
        %v6875 = vpack.c.b16 %v5531, %v5515
        %v6876 = vpack.c.b16 %v5532, %v5516
        %v6877 = vpack.c.b16 %v5533, %v5517
        %v6878 = vpack.c.b16 %v5534, %v5518
        %v6879 = vpack.c.b16 %v5535, %v5519
        %v6880 = vpack.c.b16 %v5536, %v5520
        %v6881 = vpack.c.b16 %v5537, %v5521
        %v6882 = vpack.c.b16 %v5538, %v5522
        %v6883 = vpack.c.b16 %v5539, %v5523
        %v6884 = vpack.c.b16 %v5556, %v5540
        %v6885 = vpack.c.b16 %v5557, %v5541
        %v6886 = vpack.c.b16 %v5558, %v5542
        %v6887 = vpack.c.b16 %v5559, %v5543
        %v6888 = vpack.c.b16 %v5560, %v5544
        %v6889 = vpack.c.b16 %v5561, %v5545
        %v6890 = vpack.c.b16 %v5562, %v5546
        %v6891 = vpack.c.b16 %v5563, %v5547
        %v6892 = vpack.c.b16 %v5564, %v5548
        %v6893 = vpack.c.b16 %v5565, %v5549
        %v6894 = vpack.c.b16 %v5566, %v5550
        %v6895 = vpack.c.b16 %v5567, %v5551
        %v6896 = vpack.c.b16 %v5568, %v5552
        %v6897 = vpack.c.b16 %v5569, %v5553
        %v6898 = vpack.c.b16 %v5570, %v5554
        %v6899 = vpack.c.b16 %v5571, %v5555
        %v6900 = vpack.c.b16 %v5588, %v5572
        %v6901 = vpack.c.b16 %v5589, %v5573
        %v6902 = vpack.c.b16 %v5590, %v5574
        %v6903 = vpack.c.b16 %v5591, %v5575
        %v6904 = vpack.c.b16 %v5592, %v5576
        %v6905 = vpack.c.b16 %v5593, %v5577
        %v6906 = vpack.c.b16 %v5594, %v5578
        %v6907 = vpack.c.b16 %v5595, %v5579
        %v6908 = vpack.c.b16 %v5596, %v5580
        %v6909 = vpack.c.b16 %v5597, %v5581
        %v6910 = vpack.c.b16 %v5598, %v5582
        %v6911 = vpack.c.b16 %v5599, %v5583
        %v6912 = vpack.c.b16 %v5600, %v5584
        %v6913 = vpack.c.b16 %v5601, %v5585
        %v6914 = vpack.c.b16 %v5602, %v5586
        %v6915 = vpack.c.b16 %v5603, %v5587
        %v6916 = vpack.c.b16 %v5620, %v5604
        %v6917 = vpack.c.b16 %v5621, %v5605
        %v6918 = vpack.c.b16 %v5622, %v5606
        %v6919 = vpack.c.b16 %v5623, %v5607
        %v6920 = vpack.c.b16 %v5624, %v5608
        %v6921 = vpack.c.b16 %v5625, %v5609
        %v6922 = vpack.c.b16 %v5626, %v5610
        %v6923 = vpack.c.b16 %v5627, %v5611
        %v6924 = vpack.c.b16 %v5628, %v5612
        %v6925 = vpack.c.b16 %v5629, %v5613
        %v6926 = vpack.c.b16 %v5630, %v5614
        %v6927 = vpack.c.b16 %v5631, %v5615
        %v6928 = vpack.c.b16 %v5632, %v5616
        %v6929 = vpack.c.b16 %v5633, %v5617
        %v6930 = vpack.c.b16 %v5634, %v5618
        %v6931 = vpack.c.b16 %v5635, %v5619
        %v6932 = vpack.c.b16 %v5652, %v5636
        %v6933 = vpack.c.b16 %v5653, %v5637
        %v6934 = vpack.c.b16 %v5654, %v5638
        %v6935 = vpack.c.b16 %v5655, %v5639
        %v6936 = vpack.c.b16 %v5656, %v5640
        %v6937 = vpack.c.b16 %v5657, %v5641
        %v6938 = vpack.c.b16 %v5658, %v5642
        %v6939 = vpack.c.b16 %v5659, %v5643
        %v6940 = vpack.c.b16 %v5660, %v5644
        %v6941 = vpack.c.b16 %v5661, %v5645
        %v6942 = vpack.c.b16 %v5662, %v5646
        %v6943 = vpack.c.b16 %v5663, %v5647
        %v6944 = vpack.c.b16 %v5664, %v5648
        %v6945 = vpack.c.b16 %v5665, %v5649
        %v6946 = vpack.c.b16 %v5666, %v5650
        %v6947 = vpack.c.b16 %v5667, %v5651
        %v6948 = vpack.c.b16 %v5684, %v5668
        %v6949 = vpack.c.b16 %v5685, %v5669
        %v6950 = vpack.c.b16 %v5686, %v5670
        %v6951 = vpack.c.b16 %v5687, %v5671
        %v6952 = vpack.c.b16 %v5688, %v5672
        %v6953 = vpack.c.b16 %v5689, %v5673
        %v6954 = vpack.c.b16 %v5690, %v5674
        %v6955 = vpack.c.b16 %v5691, %v5675
        %v6956 = vpack.c.b16 %v5692, %v5676
        %v6957 = vpack.c.b16 %v5693, %v5677
        %v6958 = vpack.c.b16 %v5694, %v5678
        %v6959 = vpack.c.b16 %v5695, %v5679
        %v6960 = vpack.c.b16 %v5696, %v5680
        %v6961 = vpack.c.b16 %v5697, %v5681
        %v6962 = vpack.c.b16 %v5698, %v5682
        %v6963 = vpack.c.b16 %v5699, %v5683
        %v6964 = vpack.c.b16 %v5716, %v5700
        %v6965 = vpack.c.b16 %v5717, %v5701
        %v6966 = vpack.c.b16 %v5718, %v5702
        %v6967 = vpack.c.b16 %v5719, %v5703
        %v6968 = vpack.c.b16 %v5720, %v5704
        %v6969 = vpack.c.b16 %v5721, %v5705
        %v6970 = vpack.c.b16 %v5722, %v5706
        %v6971 = vpack.c.b16 %v5723, %v5707
        %v6972 = vpack.c.b16 %v5724, %v5708
        %v6973 = vpack.c.b16 %v5725, %v5709
        %v6974 = vpack.c.b16 %v5726, %v5710
        %v6975 = vpack.c.b16 %v5727, %v5711
        %v6976 = vpack.c.b16 %v5728, %v5712
        %v6977 = vpack.c.b16 %v5729, %v5713
        %v6978 = vpack.c.b16 %v5730, %v5714
        %v6979 = vpack.c.b16 %v5731, %v5715
        %v6980 = vpack.c.b16 %v5748, %v5732
        %v6981 = vpack.c.b16 %v5749, %v5733
        %v6982 = vpack.c.b16 %v5750, %v5734
        %v6983 = vpack.c.b16 %v5751, %v5735
        %v6984 = vpack.c.b16 %v5752, %v5736
        %v6985 = vpack.c.b16 %v5753, %v5737
        %v6986 = vpack.c.b16 %v5754, %v5738
        %v6987 = vpack.c.b16 %v5755, %v5739
        %v6988 = vpack.c.b16 %v5756, %v5740
        %v6989 = vpack.c.b16 %v5757, %v5741
        %v6990 = vpack.c.b16 %v5758, %v5742
        %v6991 = vpack.c.b16 %v5759, %v5743
        %v6992 = vpack.c.b16 %v5760, %v5744
        %v6993 = vpack.c.b16 %v5761, %v5745
        %v6994 = vpack.c.b16 %v5762, %v5746
        %v6995 = vpack.c.b16 %v5763, %v5747
        %v6996 = vpack.c.b16 %v5780, %v5764
        %v6997 = vpack.c.b16 %v5781, %v5765
        %v6998 = vpack.c.b16 %v5782, %v5766
        %v6999 = vpack.c.b16 %v5783, %v5767
        %v7000 = vpack.c.b16 %v5784, %v5768
        %v7001 = vpack.c.b16 %v5785, %v5769
        %v7002 = vpack.c.b16 %v5786, %v5770
        %v7003 = vpack.c.b16 %v5787, %v5771
        %v7004 = vpack.c.b16 %v5788, %v5772
        %v7005 = vpack.c.b16 %v5789, %v5773
        %v7006 = vpack.c.b16 %v5790, %v5774
        %v7007 = vpack.c.b16 %v5791, %v5775
        %v7008 = vpack.c.b16 %v5792, %v5776
        %v7009 = vpack.c.b16 %v5793, %v5777
        %v7010 = vpack.c.b16 %v5794, %v5778
        %v7011 = vpack.c.b16 %v5795, %v5779
        %v7012 = vpack.c.b16 %v5812, %v5796
        %v7013 = vpack.c.b16 %v5813, %v5797
        %v7014 = vpack.c.b16 %v5814, %v5798
        %v7015 = vpack.c.b16 %v5815, %v5799
        %v7016 = vpack.c.b16 %v5816, %v5800
        %v7017 = vpack.c.b16 %v5817, %v5801
        %v7018 = vpack.c.b16 %v5818, %v5802
        %v7019 = vpack.c.b16 %v5819, %v5803
        %v7020 = vpack.c.b16 %v5820, %v5804
        %v7021 = vpack.c.b16 %v5821, %v5805
        %v7022 = vpack.c.b16 %v5822, %v5806
        %v7023 = vpack.c.b16 %v5823, %v5807
        %v7024 = vpack.c.b16 %v5824, %v5808
        %v7025 = vpack.c.b16 %v5825, %v5809
        %v7026 = vpack.c.b16 %v5826, %v5810
        %v7027 = vpack.c.b16 %v5827, %v5811
        %v7028 = vpack.c.b16 %v5844, %v5828
        %v7029 = vpack.c.b16 %v5845, %v5829
        %v7030 = vpack.c.b16 %v5846, %v5830
        %v7031 = vpack.c.b16 %v5847, %v5831
        %v7032 = vpack.c.b16 %v5848, %v5832
        %v7033 = vpack.c.b16 %v5849, %v5833
        %v7034 = vpack.c.b16 %v5850, %v5834
        %v7035 = vpack.c.b16 %v5851, %v5835
        %v7036 = vpack.c.b16 %v5852, %v5836
        %v7037 = vpack.c.b16 %v5853, %v5837
        %v7038 = vpack.c.b16 %v5854, %v5838
        %v7039 = vpack.c.b16 %v5855, %v5839
        %v7040 = vpack.c.b16 %v5856, %v5840
        %v7041 = vpack.c.b16 %v5857, %v5841
        %v7042 = vpack.c.b16 %v5858, %v5842
        %v7043 = vpack.c.b16 %v5859, %v5843
        %v7044 = vpack.c.b16 %v5876, %v5860
        %v7045 = vpack.c.b16 %v5877, %v5861
        %v7046 = vpack.c.b16 %v5878, %v5862
        %v7047 = vpack.c.b16 %v5879, %v5863
        %v7048 = vpack.c.b16 %v5880, %v5864
        %v7049 = vpack.c.b16 %v5881, %v5865
        %v7050 = vpack.c.b16 %v5882, %v5866
        %v7051 = vpack.c.b16 %v5883, %v5867
        %v7052 = vpack.c.b16 %v5884, %v5868
        %v7053 = vpack.c.b16 %v5885, %v5869
        %v7054 = vpack.c.b16 %v5886, %v5870
        %v7055 = vpack.c.b16 %v5887, %v5871
        %v7056 = vpack.c.b16 %v5888, %v5872
        %v7057 = vpack.c.b16 %v5889, %v5873
        %v7058 = vpack.c.b16 %v5890, %v5874
        %v7059 = vpack.c.b16 %v5891, %v5875
        %v7060 = vpack.c.b16 %v5908, %v5892
        %v7061 = vpack.c.b16 %v5909, %v5893
        %v7062 = vpack.c.b16 %v5910, %v5894
        %v7063 = vpack.c.b16 %v5911, %v5895
        %v7064 = vpack.c.b16 %v5912, %v5896
        %v7065 = vpack.c.b16 %v5913, %v5897
        %v7066 = vpack.c.b16 %v5914, %v5898
        %v7067 = vpack.c.b16 %v5915, %v5899
        %v7068 = vpack.c.b16 %v5916, %v5900
        %v7069 = vpack.c.b16 %v5917, %v5901
        %v7070 = vpack.c.b16 %v5918, %v5902
        %v7071 = vpack.c.b16 %v5919, %v5903
        %v7072 = vpack.c.b16 %v5920, %v5904
        %v7073 = vpack.c.b16 %v5921, %v5905
        %v7074 = vpack.c.b16 %v5922, %v5906
        %v7075 = vpack.c.b16 %v5923, %v5907
        %v7076 = vpack.c.b16 %v5940, %v5924
        %v7077 = vpack.c.b16 %v5941, %v5925
        %v7078 = vpack.c.b16 %v5942, %v5926
        %v7079 = vpack.c.b16 %v5943, %v5927
        %v7080 = vpack.c.b16 %v5944, %v5928
        %v7081 = vpack.c.b16 %v5945, %v5929
        %v7082 = vpack.c.b16 %v5946, %v5930
        %v7083 = vpack.c.b16 %v5947, %v5931
        %v7084 = vpack.c.b16 %v5948, %v5932
        %v7085 = vpack.c.b16 %v5949, %v5933
        %v7086 = vpack.c.b16 %v5950, %v5934
        %v7087 = vpack.c.b16 %v5951, %v5935
        %v7088 = vpack.c.b16 %v5952, %v5936
        %v7089 = vpack.c.b16 %v5953, %v5937
        %v7090 = vpack.c.b16 %v5954, %v5938
        %v7091 = vpack.c.b16 %v5955, %v5939
        %v7092 = vpack.c.b16 %v5972, %v5956
        %v7093 = vpack.c.b16 %v5973, %v5957
        %v7094 = vpack.c.b16 %v5974, %v5958
        %v7095 = vpack.c.b16 %v5975, %v5959
        %v7096 = vpack.c.b16 %v5976, %v5960
        %v7097 = vpack.c.b16 %v5977, %v5961
        %v7098 = vpack.c.b16 %v5978, %v5962
        %v7099 = vpack.c.b16 %v5979, %v5963
        %v7100 = vpack.c.b16 %v5980, %v5964
        %v7101 = vpack.c.b16 %v5981, %v5965
        %v7102 = vpack.c.b16 %v5982, %v5966
        %v7103 = vpack.c.b16 %v5983, %v5967
        %v7104 = vpack.c.b16 %v5984, %v5968
        %v7105 = vpack.c.b16 %v5985, %v5969
        %v7106 = vpack.c.b16 %v5986, %v5970
        %v7107 = vpack.c.b16 %v5987, %v5971
        %v7108 = vpack.c.b16 %v6004, %v5988
        %v7109 = vpack.c.b16 %v6005, %v5989
        %v7110 = vpack.c.b16 %v6006, %v5990
        %v7111 = vpack.c.b16 %v6007, %v5991
        %v7112 = vpack.c.b16 %v6008, %v5992
        %v7113 = vpack.c.b16 %v6009, %v5993
        %v7114 = vpack.c.b16 %v6010, %v5994
        %v7115 = vpack.c.b16 %v6011, %v5995
        %v7116 = vpack.c.b16 %v6012, %v5996
        %v7117 = vpack.c.b16 %v6013, %v5997
        %v7118 = vpack.c.b16 %v6014, %v5998
        %v7119 = vpack.c.b16 %v6015, %v5999
        %v7120 = vpack.c.b16 %v6016, %v6000
        %v7121 = vpack.c.b16 %v6017, %v6001
        %v7122 = vpack.c.b16 %v6018, %v6002
        %v7123 = vpack.c.b16 %v6019, %v6003
        %v7124 = vpack.c.b16 %v6036, %v6020
        %v7125 = vpack.c.b16 %v6037, %v6021
        %v7126 = vpack.c.b16 %v6038, %v6022
        %v7127 = vpack.c.b16 %v6039, %v6023
        %v7128 = vpack.c.b16 %v6040, %v6024
        %v7129 = vpack.c.b16 %v6041, %v6025
        %v7130 = vpack.c.b16 %v6042, %v6026
        %v7131 = vpack.c.b16 %v6043, %v6027
        %v7132 = vpack.c.b16 %v6044, %v6028
        %v7133 = vpack.c.b16 %v6045, %v6029
        %v7134 = vpack.c.b16 %v6046, %v6030
        %v7135 = vpack.c.b16 %v6047, %v6031
        %v7136 = vpack.c.b16 %v6048, %v6032
        %v7137 = vpack.c.b16 %v6049, %v6033
        %v7138 = vpack.c.b16 %v6050, %v6034
        %v7139 = vpack.c.b16 %v6051, %v6035
        %v7140 = vpack.c.b16 %v6068, %v6052
        %v7141 = vpack.c.b16 %v6069, %v6053
        %v7142 = vpack.c.b16 %v6070, %v6054
        %v7143 = vpack.c.b16 %v6071, %v6055
        %v7144 = vpack.c.b16 %v6072, %v6056
        %v7145 = vpack.c.b16 %v6073, %v6057
        %v7146 = vpack.c.b16 %v6074, %v6058
        %v7147 = vpack.c.b16 %v6075, %v6059
        %v7148 = vpack.c.b16 %v6076, %v6060
        %v7149 = vpack.c.b16 %v6077, %v6061
        %v7150 = vpack.c.b16 %v6078, %v6062
        %v7151 = vpack.c.b16 %v6079, %v6063
        %v7152 = vpack.c.b16 %v6080, %v6064
        %v7153 = vpack.c.b16 %v6081, %v6065
        %v7154 = vpack.c.b16 %v6082, %v6066
        %v7155 = vpack.c.b16 %v6083, %v6067
        %v7156 = vpack.c.b16 %v6100, %v6084
        %v7157 = vpack.c.b16 %v6101, %v6085
        %v7158 = vpack.c.b16 %v6102, %v6086
        %v7159 = vpack.c.b16 %v6103, %v6087
        %v7160 = vpack.c.b16 %v6104, %v6088
        %v7161 = vpack.c.b16 %v6105, %v6089
        %v7162 = vpack.c.b16 %v6106, %v6090
        %v7163 = vpack.c.b16 %v6107, %v6091
        %v7164 = vpack.c.b16 %v6108, %v6092
        %v7165 = vpack.c.b16 %v6109, %v6093
        %v7166 = vpack.c.b16 %v6110, %v6094
        %v7167 = vpack.c.b16 %v6111, %v6095
        %v7168 = vpack.c.b16 %v6112, %v6096
        %v7169 = vpack.c.b16 %v6113, %v6097
        %v7170 = vpack.c.b16 %v6114, %v6098
        %v7171 = vpack.c.b16 %v6115, %v6099
        %v7172 = vpack.c.b16 %v6132, %v6116
        %v7173 = vpack.c.b16 %v6133, %v6117
        %v7174 = vpack.c.b16 %v6134, %v6118
        %v7175 = vpack.c.b16 %v6135, %v6119
        %v7176 = vpack.c.b16 %v6136, %v6120
        %v7177 = vpack.c.b16 %v6137, %v6121
        %v7178 = vpack.c.b16 %v6138, %v6122
        %v7179 = vpack.c.b16 %v6139, %v6123
        %v7180 = vpack.c.b16 %v6140, %v6124
        %v7181 = vpack.c.b16 %v6141, %v6125
        %v7182 = vpack.c.b16 %v6142, %v6126
        %v7183 = vpack.c.b16 %v6143, %v6127
        %v7184 = vpack.c.b16 %v6144, %v6128
        %v7185 = vpack.c.b16 %v6145, %v6129
        %v7186 = vpack.c.b16 %v6146, %v6130
        %v7187 = vpack.c.b16 %v6147, %v6131
        %v7188 = vpack.c.b16 %v6164, %v6148
        %v7189 = vpack.c.b16 %v6165, %v6149
        %v7190 = vpack.c.b16 %v6166, %v6150
        %v7191 = vpack.c.b16 %v6167, %v6151
        %v7192 = vpack.c.b16 %v6168, %v6152
        %v7193 = vpack.c.b16 %v6169, %v6153
        %v7194 = vpack.c.b16 %v6170, %v6154
        %v7195 = vpack.c.b16 %v6171, %v6155
        %v7196 = vpack.c.b16 %v6172, %v6156
        %v7197 = vpack.c.b16 %v6173, %v6157
        %v7198 = vpack.c.b16 %v6174, %v6158
        %v7199 = vpack.c.b16 %v6175, %v6159
        %v7200 = vpack.c.b16 %v6176, %v6160
        %v7201 = vpack.c.b16 %v6177, %v6161
        %v7202 = vpack.c.b16 %v6178, %v6162
        %v7203 = vpack.c.b16 %v6179, %v6163
        %8228 = vmatprep.subr.bf16.mxu0 %v6181
        %8229 = vmatpush1.bf16.msra.mxu0 %v6180
        %8230 = vmatprep.subr.bf16.mxu0 %v6197
        %8231 = vmatpush1.bf16.msra.mxu0 %v6196
        %8232 = vmatprep.subr.bf16.mxu0 %v6213
        %8233 = vmatpush1.bf16.msra.mxu0 %v6212
        %8234 = vmatprep.subr.bf16.mxu0 %v6229
        %8235 = vmatpush1.bf16.msra.mxu0 %v6228
        %8236 = vmatprep.subr.bf16.mxu0 %v6245
        %8237 = vmatpush1.bf16.msra.mxu0 %v6244
        %8238 = vmatprep.subr.bf16.mxu0 %v6261
        %8239 = vmatpush1.bf16.msra.mxu0 %v6260
        %8240 = vmatprep.subr.bf16.mxu0 %v6277
        %8241 = vmatpush1.bf16.msra.mxu0 %v6276
        %8242 = vmatprep.subr.bf16.mxu0 %v6293
        %8243 = vmatpush1.bf16.msra.mxu0 %v6292
        %8244 = vmatprep.subr.bf16.mxu0 %v6309
        %8245 = vmatpush1.bf16.msra.mxu0 %v6308
        %8246 = vmatprep.subr.bf16.mxu0 %v6325
        %8247 = vmatpush1.bf16.msra.mxu0 %v6324
        %8248 = vmatprep.subr.bf16.mxu0 %v6341
        %8249 = vmatpush1.bf16.msra.mxu0 %v6340
        %8250 = vmatprep.subr.bf16.mxu0 %v6357
        %8251 = vmatpush1.bf16.msra.mxu0 %v6356
        %8252 = vmatprep.subr.bf16.mxu0 %v6373
        %8253 = vmatpush1.bf16.msra.mxu0 %v6372
        %8254 = vmatprep.subr.bf16.mxu0 %v6389
        %8255 = vmatpush1.bf16.msra.mxu0 %v6388
        %8256 = vmatprep.subr.bf16.mxu0 %v6405
        %8257 = vmatpush1.bf16.msra.mxu0 %v6404
        %8258 = vmatprep.subr.bf16.mxu0 %v6421
        %8259 = vmatpush1.bf16.msra.mxu0 %v6420
        %8260 = vmatprep.mubr.bf16.mxu0 %v2077
        %8261 = vmatmul.mubr.bf16.gmra.mrb[0].mxu0 %v2076
        %v8262 = vpop.f32.mrb[0].mxu0
        %v8263 = vadd.f32 0.0, %v8262
        %v8264 = vpop.f32.mrb[0].mxu0
        %v8265 = vadd.f32 0.0, %v8264
        %v8266 = vpop.f32.mrb[0].mxu0
        %v8267 = vadd.f32 0.0, %v8266
        %v8268 = vpop.f32.mrb[0].mxu0
        %v8269 = vadd.f32 0.0, %v8268
        %8270 = vdwg.mxu0
        %8271 = vmatprep.subr.bf16.mxu0 %v6437
        %8272 = vmatpush1.bf16.msra.mxu0 %v6436
        %8273 = vmatprep.subr.bf16.mxu0 %v6453
        %8274 = vmatpush1.bf16.msra.mxu0 %v6452
        %8275 = vmatprep.subr.bf16.mxu0 %v6469
        %8276 = vmatpush1.bf16.msra.mxu0 %v6468
        %8277 = vmatprep.subr.bf16.mxu0 %v6485
        %8278 = vmatpush1.bf16.msra.mxu0 %v6484
        %8279 = vmatprep.subr.bf16.mxu0 %v6501
        %8280 = vmatpush1.bf16.msra.mxu0 %v6500
        %8281 = vmatprep.subr.bf16.mxu0 %v6517
        %8282 = vmatpush1.bf16.msra.mxu0 %v6516
        %8283 = vmatprep.subr.bf16.mxu0 %v6533
        %8284 = vmatpush1.bf16.msra.mxu0 %v6532
        %8285 = vmatprep.subr.bf16.mxu0 %v6549
        %8286 = vmatpush1.bf16.msra.mxu0 %v6548
        %8287 = vmatprep.subr.bf16.mxu0 %v6565
        %8288 = vmatpush1.bf16.msra.mxu0 %v6564
        %8289 = vmatprep.subr.bf16.mxu0 %v6581
        %8290 = vmatpush1.bf16.msra.mxu0 %v6580
        %8291 = vmatprep.subr.bf16.mxu0 %v6597
        %8292 = vmatpush1.bf16.msra.mxu0 %v6596
        %8293 = vmatprep.subr.bf16.mxu0 %v6613
        %8294 = vmatpush1.bf16.msra.mxu0 %v6612
        %8295 = vmatprep.subr.bf16.mxu0 %v6629
        %8296 = vmatpush1.bf16.msra.mxu0 %v6628
        %8297 = vmatprep.subr.bf16.mxu0 %v6645
        %8298 = vmatpush1.bf16.msra.mxu0 %v6644
        %8299 = vmatprep.subr.bf16.mxu0 %v6661
        %8300 = vmatpush1.bf16.msra.mxu0 %v6660
        %8301 = vmatprep.subr.bf16.mxu0 %v6677
        %8302 = vmatpush1.bf16.msra.mxu0 %v6676
        %8303 = vmatprep.mubr.bf16.mxu0 %v2079
        %8304 = vmatmul.mubr.bf16.gmra.mrb[0].mxu0 %v2078
        %v8305 = vpop.f32.mrb[0].mxu0
        %v8306 = vadd.f32 %v8263, %v8305
        %v8307 = vpop.f32.mrb[0].mxu0
        %v8308 = vadd.f32 %v8265, %v8307
        %v8309 = vpop.f32.mrb[0].mxu0
        %v8310 = vadd.f32 %v8267, %v8309
        %v8311 = vpop.f32.mrb[0].mxu0
        %v8312 = vadd.f32 %v8269, %v8311
        %8313 = vdwg.mxu0
        %8314 = vmatprep.subr.bf16.mxu0 %v6693
        %8315 = vmatpush1.bf16.msra.mxu0 %v6692
        %8316 = vmatprep.subr.bf16.mxu0 %v6709
        %8317 = vmatpush1.bf16.msra.mxu0 %v6708
        %8318 = vmatprep.subr.bf16.mxu0 %v6725
        %8319 = vmatpush1.bf16.msra.mxu0 %v6724
        %8320 = vmatprep.subr.bf16.mxu0 %v6741
        %8321 = vmatpush1.bf16.msra.mxu0 %v6740
        %8322 = vmatprep.subr.bf16.mxu0 %v6757
        %8323 = vmatpush1.bf16.msra.mxu0 %v6756
        %8324 = vmatprep.subr.bf16.mxu0 %v6773
        %8325 = vmatpush1.bf16.msra.mxu0 %v6772
        %8326 = vmatprep.subr.bf16.mxu0 %v6789
        %8327 = vmatpush1.bf16.msra.mxu0 %v6788
        %8328 = vmatprep.subr.bf16.mxu0 %v6805
        %8329 = vmatpush1.bf16.msra.mxu0 %v6804
        %8330 = vmatprep.subr.bf16.mxu0 %v6821
        %8331 = vmatpush1.bf16.msra.mxu0 %v6820
        %8332 = vmatprep.subr.bf16.mxu0 %v6837
        %8333 = vmatpush1.bf16.msra.mxu0 %v6836
        %8334 = vmatprep.subr.bf16.mxu0 %v6853
        %8335 = vmatpush1.bf16.msra.mxu0 %v6852
        %8336 = vmatprep.subr.bf16.mxu0 %v6869
        %8337 = vmatpush1.bf16.msra.mxu0 %v6868
        %8338 = vmatprep.subr.bf16.mxu0 %v6885
        %8339 = vmatpush1.bf16.msra.mxu0 %v6884
        %8340 = vmatprep.subr.bf16.mxu0 %v6901
        %8341 = vmatpush1.bf16.msra.mxu0 %v6900
        %8342 = vmatprep.subr.bf16.mxu0 %v6917
        %8343 = vmatpush1.bf16.msra.mxu0 %v6916
        %8344 = vmatprep.subr.bf16.mxu0 %v6933
        %8345 = vmatpush1.bf16.msra.mxu0 %v6932
        %8346 = vmatprep.mubr.bf16.mxu0 %v2081
        %8347 = vmatmul.mubr.bf16.gmra.mrb[0].mxu0 %v2080
        %v8348 = vpop.f32.mrb[0].mxu0
        %v8349 = vadd.f32 %v8306, %v8348
        %v8350 = vpop.f32.mrb[0].mxu0
        %v8351 = vadd.f32 %v8308, %v8350
        %v8352 = vpop.f32.mrb[0].mxu0
        %v8353 = vadd.f32 %v8310, %v8352
        %v8354 = vpop.f32.mrb[0].mxu0
        %v8355 = vadd.f32 %v8312, %v8354
        %8356 = vdwg.mxu0
        %8357 = vmatprep.subr.bf16.mxu0 %v6949
        %8358 = vmatpush1.bf16.msra.mxu0 %v6948
        %8359 = vmatprep.subr.bf16.mxu0 %v6965
        %8360 = vmatpush1.bf16.msra.mxu0 %v6964
        %8361 = vmatprep.subr.bf16.mxu0 %v6981
        %8362 = vmatpush1.bf16.msra.mxu0 %v6980
        %8363 = vmatprep.subr.bf16.mxu0 %v6997
        %8364 = vmatpush1.bf16.msra.mxu0 %v6996
        %8365 = vmatprep.subr.bf16.mxu0 %v7013
        %8366 = vmatpush1.bf16.msra.mxu0 %v7012
        %8367 = vmatprep.subr.bf16.mxu0 %v7029
        %8368 = vmatpush1.bf16.msra.mxu0 %v7028
        %8369 = vmatprep.subr.bf16.mxu0 %v7045
        %8370 = vmatpush1.bf16.msra.mxu0 %v7044
        %8371 = vmatprep.subr.bf16.mxu0 %v7061
        %8372 = vmatpush1.bf16.msra.mxu0 %v7060
        %8373 = vmatprep.subr.bf16.mxu0 %v7077
        %8374 = vmatpush1.bf16.msra.mxu0 %v7076
        %8375 = vmatprep.subr.bf16.mxu0 %v7093
        %8376 = vmatpush1.bf16.msra.mxu0 %v7092
        %8377 = vmatprep.subr.bf16.mxu0 %v7109
        %8378 = vmatpush1.bf16.msra.mxu0 %v7108
        %8379 = vmatprep.subr.bf16.mxu0 %v7125
        %8380 = vmatpush1.bf16.msra.mxu0 %v7124
        %8381 = vmatprep.subr.bf16.mxu0 %v7141
        %8382 = vmatpush1.bf16.msra.mxu0 %v7140
        %8383 = vmatprep.subr.bf16.mxu0 %v7157
        %8384 = vmatpush1.bf16.msra.mxu0 %v7156
        %8385 = vmatprep.subr.bf16.mxu0 %v7173
        %8386 = vmatpush1.bf16.msra.mxu0 %v7172
        %8387 = vmatprep.subr.bf16.mxu0 %v7189
        %8388 = vmatpush1.bf16.msra.mxu0 %v7188
        %8389 = vmatprep.mubr.bf16.mxu0 %v2083
        %8390 = vmatmul.mubr.bf16.gmra.mrb[0].mxu0 %v2082
        %v8391 = vpop.f32.mrb[0].mxu0
        %v8392 = vadd.f32 %v8349, %v8391
        %v8393 = vpop.f32.mrb[0].mxu0
        %v8394 = vadd.f32 %v8351, %v8393
        %v8395 = vpop.f32.mrb[0].mxu0
        %v8396 = vadd.f32 %v8353, %v8395
        %v8397 = vpop.f32.mrb[0].mxu0
        %v8398 = vadd.f32 %v8355, %v8397
        %8399 = vdwg.mxu0
        %8400 = vmatprep.subr.bf16.mxu0 %v6183
        %8401 = vmatpush1.bf16.msra.mxu0 %v6182
        %8402 = vmatprep.subr.bf16.mxu0 %v6199
        %8403 = vmatpush1.bf16.msra.mxu0 %v6198
        %8404 = vmatprep.subr.bf16.mxu0 %v6215
        %8405 = vmatpush1.bf16.msra.mxu0 %v6214
        %8406 = vmatprep.subr.bf16.mxu0 %v6231
        %8407 = vmatpush1.bf16.msra.mxu0 %v6230
        %8408 = vmatprep.subr.bf16.mxu0 %v6247
        %8409 = vmatpush1.bf16.msra.mxu0 %v6246
        %8410 = vmatprep.subr.bf16.mxu0 %v6263
        %8411 = vmatpush1.bf16.msra.mxu0 %v6262
        %8412 = vmatprep.subr.bf16.mxu0 %v6279
        %8413 = vmatpush1.bf16.msra.mxu0 %v6278
        %8414 = vmatprep.subr.bf16.mxu0 %v6295
        %8415 = vmatpush1.bf16.msra.mxu0 %v6294
        %8416 = vmatprep.subr.bf16.mxu0 %v6311
        %8417 = vmatpush1.bf16.msra.mxu0 %v6310
        %8418 = vmatprep.subr.bf16.mxu0 %v6327
        %8419 = vmatpush1.bf16.msra.mxu0 %v6326
        %8420 = vmatprep.subr.bf16.mxu0 %v6343
        %8421 = vmatpush1.bf16.msra.mxu0 %v6342
        %8422 = vmatprep.subr.bf16.mxu0 %v6359
        %8423 = vmatpush1.bf16.msra.mxu0 %v6358
        %8424 = vmatprep.subr.bf16.mxu0 %v6375
        %8425 = vmatpush1.bf16.msra.mxu0 %v6374
        %8426 = vmatprep.subr.bf16.mxu0 %v6391
        %8427 = vmatpush1.bf16.msra.mxu0 %v6390
        %8428 = vmatprep.subr.bf16.mxu0 %v6407
        %8429 = vmatpush1.bf16.msra.mxu0 %v6406
        %8430 = vmatprep.subr.bf16.mxu0 %v6423
        %8431 = vmatpush1.bf16.msra.mxu0 %v6422
        %8432 = vmatprep.mubr.bf16.mxu0 %v2077
        %8433 = vmatmul.mubr.bf16.gmra.mrb[0].mxu0 %v2076
        %v8434 = vpop.f32.mrb[0].mxu0
        %v8435 = vadd.f32 0.0, %v8434
        %v8436 = vpop.f32.mrb[0].mxu0
        %v8437 = vadd.f32 0.0, %v8436
        %v8438 = vpop.f32.mrb[0].mxu0
        %v8439 = vadd.f32 0.0, %v8438
        %v8440 = vpop.f32.mrb[0].mxu0
        %v8441 = vadd.f32 0.0, %v8440
        %8442 = vdwg.mxu0
        %8443 = vmatprep.subr.bf16.mxu0 %v6439
        %8444 = vmatpush1.bf16.msra.mxu0 %v6438
        %8445 = vmatprep.subr.bf16.mxu0 %v6455
        %8446 = vmatpush1.bf16.msra.mxu0 %v6454
        %8447 = vmatprep.subr.bf16.mxu0 %v6471
        %8448 = vmatpush1.bf16.msra.mxu0 %v6470
        %8449 = vmatprep.subr.bf16.mxu0 %v6487
        %8450 = vmatpush1.bf16.msra.mxu0 %v6486
        %8451 = vmatprep.subr.bf16.mxu0 %v6503
        %8452 = vmatpush1.bf16.msra.mxu0 %v6502
        %8453 = vmatprep.subr.bf16.mxu0 %v6519
        %8454 = vmatpush1.bf16.msra.mxu0 %v6518
        %8455 = vmatprep.subr.bf16.mxu0 %v6535
        %8456 = vmatpush1.bf16.msra.mxu0 %v6534
        %8457 = vmatprep.subr.bf16.mxu0 %v6551
        %8458 = vmatpush1.bf16.msra.mxu0 %v6550
        %8459 = vmatprep.subr.bf16.mxu0 %v6567
        %8460 = vmatpush1.bf16.msra.mxu0 %v6566
        %8461 = vmatprep.subr.bf16.mxu0 %v6583
        %8462 = vmatpush1.bf16.msra.mxu0 %v6582
        %8463 = vmatprep.subr.bf16.mxu0 %v6599
        %8464 = vmatpush1.bf16.msra.mxu0 %v6598
        %8465 = vmatprep.subr.bf16.mxu0 %v6615
        %8466 = vmatpush1.bf16.msra.mxu0 %v6614
        %8467 = vmatprep.subr.bf16.mxu0 %v6631
        %8468 = vmatpush1.bf16.msra.mxu0 %v6630
        %8469 = vmatprep.subr.bf16.mxu0 %v6647
        %8470 = vmatpush1.bf16.msra.mxu0 %v6646
        %8471 = vmatprep.subr.bf16.mxu0 %v6663
        %8472 = vmatpush1.bf16.msra.mxu0 %v6662
        %8473 = vmatprep.subr.bf16.mxu0 %v6679
        %8474 = vmatpush1.bf16.msra.mxu0 %v6678
        %8475 = vmatprep.mubr.bf16.mxu0 %v2079
        %8476 = vmatmul.mubr.bf16.gmra.mrb[0].mxu0 %v2078
        %v8477 = vpop.f32.mrb[0].mxu0
        %v8478 = vadd.f32 %v8435, %v8477
        %v8479 = vpop.f32.mrb[0].mxu0
        %v8480 = vadd.f32 %v8437, %v8479
        %v8481 = vpop.f32.mrb[0].mxu0
        %v8482 = vadd.f32 %v8439, %v8481
        %v8483 = vpop.f32.mrb[0].mxu0
        %v8484 = vadd.f32 %v8441, %v8483
        %8485 = vdwg.mxu0
        %8486 = vmatprep.subr.bf16.mxu0 %v6695
        %8487 = vmatpush1.bf16.msra.mxu0 %v6694
        %8488 = vmatprep.subr.bf16.mxu0 %v6711
        %8489 = vmatpush1.bf16.msra.mxu0 %v6710
        %8490 = vmatprep.subr.bf16.mxu0 %v6727
        %8491 = vmatpush1.bf16.msra.mxu0 %v6726
        %8492 = vmatprep.subr.bf16.mxu0 %v6743
        %8493 = vmatpush1.bf16.msra.mxu0 %v6742
        %8494 = vmatprep.subr.bf16.mxu0 %v6759
        %8495 = vmatpush1.bf16.msra.mxu0 %v6758
        %8496 = vmatprep.subr.bf16.mxu0 %v6775
        %8497 = vmatpush1.bf16.msra.mxu0 %v6774
        %8498 = vmatprep.subr.bf16.mxu0 %v6791
        %8499 = vmatpush1.bf16.msra.mxu0 %v6790
        %8500 = vmatprep.subr.bf16.mxu0 %v6807
        %8501 = vmatpush1.bf16.msra.mxu0 %v6806
        %8502 = vmatprep.subr.bf16.mxu0 %v6823
        %8503 = vmatpush1.bf16.msra.mxu0 %v6822
        %8504 = vmatprep.subr.bf16.mxu0 %v6839
        %8505 = vmatpush1.bf16.msra.mxu0 %v6838
        %8506 = vmatprep.subr.bf16.mxu0 %v6855
        %8507 = vmatpush1.bf16.msra.mxu0 %v6854
        %8508 = vmatprep.subr.bf16.mxu0 %v6871
        %8509 = vmatpush1.bf16.msra.mxu0 %v6870
        %8510 = vmatprep.subr.bf16.mxu0 %v6887
        %8511 = vmatpush1.bf16.msra.mxu0 %v6886
        %8512 = vmatprep.subr.bf16.mxu0 %v6903
        %8513 = vmatpush1.bf16.msra.mxu0 %v6902
        %8514 = vmatprep.subr.bf16.mxu0 %v6919
        %8515 = vmatpush1.bf16.msra.mxu0 %v6918
        %8516 = vmatprep.subr.bf16.mxu0 %v6935
        %8517 = vmatpush1.bf16.msra.mxu0 %v6934
        %8518 = vmatprep.mubr.bf16.mxu0 %v2081
        %8519 = vmatmul.mubr.bf16.gmra.mrb[0].mxu0 %v2080
        %v8520 = vpop.f32.mrb[0].mxu0
        %v8521 = vadd.f32 %v8478, %v8520
        %v8522 = vpop.f32.mrb[0].mxu0
        %v8523 = vadd.f32 %v8480, %v8522
        %v8524 = vpop.f32.mrb[0].mxu0
        %v8525 = vadd.f32 %v8482, %v8524
        %v8526 = vpop.f32.mrb[0].mxu0
        %v8527 = vadd.f32 %v8484, %v8526
        %8528 = vdwg.mxu0
        %8529 = vmatprep.subr.bf16.mxu0 %v6951
        %8530 = vmatpush1.bf16.msra.mxu0 %v6950
        %8531 = vmatprep.subr.bf16.mxu0 %v6967
        %8532 = vmatpush1.bf16.msra.mxu0 %v6966
        %8533 = vmatprep.subr.bf16.mxu0 %v6983
        %8534 = vmatpush1.bf16.msra.mxu0 %v6982
        %8535 = vmatprep.subr.bf16.mxu0 %v6999
        %8536 = vmatpush1.bf16.msra.mxu0 %v6998
        %8537 = vmatprep.subr.bf16.mxu0 %v7015
        %8538 = vmatpush1.bf16.msra.mxu0 %v7014
        %8539 = vmatprep.subr.bf16.mxu0 %v7031
        %8540 = vmatpush1.bf16.msra.mxu0 %v7030
        %8541 = vmatprep.subr.bf16.mxu0 %v7047
        %8542 = vmatpush1.bf16.msra.mxu0 %v7046
        %8543 = vmatprep.subr.bf16.mxu0 %v7063
        %8544 = vmatpush1.bf16.msra.mxu0 %v7062
        %8545 = vmatprep.subr.bf16.mxu0 %v7079
        %8546 = vmatpush1.bf16.msra.mxu0 %v7078
        %8547 = vmatprep.subr.bf16.mxu0 %v7095
        %8548 = vmatpush1.bf16.msra.mxu0 %v7094
        %8549 = vmatprep.subr.bf16.mxu0 %v7111
        %8550 = vmatpush1.bf16.msra.mxu0 %v7110
        %8551 = vmatprep.subr.bf16.mxu0 %v7127
        %8552 = vmatpush1.bf16.msra.mxu0 %v7126
        %8553 = vmatprep.subr.bf16.mxu0 %v7143
        %8554 = vmatpush1.bf16.msra.mxu0 %v7142
        %8555 = vmatprep.subr.bf16.mxu0 %v7159
        %8556 = vmatpush1.bf16.msra.mxu0 %v7158
        %8557 = vmatprep.subr.bf16.mxu0 %v7175
        %8558 = vmatpush1.bf16.msra.mxu0 %v7174
        %8559 = vmatprep.subr.bf16.mxu0 %v7191
        %8560 = vmatpush1.bf16.msra.mxu0 %v7190
        %8561 = vmatprep.mubr.bf16.mxu0 %v2083
        %8562 = vmatmul.mubr.bf16.gmra.mrb[0].mxu0 %v2082
        %v8563 = vpop.f32.mrb[0].mxu0
        %v8564 = vadd.f32 %v8521, %v8563
        %v8565 = vpop.f32.mrb[0].mxu0
        %v8566 = vadd.f32 %v8523, %v8565
        %v8567 = vpop.f32.mrb[0].mxu0
        %v8568 = vadd.f32 %v8525, %v8567
        %v8569 = vpop.f32.mrb[0].mxu0
        %v8570 = vadd.f32 %v8527, %v8569
        %8571 = vdwg.mxu0
        %8572 = vmatprep.subr.bf16.mxu0 %v6185
        %8573 = vmatpush1.bf16.msra.mxu0 %v6184
        %8574 = vmatprep.subr.bf16.mxu0 %v6201
        %8575 = vmatpush1.bf16.msra.mxu0 %v6200
        %8576 = vmatprep.subr.bf16.mxu0 %v6217
        %8577 = vmatpush1.bf16.msra.mxu0 %v6216
        %8578 = vmatprep.subr.bf16.mxu0 %v6233
        %8579 = vmatpush1.bf16.msra.mxu0 %v6232
        %8580 = vmatprep.subr.bf16.mxu0 %v6249
        %8581 = vmatpush1.bf16.msra.mxu0 %v6248
        %8582 = vmatprep.subr.bf16.mxu0 %v6265
        %8583 = vmatpush1.bf16.msra.mxu0 %v6264
        %8584 = vmatprep.subr.bf16.mxu0 %v6281
        %8585 = vmatpush1.bf16.msra.mxu0 %v6280
        %8586 = vmatprep.subr.bf16.mxu0 %v6297
        %8587 = vmatpush1.bf16.msra.mxu0 %v6296
        %8588 = vmatprep.subr.bf16.mxu0 %v6313
        %8589 = vmatpush1.bf16.msra.mxu0 %v6312
        %8590 = vmatprep.subr.bf16.mxu0 %v6329
        %8591 = vmatpush1.bf16.msra.mxu0 %v6328
        %8592 = vmatprep.subr.bf16.mxu0 %v6345
        %8593 = vmatpush1.bf16.msra.mxu0 %v6344
        %8594 = vmatprep.subr.bf16.mxu0 %v6361
        %8595 = vmatpush1.bf16.msra.mxu0 %v6360
        %8596 = vmatprep.subr.bf16.mxu0 %v6377
        %8597 = vmatpush1.bf16.msra.mxu0 %v6376
        %8598 = vmatprep.subr.bf16.mxu0 %v6393
        %8599 = vmatpush1.bf16.msra.mxu0 %v6392
        %8600 = vmatprep.subr.bf16.mxu0 %v6409
        %8601 = vmatpush1.bf16.msra.mxu0 %v6408
        %8602 = vmatprep.subr.bf16.mxu0 %v6425
        %8603 = vmatpush1.bf16.msra.mxu0 %v6424
        %8604 = vmatprep.mubr.bf16.mxu0 %v2077
        %8605 = vmatmul.mubr.bf16.gmra.mrb[0].mxu0 %v2076
        %v8606 = vpop.f32.mrb[0].mxu0
        %v8607 = vadd.f32 0.0, %v8606
        %v8608 = vpop.f32.mrb[0].mxu0
        %v8609 = vadd.f32 0.0, %v8608
        %v8610 = vpop.f32.mrb[0].mxu0
        %v8611 = vadd.f32 0.0, %v8610
        %v8612 = vpop.f32.mrb[0].mxu0
        %v8613 = vadd.f32 0.0, %v8612
        %8614 = vdwg.mxu0
        %8615 = vmatprep.subr.bf16.mxu0 %v6441
        %8616 = vmatpush1.bf16.msra.mxu0 %v6440
        %8617 = vmatprep.subr.bf16.mxu0 %v6457
        %8618 = vmatpush1.bf16.msra.mxu0 %v6456
        %8619 = vmatprep.subr.bf16.mxu0 %v6473
        %8620 = vmatpush1.bf16.msra.mxu0 %v6472
        %8621 = vmatprep.subr.bf16.mxu0 %v6489
        %8622 = vmatpush1.bf16.msra.mxu0 %v6488
        %8623 = vmatprep.subr.bf16.mxu0 %v6505
        %8624 = vmatpush1.bf16.msra.mxu0 %v6504
        %8625 = vmatprep.subr.bf16.mxu0 %v6521
        %8626 = vmatpush1.bf16.msra.mxu0 %v6520
        %8627 = vmatprep.subr.bf16.mxu0 %v6537
        %8628 = vmatpush1.bf16.msra.mxu0 %v6536
        %8629 = vmatprep.subr.bf16.mxu0 %v6553
        %8630 = vmatpush1.bf16.msra.mxu0 %v6552
        %8631 = vmatprep.subr.bf16.mxu0 %v6569
        %8632 = vmatpush1.bf16.msra.mxu0 %v6568
        %8633 = vmatprep.subr.bf16.mxu0 %v6585
        %8634 = vmatpush1.bf16.msra.mxu0 %v6584
        %8635 = vmatprep.subr.bf16.mxu0 %v6601
        %8636 = vmatpush1.bf16.msra.mxu0 %v6600
        %8637 = vmatprep.subr.bf16.mxu0 %v6617
        %8638 = vmatpush1.bf16.msra.mxu0 %v6616
        %8639 = vmatprep.subr.bf16.mxu0 %v6633
        %8640 = vmatpush1.bf16.msra.mxu0 %v6632
        %8641 = vmatprep.subr.bf16.mxu0 %v6649
        %8642 = vmatpush1.bf16.msra.mxu0 %v6648
        %8643 = vmatprep.subr.bf16.mxu0 %v6665
        %8644 = vmatpush1.bf16.msra.mxu0 %v6664
        %8645 = vmatprep.subr.bf16.mxu0 %v6681
        %8646 = vmatpush1.bf16.msra.mxu0 %v6680
        %8647 = vmatprep.mubr.bf16.mxu0 %v2079
        %8648 = vmatmul.mubr.bf16.gmra.mrb[0].mxu0 %v2078
        %v8649 = vpop.f32.mrb[0].mxu0
        %v8650 = vadd.f32 %v8607, %v8649
        %v8651 = vpop.f32.mrb[0].mxu0
        %v8652 = vadd.f32 %v8609, %v8651
        %v8653 = vpop.f32.mrb[0].mxu0
        %v8654 = vadd.f32 %v8611, %v8653
        %v8655 = vpop.f32.mrb[0].mxu0
        %v8656 = vadd.f32 %v8613, %v8655
        %8657 = vdwg.mxu0
        %8658 = vmatprep.subr.bf16.mxu0 %v6697
        %8659 = vmatpush1.bf16.msra.mxu0 %v6696
        %8660 = vmatprep.subr.bf16.mxu0 %v6713
        %8661 = vmatpush1.bf16.msra.mxu0 %v6712
        %8662 = vmatprep.subr.bf16.mxu0 %v6729
        %8663 = vmatpush1.bf16.msra.mxu0 %v6728
        %8664 = vmatprep.subr.bf16.mxu0 %v6745
        %8665 = vmatpush1.bf16.msra.mxu0 %v6744
        %8666 = vmatprep.subr.bf16.mxu0 %v6761
        %8667 = vmatpush1.bf16.msra.mxu0 %v6760
        %8668 = vmatprep.subr.bf16.mxu0 %v6777
        %8669 = vmatpush1.bf16.msra.mxu0 %v6776
        %8670 = vmatprep.subr.bf16.mxu0 %v6793
        %8671 = vmatpush1.bf16.msra.mxu0 %v6792
        %8672 = vmatprep.subr.bf16.mxu0 %v6809
        %8673 = vmatpush1.bf16.msra.mxu0 %v6808
        %8674 = vmatprep.subr.bf16.mxu0 %v6825
        %8675 = vmatpush1.bf16.msra.mxu0 %v6824
        %8676 = vmatprep.subr.bf16.mxu0 %v6841
        %8677 = vmatpush1.bf16.msra.mxu0 %v6840
        %8678 = vmatprep.subr.bf16.mxu0 %v6857
        %8679 = vmatpush1.bf16.msra.mxu0 %v6856
        %8680 = vmatprep.subr.bf16.mxu0 %v6873
        %8681 = vmatpush1.bf16.msra.mxu0 %v6872
        %8682 = vmatprep.subr.bf16.mxu0 %v6889
        %8683 = vmatpush1.bf16.msra.mxu0 %v6888
        %8684 = vmatprep.subr.bf16.mxu0 %v6905
        %8685 = vmatpush1.bf16.msra.mxu0 %v6904
        %8686 = vmatprep.subr.bf16.mxu0 %v6921
        %8687 = vmatpush1.bf16.msra.mxu0 %v6920
        %8688 = vmatprep.subr.bf16.mxu0 %v6937
        %8689 = vmatpush1.bf16.msra.mxu0 %v6936
        %8690 = vmatprep.mubr.bf16.mxu0 %v2081
        %8691 = vmatmul.mubr.bf16.gmra.mrb[0].mxu0 %v2080
        %v8692 = vpop.f32.mrb[0].mxu0
        %v8693 = vadd.f32 %v8650, %v8692
        %v8694 = vpop.f32.mrb[0].mxu0
        %v8695 = vadd.f32 %v8652, %v8694
        %v8696 = vpop.f32.mrb[0].mxu0
        %v8697 = vadd.f32 %v8654, %v8696
        %v8698 = vpop.f32.mrb[0].mxu0
        %v8699 = vadd.f32 %v8656, %v8698
        %8700 = vdwg.mxu0
        %8701 = vmatprep.subr.bf16.mxu0 %v6953
        %8702 = vmatpush1.bf16.msra.mxu0 %v6952
        %8703 = vmatprep.subr.bf16.mxu0 %v6969
        %8704 = vmatpush1.bf16.msra.mxu0 %v6968
        %8705 = vmatprep.subr.bf16.mxu0 %v6985
        %8706 = vmatpush1.bf16.msra.mxu0 %v6984
        %8707 = vmatprep.subr.bf16.mxu0 %v7001
        %8708 = vmatpush1.bf16.msra.mxu0 %v7000
        %8709 = vmatprep.subr.bf16.mxu0 %v7017
        %8710 = vmatpush1.bf16.msra.mxu0 %v7016
        %8711 = vmatprep.subr.bf16.mxu0 %v7033
        %8712 = vmatpush1.bf16.msra.mxu0 %v7032
        %8713 = vmatprep.subr.bf16.mxu0 %v7049
        %8714 = vmatpush1.bf16.msra.mxu0 %v7048
        %8715 = vmatprep.subr.bf16.mxu0 %v7065
        %8716 = vmatpush1.bf16.msra.mxu0 %v7064
        %8717 = vmatprep.subr.bf16.mxu0 %v7081
        %8718 = vmatpush1.bf16.msra.mxu0 %v7080
        %8719 = vmatprep.subr.bf16.mxu0 %v7097
        %8720 = vmatpush1.bf16.msra.mxu0 %v7096
        %8721 = vmatprep.subr.bf16.mxu0 %v7113
        %8722 = vmatpush1.bf16.msra.mxu0 %v7112
        %8723 = vmatprep.subr.bf16.mxu0 %v7129
        %8724 = vmatpush1.bf16.msra.mxu0 %v7128
        %8725 = vmatprep.subr.bf16.mxu0 %v7145
        %8726 = vmatpush1.bf16.msra.mxu0 %v7144
        %8727 = vmatprep.subr.bf16.mxu0 %v7161
        %8728 = vmatpush1.bf16.msra.mxu0 %v7160
        %8729 = vmatprep.subr.bf16.mxu0 %v7177
        %8730 = vmatpush1.bf16.msra.mxu0 %v7176
        %8731 = vmatprep.subr.bf16.mxu0 %v7193
        %8732 = vmatpush1.bf16.msra.mxu0 %v7192
        %8733 = vmatprep.mubr.bf16.mxu0 %v2083
        %8734 = vmatmul.mubr.bf16.gmra.mrb[0].mxu0 %v2082
        %v8735 = vpop.f32.mrb[0].mxu0
        %v8736 = vadd.f32 %v8693, %v8735
        %v8737 = vpop.f32.mrb[0].mxu0
        %v8738 = vadd.f32 %v8695, %v8737
        %v8739 = vpop.f32.mrb[0].mxu0
        %v8740 = vadd.f32 %v8697, %v8739
        %v8741 = vpop.f32.mrb[0].mxu0
        %v8742 = vadd.f32 %v8699, %v8741
        %8743 = vdwg.mxu0
        %8744 = vmatprep.subr.bf16.mxu0 %v6187
        %8745 = vmatpush1.bf16.msra.mxu0 %v6186
        %8746 = vmatprep.subr.bf16.mxu0 %v6203
        %8747 = vmatpush1.bf16.msra.mxu0 %v6202
        %8748 = vmatprep.subr.bf16.mxu0 %v6219
        %8749 = vmatpush1.bf16.msra.mxu0 %v6218
        %8750 = vmatprep.subr.bf16.mxu0 %v6235
        %8751 = vmatpush1.bf16.msra.mxu0 %v6234
        %8752 = vmatprep.subr.bf16.mxu0 %v6251
        %8753 = vmatpush1.bf16.msra.mxu0 %v6250
        %8754 = vmatprep.subr.bf16.mxu0 %v6267
        %8755 = vmatpush1.bf16.msra.mxu0 %v6266
        %8756 = vmatprep.subr.bf16.mxu0 %v6283
        %8757 = vmatpush1.bf16.msra.mxu0 %v6282
        %8758 = vmatprep.subr.bf16.mxu0 %v6299
        %8759 = vmatpush1.bf16.msra.mxu0 %v6298
        %8760 = vmatprep.subr.bf16.mxu0 %v6315
        %8761 = vmatpush1.bf16.msra.mxu0 %v6314
        %8762 = vmatprep.subr.bf16.mxu0 %v6331
        %8763 = vmatpush1.bf16.msra.mxu0 %v6330
        %8764 = vmatprep.subr.bf16.mxu0 %v6347
        %8765 = vmatpush1.bf16.msra.mxu0 %v6346
        %8766 = vmatprep.subr.bf16.mxu0 %v6363
        %8767 = vmatpush1.bf16.msra.mxu0 %v6362
        %8768 = vmatprep.subr.bf16.mxu0 %v6379
        %8769 = vmatpush1.bf16.msra.mxu0 %v6378
        %8770 = vmatprep.subr.bf16.mxu0 %v6395
        %8771 = vmatpush1.bf16.msra.mxu0 %v6394
        %8772 = vmatprep.subr.bf16.mxu0 %v6411
        %8773 = vmatpush1.bf16.msra.mxu0 %v6410
        %8774 = vmatprep.subr.bf16.mxu0 %v6427
        %8775 = vmatpush1.bf16.msra.mxu0 %v6426
        %8776 = vmatprep.mubr.bf16.mxu0 %v2077
        %8777 = vmatmul.mubr.bf16.gmra.mrb[0].mxu0 %v2076
        %v8778 = vpop.f32.mrb[0].mxu0
        %v8779 = vadd.f32 0.0, %v8778
        %v8780 = vpop.f32.mrb[0].mxu0
        %v8781 = vadd.f32 0.0, %v8780
        %v8782 = vpop.f32.mrb[0].mxu0
        %v8783 = vadd.f32 0.0, %v8782
        %v8784 = vpop.f32.mrb[0].mxu0
        %v8785 = vadd.f32 0.0, %v8784
        %8786 = vdwg.mxu0
        %8787 = vmatprep.subr.bf16.mxu0 %v6443
        %8788 = vmatpush1.bf16.msra.mxu0 %v6442
        %8789 = vmatprep.subr.bf16.mxu0 %v6459
        %8790 = vmatpush1.bf16.msra.mxu0 %v6458
        %8791 = vmatprep.subr.bf16.mxu0 %v6475
        %8792 = vmatpush1.bf16.msra.mxu0 %v6474
        %8793 = vmatprep.subr.bf16.mxu0 %v6491
        %8794 = vmatpush1.bf16.msra.mxu0 %v6490
        %8795 = vmatprep.subr.bf16.mxu0 %v6507
        %8796 = vmatpush1.bf16.msra.mxu0 %v6506
        %8797 = vmatprep.subr.bf16.mxu0 %v6523
        %8798 = vmatpush1.bf16.msra.mxu0 %v6522
        %8799 = vmatprep.subr.bf16.mxu0 %v6539
        %8800 = vmatpush1.bf16.msra.mxu0 %v6538
        %8801 = vmatprep.subr.bf16.mxu0 %v6555
        %8802 = vmatpush1.bf16.msra.mxu0 %v6554
        %8803 = vmatprep.subr.bf16.mxu0 %v6571
        %8804 = vmatpush1.bf16.msra.mxu0 %v6570
        %8805 = vmatprep.subr.bf16.mxu0 %v6587
        %8806 = vmatpush1.bf16.msra.mxu0 %v6586
        %8807 = vmatprep.subr.bf16.mxu0 %v6603
        %8808 = vmatpush1.bf16.msra.mxu0 %v6602
        %8809 = vmatprep.subr.bf16.mxu0 %v6619
        %8810 = vmatpush1.bf16.msra.mxu0 %v6618
        %8811 = vmatprep.subr.bf16.mxu0 %v6635
        %8812 = vmatpush1.bf16.msra.mxu0 %v6634
        %8813 = vmatprep.subr.bf16.mxu0 %v6651
        %8814 = vmatpush1.bf16.msra.mxu0 %v6650
        %8815 = vmatprep.subr.bf16.mxu0 %v6667
        %8816 = vmatpush1.bf16.msra.mxu0 %v6666
        %8817 = vmatprep.subr.bf16.mxu0 %v6683
        %8818 = vmatpush1.bf16.msra.mxu0 %v6682
        %8819 = vmatprep.mubr.bf16.mxu0 %v2079
        %8820 = vmatmul.mubr.bf16.gmra.mrb[0].mxu0 %v2078
        %v8821 = vpop.f32.mrb[0].mxu0
        %v8822 = vadd.f32 %v8779, %v8821
        %v8823 = vpop.f32.mrb[0].mxu0
        %v8824 = vadd.f32 %v8781, %v8823
        %v8825 = vpop.f32.mrb[0].mxu0
        %v8826 = vadd.f32 %v8783, %v8825
        %v8827 = vpop.f32.mrb[0].mxu0
        %v8828 = vadd.f32 %v8785, %v8827
        %8829 = vdwg.mxu0
        %8830 = vmatprep.subr.bf16.mxu0 %v6699
        %8831 = vmatpush1.bf16.msra.mxu0 %v6698
        %8832 = vmatprep.subr.bf16.mxu0 %v6715
        %8833 = vmatpush1.bf16.msra.mxu0 %v6714
        %8834 = vmatprep.subr.bf16.mxu0 %v6731
        %8835 = vmatpush1.bf16.msra.mxu0 %v6730
        %8836 = vmatprep.subr.bf16.mxu0 %v6747
        %8837 = vmatpush1.bf16.msra.mxu0 %v6746
        %8838 = vmatprep.subr.bf16.mxu0 %v6763
        %8839 = vmatpush1.bf16.msra.mxu0 %v6762
        %8840 = vmatprep.subr.bf16.mxu0 %v6779
        %8841 = vmatpush1.bf16.msra.mxu0 %v6778
        %8842 = vmatprep.subr.bf16.mxu0 %v6795
        %8843 = vmatpush1.bf16.msra.mxu0 %v6794
        %8844 = vmatprep.subr.bf16.mxu0 %v6811
        %8845 = vmatpush1.bf16.msra.mxu0 %v6810
        %8846 = vmatprep.subr.bf16.mxu0 %v6827
        %8847 = vmatpush1.bf16.msra.mxu0 %v6826
        %8848 = vmatprep.subr.bf16.mxu0 %v6843
        %8849 = vmatpush1.bf16.msra.mxu0 %v6842
        %8850 = vmatprep.subr.bf16.mxu0 %v6859
        %8851 = vmatpush1.bf16.msra.mxu0 %v6858
        %8852 = vmatprep.subr.bf16.mxu0 %v6875
        %8853 = vmatpush1.bf16.msra.mxu0 %v6874
        %8854 = vmatprep.subr.bf16.mxu0 %v6891
        %8855 = vmatpush1.bf16.msra.mxu0 %v6890
        %8856 = vmatprep.subr.bf16.mxu0 %v6907
        %8857 = vmatpush1.bf16.msra.mxu0 %v6906
        %8858 = vmatprep.subr.bf16.mxu0 %v6923
        %8859 = vmatpush1.bf16.msra.mxu0 %v6922
        %8860 = vmatprep.subr.bf16.mxu0 %v6939
        %8861 = vmatpush1.bf16.msra.mxu0 %v6938
        %8862 = vmatprep.mubr.bf16.mxu0 %v2081
        %8863 = vmatmul.mubr.bf16.gmra.mrb[0].mxu0 %v2080
        %v8864 = vpop.f32.mrb[0].mxu0
        %v8865 = vadd.f32 %v8822, %v8864
        %v8866 = vpop.f32.mrb[0].mxu0
        %v8867 = vadd.f32 %v8824, %v8866
        %v8868 = vpop.f32.mrb[0].mxu0
        %v8869 = vadd.f32 %v8826, %v8868
        %v8870 = vpop.f32.mrb[0].mxu0
        %v8871 = vadd.f32 %v8828, %v8870
        %8872 = vdwg.mxu0
        %8873 = vmatprep.subr.bf16.mxu0 %v6955
        %8874 = vmatpush1.bf16.msra.mxu0 %v6954
        %8875 = vmatprep.subr.bf16.mxu0 %v6971
        %8876 = vmatpush1.bf16.msra.mxu0 %v6970
        %8877 = vmatprep.subr.bf16.mxu0 %v6987
        %8878 = vmatpush1.bf16.msra.mxu0 %v6986
        %8879 = vmatprep.subr.bf16.mxu0 %v7003
        %8880 = vmatpush1.bf16.msra.mxu0 %v7002
        %8881 = vmatprep.subr.bf16.mxu0 %v7019
        %8882 = vmatpush1.bf16.msra.mxu0 %v7018
        %8883 = vmatprep.subr.bf16.mxu0 %v7035
        %8884 = vmatpush1.bf16.msra.mxu0 %v7034
        %8885 = vmatprep.subr.bf16.mxu0 %v7051
        %8886 = vmatpush1.bf16.msra.mxu0 %v7050
        %8887 = vmatprep.subr.bf16.mxu0 %v7067
        %8888 = vmatpush1.bf16.msra.mxu0 %v7066
        %8889 = vmatprep.subr.bf16.mxu0 %v7083
        %8890 = vmatpush1.bf16.msra.mxu0 %v7082
        %8891 = vmatprep.subr.bf16.mxu0 %v7099
        %8892 = vmatpush1.bf16.msra.mxu0 %v7098
        %8893 = vmatprep.subr.bf16.mxu0 %v7115
        %8894 = vmatpush1.bf16.msra.mxu0 %v7114
        %8895 = vmatprep.subr.bf16.mxu0 %v7131
        %8896 = vmatpush1.bf16.msra.mxu0 %v7130
        %8897 = vmatprep.subr.bf16.mxu0 %v7147
        %8898 = vmatpush1.bf16.msra.mxu0 %v7146
        %8899 = vmatprep.subr.bf16.mxu0 %v7163
        %8900 = vmatpush1.bf16.msra.mxu0 %v7162
        %8901 = vmatprep.subr.bf16.mxu0 %v7179
        %8902 = vmatpush1.bf16.msra.mxu0 %v7178
        %8903 = vmatprep.subr.bf16.mxu0 %v7195
        %8904 = vmatpush1.bf16.msra.mxu0 %v7194
        %8905 = vmatprep.mubr.bf16.mxu0 %v2083
        %8906 = vmatmul.mubr.bf16.gmra.mrb[0].mxu0 %v2082
        %v8907 = vpop.f32.mrb[0].mxu0
        %v8908 = vadd.f32 %v8865, %v8907
        %v8909 = vpop.f32.mrb[0].mxu0
        %v8910 = vadd.f32 %v8867, %v8909
        %v8911 = vpop.f32.mrb[0].mxu0
        %v8912 = vadd.f32 %v8869, %v8911
        %v8913 = vpop.f32.mrb[0].mxu0
        %v8914 = vadd.f32 %v8871, %v8913
        %8915 = vdwg.mxu0
        %8916 = vmatprep.subr.bf16.mxu0 %v6189
        %8917 = vmatpush1.bf16.msra.mxu0 %v6188
        %8918 = vmatprep.subr.bf16.mxu0 %v6205
        %8919 = vmatpush1.bf16.msra.mxu0 %v6204
        %8920 = vmatprep.subr.bf16.mxu0 %v6221
        %8921 = vmatpush1.bf16.msra.mxu0 %v6220
        %8922 = vmatprep.subr.bf16.mxu0 %v6237
        %8923 = vmatpush1.bf16.msra.mxu0 %v6236
        %8924 = vmatprep.subr.bf16.mxu0 %v6253
        %8925 = vmatpush1.bf16.msra.mxu0 %v6252
        %8926 = vmatprep.subr.bf16.mxu0 %v6269
        %8927 = vmatpush1.bf16.msra.mxu0 %v6268
        %8928 = vmatprep.subr.bf16.mxu0 %v6285
        %8929 = vmatpush1.bf16.msra.mxu0 %v6284
        %8930 = vmatprep.subr.bf16.mxu0 %v6301
        %8931 = vmatpush1.bf16.msra.mxu0 %v6300
        %8932 = vmatprep.subr.bf16.mxu0 %v6317
        %8933 = vmatpush1.bf16.msra.mxu0 %v6316
        %8934 = vmatprep.subr.bf16.mxu0 %v6333
        %8935 = vmatpush1.bf16.msra.mxu0 %v6332
        %8936 = vmatprep.subr.bf16.mxu0 %v6349
        %8937 = vmatpush1.bf16.msra.mxu0 %v6348
        %8938 = vmatprep.subr.bf16.mxu0 %v6365
        %8939 = vmatpush1.bf16.msra.mxu0 %v6364
        %8940 = vmatprep.subr.bf16.mxu0 %v6381
        %8941 = vmatpush1.bf16.msra.mxu0 %v6380
        %8942 = vmatprep.subr.bf16.mxu0 %v6397
        %8943 = vmatpush1.bf16.msra.mxu0 %v6396
        %8944 = vmatprep.subr.bf16.mxu0 %v6413
        %8945 = vmatpush1.bf16.msra.mxu0 %v6412
        %8946 = vmatprep.subr.bf16.mxu0 %v6429
        %8947 = vmatpush1.bf16.msra.mxu0 %v6428
        %8948 = vmatprep.mubr.bf16.mxu0 %v2077
        %8949 = vmatmul.mubr.bf16.gmra.mrb[0].mxu0 %v2076
        %v8950 = vpop.f32.mrb[0].mxu0
        %v8951 = vadd.f32 0.0, %v8950
        %v8952 = vpop.f32.mrb[0].mxu0
        %v8953 = vadd.f32 0.0, %v8952
        %v8954 = vpop.f32.mrb[0].mxu0
        %v8955 = vadd.f32 0.0, %v8954
        %v8956 = vpop.f32.mrb[0].mxu0
        %v8957 = vadd.f32 0.0, %v8956
        %8958 = vdwg.mxu0
        %8959 = vmatprep.subr.bf16.mxu0 %v6445
        %8960 = vmatpush1.bf16.msra.mxu0 %v6444
        %8961 = vmatprep.subr.bf16.mxu0 %v6461
        %8962 = vmatpush1.bf16.msra.mxu0 %v6460
        %8963 = vmatprep.subr.bf16.mxu0 %v6477
        %8964 = vmatpush1.bf16.msra.mxu0 %v6476
        %8965 = vmatprep.subr.bf16.mxu0 %v6493
        %8966 = vmatpush1.bf16.msra.mxu0 %v6492
        %8967 = vmatprep.subr.bf16.mxu0 %v6509
        %8968 = vmatpush1.bf16.msra.mxu0 %v6508
        %8969 = vmatprep.subr.bf16.mxu0 %v6525
        %8970 = vmatpush1.bf16.msra.mxu0 %v6524
        %8971 = vmatprep.subr.bf16.mxu0 %v6541
        %8972 = vmatpush1.bf16.msra.mxu0 %v6540
        %8973 = vmatprep.subr.bf16.mxu0 %v6557
        %8974 = vmatpush1.bf16.msra.mxu0 %v6556
        %8975 = vmatprep.subr.bf16.mxu0 %v6573
        %8976 = vmatpush1.bf16.msra.mxu0 %v6572
        %8977 = vmatprep.subr.bf16.mxu0 %v6589
        %8978 = vmatpush1.bf16.msra.mxu0 %v6588
        %8979 = vmatprep.subr.bf16.mxu0 %v6605
        %8980 = vmatpush1.bf16.msra.mxu0 %v6604
        %8981 = vmatprep.subr.bf16.mxu0 %v6621
        %8982 = vmatpush1.bf16.msra.mxu0 %v6620
        %8983 = vmatprep.subr.bf16.mxu0 %v6637
        %8984 = vmatpush1.bf16.msra.mxu0 %v6636
        %8985 = vmatprep.subr.bf16.mxu0 %v6653
        %8986 = vmatpush1.bf16.msra.mxu0 %v6652
        %8987 = vmatprep.subr.bf16.mxu0 %v6669
        %8988 = vmatpush1.bf16.msra.mxu0 %v6668
        %8989 = vmatprep.subr.bf16.mxu0 %v6685
        %8990 = vmatpush1.bf16.msra.mxu0 %v6684
        %8991 = vmatprep.mubr.bf16.mxu0 %v2079
        %8992 = vmatmul.mubr.bf16.gmra.mrb[0].mxu0 %v2078
        %v8993 = vpop.f32.mrb[0].mxu0
        %v8994 = vadd.f32 %v8951, %v8993
        %v8995 = vpop.f32.mrb[0].mxu0
        %v8996 = vadd.f32 %v8953, %v8995
        %v8997 = vpop.f32.mrb[0].mxu0
        %v8998 = vadd.f32 %v8955, %v8997
        %v8999 = vpop.f32.mrb[0].mxu0
        %v9000 = vadd.f32 %v8957, %v8999
        %9001 = vdwg.mxu0
        %9002 = vmatprep.subr.bf16.mxu0 %v6701
        %9003 = vmatpush1.bf16.msra.mxu0 %v6700
        %9004 = vmatprep.subr.bf16.mxu0 %v6717
        %9005 = vmatpush1.bf16.msra.mxu0 %v6716
        %9006 = vmatprep.subr.bf16.mxu0 %v6733
        %9007 = vmatpush1.bf16.msra.mxu0 %v6732
        %9008 = vmatprep.subr.bf16.mxu0 %v6749
        %9009 = vmatpush1.bf16.msra.mxu0 %v6748
        %9010 = vmatprep.subr.bf16.mxu0 %v6765
        %9011 = vmatpush1.bf16.msra.mxu0 %v6764
        %9012 = vmatprep.subr.bf16.mxu0 %v6781
        %9013 = vmatpush1.bf16.msra.mxu0 %v6780
        %9014 = vmatprep.subr.bf16.mxu0 %v6797
        %9015 = vmatpush1.bf16.msra.mxu0 %v6796
        %9016 = vmatprep.subr.bf16.mxu0 %v6813
        %9017 = vmatpush1.bf16.msra.mxu0 %v6812
        %9018 = vmatprep.subr.bf16.mxu0 %v6829
        %9019 = vmatpush1.bf16.msra.mxu0 %v6828
        %9020 = vmatprep.subr.bf16.mxu0 %v6845
        %9021 = vmatpush1.bf16.msra.mxu0 %v6844
        %9022 = vmatprep.subr.bf16.mxu0 %v6861
        %9023 = vmatpush1.bf16.msra.mxu0 %v6860
        %9024 = vmatprep.subr.bf16.mxu0 %v6877
        %9025 = vmatpush1.bf16.msra.mxu0 %v6876
        %9026 = vmatprep.subr.bf16.mxu0 %v6893
        %9027 = vmatpush1.bf16.msra.mxu0 %v6892
        %9028 = vmatprep.subr.bf16.mxu0 %v6909
        %9029 = vmatpush1.bf16.msra.mxu0 %v6908
        %9030 = vmatprep.subr.bf16.mxu0 %v6925
        %9031 = vmatpush1.bf16.msra.mxu0 %v6924
        %9032 = vmatprep.subr.bf16.mxu0 %v6941
        %9033 = vmatpush1.bf16.msra.mxu0 %v6940
        %9034 = vmatprep.mubr.bf16.mxu0 %v2081
        %9035 = vmatmul.mubr.bf16.gmra.mrb[0].mxu0 %v2080
        %v9036 = vpop.f32.mrb[0].mxu0
        %v9037 = vadd.f32 %v8994, %v9036
        %v9038 = vpop.f32.mrb[0].mxu0
        %v9039 = vadd.f32 %v8996, %v9038
        %v9040 = vpop.f32.mrb[0].mxu0
        %v9041 = vadd.f32 %v8998, %v9040
        %v9042 = vpop.f32.mrb[0].mxu0
        %v9043 = vadd.f32 %v9000, %v9042
        %9044 = vdwg.mxu0
        %9045 = vmatprep.subr.bf16.mxu0 %v6957
        %9046 = vmatpush1.bf16.msra.mxu0 %v6956
        %9047 = vmatprep.subr.bf16.mxu0 %v6973
        %9048 = vmatpush1.bf16.msra.mxu0 %v6972
        %9049 = vmatprep.subr.bf16.mxu0 %v6989
        %9050 = vmatpush1.bf16.msra.mxu0 %v6988
        %9051 = vmatprep.subr.bf16.mxu0 %v7005
        %9052 = vmatpush1.bf16.msra.mxu0 %v7004
        %9053 = vmatprep.subr.bf16.mxu0 %v7021
        %9054 = vmatpush1.bf16.msra.mxu0 %v7020
        %9055 = vmatprep.subr.bf16.mxu0 %v7037
        %9056 = vmatpush1.bf16.msra.mxu0 %v7036
        %9057 = vmatprep.subr.bf16.mxu0 %v7053
        %9058 = vmatpush1.bf16.msra.mxu0 %v7052
        %9059 = vmatprep.subr.bf16.mxu0 %v7069
        %9060 = vmatpush1.bf16.msra.mxu0 %v7068
        %9061 = vmatprep.subr.bf16.mxu0 %v7085
        %9062 = vmatpush1.bf16.msra.mxu0 %v7084
        %9063 = vmatprep.subr.bf16.mxu0 %v7101
        %9064 = vmatpush1.bf16.msra.mxu0 %v7100
        %9065 = vmatprep.subr.bf16.mxu0 %v7117
        %9066 = vmatpush1.bf16.msra.mxu0 %v7116
        %9067 = vmatprep.subr.bf16.mxu0 %v7133
        %9068 = vmatpush1.bf16.msra.mxu0 %v7132
        %9069 = vmatprep.subr.bf16.mxu0 %v7149
        %9070 = vmatpush1.bf16.msra.mxu0 %v7148
        %9071 = vmatprep.subr.bf16.mxu0 %v7165
        %9072 = vmatpush1.bf16.msra.mxu0 %v7164
        %9073 = vmatprep.subr.bf16.mxu0 %v7181
        %9074 = vmatpush1.bf16.msra.mxu0 %v7180
        %9075 = vmatprep.subr.bf16.mxu0 %v7197
        %9076 = vmatpush1.bf16.msra.mxu0 %v7196
        %9077 = vmatprep.mubr.bf16.mxu0 %v2083
        %9078 = vmatmul.mubr.bf16.gmra.mrb[0].mxu0 %v2082
        %v9079 = vpop.f32.mrb[0].mxu0
        %v9080 = vadd.f32 %v9037, %v9079
        %v9081 = vpop.f32.mrb[0].mxu0
        %v9082 = vadd.f32 %v9039, %v9081
        %v9083 = vpop.f32.mrb[0].mxu0
        %v9084 = vadd.f32 %v9041, %v9083
        %v9085 = vpop.f32.mrb[0].mxu0
        %v9086 = vadd.f32 %v9043, %v9085
        %9087 = vdwg.mxu0
        %9088 = vmatprep.subr.bf16.mxu0 %v6191
        %9089 = vmatpush1.bf16.msra.mxu0 %v6190
        %9090 = vmatprep.subr.bf16.mxu0 %v6207
        %9091 = vmatpush1.bf16.msra.mxu0 %v6206
        %9092 = vmatprep.subr.bf16.mxu0 %v6223
        %9093 = vmatpush1.bf16.msra.mxu0 %v6222
        %9094 = vmatprep.subr.bf16.mxu0 %v6239
        %9095 = vmatpush1.bf16.msra.mxu0 %v6238
        %9096 = vmatprep.subr.bf16.mxu0 %v6255
        %9097 = vmatpush1.bf16.msra.mxu0 %v6254
        %9098 = vmatprep.subr.bf16.mxu0 %v6271
        %9099 = vmatpush1.bf16.msra.mxu0 %v6270
        %9100 = vmatprep.subr.bf16.mxu0 %v6287
        %9101 = vmatpush1.bf16.msra.mxu0 %v6286
        %9102 = vmatprep.subr.bf16.mxu0 %v6303
        %9103 = vmatpush1.bf16.msra.mxu0 %v6302
        %9104 = vmatprep.subr.bf16.mxu0 %v6319
        %9105 = vmatpush1.bf16.msra.mxu0 %v6318
        %9106 = vmatprep.subr.bf16.mxu0 %v6335
        %9107 = vmatpush1.bf16.msra.mxu0 %v6334
        %9108 = vmatprep.subr.bf16.mxu0 %v6351
        %9109 = vmatpush1.bf16.msra.mxu0 %v6350
        %9110 = vmatprep.subr.bf16.mxu0 %v6367
        %9111 = vmatpush1.bf16.msra.mxu0 %v6366
        %9112 = vmatprep.subr.bf16.mxu0 %v6383
        %9113 = vmatpush1.bf16.msra.mxu0 %v6382
        %9114 = vmatprep.subr.bf16.mxu0 %v6399
        %9115 = vmatpush1.bf16.msra.mxu0 %v6398
        %9116 = vmatprep.subr.bf16.mxu0 %v6415
        %9117 = vmatpush1.bf16.msra.mxu0 %v6414
        %9118 = vmatprep.subr.bf16.mxu0 %v6431
        %9119 = vmatpush1.bf16.msra.mxu0 %v6430
        %9120 = vmatprep.mubr.bf16.mxu0 %v2077
        %9121 = vmatmul.mubr.bf16.gmra.mrb[0].mxu0 %v2076
        %v9122 = vpop.f32.mrb[0].mxu0
        %v9123 = vadd.f32 0.0, %v9122
        %v9124 = vpop.f32.mrb[0].mxu0
        %v9125 = vadd.f32 0.0, %v9124
        %v9126 = vpop.f32.mrb[0].mxu0
        %v9127 = vadd.f32 0.0, %v9126
        %v9128 = vpop.f32.mrb[0].mxu0
        %v9129 = vadd.f32 0.0, %v9128
        %9130 = vdwg.mxu0
        %9131 = vmatprep.subr.bf16.mxu0 %v6447
        %9132 = vmatpush1.bf16.msra.mxu0 %v6446
        %9133 = vmatprep.subr.bf16.mxu0 %v6463
        %9134 = vmatpush1.bf16.msra.mxu0 %v6462
        %9135 = vmatprep.subr.bf16.mxu0 %v6479
        %9136 = vmatpush1.bf16.msra.mxu0 %v6478
        %9137 = vmatprep.subr.bf16.mxu0 %v6495
        %9138 = vmatpush1.bf16.msra.mxu0 %v6494
        %9139 = vmatprep.subr.bf16.mxu0 %v6511
        %9140 = vmatpush1.bf16.msra.mxu0 %v6510
        %9141 = vmatprep.subr.bf16.mxu0 %v6527
        %9142 = vmatpush1.bf16.msra.mxu0 %v6526
        %9143 = vmatprep.subr.bf16.mxu0 %v6543
        %9144 = vmatpush1.bf16.msra.mxu0 %v6542
        %9145 = vmatprep.subr.bf16.mxu0 %v6559
        %9146 = vmatpush1.bf16.msra.mxu0 %v6558
        %9147 = vmatprep.subr.bf16.mxu0 %v6575
        %9148 = vmatpush1.bf16.msra.mxu0 %v6574
        %9149 = vmatprep.subr.bf16.mxu0 %v6591
        %9150 = vmatpush1.bf16.msra.mxu0 %v6590
        %9151 = vmatprep.subr.bf16.mxu0 %v6607
        %9152 = vmatpush1.bf16.msra.mxu0 %v6606
        %9153 = vmatprep.subr.bf16.mxu0 %v6623
        %9154 = vmatpush1.bf16.msra.mxu0 %v6622
        %9155 = vmatprep.subr.bf16.mxu0 %v6639
        %9156 = vmatpush1.bf16.msra.mxu0 %v6638
        %9157 = vmatprep.subr.bf16.mxu0 %v6655
        %9158 = vmatpush1.bf16.msra.mxu0 %v6654
        %9159 = vmatprep.subr.bf16.mxu0 %v6671
        %9160 = vmatpush1.bf16.msra.mxu0 %v6670
        %9161 = vmatprep.subr.bf16.mxu0 %v6687
        %9162 = vmatpush1.bf16.msra.mxu0 %v6686
        %9163 = vmatprep.mubr.bf16.mxu0 %v2079
        %9164 = vmatmul.mubr.bf16.gmra.mrb[0].mxu0 %v2078
        %v9165 = vpop.f32.mrb[0].mxu0
        %v9166 = vadd.f32 %v9123, %v9165
        %v9167 = vpop.f32.mrb[0].mxu0
        %v9168 = vadd.f32 %v9125, %v9167
        %v9169 = vpop.f32.mrb[0].mxu0
        %v9170 = vadd.f32 %v9127, %v9169
        %v9171 = vpop.f32.mrb[0].mxu0
        %v9172 = vadd.f32 %v9129, %v9171
        %9173 = vdwg.mxu0
        %9174 = vmatprep.subr.bf16.mxu0 %v6703
        %9175 = vmatpush1.bf16.msra.mxu0 %v6702
        %9176 = vmatprep.subr.bf16.mxu0 %v6719
        %9177 = vmatpush1.bf16.msra.mxu0 %v6718
        %9178 = vmatprep.subr.bf16.mxu0 %v6735
        %9179 = vmatpush1.bf16.msra.mxu0 %v6734
        %9180 = vmatprep.subr.bf16.mxu0 %v6751
        %9181 = vmatpush1.bf16.msra.mxu0 %v6750
        %9182 = vmatprep.subr.bf16.mxu0 %v6767
        %9183 = vmatpush1.bf16.msra.mxu0 %v6766
        %9184 = vmatprep.subr.bf16.mxu0 %v6783
        %9185 = vmatpush1.bf16.msra.mxu0 %v6782
        %9186 = vmatprep.subr.bf16.mxu0 %v6799
        %9187 = vmatpush1.bf16.msra.mxu0 %v6798
        %9188 = vmatprep.subr.bf16.mxu0 %v6815
        %9189 = vmatpush1.bf16.msra.mxu0 %v6814
        %9190 = vmatprep.subr.bf16.mxu0 %v6831
        %9191 = vmatpush1.bf16.msra.mxu0 %v6830
        %9192 = vmatprep.subr.bf16.mxu0 %v6847
        %9193 = vmatpush1.bf16.msra.mxu0 %v6846
        %9194 = vmatprep.subr.bf16.mxu0 %v6863
        %9195 = vmatpush1.bf16.msra.mxu0 %v6862
        %9196 = vmatprep.subr.bf16.mxu0 %v6879
        %9197 = vmatpush1.bf16.msra.mxu0 %v6878
        %9198 = vmatprep.subr.bf16.mxu0 %v6895
        %9199 = vmatpush1.bf16.msra.mxu0 %v6894
        %9200 = vmatprep.subr.bf16.mxu0 %v6911
        %9201 = vmatpush1.bf16.msra.mxu0 %v6910
        %9202 = vmatprep.subr.bf16.mxu0 %v6927
        %9203 = vmatpush1.bf16.msra.mxu0 %v6926
        %9204 = vmatprep.subr.bf16.mxu0 %v6943
        %9205 = vmatpush1.bf16.msra.mxu0 %v6942
        %9206 = vmatprep.mubr.bf16.mxu0 %v2081
        %9207 = vmatmul.mubr.bf16.gmra.mrb[0].mxu0 %v2080
        %v9208 = vpop.f32.mrb[0].mxu0
        %v9209 = vadd.f32 %v9166, %v9208
        %v9210 = vpop.f32.mrb[0].mxu0
        %v9211 = vadd.f32 %v9168, %v9210
        %v9212 = vpop.f32.mrb[0].mxu0
        %v9213 = vadd.f32 %v9170, %v9212
        %v9214 = vpop.f32.mrb[0].mxu0
        %v9215 = vadd.f32 %v9172, %v9214
        %9216 = vdwg.mxu0
        %9217 = vmatprep.subr.bf16.mxu0 %v6959
        %9218 = vmatpush1.bf16.msra.mxu0 %v6958
        %9219 = vmatprep.subr.bf16.mxu0 %v6975
        %9220 = vmatpush1.bf16.msra.mxu0 %v6974
        %9221 = vmatprep.subr.bf16.mxu0 %v6991
        %9222 = vmatpush1.bf16.msra.mxu0 %v6990
        %9223 = vmatprep.subr.bf16.mxu0 %v7007
        %9224 = vmatpush1.bf16.msra.mxu0 %v7006
        %9225 = vmatprep.subr.bf16.mxu0 %v7023
        %9226 = vmatpush1.bf16.msra.mxu0 %v7022
        %9227 = vmatprep.subr.bf16.mxu0 %v7039
        %9228 = vmatpush1.bf16.msra.mxu0 %v7038
        %9229 = vmatprep.subr.bf16.mxu0 %v7055
        %9230 = vmatpush1.bf16.msra.mxu0 %v7054
        %9231 = vmatprep.subr.bf16.mxu0 %v7071
        %9232 = vmatpush1.bf16.msra.mxu0 %v7070
        %9233 = vmatprep.subr.bf16.mxu0 %v7087
        %9234 = vmatpush1.bf16.msra.mxu0 %v7086
        %9235 = vmatprep.subr.bf16.mxu0 %v7103
        %9236 = vmatpush1.bf16.msra.mxu0 %v7102
        %9237 = vmatprep.subr.bf16.mxu0 %v7119
        %9238 = vmatpush1.bf16.msra.mxu0 %v7118
        %9239 = vmatprep.subr.bf16.mxu0 %v7135
        %9240 = vmatpush1.bf16.msra.mxu0 %v7134
        %9241 = vmatprep.subr.bf16.mxu0 %v7151
        %9242 = vmatpush1.bf16.msra.mxu0 %v7150
        %9243 = vmatprep.subr.bf16.mxu0 %v7167
        %9244 = vmatpush1.bf16.msra.mxu0 %v7166
        %9245 = vmatprep.subr.bf16.mxu0 %v7183
        %9246 = vmatpush1.bf16.msra.mxu0 %v7182
        %9247 = vmatprep.subr.bf16.mxu0 %v7199
        %9248 = vmatpush1.bf16.msra.mxu0 %v7198
        %9249 = vmatprep.mubr.bf16.mxu0 %v2083
        %9250 = vmatmul.mubr.bf16.gmra.mrb[0].mxu0 %v2082
        %v9251 = vpop.f32.mrb[0].mxu0
        %v9252 = vadd.f32 %v9209, %v9251
        %v9253 = vpop.f32.mrb[0].mxu0
        %v9254 = vadd.f32 %v9211, %v9253
        %v9255 = vpop.f32.mrb[0].mxu0
        %v9256 = vadd.f32 %v9213, %v9255
        %v9257 = vpop.f32.mrb[0].mxu0
        %v9258 = vadd.f32 %v9215, %v9257
        %9259 = vdwg.mxu0
        %9260 = vmatprep.subr.bf16.mxu0 %v6193
        %9261 = vmatpush1.bf16.msra.mxu0 %v6192
        %9262 = vmatprep.subr.bf16.mxu0 %v6209
        %9263 = vmatpush1.bf16.msra.mxu0 %v6208
        %9264 = vmatprep.subr.bf16.mxu0 %v6225
        %9265 = vmatpush1.bf16.msra.mxu0 %v6224
        %9266 = vmatprep.subr.bf16.mxu0 %v6241
        %9267 = vmatpush1.bf16.msra.mxu0 %v6240
        %9268 = vmatprep.subr.bf16.mxu0 %v6257
        %9269 = vmatpush1.bf16.msra.mxu0 %v6256
        %9270 = vmatprep.subr.bf16.mxu0 %v6273
        %9271 = vmatpush1.bf16.msra.mxu0 %v6272
        %9272 = vmatprep.subr.bf16.mxu0 %v6289
        %9273 = vmatpush1.bf16.msra.mxu0 %v6288
        %9274 = vmatprep.subr.bf16.mxu0 %v6305
        %9275 = vmatpush1.bf16.msra.mxu0 %v6304
        %9276 = vmatprep.subr.bf16.mxu0 %v6321
        %9277 = vmatpush1.bf16.msra.mxu0 %v6320
        %9278 = vmatprep.subr.bf16.mxu0 %v6337
        %9279 = vmatpush1.bf16.msra.mxu0 %v6336
        %9280 = vmatprep.subr.bf16.mxu0 %v6353
        %9281 = vmatpush1.bf16.msra.mxu0 %v6352
        %9282 = vmatprep.subr.bf16.mxu0 %v6369
        %9283 = vmatpush1.bf16.msra.mxu0 %v6368
        %9284 = vmatprep.subr.bf16.mxu0 %v6385
        %9285 = vmatpush1.bf16.msra.mxu0 %v6384
        %9286 = vmatprep.subr.bf16.mxu0 %v6401
        %9287 = vmatpush1.bf16.msra.mxu0 %v6400
        %9288 = vmatprep.subr.bf16.mxu0 %v6417
        %9289 = vmatpush1.bf16.msra.mxu0 %v6416
        %9290 = vmatprep.subr.bf16.mxu0 %v6433
        %9291 = vmatpush1.bf16.msra.mxu0 %v6432
        %9292 = vmatprep.mubr.bf16.mxu0 %v2077
        %9293 = vmatmul.mubr.bf16.gmra.mrb[0].mxu0 %v2076
        %v9294 = vpop.f32.mrb[0].mxu0
        %v9295 = vadd.f32 0.0, %v9294
        %v9296 = vpop.f32.mrb[0].mxu0
        %v9297 = vadd.f32 0.0, %v9296
        %v9298 = vpop.f32.mrb[0].mxu0
        %v9299 = vadd.f32 0.0, %v9298
        %v9300 = vpop.f32.mrb[0].mxu0
        %v9301 = vadd.f32 0.0, %v9300
        %9302 = vdwg.mxu0
        %9303 = vmatprep.subr.bf16.mxu0 %v6449
        %9304 = vmatpush1.bf16.msra.mxu0 %v6448
        %9305 = vmatprep.subr.bf16.mxu0 %v6465
        %9306 = vmatpush1.bf16.msra.mxu0 %v6464
        %9307 = vmatprep.subr.bf16.mxu0 %v6481
        %9308 = vmatpush1.bf16.msra.mxu0 %v6480
        %9309 = vmatprep.subr.bf16.mxu0 %v6497
        %9310 = vmatpush1.bf16.msra.mxu0 %v6496
        %9311 = vmatprep.subr.bf16.mxu0 %v6513
        %9312 = vmatpush1.bf16.msra.mxu0 %v6512
        %9313 = vmatprep.subr.bf16.mxu0 %v6529
        %9314 = vmatpush1.bf16.msra.mxu0 %v6528
        %9315 = vmatprep.subr.bf16.mxu0 %v6545
        %9316 = vmatpush1.bf16.msra.mxu0 %v6544
        %9317 = vmatprep.subr.bf16.mxu0 %v6561
        %9318 = vmatpush1.bf16.msra.mxu0 %v6560
        %9319 = vmatprep.subr.bf16.mxu0 %v6577
        %9320 = vmatpush1.bf16.msra.mxu0 %v6576
        %9321 = vmatprep.subr.bf16.mxu0 %v6593
        %9322 = vmatpush1.bf16.msra.mxu0 %v6592
        %9323 = vmatprep.subr.bf16.mxu0 %v6609
        %9324 = vmatpush1.bf16.msra.mxu0 %v6608
        %9325 = vmatprep.subr.bf16.mxu0 %v6625
        %9326 = vmatpush1.bf16.msra.mxu0 %v6624
        %9327 = vmatprep.subr.bf16.mxu0 %v6641
        %9328 = vmatpush1.bf16.msra.mxu0 %v6640
        %9329 = vmatprep.subr.bf16.mxu0 %v6657
        %9330 = vmatpush1.bf16.msra.mxu0 %v6656
        %9331 = vmatprep.subr.bf16.mxu0 %v6673
        %9332 = vmatpush1.bf16.msra.mxu0 %v6672
        %9333 = vmatprep.subr.bf16.mxu0 %v6689
        %9334 = vmatpush1.bf16.msra.mxu0 %v6688
        %9335 = vmatprep.mubr.bf16.mxu0 %v2079
        %9336 = vmatmul.mubr.bf16.gmra.mrb[0].mxu0 %v2078
        %v9337 = vpop.f32.mrb[0].mxu0
        %v9338 = vadd.f32 %v9295, %v9337
        %v9339 = vpop.f32.mrb[0].mxu0
        %v9340 = vadd.f32 %v9297, %v9339
        %v9341 = vpop.f32.mrb[0].mxu0
        %v9342 = vadd.f32 %v9299, %v9341
        %v9343 = vpop.f32.mrb[0].mxu0
        %v9344 = vadd.f32 %v9301, %v9343
        %9345 = vdwg.mxu0
        %9346 = vmatprep.subr.bf16.mxu0 %v6705
        %9347 = vmatpush1.bf16.msra.mxu0 %v6704
        %9348 = vmatprep.subr.bf16.mxu0 %v6721
        %9349 = vmatpush1.bf16.msra.mxu0 %v6720
        %9350 = vmatprep.subr.bf16.mxu0 %v6737
        %9351 = vmatpush1.bf16.msra.mxu0 %v6736
        %9352 = vmatprep.subr.bf16.mxu0 %v6753
        %9353 = vmatpush1.bf16.msra.mxu0 %v6752
        %9354 = vmatprep.subr.bf16.mxu0 %v6769
        %9355 = vmatpush1.bf16.msra.mxu0 %v6768
        %9356 = vmatprep.subr.bf16.mxu0 %v6785
        %9357 = vmatpush1.bf16.msra.mxu0 %v6784
        %9358 = vmatprep.subr.bf16.mxu0 %v6801
        %9359 = vmatpush1.bf16.msra.mxu0 %v6800
        %9360 = vmatprep.subr.bf16.mxu0 %v6817
        %9361 = vmatpush1.bf16.msra.mxu0 %v6816
        %9362 = vmatprep.subr.bf16.mxu0 %v6833
        %9363 = vmatpush1.bf16.msra.mxu0 %v6832
        %9364 = vmatprep.subr.bf16.mxu0 %v6849
        %9365 = vmatpush1.bf16.msra.mxu0 %v6848
        %9366 = vmatprep.subr.bf16.mxu0 %v6865
        %9367 = vmatpush1.bf16.msra.mxu0 %v6864
        %9368 = vmatprep.subr.bf16.mxu0 %v6881
        %9369 = vmatpush1.bf16.msra.mxu0 %v6880
        %9370 = vmatprep.subr.bf16.mxu0 %v6897
        %9371 = vmatpush1.bf16.msra.mxu0 %v6896
        %9372 = vmatprep.subr.bf16.mxu0 %v6913
        %9373 = vmatpush1.bf16.msra.mxu0 %v6912
        %9374 = vmatprep.subr.bf16.mxu0 %v6929
        %9375 = vmatpush1.bf16.msra.mxu0 %v6928
        %9376 = vmatprep.subr.bf16.mxu0 %v6945
        %9377 = vmatpush1.bf16.msra.mxu0 %v6944
        %9378 = vmatprep.mubr.bf16.mxu0 %v2081
        %9379 = vmatmul.mubr.bf16.gmra.mrb[0].mxu0 %v2080
        %v9380 = vpop.f32.mrb[0].mxu0
        %v9381 = vadd.f32 %v9338, %v9380
        %v9382 = vpop.f32.mrb[0].mxu0
        %v9383 = vadd.f32 %v9340, %v9382
        %v9384 = vpop.f32.mrb[0].mxu0
        %v9385 = vadd.f32 %v9342, %v9384
        %v9386 = vpop.f32.mrb[0].mxu0
        %v9387 = vadd.f32 %v9344, %v9386
        %9388 = vdwg.mxu0
        %9389 = vmatprep.subr.bf16.mxu0 %v6961
        %9390 = vmatpush1.bf16.msra.mxu0 %v6960
        %9391 = vmatprep.subr.bf16.mxu0 %v6977
        %9392 = vmatpush1.bf16.msra.mxu0 %v6976
        %9393 = vmatprep.subr.bf16.mxu0 %v6993
        %9394 = vmatpush1.bf16.msra.mxu0 %v6992
        %9395 = vmatprep.subr.bf16.mxu0 %v7009
        %9396 = vmatpush1.bf16.msra.mxu0 %v7008
        %9397 = vmatprep.subr.bf16.mxu0 %v7025
        %9398 = vmatpush1.bf16.msra.mxu0 %v7024
        %9399 = vmatprep.subr.bf16.mxu0 %v7041
        %9400 = vmatpush1.bf16.msra.mxu0 %v7040
        %9401 = vmatprep.subr.bf16.mxu0 %v7057
        %9402 = vmatpush1.bf16.msra.mxu0 %v7056
        %9403 = vmatprep.subr.bf16.mxu0 %v7073
        %9404 = vmatpush1.bf16.msra.mxu0 %v7072
        %9405 = vmatprep.subr.bf16.mxu0 %v7089
        %9406 = vmatpush1.bf16.msra.mxu0 %v7088
        %9407 = vmatprep.subr.bf16.mxu0 %v7105
        %9408 = vmatpush1.bf16.msra.mxu0 %v7104
        %9409 = vmatprep.subr.bf16.mxu0 %v7121
        %9410 = vmatpush1.bf16.msra.mxu0 %v7120
        %9411 = vmatprep.subr.bf16.mxu0 %v7137
        %9412 = vmatpush1.bf16.msra.mxu0 %v7136
        %9413 = vmatprep.subr.bf16.mxu0 %v7153
        %9414 = vmatpush1.bf16.msra.mxu0 %v7152
        %9415 = vmatprep.subr.bf16.mxu0 %v7169
        %9416 = vmatpush1.bf16.msra.mxu0 %v7168
        %9417 = vmatprep.subr.bf16.mxu0 %v7185
        %9418 = vmatpush1.bf16.msra.mxu0 %v7184
        %9419 = vmatprep.subr.bf16.mxu0 %v7201
        %9420 = vmatpush1.bf16.msra.mxu0 %v7200
        %9421 = vmatprep.mubr.bf16.mxu0 %v2083
        %9422 = vmatmul.mubr.bf16.gmra.mrb[0].mxu0 %v2082
        %v9423 = vpop.f32.mrb[0].mxu0
        %v9424 = vadd.f32 %v9381, %v9423
        %v9425 = vpop.f32.mrb[0].mxu0
        %v9426 = vadd.f32 %v9383, %v9425
        %v9427 = vpop.f32.mrb[0].mxu0
        %v9428 = vadd.f32 %v9385, %v9427
        %v9429 = vpop.f32.mrb[0].mxu0
        %v9430 = vadd.f32 %v9387, %v9429
        %9431 = vdwg.mxu0
        %9432 = vmatprep.subr.bf16.mxu0 %v6195
        %9433 = vmatpush1.bf16.msra.mxu0 %v6194
        %9434 = vmatprep.subr.bf16.mxu0 %v6211
        %9435 = vmatpush1.bf16.msra.mxu0 %v6210
        %9436 = vmatprep.subr.bf16.mxu0 %v6227
        %9437 = vmatpush1.bf16.msra.mxu0 %v6226
        %9438 = vmatprep.subr.bf16.mxu0 %v6243
        %9439 = vmatpush1.bf16.msra.mxu0 %v6242
        %9440 = vmatprep.subr.bf16.mxu0 %v6259
        %9441 = vmatpush1.bf16.msra.mxu0 %v6258
        %9442 = vmatprep.subr.bf16.mxu0 %v6275
        %9443 = vmatpush1.bf16.msra.mxu0 %v6274
        %9444 = vmatprep.subr.bf16.mxu0 %v6291
        %9445 = vmatpush1.bf16.msra.mxu0 %v6290
        %9446 = vmatprep.subr.bf16.mxu0 %v6307
        %9447 = vmatpush1.bf16.msra.mxu0 %v6306
        %9448 = vmatprep.subr.bf16.mxu0 %v6323
        %9449 = vmatpush1.bf16.msra.mxu0 %v6322
        %9450 = vmatprep.subr.bf16.mxu0 %v6339
        %9451 = vmatpush1.bf16.msra.mxu0 %v6338
        %9452 = vmatprep.subr.bf16.mxu0 %v6355
        %9453 = vmatpush1.bf16.msra.mxu0 %v6354
        %9454 = vmatprep.subr.bf16.mxu0 %v6371
        %9455 = vmatpush1.bf16.msra.mxu0 %v6370
        %9456 = vmatprep.subr.bf16.mxu0 %v6387
        %9457 = vmatpush1.bf16.msra.mxu0 %v6386
        %9458 = vmatprep.subr.bf16.mxu0 %v6403
        %9459 = vmatpush1.bf16.msra.mxu0 %v6402
        %9460 = vmatprep.subr.bf16.mxu0 %v6419
        %9461 = vmatpush1.bf16.msra.mxu0 %v6418
        %9462 = vmatprep.subr.bf16.mxu0 %v6435
        %9463 = vmatpush1.bf16.msra.mxu0 %v6434
        %9464 = vmatprep.mubr.bf16.mxu0 %v2077
        %9465 = vmatmul.mubr.bf16.gmra.mrb[0].mxu0 %v2076
        %v9466 = vpop.f32.mrb[0].mxu0
        %v9467 = vadd.f32 0.0, %v9466
        %v9468 = vpop.f32.mrb[0].mxu0
        %v9469 = vadd.f32 0.0, %v9468
        %v9470 = vpop.f32.mrb[0].mxu0
        %v9471 = vadd.f32 0.0, %v9470
        %v9472 = vpop.f32.mrb[0].mxu0
        %v9473 = vadd.f32 0.0, %v9472
        %9474 = vdwg.mxu0
        %9475 = vmatprep.subr.bf16.mxu0 %v6451
        %9476 = vmatpush1.bf16.msra.mxu0 %v6450
        %9477 = vmatprep.subr.bf16.mxu0 %v6467
        %9478 = vmatpush1.bf16.msra.mxu0 %v6466
        %9479 = vmatprep.subr.bf16.mxu0 %v6483
        %9480 = vmatpush1.bf16.msra.mxu0 %v6482
        %9481 = vmatprep.subr.bf16.mxu0 %v6499
        %9482 = vmatpush1.bf16.msra.mxu0 %v6498
        %9483 = vmatprep.subr.bf16.mxu0 %v6515
        %9484 = vmatpush1.bf16.msra.mxu0 %v6514
        %9485 = vmatprep.subr.bf16.mxu0 %v6531
        %9486 = vmatpush1.bf16.msra.mxu0 %v6530
        %9487 = vmatprep.subr.bf16.mxu0 %v6547
        %9488 = vmatpush1.bf16.msra.mxu0 %v6546
        %9489 = vmatprep.subr.bf16.mxu0 %v6563
        %9490 = vmatpush1.bf16.msra.mxu0 %v6562
        %9491 = vmatprep.subr.bf16.mxu0 %v6579
        %9492 = vmatpush1.bf16.msra.mxu0 %v6578
        %9493 = vmatprep.subr.bf16.mxu0 %v6595
        %9494 = vmatpush1.bf16.msra.mxu0 %v6594
        %9495 = vmatprep.subr.bf16.mxu0 %v6611
        %9496 = vmatpush1.bf16.msra.mxu0 %v6610
        %9497 = vmatprep.subr.bf16.mxu0 %v6627
        %9498 = vmatpush1.bf16.msra.mxu0 %v6626
        %9499 = vmatprep.subr.bf16.mxu0 %v6643
        %9500 = vmatpush1.bf16.msra.mxu0 %v6642
        %9501 = vmatprep.subr.bf16.mxu0 %v6659
        %9502 = vmatpush1.bf16.msra.mxu0 %v6658
        %9503 = vmatprep.subr.bf16.mxu0 %v6675
        %9504 = vmatpush1.bf16.msra.mxu0 %v6674
        %9505 = vmatprep.subr.bf16.mxu0 %v6691
        %9506 = vmatpush1.bf16.msra.mxu0 %v6690
        %9507 = vmatprep.mubr.bf16.mxu0 %v2079
        %9508 = vmatmul.mubr.bf16.gmra.mrb[0].mxu0 %v2078
        %v9509 = vpop.f32.mrb[0].mxu0
        %v9510 = vadd.f32 %v9467, %v9509
        %v9511 = vpop.f32.mrb[0].mxu0
        %v9512 = vadd.f32 %v9469, %v9511
        %v9513 = vpop.f32.mrb[0].mxu0
        %v9514 = vadd.f32 %v9471, %v9513
        %v9515 = vpop.f32.mrb[0].mxu0
        %v9516 = vadd.f32 %v9473, %v9515
        %9517 = vdwg.mxu0
        %9518 = vmatprep.subr.bf16.mxu0 %v6707
        %9519 = vmatpush1.bf16.msra.mxu0 %v6706
        %9520 = vmatprep.subr.bf16.mxu0 %v6723
        %9521 = vmatpush1.bf16.msra.mxu0 %v6722
        %9522 = vmatprep.subr.bf16.mxu0 %v6739
        %9523 = vmatpush1.bf16.msra.mxu0 %v6738
        %9524 = vmatprep.subr.bf16.mxu0 %v6755
        %9525 = vmatpush1.bf16.msra.mxu0 %v6754
        %9526 = vmatprep.subr.bf16.mxu0 %v6771
        %9527 = vmatpush1.bf16.msra.mxu0 %v6770
        %9528 = vmatprep.subr.bf16.mxu0 %v6787
        %9529 = vmatpush1.bf16.msra.mxu0 %v6786
        %9530 = vmatprep.subr.bf16.mxu0 %v6803
        %9531 = vmatpush1.bf16.msra.mxu0 %v6802
        %9532 = vmatprep.subr.bf16.mxu0 %v6819
        %9533 = vmatpush1.bf16.msra.mxu0 %v6818
        %9534 = vmatprep.subr.bf16.mxu0 %v6835
        %9535 = vmatpush1.bf16.msra.mxu0 %v6834
        %9536 = vmatprep.subr.bf16.mxu0 %v6851
        %9537 = vmatpush1.bf16.msra.mxu0 %v6850
        %9538 = vmatprep.subr.bf16.mxu0 %v6867
        %9539 = vmatpush1.bf16.msra.mxu0 %v6866
        %9540 = vmatprep.subr.bf16.mxu0 %v6883
        %9541 = vmatpush1.bf16.msra.mxu0 %v6882
        %9542 = vmatprep.subr.bf16.mxu0 %v6899
        %9543 = vmatpush1.bf16.msra.mxu0 %v6898
        %9544 = vmatprep.subr.bf16.mxu0 %v6915
        %9545 = vmatpush1.bf16.msra.mxu0 %v6914
        %9546 = vmatprep.subr.bf16.mxu0 %v6931
        %9547 = vmatpush1.bf16.msra.mxu0 %v6930
        %9548 = vmatprep.subr.bf16.mxu0 %v6947
        %9549 = vmatpush1.bf16.msra.mxu0 %v6946
        %9550 = vmatprep.mubr.bf16.mxu0 %v2081
        %9551 = vmatmul.mubr.bf16.gmra.mrb[0].mxu0 %v2080
        %v9552 = vpop.f32.mrb[0].mxu0
        %v9553 = vadd.f32 %v9510, %v9552
        %v9554 = vpop.f32.mrb[0].mxu0
        %v9555 = vadd.f32 %v9512, %v9554
        %v9556 = vpop.f32.mrb[0].mxu0
        %v9557 = vadd.f32 %v9514, %v9556
        %v9558 = vpop.f32.mrb[0].mxu0
        %v9559 = vadd.f32 %v9516, %v9558
        %9560 = vdwg.mxu0
        %9561 = vmatprep.subr.bf16.mxu0 %v6963
        %9562 = vmatpush1.bf16.msra.mxu0 %v6962
        %9563 = vmatprep.subr.bf16.mxu0 %v6979
        %9564 = vmatpush1.bf16.msra.mxu0 %v6978
        %9565 = vmatprep.subr.bf16.mxu0 %v6995
        %9566 = vmatpush1.bf16.msra.mxu0 %v6994
        %9567 = vmatprep.subr.bf16.mxu0 %v7011
        %9568 = vmatpush1.bf16.msra.mxu0 %v7010
        %9569 = vmatprep.subr.bf16.mxu0 %v7027
        %9570 = vmatpush1.bf16.msra.mxu0 %v7026
        %9571 = vmatprep.subr.bf16.mxu0 %v7043
        %9572 = vmatpush1.bf16.msra.mxu0 %v7042
        %9573 = vmatprep.subr.bf16.mxu0 %v7059
        %9574 = vmatpush1.bf16.msra.mxu0 %v7058
        %9575 = vmatprep.subr.bf16.mxu0 %v7075
        %9576 = vmatpush1.bf16.msra.mxu0 %v7074
        %9577 = vmatprep.subr.bf16.mxu0 %v7091
        %9578 = vmatpush1.bf16.msra.mxu0 %v7090
        %9579 = vmatprep.subr.bf16.mxu0 %v7107
        %9580 = vmatpush1.bf16.msra.mxu0 %v7106
        %9581 = vmatprep.subr.bf16.mxu0 %v7123
        %9582 = vmatpush1.bf16.msra.mxu0 %v7122
        %9583 = vmatprep.subr.bf16.mxu0 %v7139
        %9584 = vmatpush1.bf16.msra.mxu0 %v7138
        %9585 = vmatprep.subr.bf16.mxu0 %v7155
        %9586 = vmatpush1.bf16.msra.mxu0 %v7154
        %9587 = vmatprep.subr.bf16.mxu0 %v7171
        %9588 = vmatpush1.bf16.msra.mxu0 %v7170
        %9589 = vmatprep.subr.bf16.mxu0 %v7187
        %9590 = vmatpush1.bf16.msra.mxu0 %v7186
        %9591 = vmatprep.subr.bf16.mxu0 %v7203
        %9592 = vmatpush1.bf16.msra.mxu0 %v7202
        %9593 = vmatprep.mubr.bf16.mxu0 %v2083
        %9594 = vmatmul.mubr.bf16.gmra.mrb[0].mxu0 %v2082
        %v9595 = vpop.f32.mrb[0].mxu0
        %v9596 = vadd.f32 %v9553, %v9595
        %v9597 = vpop.f32.mrb[0].mxu0
        %v9598 = vadd.f32 %v9555, %v9597
        %v9599 = vpop.f32.mrb[0].mxu0
        %v9600 = vadd.f32 %v9557, %v9599
        %v9601 = vpop.f32.mrb[0].mxu0
        %v9602 = vadd.f32 %v9559, %v9601
        %9603 = vdwg.mxu0
        // Predicated region
        $region77: #{vggnet2c_forward.1} parent=47 // pred_check
          %p9604 = pneg %p488
        $region78: #{vggnet2c_forward.1} parent=47 // pred_check_branch
          %9606 = sbr.rel (%p9604) target = $region80
        $region79: #{vggnet2c_forward.1} parent=47 // pred_region
          %9607 = vst [vmem:[#allocation3] sm:$0xff] %v8392
          %9608 = vst [vmem:[#allocation3 + $0x8] sm:$0xff] %v8394
          %9609 = vst [vmem:[#allocation3 + $0x10] sm:$0xff] %v8564
          %9610 = vst [vmem:[#allocation3 + $0x18] sm:$0xff] %v8566
          %9611 = vst [vmem:[#allocation3 + $0x20] sm:$0xff] %v8736
          %9612 = vst [vmem:[#allocation3 + $0x28] sm:$0xff] %v8738
          %9613 = vst [vmem:[#allocation3 + $0x30] sm:$0xff] %v8908
          %9614 = vst [vmem:[#allocation3 + $0x38] sm:$0xff] %v8910
          %9615 = vst [vmem:[#allocation3 + $0x40] sm:$0xff] %v9080
          %9616 = vst [vmem:[#allocation3 + $0x48] sm:$0xff] %v9082
          %9617 = vst [vmem:[#allocation3 + $0x50] sm:$0xff] %v9252
          %9618 = vst [vmem:[#allocation3 + $0x58] sm:$0xff] %v9254
          %9619 = vst [vmem:[#allocation3 + $0x60] sm:$0xff] %v9424
          %9620 = vst [vmem:[#allocation3 + $0x68] sm:$0xff] %v9426
          %9621 = vst [vmem:[#allocation3 + $0x70] sm:$0xff] %v9596
          %9622 = vst [vmem:[#allocation3 + $0x78] sm:$0xff] %v9598
          %9623 = vst [vmem:[#allocation3 + $0x80] sm:$0xff] %v8396
          %9624 = vst [vmem:[#allocation3 + $0x88] sm:$0xff] %v8398
          %9625 = vst [vmem:[#allocation3 + $0x90] sm:$0xff] %v8568
          %9626 = vst [vmem:[#allocation3 + $0x98] sm:$0xff] %v8570
          %9627 = vst [vmem:[#allocation3 + $0xa0] sm:$0xff] %v8740
          %9628 = vst [vmem:[#allocation3 + $0xa8] sm:$0xff] %v8742
          %9629 = vst [vmem:[#allocation3 + $0xb0] sm:$0xff] %v8912
          %9630 = vst [vmem:[#allocation3 + $0xb8] sm:$0xff] %v8914
          %9631 = vst [vmem:[#allocation3 + $0xc0] sm:$0xff] %v9084
          %9632 = vst [vmem:[#allocation3 + $0xc8] sm:$0xff] %v9086
          %9633 = vst [vmem:[#allocation3 + $0xd0] sm:$0xff] %v9256
          %9634 = vst [vmem:[#allocation3 + $0xd8] sm:$0xff] %v9258
          %9635 = vst [vmem:[#allocation3 + $0xe0] sm:$0xff] %v9428
          %9636 = vst [vmem:[#allocation3 + $0xe8] sm:$0xff] %v9430
          %9637 = vst [vmem:[#allocation3 + $0xf0] sm:$0xff] %v9600
          %9638 = vst [vmem:[#allocation3 + $0xf8] sm:$0xff] %v9602
        $region80: #{vggnet2c_forward.1} parent=47 // pred_fallthru
          _
        %p9639 = scmp.ne.s32.totalorder %s33, 0
        // Predicated region
        $region81: #{vggnet2c_forward.1} parent=47 // pred_check
          %p9640 = pneg %p9639
        $region82: #{vggnet2c_forward.1} parent=47 // pred_check_branch
          %9642 = sbr.rel (%p9640) target = $region84
        $region83: #{vggnet2c_forward.1} parent=47 // pred_region
          %v9643 = vld [vmem:[#allocation3] sm:$0xff]
          %v9644 = vld [vmem:[#allocation3 + $0x8] sm:$0xff]
          %v9645 = vld [vmem:[#allocation3 + $0x10] sm:$0xff]
          %v9646 = vld [vmem:[#allocation3 + $0x18] sm:$0xff]
          %v9647 = vld [vmem:[#allocation3 + $0x20] sm:$0xff]
          %v9648 = vld [vmem:[#allocation3 + $0x28] sm:$0xff]
          %v9649 = vld [vmem:[#allocation3 + $0x30] sm:$0xff]
          %v9650 = vld [vmem:[#allocation3 + $0x38] sm:$0xff]
          %v9651 = vld [vmem:[#allocation3 + $0x40] sm:$0xff]
          %v9652 = vld [vmem:[#allocation3 + $0x48] sm:$0xff]
          %v9653 = vld [vmem:[#allocation3 + $0x50] sm:$0xff]
          %v9654 = vld [vmem:[#allocation3 + $0x58] sm:$0xff]
          %v9655 = vld [vmem:[#allocation3 + $0x60] sm:$0xff]
          %v9656 = vld [vmem:[#allocation3 + $0x68] sm:$0xff]
          %v9657 = vld [vmem:[#allocation3 + $0x70] sm:$0xff]
          %v9658 = vld [vmem:[#allocation3 + $0x78] sm:$0xff]
          %v9659 = vld [vmem:[#allocation3 + $0x80] sm:$0xff]
          %v9660 = vld [vmem:[#allocation3 + $0x88] sm:$0xff]
          %v9661 = vld [vmem:[#allocation3 + $0x90] sm:$0xff]
          %v9662 = vld [vmem:[#allocation3 + $0x98] sm:$0xff]
          %v9663 = vld [vmem:[#allocation3 + $0xa0] sm:$0xff]
          %v9664 = vld [vmem:[#allocation3 + $0xa8] sm:$0xff]
          %v9665 = vld [vmem:[#allocation3 + $0xb0] sm:$0xff]
          %v9666 = vld [vmem:[#allocation3 + $0xb8] sm:$0xff]
          %v9667 = vld [vmem:[#allocation3 + $0xc0] sm:$0xff]
          %v9668 = vld [vmem:[#allocation3 + $0xc8] sm:$0xff]
          %v9669 = vld [vmem:[#allocation3 + $0xd0] sm:$0xff]
          %v9670 = vld [vmem:[#allocation3 + $0xd8] sm:$0xff]
          %v9671 = vld [vmem:[#allocation3 + $0xe0] sm:$0xff]
          %v9672 = vld [vmem:[#allocation3 + $0xe8] sm:$0xff]
          %v9673 = vld [vmem:[#allocation3 + $0xf0] sm:$0xff]
          %v9674 = vld [vmem:[#allocation3 + $0xf8] sm:$0xff]
          %v9675 = vadd.f32 %v9643, %v8392
          %v9676 = vadd.f32 %v9644, %v8394
          %v9677 = vadd.f32 %v9645, %v8564
          %v9678 = vadd.f32 %v9646, %v8566
          %v9679 = vadd.f32 %v9647, %v8736
          %v9680 = vadd.f32 %v9648, %v8738
          %v9681 = vadd.f32 %v9649, %v8908
          %v9682 = vadd.f32 %v9650, %v8910
          %v9683 = vadd.f32 %v9651, %v9080
          %v9684 = vadd.f32 %v9652, %v9082
          %v9685 = vadd.f32 %v9653, %v9252
          %v9686 = vadd.f32 %v9654, %v9254
          %v9687 = vadd.f32 %v9655, %v9424
          %v9688 = vadd.f32 %v9656, %v9426
          %v9689 = vadd.f32 %v9657, %v9596
          %v9690 = vadd.f32 %v9658, %v9598
          %v9691 = vadd.f32 %v9659, %v8396
          %v9692 = vadd.f32 %v9660, %v8398
          %v9693 = vadd.f32 %v9661, %v8568
          %v9694 = vadd.f32 %v9662, %v8570
          %v9695 = vadd.f32 %v9663, %v8740
          %v9696 = vadd.f32 %v9664, %v8742
          %v9697 = vadd.f32 %v9665, %v8912
          %v9698 = vadd.f32 %v9666, %v8914
          %v9699 = vadd.f32 %v9667, %v9084
          %v9700 = vadd.f32 %v9668, %v9086
          %v9701 = vadd.f32 %v9669, %v9256
          %v9702 = vadd.f32 %v9670, %v9258
          %v9703 = vadd.f32 %v9671, %v9428
          %v9704 = vadd.f32 %v9672, %v9430
          %v9705 = vadd.f32 %v9673, %v9600
          %v9706 = vadd.f32 %v9674, %v9602
          %9707 = vst [vmem:[#allocation3] sm:$0xff] %v9675
          %9708 = vst [vmem:[#allocation3 + $0x8] sm:$0xff] %v9676
          %9709 = vst [vmem:[#allocation3 + $0x10] sm:$0xff] %v9677
          %9710 = vst [vmem:[#allocation3 + $0x18] sm:$0xff] %v9678
          %9711 = vst [vmem:[#allocation3 + $0x20] sm:$0xff] %v9679
          %9712 = vst [vmem:[#allocation3 + $0x28] sm:$0xff] %v9680
          %9713 = vst [vmem:[#allocation3 + $0x30] sm:$0xff] %v9681
          %9714 = vst [vmem:[#allocation3 + $0x38] sm:$0xff] %v9682
          %9715 = vst [vmem:[#allocation3 + $0x40] sm:$0xff] %v9683
          %9716 = vst [vmem:[#allocation3 + $0x48] sm:$0xff] %v9684
          %9717 = vst [vmem:[#allocation3 + $0x50] sm:$0xff] %v9685
          %9718 = vst [vmem:[#allocation3 + $0x58] sm:$0xff] %v9686
          %9719 = vst [vmem:[#allocation3 + $0x60] sm:$0xff] %v9687
          %9720 = vst [vmem:[#allocation3 + $0x68] sm:$0xff] %v9688
          %9721 = vst [vmem:[#allocation3 + $0x70] sm:$0xff] %v9689
          %9722 = vst [vmem:[#allocation3 + $0x78] sm:$0xff] %v9690
          %9723 = vst [vmem:[#allocation3 + $0x80] sm:$0xff] %v9691
          %9724 = vst [vmem:[#allocation3 + $0x88] sm:$0xff] %v9692
          %9725 = vst [vmem:[#allocation3 + $0x90] sm:$0xff] %v9693
          %9726 = vst [vmem:[#allocation3 + $0x98] sm:$0xff] %v9694
          %9727 = vst [vmem:[#allocation3 + $0xa0] sm:$0xff] %v9695
          %9728 = vst [vmem:[#allocation3 + $0xa8] sm:$0xff] %v9696
          %9729 = vst [vmem:[#allocation3 + $0xb0] sm:$0xff] %v9697
          %9730 = vst [vmem:[#allocation3 + $0xb8] sm:$0xff] %v9698
          %9731 = vst [vmem:[#allocation3 + $0xc0] sm:$0xff] %v9699
          %9732 = vst [vmem:[#allocation3 + $0xc8] sm:$0xff] %v9700
          %9733 = vst [vmem:[#allocation3 + $0xd0] sm:$0xff] %v9701
          %9734 = vst [vmem:[#allocation3 + $0xd8] sm:$0xff] %v9702
          %9735 = vst [vmem:[#allocation3 + $0xe0] sm:$0xff] %v9703
          %9736 = vst [vmem:[#allocation3 + $0xe8] sm:$0xff] %v9704
          %9737 = vst [vmem:[#allocation3 + $0xf0] sm:$0xff] %v9705
          %9738 = vst [vmem:[#allocation3 + $0xf8] sm:$0xff] %v9706
        $region84: #{vggnet2c_forward.1} parent=47 // pred_fallthru
          _
        %p9739 = scmp.eq.s32.totalorder %s33, 3
        // Predicated region
        $region85: #{vggnet2c_forward.1} parent=47 // pred_check
          %p9740 = pneg %p9739
        $region86: #{vggnet2c_forward.1} parent=47 // pred_check_branch
          %9742 = sbr.rel (%p9740) target = $region88
        $region87: #{vggnet2c_forward.1} parent=47 // pred_region
          %v9743 = vld [vmem:[#allocation3] sm:$0xff]
          %v9744 = vld [vmem:[#allocation3 + $0x8] sm:$0xff]
          %v9745 = vld [vmem:[#allocation3 + $0x10] sm:$0xff]
          %v9746 = vld [vmem:[#allocation3 + $0x18] sm:$0xff]
          %v9747 = vld [vmem:[#allocation3 + $0x20] sm:$0xff]
          %v9748 = vld [vmem:[#allocation3 + $0x28] sm:$0xff]
          %v9749 = vld [vmem:[#allocation3 + $0x30] sm:$0xff]
          %v9750 = vld [vmem:[#allocation3 + $0x38] sm:$0xff]
          %v9751 = vld [vmem:[#allocation3 + $0x40] sm:$0xff]
          %v9752 = vld [vmem:[#allocation3 + $0x48] sm:$0xff]
          %v9753 = vld [vmem:[#allocation3 + $0x50] sm:$0xff]
          %v9754 = vld [vmem:[#allocation3 + $0x58] sm:$0xff]
          %v9755 = vld [vmem:[#allocation3 + $0x60] sm:$0xff]
          %v9756 = vld [vmem:[#allocation3 + $0x68] sm:$0xff]
          %v9757 = vld [vmem:[#allocation3 + $0x70] sm:$0xff]
          %v9758 = vld [vmem:[#allocation3 + $0x78] sm:$0xff]
          %v9759 = vld [vmem:[#allocation3 + $0x80] sm:$0xff]
          %v9760 = vld [vmem:[#allocation3 + $0x88] sm:$0xff]
          %v9761 = vld [vmem:[#allocation3 + $0x90] sm:$0xff]
          %v9762 = vld [vmem:[#allocation3 + $0x98] sm:$0xff]
          %v9763 = vld [vmem:[#allocation3 + $0xa0] sm:$0xff]
          %v9764 = vld [vmem:[#allocation3 + $0xa8] sm:$0xff]
          %v9765 = vld [vmem:[#allocation3 + $0xb0] sm:$0xff]
          %v9766 = vld [vmem:[#allocation3 + $0xb8] sm:$0xff]
          %v9767 = vld [vmem:[#allocation3 + $0xc0] sm:$0xff]
          %v9768 = vld [vmem:[#allocation3 + $0xc8] sm:$0xff]
          %v9769 = vld [vmem:[#allocation3 + $0xd0] sm:$0xff]
          %v9770 = vld [vmem:[#allocation3 + $0xd8] sm:$0xff]
          %v9771 = vld [vmem:[#allocation3 + $0xe0] sm:$0xff]
          %v9772 = vld [vmem:[#allocation3 + $0xe8] sm:$0xff]
          %v9773 = vld [vmem:[#allocation3 + $0xf0] sm:$0xff]
          %v9774 = vld [vmem:[#allocation3 + $0xf8] sm:$0xff]
          %v9775 = vld [vmem:[%s416] sm:$0xff]
          %v9776 = vld [vmem:[%s416 + $0x8] sm:$0xff]
          %v9779 = vlaneseq
          %v9780 = vshrl.u32 %v9779, 7
          %v9781 = vsub.s32 0, %v9780
          %v9782 = vrot.slane %v9775, %v9781
          %v9783 = vlaneseq
          %v9784 = vshrl.u32 %v9783, 7
          %v9785 = vsub.s32 1, %v9784
          %v9786 = vrot.slane %v9775, %v9785
          %v9787 = vlaneseq
          %v9788 = vshrl.u32 %v9787, 7
          %v9789 = vsub.s32 2, %v9788
          %v9790 = vrot.slane %v9775, %v9789
          %v9791 = vlaneseq
          %v9792 = vshrl.u32 %v9791, 7
          %v9793 = vsub.s32 3, %v9792
          %v9794 = vrot.slane %v9775, %v9793
          %v9795 = vlaneseq
          %v9796 = vshrl.u32 %v9795, 7
          %v9797 = vsub.s32 4, %v9796
          %v9798 = vrot.slane %v9775, %v9797
          %v9799 = vlaneseq
          %v9800 = vshrl.u32 %v9799, 7
          %v9801 = vsub.s32 5, %v9800
          %v9802 = vrot.slane %v9775, %v9801
          %v9803 = vlaneseq
          %v9804 = vshrl.u32 %v9803, 7
          %v9805 = vsub.s32 6, %v9804
          %v9806 = vrot.slane %v9775, %v9805
          %v9807 = vlaneseq
          %v9808 = vshrl.u32 %v9807, 7
          %v9809 = vsub.s32 7, %v9808
          %v9810 = vrot.slane %v9775, %v9809
          %v9811 = vlaneseq
          %v9812 = vshrl.u32 %v9811, 7
          %v9813 = vsub.s32 0, %v9812
          %v9814 = vrot.slane %v9776, %v9813
          %v9815 = vlaneseq
          %v9816 = vshrl.u32 %v9815, 7
          %v9817 = vsub.s32 1, %v9816
          %v9818 = vrot.slane %v9776, %v9817
          %v9819 = vlaneseq
          %v9820 = vshrl.u32 %v9819, 7
          %v9821 = vsub.s32 2, %v9820
          %v9822 = vrot.slane %v9776, %v9821
          %v9823 = vlaneseq
          %v9824 = vshrl.u32 %v9823, 7
          %v9825 = vsub.s32 3, %v9824
          %v9826 = vrot.slane %v9776, %v9825
          %v9827 = vlaneseq
          %v9828 = vshrl.u32 %v9827, 7
          %v9829 = vsub.s32 4, %v9828
          %v9830 = vrot.slane %v9776, %v9829
          %v9831 = vlaneseq
          %v9832 = vshrl.u32 %v9831, 7
          %v9833 = vsub.s32 5, %v9832
          %v9834 = vrot.slane %v9776, %v9833
          %v9835 = vlaneseq
          %v9836 = vshrl.u32 %v9835, 7
          %v9837 = vsub.s32 6, %v9836
          %v9838 = vrot.slane %v9776, %v9837
          %v9839 = vlaneseq
          %v9840 = vshrl.u32 %v9839, 7
          %v9841 = vsub.s32 7, %v9840
          %v9842 = vrot.slane %v9776, %v9841
          %v9859 = vadd.f32 %v9743, %v9782
          %v9860 = vadd.f32 %v9744, %v9786
          %v9861 = vadd.f32 %v9745, %v9790
          %v9862 = vadd.f32 %v9746, %v9794
          %v9863 = vadd.f32 %v9747, %v9798
          %v9864 = vadd.f32 %v9748, %v9802
          %v9865 = vadd.f32 %v9749, %v9806
          %v9866 = vadd.f32 %v9750, %v9810
          %v9867 = vadd.f32 %v9751, %v9814
          %v9868 = vadd.f32 %v9752, %v9818
          %v9869 = vadd.f32 %v9753, %v9822
          %v9870 = vadd.f32 %v9754, %v9826
          %v9871 = vadd.f32 %v9755, %v9830
          %v9872 = vadd.f32 %v9756, %v9834
          %v9873 = vadd.f32 %v9757, %v9838
          %v9874 = vadd.f32 %v9758, %v9842
          %v9875 = vadd.f32 %v9759, %v9782
          %v9876 = vadd.f32 %v9760, %v9786
          %v9877 = vadd.f32 %v9761, %v9790
          %v9878 = vadd.f32 %v9762, %v9794
          %v9879 = vadd.f32 %v9763, %v9798
          %v9880 = vadd.f32 %v9764, %v9802
          %v9881 = vadd.f32 %v9765, %v9806
          %v9882 = vadd.f32 %v9766, %v9810
          %v9883 = vadd.f32 %v9767, %v9814
          %v9884 = vadd.f32 %v9768, %v9818
          %v9885 = vadd.f32 %v9769, %v9822
          %v9886 = vadd.f32 %v9770, %v9826
          %v9887 = vadd.f32 %v9771, %v9830
          %v9888 = vadd.f32 %v9772, %v9834
          %v9889 = vadd.f32 %v9773, %v9838
          %v9890 = vadd.f32 %v9774, %v9842
          %v9891 = vmax.f32 %v9859, 0.0
          %v9892 = vmax.f32 %v9860, 0.0
          %v9893 = vmax.f32 %v9861, 0.0
          %v9894 = vmax.f32 %v9862, 0.0
          %v9895 = vmax.f32 %v9863, 0.0
          %v9896 = vmax.f32 %v9864, 0.0
          %v9897 = vmax.f32 %v9865, 0.0
          %v9898 = vmax.f32 %v9866, 0.0
          %v9899 = vmax.f32 %v9867, 0.0
          %v9900 = vmax.f32 %v9868, 0.0
          %v9901 = vmax.f32 %v9869, 0.0
          %v9902 = vmax.f32 %v9870, 0.0
          %v9903 = vmax.f32 %v9871, 0.0
          %v9904 = vmax.f32 %v9872, 0.0
          %v9905 = vmax.f32 %v9873, 0.0
          %v9906 = vmax.f32 %v9874, 0.0
          %v9907 = vmax.f32 %v9875, 0.0
          %v9908 = vmax.f32 %v9876, 0.0
          %v9909 = vmax.f32 %v9877, 0.0
          %v9910 = vmax.f32 %v9878, 0.0
          %v9911 = vmax.f32 %v9879, 0.0
          %v9912 = vmax.f32 %v9880, 0.0
          %v9913 = vmax.f32 %v9881, 0.0
          %v9914 = vmax.f32 %v9882, 0.0
          %v9915 = vmax.f32 %v9883, 0.0
          %v9916 = vmax.f32 %v9884, 0.0
          %v9917 = vmax.f32 %v9885, 0.0
          %v9918 = vmax.f32 %v9886, 0.0
          %v9919 = vmax.f32 %v9887, 0.0
          %v9920 = vmax.f32 %v9888, 0.0
          %v9921 = vmax.f32 %v9889, 0.0
          %v9922 = vmax.f32 %v9890, 0.0
          %v9923 = vpack.c.bf16 %v9907, %v9891
          %v9924 = vpack.c.bf16 %v9908, %v9892
          %v9925 = vpack.c.bf16 %v9909, %v9893
          %v9926 = vpack.c.bf16 %v9910, %v9894
          %v9927 = vpack.c.bf16 %v9911, %v9895
          %v9928 = vpack.c.bf16 %v9912, %v9896
          %v9929 = vpack.c.bf16 %v9913, %v9897
          %v9930 = vpack.c.bf16 %v9914, %v9898
          %v9931 = vpack.c.bf16 %v9915, %v9899
          %v9932 = vpack.c.bf16 %v9916, %v9900
          %v9933 = vpack.c.bf16 %v9917, %v9901
          %v9934 = vpack.c.bf16 %v9918, %v9902
          %v9935 = vpack.c.bf16 %v9919, %v9903
          %v9936 = vpack.c.bf16 %v9920, %v9904
          %v9937 = vpack.c.bf16 %v9921, %v9905
          %v9938 = vpack.c.bf16 %v9922, %v9906
          %v9939 = vld [vmem:[%s425] sm:$0xf]
          %v9940 = vld [vmem:[%s425 + $0x4] sm:$0xf]
          %v9941 = vld [vmem:[%s425 + $0x8] sm:$0xf]
          %v9942 = vld [vmem:[%s425 + $0xc] sm:$0xf]
          %v9943 = vld [vmem:[%s425 + $0x10] sm:$0xf]
          %v9944 = vld [vmem:[%s425 + $0x14] sm:$0xf]
          %v9945 = vld [vmem:[%s425 + $0x18] sm:$0xf]
          %v9946 = vld [vmem:[%s425 + $0x1c] sm:$0xf]
          %v9947 = vld [vmem:[%s425 + $0x20] sm:$0xf]
          %v9948 = vld [vmem:[%s425 + $0x24] sm:$0xf]
          %v9949 = vld [vmem:[%s425 + $0x28] sm:$0xf]
          %v9950 = vld [vmem:[%s425 + $0x2c] sm:$0xf]
          %v9951 = vld [vmem:[%s425 + $0x30] sm:$0xf]
          %v9952 = vld [vmem:[%s425 + $0x34] sm:$0xf]
          %v9953 = vld [vmem:[%s425 + $0x38] sm:$0xf]
          %v9954 = vld [vmem:[%s425 + $0x3c] sm:$0xf]
          %v9955 = vld [vmem:[%s425 + $0x40] sm:$0xf]
          %v9956 = vld [vmem:[%s425 + $0x44] sm:$0xf]
          %v9957 = vld [vmem:[%s425 + $0x48] sm:$0xf]
          %v9958 = vld [vmem:[%s425 + $0x4c] sm:$0xf]
          %v9959 = vld [vmem:[%s425 + $0x50] sm:$0xf]
          %v9960 = vld [vmem:[%s425 + $0x54] sm:$0xf]
          %v9961 = vld [vmem:[%s425 + $0x58] sm:$0xf]
          %v9962 = vld [vmem:[%s425 + $0x5c] sm:$0xf]
          %v9963 = vld [vmem:[%s425 + $0x60] sm:$0xf]
          %v9964 = vld [vmem:[%s425 + $0x64] sm:$0xf]
          %v9965 = vld [vmem:[%s425 + $0x68] sm:$0xf]
          %v9966 = vld [vmem:[%s425 + $0x6c] sm:$0xf]
          %v9967 = vld [vmem:[%s425 + $0x70] sm:$0xf]
          %v9968 = vld [vmem:[%s425 + $0x74] sm:$0xf]
          %v9969 = vld [vmem:[%s425 + $0x78] sm:$0xf]
          %v9970 = vld [vmem:[%s425 + $0x7c] sm:$0xf]
          %v9971 = vld [vmem:[%s425 + $0x80] sm:$0xf]
          %v9972 = vld [vmem:[%s425 + $0x84] sm:$0xf]
          %v9973 = vld [vmem:[%s425 + $0x88] sm:$0xf]
          %v9974 = vld [vmem:[%s425 + $0x8c] sm:$0xf]
          %v9975 = vld [vmem:[%s425 + $0x90] sm:$0xf]
          %v9976 = vld [vmem:[%s425 + $0x94] sm:$0xf]
          %v9977 = vld [vmem:[%s425 + $0x98] sm:$0xf]
          %v9978 = vld [vmem:[%s425 + $0x9c] sm:$0xf]
          %v9979 = vld [vmem:[%s425 + $0xa0] sm:$0xf]
          %v9980 = vld [vmem:[%s425 + $0xa4] sm:$0xf]
          %v9981 = vld [vmem:[%s425 + $0xa8] sm:$0xf]
          %v9982 = vld [vmem:[%s425 + $0xac] sm:$0xf]
          %v9983 = vld [vmem:[%s425 + $0xb0] sm:$0xf]
          %v9984 = vld [vmem:[%s425 + $0xb4] sm:$0xf]
          %v9985 = vld [vmem:[%s425 + $0xb8] sm:$0xf]
          %v9986 = vld [vmem:[%s425 + $0xbc] sm:$0xf]
          %v9987 = vld [vmem:[%s425 + $0xc0] sm:$0xf]
          %v9988 = vld [vmem:[%s425 + $0xc4] sm:$0xf]
          %v9989 = vld [vmem:[%s425 + $0xc8] sm:$0xf]
          %v9990 = vld [vmem:[%s425 + $0xcc] sm:$0xf]
          %v9991 = vld [vmem:[%s425 + $0xd0] sm:$0xf]
          %v9992 = vld [vmem:[%s425 + $0xd4] sm:$0xf]
          %v9993 = vld [vmem:[%s425 + $0xd8] sm:$0xf]
          %v9994 = vld [vmem:[%s425 + $0xdc] sm:$0xf]
          %v9995 = vld [vmem:[%s425 + $0xe0] sm:$0xf]
          %v9996 = vld [vmem:[%s425 + $0xe4] sm:$0xf]
          %v9997 = vld [vmem:[%s425 + $0xe8] sm:$0xf]
          %v9998 = vld [vmem:[%s425 + $0xec] sm:$0xf]
          %v9999 = vld [vmem:[%s425 + $0xf0] sm:$0xf]
          %v10000 = vld [vmem:[%s425 + $0xf4] sm:$0xf]
          %v10001 = vld [vmem:[%s425 + $0xf8] sm:$0xf]
          %v10002 = vld [vmem:[%s425 + $0xfc] sm:$0xf]
          %v10003 = vld [vmem:[%s425 + $0x100] sm:$0xf]
          %v10004 = vld [vmem:[%s425 + $0x104] sm:$0xf]
          %v10005 = vld [vmem:[%s425 + $0x108] sm:$0xf]
          %v10006 = vld [vmem:[%s425 + $0x10c] sm:$0xf]
          %v10007 = vld [vmem:[%s425 + $0x110] sm:$0xf]
          %v10008 = vld [vmem:[%s425 + $0x114] sm:$0xf]
          %v10009 = vld [vmem:[%s425 + $0x118] sm:$0xf]
          %v10010 = vld [vmem:[%s425 + $0x11c] sm:$0xf]
          %v10011 = vld [vmem:[%s425 + $0x120] sm:$0xf]
          %v10012 = vld [vmem:[%s425 + $0x124] sm:$0xf]
          %v10013 = vld [vmem:[%s425 + $0x128] sm:$0xf]
          %v10014 = vld [vmem:[%s425 + $0x12c] sm:$0xf]
          %v10015 = vld [vmem:[%s425 + $0x130] sm:$0xf]
          %v10016 = vld [vmem:[%s425 + $0x134] sm:$0xf]
          %v10017 = vld [vmem:[%s425 + $0x138] sm:$0xf]
          %v10018 = vld [vmem:[%s425 + $0x13c] sm:$0xf]
          %v10019 = vld [vmem:[%s425 + $0x140] sm:$0xf]
          %v10020 = vld [vmem:[%s425 + $0x144] sm:$0xf]
          %v10021 = vld [vmem:[%s425 + $0x148] sm:$0xf]
          %v10022 = vld [vmem:[%s425 + $0x14c] sm:$0xf]
          %v10023 = vld [vmem:[%s425 + $0x150] sm:$0xf]
          %v10024 = vld [vmem:[%s425 + $0x154] sm:$0xf]
          %v10025 = vld [vmem:[%s425 + $0x158] sm:$0xf]
          %v10026 = vld [vmem:[%s425 + $0x15c] sm:$0xf]
          %v10027 = vld [vmem:[%s425 + $0x160] sm:$0xf]
          %v10028 = vld [vmem:[%s425 + $0x164] sm:$0xf]
          %v10029 = vld [vmem:[%s425 + $0x168] sm:$0xf]
          %v10030 = vld [vmem:[%s425 + $0x16c] sm:$0xf]
          %v10031 = vld [vmem:[%s425 + $0x170] sm:$0xf]
          %v10032 = vld [vmem:[%s425 + $0x174] sm:$0xf]
          %v10033 = vld [vmem:[%s425 + $0x178] sm:$0xf]
          %v10034 = vld [vmem:[%s425 + $0x17c] sm:$0xf]
          %v10035 = vld [vmem:[%s425 + $0x180] sm:$0xf]
          %v10036 = vld [vmem:[%s425 + $0x184] sm:$0xf]
          %v10037 = vld [vmem:[%s425 + $0x188] sm:$0xf]
          %v10038 = vld [vmem:[%s425 + $0x18c] sm:$0xf]
          %v10039 = vld [vmem:[%s425 + $0x190] sm:$0xf]
          %v10040 = vld [vmem:[%s425 + $0x194] sm:$0xf]
          %v10041 = vld [vmem:[%s425 + $0x198] sm:$0xf]
          %v10042 = vld [vmem:[%s425 + $0x19c] sm:$0xf]
          %v10043 = vld [vmem:[%s425 + $0x1a0] sm:$0xf]
          %v10044 = vld [vmem:[%s425 + $0x1a4] sm:$0xf]
          %v10045 = vld [vmem:[%s425 + $0x1a8] sm:$0xf]
          %v10046 = vld [vmem:[%s425 + $0x1ac] sm:$0xf]
          %v10047 = vld [vmem:[%s425 + $0x1b0] sm:$0xf]
          %v10048 = vld [vmem:[%s425 + $0x1b4] sm:$0xf]
          %v10049 = vld [vmem:[%s425 + $0x1b8] sm:$0xf]
          %v10050 = vld [vmem:[%s425 + $0x1bc] sm:$0xf]
          %v10051 = vld [vmem:[%s425 + $0x1c0] sm:$0xf]
          %v10052 = vld [vmem:[%s425 + $0x1c4] sm:$0xf]
          %v10053 = vld [vmem:[%s425 + $0x1c8] sm:$0xf]
          %v10054 = vld [vmem:[%s425 + $0x1cc] sm:$0xf]
          %v10055 = vld [vmem:[%s425 + $0x1d0] sm:$0xf]
          %v10056 = vld [vmem:[%s425 + $0x1d4] sm:$0xf]
          %v10057 = vld [vmem:[%s425 + $0x1d8] sm:$0xf]
          %v10058 = vld [vmem:[%s425 + $0x1dc] sm:$0xf]
          %v10059 = vld [vmem:[%s425 + $0x1e0] sm:$0xf]
          %v10060 = vld [vmem:[%s425 + $0x1e4] sm:$0xf]
          %v10061 = vld [vmem:[%s425 + $0x1e8] sm:$0xf]
          %v10062 = vld [vmem:[%s425 + $0x1ec] sm:$0xf]
          %v10063 = vld [vmem:[%s425 + $0x1f0] sm:$0xf]
          %v10064 = vld [vmem:[%s425 + $0x1f4] sm:$0xf]
          %v10065 = vld [vmem:[%s425 + $0x1f8] sm:$0xf]
          %v10066 = vld [vmem:[%s425 + $0x1fc] sm:$0xf]
          %v10067 = vld [vmem:[%s425 + $0x200] sm:$0xf]
          %v10068 = vld [vmem:[%s425 + $0x204] sm:$0xf]
          %v10069 = vld [vmem:[%s425 + $0x208] sm:$0xf]
          %v10070 = vld [vmem:[%s425 + $0x20c] sm:$0xf]
          %v10071 = vld [vmem:[%s425 + $0x210] sm:$0xf]
          %v10072 = vld [vmem:[%s425 + $0x214] sm:$0xf]
          %v10073 = vld [vmem:[%s425 + $0x218] sm:$0xf]
          %v10074 = vld [vmem:[%s425 + $0x21c] sm:$0xf]
          %v10075 = vld [vmem:[%s425 + $0x220] sm:$0xf]
          %v10076 = vld [vmem:[%s425 + $0x224] sm:$0xf]
          %v10077 = vld [vmem:[%s425 + $0x228] sm:$0xf]
          %v10078 = vld [vmem:[%s425 + $0x22c] sm:$0xf]
          %v10079 = vld [vmem:[%s425 + $0x230] sm:$0xf]
          %v10080 = vld [vmem:[%s425 + $0x234] sm:$0xf]
          %v10081 = vld [vmem:[%s425 + $0x238] sm:$0xf]
          %v10082 = vld [vmem:[%s425 + $0x23c] sm:$0xf]
          %v10083 = vld [vmem:[%s425 + $0x240] sm:$0xf]
          %v10084 = vld [vmem:[%s425 + $0x244] sm:$0xf]
          %v10085 = vld [vmem:[%s425 + $0x248] sm:$0xf]
          %v10086 = vld [vmem:[%s425 + $0x24c] sm:$0xf]
          %v10087 = vld [vmem:[%s425 + $0x250] sm:$0xf]
          %v10088 = vld [vmem:[%s425 + $0x254] sm:$0xf]
          %v10089 = vld [vmem:[%s425 + $0x258] sm:$0xf]
          %v10090 = vld [vmem:[%s425 + $0x25c] sm:$0xf]
          %v10091 = vld [vmem:[%s425 + $0x260] sm:$0xf]
          %v10092 = vld [vmem:[%s425 + $0x264] sm:$0xf]
          %v10093 = vld [vmem:[%s425 + $0x268] sm:$0xf]
          %v10094 = vld [vmem:[%s425 + $0x26c] sm:$0xf]
          %v10095 = vld [vmem:[%s425 + $0x270] sm:$0xf]
          %v10096 = vld [vmem:[%s425 + $0x274] sm:$0xf]
          %v10097 = vld [vmem:[%s425 + $0x278] sm:$0xf]
          %v10098 = vld [vmem:[%s425 + $0x27c] sm:$0xf]
          %v10099 = vld [vmem:[%s425 + $0x280] sm:$0xf]
          %v10100 = vld [vmem:[%s425 + $0x284] sm:$0xf]
          %v10101 = vld [vmem:[%s425 + $0x288] sm:$0xf]
          %v10102 = vld [vmem:[%s425 + $0x28c] sm:$0xf]
          %v10103 = vld [vmem:[%s425 + $0x290] sm:$0xf]
          %v10104 = vld [vmem:[%s425 + $0x294] sm:$0xf]
          %v10105 = vld [vmem:[%s425 + $0x298] sm:$0xf]
          %v10106 = vld [vmem:[%s425 + $0x29c] sm:$0xf]
          %v10107 = vld [vmem:[%s425 + $0x2a0] sm:$0xf]
          %v10108 = vld [vmem:[%s425 + $0x2a4] sm:$0xf]
          %v10109 = vld [vmem:[%s425 + $0x2a8] sm:$0xf]
          %v10110 = vld [vmem:[%s425 + $0x2ac] sm:$0xf]
          %v10111 = vld [vmem:[%s425 + $0x2b0] sm:$0xf]
          %v10112 = vld [vmem:[%s425 + $0x2b4] sm:$0xf]
          %v10113 = vld [vmem:[%s425 + $0x2b8] sm:$0xf]
          %v10114 = vld [vmem:[%s425 + $0x2bc] sm:$0xf]
          %v10115 = vld [vmem:[%s425 + $0x2c0] sm:$0xf]
          %v10116 = vld [vmem:[%s425 + $0x2c4] sm:$0xf]
          %v10117 = vld [vmem:[%s425 + $0x2c8] sm:$0xf]
          %v10118 = vld [vmem:[%s425 + $0x2cc] sm:$0xf]
          %v10119 = vld [vmem:[%s425 + $0x2d0] sm:$0xf]
          %v10120 = vld [vmem:[%s425 + $0x2d4] sm:$0xf]
          %v10121 = vld [vmem:[%s425 + $0x2d8] sm:$0xf]
          %v10122 = vld [vmem:[%s425 + $0x2dc] sm:$0xf]
          %v10123 = vld [vmem:[%s425 + $0x2e0] sm:$0xf]
          %v10124 = vld [vmem:[%s425 + $0x2e4] sm:$0xf]
          %v10125 = vld [vmem:[%s425 + $0x2e8] sm:$0xf]
          %v10126 = vld [vmem:[%s425 + $0x2ec] sm:$0xf]
          %v10127 = vld [vmem:[%s425 + $0x2f0] sm:$0xf]
          %v10128 = vld [vmem:[%s425 + $0x2f4] sm:$0xf]
          %v10129 = vld [vmem:[%s425 + $0x2f8] sm:$0xf]
          %v10130 = vld [vmem:[%s425 + $0x2fc] sm:$0xf]
          %v10131 = vld [vmem:[%s425 + $0x300] sm:$0xf]
          %v10132 = vld [vmem:[%s425 + $0x304] sm:$0xf]
          %v10133 = vld [vmem:[%s425 + $0x308] sm:$0xf]
          %v10134 = vld [vmem:[%s425 + $0x30c] sm:$0xf]
          %v10135 = vld [vmem:[%s425 + $0x310] sm:$0xf]
          %v10136 = vld [vmem:[%s425 + $0x314] sm:$0xf]
          %v10137 = vld [vmem:[%s425 + $0x318] sm:$0xf]
          %v10138 = vld [vmem:[%s425 + $0x31c] sm:$0xf]
          %v10139 = vld [vmem:[%s425 + $0x320] sm:$0xf]
          %v10140 = vld [vmem:[%s425 + $0x324] sm:$0xf]
          %v10141 = vld [vmem:[%s425 + $0x328] sm:$0xf]
          %v10142 = vld [vmem:[%s425 + $0x32c] sm:$0xf]
          %v10143 = vld [vmem:[%s425 + $0x330] sm:$0xf]
          %v10144 = vld [vmem:[%s425 + $0x334] sm:$0xf]
          %v10145 = vld [vmem:[%s425 + $0x338] sm:$0xf]
          %v10146 = vld [vmem:[%s425 + $0x33c] sm:$0xf]
          %v10147 = vld [vmem:[%s425 + $0x340] sm:$0xf]
          %v10148 = vld [vmem:[%s425 + $0x344] sm:$0xf]
          %v10149 = vld [vmem:[%s425 + $0x348] sm:$0xf]
          %v10150 = vld [vmem:[%s425 + $0x34c] sm:$0xf]
          %v10151 = vld [vmem:[%s425 + $0x350] sm:$0xf]
          %v10152 = vld [vmem:[%s425 + $0x354] sm:$0xf]
          %v10153 = vld [vmem:[%s425 + $0x358] sm:$0xf]
          %v10154 = vld [vmem:[%s425 + $0x35c] sm:$0xf]
          %v10155 = vld [vmem:[%s425 + $0x360] sm:$0xf]
          %v10156 = vld [vmem:[%s425 + $0x364] sm:$0xf]
          %v10157 = vld [vmem:[%s425 + $0x368] sm:$0xf]
          %v10158 = vld [vmem:[%s425 + $0x36c] sm:$0xf]
          %v10159 = vld [vmem:[%s425 + $0x370] sm:$0xf]
          %v10160 = vld [vmem:[%s425 + $0x374] sm:$0xf]
          %v10161 = vld [vmem:[%s425 + $0x378] sm:$0xf]
          %v10162 = vld [vmem:[%s425 + $0x37c] sm:$0xf]
          %v10163 = vld [vmem:[%s425 + $0x380] sm:$0xf]
          %v10164 = vld [vmem:[%s425 + $0x384] sm:$0xf]
          %v10165 = vld [vmem:[%s425 + $0x388] sm:$0xf]
          %v10166 = vld [vmem:[%s425 + $0x38c] sm:$0xf]
          %v10167 = vld [vmem:[%s425 + $0x390] sm:$0xf]
          %v10168 = vld [vmem:[%s425 + $0x394] sm:$0xf]
          %v10169 = vld [vmem:[%s425 + $0x398] sm:$0xf]
          %v10170 = vld [vmem:[%s425 + $0x39c] sm:$0xf]
          %v10171 = vld [vmem:[%s425 + $0x3a0] sm:$0xf]
          %v10172 = vld [vmem:[%s425 + $0x3a4] sm:$0xf]
          %v10173 = vld [vmem:[%s425 + $0x3a8] sm:$0xf]
          %v10174 = vld [vmem:[%s425 + $0x3ac] sm:$0xf]
          %v10175 = vld [vmem:[%s425 + $0x3b0] sm:$0xf]
          %v10176 = vld [vmem:[%s425 + $0x3b4] sm:$0xf]
          %v10177 = vld [vmem:[%s425 + $0x3b8] sm:$0xf]
          %v10178 = vld [vmem:[%s425 + $0x3bc] sm:$0xf]
          %v10179 = vld [vmem:[%s425 + $0x3c0] sm:$0xf]
          %v10180 = vld [vmem:[%s425 + $0x3c4] sm:$0xf]
          %v10181 = vld [vmem:[%s425 + $0x3c8] sm:$0xf]
          %v10182 = vld [vmem:[%s425 + $0x3cc] sm:$0xf]
          %v10183 = vld [vmem:[%s425 + $0x3d0] sm:$0xf]
          %v10184 = vld [vmem:[%s425 + $0x3d4] sm:$0xf]
          %v10185 = vld [vmem:[%s425 + $0x3d8] sm:$0xf]
          %v10186 = vld [vmem:[%s425 + $0x3dc] sm:$0xf]
          %v10187 = vld [vmem:[%s425 + $0x3e0] sm:$0xf]
          %v10188 = vld [vmem:[%s425 + $0x3e4] sm:$0xf]
          %v10189 = vld [vmem:[%s425 + $0x3e8] sm:$0xf]
          %v10190 = vld [vmem:[%s425 + $0x3ec] sm:$0xf]
          %v10191 = vld [vmem:[%s425 + $0x3f0] sm:$0xf]
          %v10192 = vld [vmem:[%s425 + $0x3f4] sm:$0xf]
          %v10193 = vld [vmem:[%s425 + $0x3f8] sm:$0xf]
          %v10194 = vld [vmem:[%s425 + $0x3fc] sm:$0xf]
          %v10451 = vunpack.c.l.b16 %v9939
          %v10452 = vunpack.c.l.b16 %v9940
          %v10453 = vunpack.c.l.b16 %v9941
          %v10454 = vunpack.c.l.b16 %v9942
          %v10455 = vunpack.c.l.b16 %v9943
          %v10456 = vunpack.c.l.b16 %v9944
          %v10457 = vunpack.c.l.b16 %v9945
          %v10458 = vunpack.c.l.b16 %v9946
          %v10459 = vunpack.c.l.b16 %v9947
          %v10460 = vunpack.c.l.b16 %v9948
          %v10461 = vunpack.c.l.b16 %v9949
          %v10462 = vunpack.c.l.b16 %v9950
          %v10463 = vunpack.c.l.b16 %v9951
          %v10464 = vunpack.c.l.b16 %v9952
          %v10465 = vunpack.c.l.b16 %v9953
          %v10466 = vunpack.c.l.b16 %v9954
          %v10467 = vunpack.c.l.b16 %v9955
          %v10468 = vunpack.c.l.b16 %v9956
          %v10469 = vunpack.c.l.b16 %v9957
          %v10470 = vunpack.c.l.b16 %v9958
          %v10471 = vunpack.c.l.b16 %v9959
          %v10472 = vunpack.c.l.b16 %v9960
          %v10473 = vunpack.c.l.b16 %v9961
          %v10474 = vunpack.c.l.b16 %v9962
          %v10475 = vunpack.c.l.b16 %v9963
          %v10476 = vunpack.c.l.b16 %v9964
          %v10477 = vunpack.c.l.b16 %v9965
          %v10478 = vunpack.c.l.b16 %v9966
          %v10479 = vunpack.c.l.b16 %v9967
          %v10480 = vunpack.c.l.b16 %v9968
          %v10481 = vunpack.c.l.b16 %v9969
          %v10482 = vunpack.c.l.b16 %v9970
          %v10483 = vunpack.c.l.b16 %v9971
          %v10484 = vunpack.c.l.b16 %v9972
          %v10485 = vunpack.c.l.b16 %v9973
          %v10486 = vunpack.c.l.b16 %v9974
          %v10487 = vunpack.c.l.b16 %v9975
          %v10488 = vunpack.c.l.b16 %v9976
          %v10489 = vunpack.c.l.b16 %v9977
          %v10490 = vunpack.c.l.b16 %v9978
          %v10491 = vunpack.c.l.b16 %v9979
          %v10492 = vunpack.c.l.b16 %v9980
          %v10493 = vunpack.c.l.b16 %v9981
          %v10494 = vunpack.c.l.b16 %v9982
          %v10495 = vunpack.c.l.b16 %v9983
          %v10496 = vunpack.c.l.b16 %v9984
          %v10497 = vunpack.c.l.b16 %v9985
          %v10498 = vunpack.c.l.b16 %v9986
          %v10499 = vunpack.c.l.b16 %v9987
          %v10500 = vunpack.c.l.b16 %v9988
          %v10501 = vunpack.c.l.b16 %v9989
          %v10502 = vunpack.c.l.b16 %v9990
          %v10503 = vunpack.c.l.b16 %v9991
          %v10504 = vunpack.c.l.b16 %v9992
          %v10505 = vunpack.c.l.b16 %v9993
          %v10506 = vunpack.c.l.b16 %v9994
          %v10507 = vunpack.c.l.b16 %v9995
          %v10508 = vunpack.c.l.b16 %v9996
          %v10509 = vunpack.c.l.b16 %v9997
          %v10510 = vunpack.c.l.b16 %v9998
          %v10511 = vunpack.c.l.b16 %v9999
          %v10512 = vunpack.c.l.b16 %v10000
          %v10513 = vunpack.c.l.b16 %v10001
          %v10514 = vunpack.c.l.b16 %v10002
          %v10515 = vunpack.c.l.b16 %v10003
          %v10516 = vunpack.c.l.b16 %v10004
          %v10517 = vunpack.c.l.b16 %v10005
          %v10518 = vunpack.c.l.b16 %v10006
          %v10519 = vunpack.c.l.b16 %v10007
          %v10520 = vunpack.c.l.b16 %v10008
          %v10521 = vunpack.c.l.b16 %v10009
          %v10522 = vunpack.c.l.b16 %v10010
          %v10523 = vunpack.c.l.b16 %v10011
          %v10524 = vunpack.c.l.b16 %v10012
          %v10525 = vunpack.c.l.b16 %v10013
          %v10526 = vunpack.c.l.b16 %v10014
          %v10527 = vunpack.c.l.b16 %v10015
          %v10528 = vunpack.c.l.b16 %v10016
          %v10529 = vunpack.c.l.b16 %v10017
          %v10530 = vunpack.c.l.b16 %v10018
          %v10531 = vunpack.c.l.b16 %v10019
          %v10532 = vunpack.c.l.b16 %v10020
          %v10533 = vunpack.c.l.b16 %v10021
          %v10534 = vunpack.c.l.b16 %v10022
          %v10535 = vunpack.c.l.b16 %v10023
          %v10536 = vunpack.c.l.b16 %v10024
          %v10537 = vunpack.c.l.b16 %v10025
          %v10538 = vunpack.c.l.b16 %v10026
          %v10539 = vunpack.c.l.b16 %v10027
          %v10540 = vunpack.c.l.b16 %v10028
          %v10541 = vunpack.c.l.b16 %v10029
          %v10542 = vunpack.c.l.b16 %v10030
          %v10543 = vunpack.c.l.b16 %v10031
          %v10544 = vunpack.c.l.b16 %v10032
          %v10545 = vunpack.c.l.b16 %v10033
          %v10546 = vunpack.c.l.b16 %v10034
          %v10547 = vunpack.c.l.b16 %v10035
          %v10548 = vunpack.c.l.b16 %v10036
          %v10549 = vunpack.c.l.b16 %v10037
          %v10550 = vunpack.c.l.b16 %v10038
          %v10551 = vunpack.c.l.b16 %v10039
          %v10552 = vunpack.c.l.b16 %v10040
          %v10553 = vunpack.c.l.b16 %v10041
          %v10554 = vunpack.c.l.b16 %v10042
          %v10555 = vunpack.c.l.b16 %v10043
          %v10556 = vunpack.c.l.b16 %v10044
          %v10557 = vunpack.c.l.b16 %v10045
          %v10558 = vunpack.c.l.b16 %v10046
          %v10559 = vunpack.c.l.b16 %v10047
          %v10560 = vunpack.c.l.b16 %v10048
          %v10561 = vunpack.c.l.b16 %v10049
          %v10562 = vunpack.c.l.b16 %v10050
          %v10563 = vunpack.c.l.b16 %v10051
          %v10564 = vunpack.c.l.b16 %v10052
          %v10565 = vunpack.c.l.b16 %v10053
          %v10566 = vunpack.c.l.b16 %v10054
          %v10567 = vunpack.c.l.b16 %v10055
          %v10568 = vunpack.c.l.b16 %v10056
          %v10569 = vunpack.c.l.b16 %v10057
          %v10570 = vunpack.c.l.b16 %v10058
          %v10571 = vunpack.c.l.b16 %v10059
          %v10572 = vunpack.c.l.b16 %v10060
          %v10573 = vunpack.c.l.b16 %v10061
          %v10574 = vunpack.c.l.b16 %v10062
          %v10575 = vunpack.c.l.b16 %v10063
          %v10576 = vunpack.c.l.b16 %v10064
          %v10577 = vunpack.c.l.b16 %v10065
          %v10578 = vunpack.c.l.b16 %v10066
          %v10579 = vunpack.c.l.b16 %v10067
          %v10580 = vunpack.c.l.b16 %v10068
          %v10581 = vunpack.c.l.b16 %v10069
          %v10582 = vunpack.c.l.b16 %v10070
          %v10583 = vunpack.c.l.b16 %v10071
          %v10584 = vunpack.c.l.b16 %v10072
          %v10585 = vunpack.c.l.b16 %v10073
          %v10586 = vunpack.c.l.b16 %v10074
          %v10587 = vunpack.c.l.b16 %v10075
          %v10588 = vunpack.c.l.b16 %v10076
          %v10589 = vunpack.c.l.b16 %v10077
          %v10590 = vunpack.c.l.b16 %v10078
          %v10591 = vunpack.c.l.b16 %v10079
          %v10592 = vunpack.c.l.b16 %v10080
          %v10593 = vunpack.c.l.b16 %v10081
          %v10594 = vunpack.c.l.b16 %v10082
          %v10595 = vunpack.c.l.b16 %v10083
          %v10596 = vunpack.c.l.b16 %v10084
          %v10597 = vunpack.c.l.b16 %v10085
          %v10598 = vunpack.c.l.b16 %v10086
          %v10599 = vunpack.c.l.b16 %v10087
          %v10600 = vunpack.c.l.b16 %v10088
          %v10601 = vunpack.c.l.b16 %v10089
          %v10602 = vunpack.c.l.b16 %v10090
          %v10603 = vunpack.c.l.b16 %v10091
          %v10604 = vunpack.c.l.b16 %v10092
          %v10605 = vunpack.c.l.b16 %v10093
          %v10606 = vunpack.c.l.b16 %v10094
          %v10607 = vunpack.c.l.b16 %v10095
          %v10608 = vunpack.c.l.b16 %v10096
          %v10609 = vunpack.c.l.b16 %v10097
          %v10610 = vunpack.c.l.b16 %v10098
          %v10611 = vunpack.c.l.b16 %v10099
          %v10612 = vunpack.c.l.b16 %v10100
          %v10613 = vunpack.c.l.b16 %v10101
          %v10614 = vunpack.c.l.b16 %v10102
          %v10615 = vunpack.c.l.b16 %v10103
          %v10616 = vunpack.c.l.b16 %v10104
          %v10617 = vunpack.c.l.b16 %v10105
          %v10618 = vunpack.c.l.b16 %v10106
          %v10619 = vunpack.c.l.b16 %v10107
          %v10620 = vunpack.c.l.b16 %v10108
          %v10621 = vunpack.c.l.b16 %v10109
          %v10622 = vunpack.c.l.b16 %v10110
          %v10623 = vunpack.c.l.b16 %v10111
          %v10624 = vunpack.c.l.b16 %v10112
          %v10625 = vunpack.c.l.b16 %v10113
          %v10626 = vunpack.c.l.b16 %v10114
          %v10627 = vunpack.c.l.b16 %v10115
          %v10628 = vunpack.c.l.b16 %v10116
          %v10629 = vunpack.c.l.b16 %v10117
          %v10630 = vunpack.c.l.b16 %v10118
          %v10631 = vunpack.c.l.b16 %v10119
          %v10632 = vunpack.c.l.b16 %v10120
          %v10633 = vunpack.c.l.b16 %v10121
          %v10634 = vunpack.c.l.b16 %v10122
          %v10635 = vunpack.c.l.b16 %v10123
          %v10636 = vunpack.c.l.b16 %v10124
          %v10637 = vunpack.c.l.b16 %v10125
          %v10638 = vunpack.c.l.b16 %v10126
          %v10639 = vunpack.c.l.b16 %v10127
          %v10640 = vunpack.c.l.b16 %v10128
          %v10641 = vunpack.c.l.b16 %v10129
          %v10642 = vunpack.c.l.b16 %v10130
          %v10643 = vunpack.c.l.b16 %v10131
          %v10644 = vunpack.c.l.b16 %v10132
          %v10645 = vunpack.c.l.b16 %v10133
          %v10646 = vunpack.c.l.b16 %v10134
          %v10647 = vunpack.c.l.b16 %v10135
          %v10648 = vunpack.c.l.b16 %v10136
          %v10649 = vunpack.c.l.b16 %v10137
          %v10650 = vunpack.c.l.b16 %v10138
          %v10651 = vunpack.c.l.b16 %v10139
          %v10652 = vunpack.c.l.b16 %v10140
          %v10653 = vunpack.c.l.b16 %v10141
          %v10654 = vunpack.c.l.b16 %v10142
          %v10655 = vunpack.c.l.b16 %v10143
          %v10656 = vunpack.c.l.b16 %v10144
          %v10657 = vunpack.c.l.b16 %v10145
          %v10658 = vunpack.c.l.b16 %v10146
          %v10659 = vunpack.c.l.b16 %v10147
          %v10660 = vunpack.c.l.b16 %v10148
          %v10661 = vunpack.c.l.b16 %v10149
          %v10662 = vunpack.c.l.b16 %v10150
          %v10663 = vunpack.c.l.b16 %v10151
          %v10664 = vunpack.c.l.b16 %v10152
          %v10665 = vunpack.c.l.b16 %v10153
          %v10666 = vunpack.c.l.b16 %v10154
          %v10667 = vunpack.c.l.b16 %v10155
          %v10668 = vunpack.c.l.b16 %v10156
          %v10669 = vunpack.c.l.b16 %v10157
          %v10670 = vunpack.c.l.b16 %v10158
          %v10671 = vunpack.c.l.b16 %v10159
          %v10672 = vunpack.c.l.b16 %v10160
          %v10673 = vunpack.c.l.b16 %v10161
          %v10674 = vunpack.c.l.b16 %v10162
          %v10675 = vunpack.c.l.b16 %v10163
          %v10676 = vunpack.c.l.b16 %v10164
          %v10677 = vunpack.c.l.b16 %v10165
          %v10678 = vunpack.c.l.b16 %v10166
          %v10679 = vunpack.c.l.b16 %v10167
          %v10680 = vunpack.c.l.b16 %v10168
          %v10681 = vunpack.c.l.b16 %v10169
          %v10682 = vunpack.c.l.b16 %v10170
          %v10683 = vunpack.c.l.b16 %v10171
          %v10684 = vunpack.c.l.b16 %v10172
          %v10685 = vunpack.c.l.b16 %v10173
          %v10686 = vunpack.c.l.b16 %v10174
          %v10687 = vunpack.c.l.b16 %v10175
          %v10688 = vunpack.c.l.b16 %v10176
          %v10689 = vunpack.c.l.b16 %v10177
          %v10690 = vunpack.c.l.b16 %v10178
          %v10691 = vunpack.c.l.b16 %v10179
          %v10692 = vunpack.c.l.b16 %v10180
          %v10693 = vunpack.c.l.b16 %v10181
          %v10694 = vunpack.c.l.b16 %v10182
          %v10695 = vunpack.c.l.b16 %v10183
          %v10696 = vunpack.c.l.b16 %v10184
          %v10697 = vunpack.c.l.b16 %v10185
          %v10698 = vunpack.c.l.b16 %v10186
          %v10699 = vunpack.c.l.b16 %v10187
          %v10700 = vunpack.c.l.b16 %v10188
          %v10701 = vunpack.c.l.b16 %v10189
          %v10702 = vunpack.c.l.b16 %v10190
          %v10703 = vunpack.c.l.b16 %v10191
          %v10704 = vunpack.c.l.b16 %v10192
          %v10705 = vunpack.c.l.b16 %v10193
          %v10706 = vunpack.c.l.b16 %v10194
          %v10707 = vpack.c.b16 %v10452, %v10451
          %v10708 = vpack.c.b16 %v10454, %v10453
          %v10709 = vpack.c.b16 %v10456, %v10455
          %v10710 = vpack.c.b16 %v10458, %v10457
          %v10711 = vpack.c.b16 %v10460, %v10459
          %v10712 = vpack.c.b16 %v10462, %v10461
          %v10713 = vpack.c.b16 %v10464, %v10463
          %v10714 = vpack.c.b16 %v10466, %v10465
          %v10715 = vpack.c.b16 %v10468, %v10467
          %v10716 = vpack.c.b16 %v10470, %v10469
          %v10717 = vpack.c.b16 %v10472, %v10471
          %v10718 = vpack.c.b16 %v10474, %v10473
          %v10719 = vpack.c.b16 %v10476, %v10475
          %v10720 = vpack.c.b16 %v10478, %v10477
          %v10721 = vpack.c.b16 %v10480, %v10479
          %v10722 = vpack.c.b16 %v10482, %v10481
          %v10723 = vpack.c.b16 %v10484, %v10483
          %v10724 = vpack.c.b16 %v10486, %v10485
          %v10725 = vpack.c.b16 %v10488, %v10487
          %v10726 = vpack.c.b16 %v10490, %v10489
          %v10727 = vpack.c.b16 %v10492, %v10491
          %v10728 = vpack.c.b16 %v10494, %v10493
          %v10729 = vpack.c.b16 %v10496, %v10495
          %v10730 = vpack.c.b16 %v10498, %v10497
          %v10731 = vpack.c.b16 %v10500, %v10499
          %v10732 = vpack.c.b16 %v10502, %v10501
          %v10733 = vpack.c.b16 %v10504, %v10503
          %v10734 = vpack.c.b16 %v10506, %v10505
          %v10735 = vpack.c.b16 %v10508, %v10507
          %v10736 = vpack.c.b16 %v10510, %v10509
          %v10737 = vpack.c.b16 %v10512, %v10511
          %v10738 = vpack.c.b16 %v10514, %v10513
          %v10739 = vpack.c.b16 %v10516, %v10515
          %v10740 = vpack.c.b16 %v10518, %v10517
          %v10741 = vpack.c.b16 %v10520, %v10519
          %v10742 = vpack.c.b16 %v10522, %v10521
          %v10743 = vpack.c.b16 %v10524, %v10523
          %v10744 = vpack.c.b16 %v10526, %v10525
          %v10745 = vpack.c.b16 %v10528, %v10527
          %v10746 = vpack.c.b16 %v10530, %v10529
          %v10747 = vpack.c.b16 %v10532, %v10531
          %v10748 = vpack.c.b16 %v10534, %v10533
          %v10749 = vpack.c.b16 %v10536, %v10535
          %v10750 = vpack.c.b16 %v10538, %v10537
          %v10751 = vpack.c.b16 %v10540, %v10539
          %v10752 = vpack.c.b16 %v10542, %v10541
          %v10753 = vpack.c.b16 %v10544, %v10543
          %v10754 = vpack.c.b16 %v10546, %v10545
          %v10755 = vpack.c.b16 %v10548, %v10547
          %v10756 = vpack.c.b16 %v10550, %v10549
          %v10757 = vpack.c.b16 %v10552, %v10551
          %v10758 = vpack.c.b16 %v10554, %v10553
          %v10759 = vpack.c.b16 %v10556, %v10555
          %v10760 = vpack.c.b16 %v10558, %v10557
          %v10761 = vpack.c.b16 %v10560, %v10559
          %v10762 = vpack.c.b16 %v10562, %v10561
          %v10763 = vpack.c.b16 %v10564, %v10563
          %v10764 = vpack.c.b16 %v10566, %v10565
          %v10765 = vpack.c.b16 %v10568, %v10567
          %v10766 = vpack.c.b16 %v10570, %v10569
          %v10767 = vpack.c.b16 %v10572, %v10571
          %v10768 = vpack.c.b16 %v10574, %v10573
          %v10769 = vpack.c.b16 %v10576, %v10575
          %v10770 = vpack.c.b16 %v10578, %v10577
          %v10771 = vpack.c.b16 %v10580, %v10579
          %v10772 = vpack.c.b16 %v10582, %v10581
          %v10773 = vpack.c.b16 %v10584, %v10583
          %v10774 = vpack.c.b16 %v10586, %v10585
          %v10775 = vpack.c.b16 %v10588, %v10587
          %v10776 = vpack.c.b16 %v10590, %v10589
          %v10777 = vpack.c.b16 %v10592, %v10591
          %v10778 = vpack.c.b16 %v10594, %v10593
          %v10779 = vpack.c.b16 %v10596, %v10595
          %v10780 = vpack.c.b16 %v10598, %v10597
          %v10781 = vpack.c.b16 %v10600, %v10599
          %v10782 = vpack.c.b16 %v10602, %v10601
          %v10783 = vpack.c.b16 %v10604, %v10603
          %v10784 = vpack.c.b16 %v10606, %v10605
          %v10785 = vpack.c.b16 %v10608, %v10607
          %v10786 = vpack.c.b16 %v10610, %v10609
          %v10787 = vpack.c.b16 %v10612, %v10611
          %v10788 = vpack.c.b16 %v10614, %v10613
          %v10789 = vpack.c.b16 %v10616, %v10615
          %v10790 = vpack.c.b16 %v10618, %v10617
          %v10791 = vpack.c.b16 %v10620, %v10619
          %v10792 = vpack.c.b16 %v10622, %v10621
          %v10793 = vpack.c.b16 %v10624, %v10623
          %v10794 = vpack.c.b16 %v10626, %v10625
          %v10795 = vpack.c.b16 %v10628, %v10627
          %v10796 = vpack.c.b16 %v10630, %v10629
          %v10797 = vpack.c.b16 %v10632, %v10631
          %v10798 = vpack.c.b16 %v10634, %v10633
          %v10799 = vpack.c.b16 %v10636, %v10635
          %v10800 = vpack.c.b16 %v10638, %v10637
          %v10801 = vpack.c.b16 %v10640, %v10639
          %v10802 = vpack.c.b16 %v10642, %v10641
          %v10803 = vpack.c.b16 %v10644, %v10643
          %v10804 = vpack.c.b16 %v10646, %v10645
          %v10805 = vpack.c.b16 %v10648, %v10647
          %v10806 = vpack.c.b16 %v10650, %v10649
          %v10807 = vpack.c.b16 %v10652, %v10651
          %v10808 = vpack.c.b16 %v10654, %v10653
          %v10809 = vpack.c.b16 %v10656, %v10655
          %v10810 = vpack.c.b16 %v10658, %v10657
          %v10811 = vpack.c.b16 %v10660, %v10659
          %v10812 = vpack.c.b16 %v10662, %v10661
          %v10813 = vpack.c.b16 %v10664, %v10663
          %v10814 = vpack.c.b16 %v10666, %v10665
          %v10815 = vpack.c.b16 %v10668, %v10667
          %v10816 = vpack.c.b16 %v10670, %v10669
          %v10817 = vpack.c.b16 %v10672, %v10671
          %v10818 = vpack.c.b16 %v10674, %v10673
          %v10819 = vpack.c.b16 %v10676, %v10675
          %v10820 = vpack.c.b16 %v10678, %v10677
          %v10821 = vpack.c.b16 %v10680, %v10679
          %v10822 = vpack.c.b16 %v10682, %v10681
          %v10823 = vpack.c.b16 %v10684, %v10683
          %v10824 = vpack.c.b16 %v10686, %v10685
          %v10825 = vpack.c.b16 %v10688, %v10687
          %v10826 = vpack.c.b16 %v10690, %v10689
          %v10827 = vpack.c.b16 %v10692, %v10691
          %v10828 = vpack.c.b16 %v10694, %v10693
          %v10829 = vpack.c.b16 %v10696, %v10695
          %v10830 = vpack.c.b16 %v10698, %v10697
          %v10831 = vpack.c.b16 %v10700, %v10699
          %v10832 = vpack.c.b16 %v10702, %v10701
          %v10833 = vpack.c.b16 %v10704, %v10703
          %v10834 = vpack.c.b16 %v10706, %v10705
          %10963 = vmatprep.subr.bf16.mxu0 0
          %10964 = vmatpush1.bf16.msra.mxu0 %v10707
          %10965 = vmatprep.subr.bf16.mxu0 0
          %10966 = vmatpush1.bf16.msra.mxu0 %v10708
          %10967 = vmatprep.subr.bf16.mxu0 0
          %10968 = vmatpush1.bf16.msra.mxu0 %v10709
          %10969 = vmatprep.subr.bf16.mxu0 0
          %10970 = vmatpush1.bf16.msra.mxu0 %v10710
          %10971 = vmatprep.subr.bf16.mxu0 0
          %10972 = vmatpush1.bf16.msra.mxu0 %v10711
          %10973 = vmatprep.subr.bf16.mxu0 0
          %10974 = vmatpush1.bf16.msra.mxu0 %v10712
          %10975 = vmatprep.subr.bf16.mxu0 0
          %10976 = vmatpush1.bf16.msra.mxu0 %v10713
          %10977 = vmatprep.subr.bf16.mxu0 0
          %10978 = vmatpush1.bf16.msra.mxu0 %v10714
          %10979 = vmatprep.subr.bf16.mxu0 0
          %10980 = vmatpush1.bf16.msra.mxu0 %v10715
          %10981 = vmatprep.subr.bf16.mxu0 0
          %10982 = vmatpush1.bf16.msra.mxu0 %v10716
          %10983 = vmatprep.subr.bf16.mxu0 0
          %10984 = vmatpush1.bf16.msra.mxu0 %v10717
          %10985 = vmatprep.subr.bf16.mxu0 0
          %10986 = vmatpush1.bf16.msra.mxu0 %v10718
          %10987 = vmatprep.subr.bf16.mxu0 0
          %10988 = vmatpush1.bf16.msra.mxu0 %v10719
          %10989 = vmatprep.subr.bf16.mxu0 0
          %10990 = vmatpush1.bf16.msra.mxu0 %v10720
          %10991 = vmatprep.subr.bf16.mxu0 0
          %10992 = vmatpush1.bf16.msra.mxu0 %v10721
          %10993 = vmatprep.subr.bf16.mxu0 0
          %10994 = vmatpush1.bf16.msra.mxu0 %v10722
          %10995 = vmatprep.mubr.bf16.mxu0 %v9924
          %10996 = vmatmul.mubr.bf16.gmra.mrb[0].mxu0 %v9923
          %v10997 = vpop.f32.mrb[0].mxu0
          %v10998 = vadd.f32 0.0, %v10997
          %v10999 = vpop.f32.mrb[0].mxu0
          %v11000 = vpop.f32.mrb[0].mxu0
          %v11001 = vadd.f32 0.0, %v11000
          %v11002 = vpop.f32.mrb[0].mxu0
          %11003 = vdwg.mxu0
          %11004 = vmatprep.subr.bf16.mxu0 0
          %11005 = vmatpush1.bf16.msra.mxu0 %v10723
          %11006 = vmatprep.subr.bf16.mxu0 0
          %11007 = vmatpush1.bf16.msra.mxu0 %v10724
          %11008 = vmatprep.subr.bf16.mxu0 0
          %11009 = vmatpush1.bf16.msra.mxu0 %v10725
          %11010 = vmatprep.subr.bf16.mxu0 0
          %11011 = vmatpush1.bf16.msra.mxu0 %v10726
          %11012 = vmatprep.subr.bf16.mxu0 0
          %11013 = vmatpush1.bf16.msra.mxu0 %v10727
          %11014 = vmatprep.subr.bf16.mxu0 0
          %11015 = vmatpush1.bf16.msra.mxu0 %v10728
          %11016 = vmatprep.subr.bf16.mxu0 0
          %11017 = vmatpush1.bf16.msra.mxu0 %v10729
          %11018 = vmatprep.subr.bf16.mxu0 0
          %11019 = vmatpush1.bf16.msra.mxu0 %v10730
          %11020 = vmatprep.subr.bf16.mxu0 0
          %11021 = vmatpush1.bf16.msra.mxu0 %v10731
          %11022 = vmatprep.subr.bf16.mxu0 0
          %11023 = vmatpush1.bf16.msra.mxu0 %v10732
          %11024 = vmatprep.subr.bf16.mxu0 0
          %11025 = vmatpush1.bf16.msra.mxu0 %v10733
          %11026 = vmatprep.subr.bf16.mxu0 0
          %11027 = vmatpush1.bf16.msra.mxu0 %v10734
          %11028 = vmatprep.subr.bf16.mxu0 0
          %11029 = vmatpush1.bf16.msra.mxu0 %v10735
          %11030 = vmatprep.subr.bf16.mxu0 0
          %11031 = vmatpush1.bf16.msra.mxu0 %v10736
          %11032 = vmatprep.subr.bf16.mxu0 0
          %11033 = vmatpush1.bf16.msra.mxu0 %v10737
          %11034 = vmatprep.subr.bf16.mxu0 0
          %11035 = vmatpush1.bf16.msra.mxu0 %v10738
          %11036 = vmatprep.mubr.bf16.mxu0 %v9926
          %11037 = vmatmul.mubr.bf16.gmra.mrb[0].mxu0 %v9925
          %v11038 = vpop.f32.mrb[0].mxu0
          %v11039 = vadd.f32 %v10998, %v11038
          %v11040 = vpop.f32.mrb[0].mxu0
          %v11041 = vpop.f32.mrb[0].mxu0
          %v11042 = vadd.f32 %v11001, %v11041
          %v11043 = vpop.f32.mrb[0].mxu0
          %11044 = vdwg.mxu0
          %11045 = vmatprep.subr.bf16.mxu0 0
          %11046 = vmatpush1.bf16.msra.mxu0 %v10739
          %11047 = vmatprep.subr.bf16.mxu0 0
          %11048 = vmatpush1.bf16.msra.mxu0 %v10740
          %11049 = vmatprep.subr.bf16.mxu0 0
          %11050 = vmatpush1.bf16.msra.mxu0 %v10741
          %11051 = vmatprep.subr.bf16.mxu0 0
          %11052 = vmatpush1.bf16.msra.mxu0 %v10742
          %11053 = vmatprep.subr.bf16.mxu0 0
          %11054 = vmatpush1.bf16.msra.mxu0 %v10743
          %11055 = vmatprep.subr.bf16.mxu0 0
          %11056 = vmatpush1.bf16.msra.mxu0 %v10744
          %11057 = vmatprep.subr.bf16.mxu0 0
          %11058 = vmatpush1.bf16.msra.mxu0 %v10745
          %11059 = vmatprep.subr.bf16.mxu0 0
          %11060 = vmatpush1.bf16.msra.mxu0 %v10746
          %11061 = vmatprep.subr.bf16.mxu0 0
          %11062 = vmatpush1.bf16.msra.mxu0 %v10747
          %11063 = vmatprep.subr.bf16.mxu0 0
          %11064 = vmatpush1.bf16.msra.mxu0 %v10748
          %11065 = vmatprep.subr.bf16.mxu0 0
          %11066 = vmatpush1.bf16.msra.mxu0 %v10749
          %11067 = vmatprep.subr.bf16.mxu0 0
          %11068 = vmatpush1.bf16.msra.mxu0 %v10750
          %11069 = vmatprep.subr.bf16.mxu0 0
          %11070 = vmatpush1.bf16.msra.mxu0 %v10751
          %11071 = vmatprep.subr.bf16.mxu0 0
          %11072 = vmatpush1.bf16.msra.mxu0 %v10752
          %11073 = vmatprep.subr.bf16.mxu0 0
          %11074 = vmatpush1.bf16.msra.mxu0 %v10753
          %11075 = vmatprep.subr.bf16.mxu0 0
          %11076 = vmatpush1.bf16.msra.mxu0 %v10754
          %11077 = vmatprep.mubr.bf16.mxu0 %v9928
          %11078 = vmatmul.mubr.bf16.gmra.mrb[0].mxu0 %v9927
          %v11079 = vpop.f32.mrb[0].mxu0
          %v11080 = vadd.f32 %v11039, %v11079
          %v11081 = vpop.f32.mrb[0].mxu0
          %v11082 = vpop.f32.mrb[0].mxu0
          %v11083 = vadd.f32 %v11042, %v11082
          %v11084 = vpop.f32.mrb[0].mxu0
          %11085 = vdwg.mxu0
          %11086 = vmatprep.subr.bf16.mxu0 0
          %11087 = vmatpush1.bf16.msra.mxu0 %v10755
          %11088 = vmatprep.subr.bf16.mxu0 0
          %11089 = vmatpush1.bf16.msra.mxu0 %v10756
          %11090 = vmatprep.subr.bf16.mxu0 0
          %11091 = vmatpush1.bf16.msra.mxu0 %v10757
          %11092 = vmatprep.subr.bf16.mxu0 0
          %11093 = vmatpush1.bf16.msra.mxu0 %v10758
          %11094 = vmatprep.subr.bf16.mxu0 0
          %11095 = vmatpush1.bf16.msra.mxu0 %v10759
          %11096 = vmatprep.subr.bf16.mxu0 0
          %11097 = vmatpush1.bf16.msra.mxu0 %v10760
          %11098 = vmatprep.subr.bf16.mxu0 0
          %11099 = vmatpush1.bf16.msra.mxu0 %v10761
          %11100 = vmatprep.subr.bf16.mxu0 0
          %11101 = vmatpush1.bf16.msra.mxu0 %v10762
          %11102 = vmatprep.subr.bf16.mxu0 0
          %11103 = vmatpush1.bf16.msra.mxu0 %v10763
          %11104 = vmatprep.subr.bf16.mxu0 0
          %11105 = vmatpush1.bf16.msra.mxu0 %v10764
          %11106 = vmatprep.subr.bf16.mxu0 0
          %11107 = vmatpush1.bf16.msra.mxu0 %v10765
          %11108 = vmatprep.subr.bf16.mxu0 0
          %11109 = vmatpush1.bf16.msra.mxu0 %v10766
          %11110 = vmatprep.subr.bf16.mxu0 0
          %11111 = vmatpush1.bf16.msra.mxu0 %v10767
          %11112 = vmatprep.subr.bf16.mxu0 0
          %11113 = vmatpush1.bf16.msra.mxu0 %v10768
          %11114 = vmatprep.subr.bf16.mxu0 0
          %11115 = vmatpush1.bf16.msra.mxu0 %v10769
          %11116 = vmatprep.subr.bf16.mxu0 0
          %11117 = vmatpush1.bf16.msra.mxu0 %v10770
          %11118 = vmatprep.mubr.bf16.mxu0 %v9930
          %11119 = vmatmul.mubr.bf16.gmra.mrb[0].mxu0 %v9929
          %v11120 = vpop.f32.mrb[0].mxu0
          %v11121 = vadd.f32 %v11080, %v11120
          %v11122 = vpop.f32.mrb[0].mxu0
          %v11123 = vpop.f32.mrb[0].mxu0
          %v11124 = vadd.f32 %v11083, %v11123
          %v11125 = vpop.f32.mrb[0].mxu0
          %11126 = vdwg.mxu0
          %11127 = vmatprep.subr.bf16.mxu0 0
          %11128 = vmatpush1.bf16.msra.mxu0 %v10771
          %11129 = vmatprep.subr.bf16.mxu0 0
          %11130 = vmatpush1.bf16.msra.mxu0 %v10772
          %11131 = vmatprep.subr.bf16.mxu0 0
          %11132 = vmatpush1.bf16.msra.mxu0 %v10773
          %11133 = vmatprep.subr.bf16.mxu0 0
          %11134 = vmatpush1.bf16.msra.mxu0 %v10774
          %11135 = vmatprep.subr.bf16.mxu0 0
          %11136 = vmatpush1.bf16.msra.mxu0 %v10775
          %11137 = vmatprep.subr.bf16.mxu0 0
          %11138 = vmatpush1.bf16.msra.mxu0 %v10776
          %11139 = vmatprep.subr.bf16.mxu0 0
          %11140 = vmatpush1.bf16.msra.mxu0 %v10777
          %11141 = vmatprep.subr.bf16.mxu0 0
          %11142 = vmatpush1.bf16.msra.mxu0 %v10778
          %11143 = vmatprep.subr.bf16.mxu0 0
          %11144 = vmatpush1.bf16.msra.mxu0 %v10779
          %11145 = vmatprep.subr.bf16.mxu0 0
          %11146 = vmatpush1.bf16.msra.mxu0 %v10780
          %11147 = vmatprep.subr.bf16.mxu0 0
          %11148 = vmatpush1.bf16.msra.mxu0 %v10781
          %11149 = vmatprep.subr.bf16.mxu0 0
          %11150 = vmatpush1.bf16.msra.mxu0 %v10782
          %11151 = vmatprep.subr.bf16.mxu0 0
          %11152 = vmatpush1.bf16.msra.mxu0 %v10783
          %11153 = vmatprep.subr.bf16.mxu0 0
          %11154 = vmatpush1.bf16.msra.mxu0 %v10784
          %11155 = vmatprep.subr.bf16.mxu0 0
          %11156 = vmatpush1.bf16.msra.mxu0 %v10785
          %11157 = vmatprep.subr.bf16.mxu0 0
          %11158 = vmatpush1.bf16.msra.mxu0 %v10786
          %11159 = vmatprep.mubr.bf16.mxu0 %v9932
          %11160 = vmatmul.mubr.bf16.gmra.mrb[0].mxu0 %v9931
          %v11161 = vpop.f32.mrb[0].mxu0
          %v11162 = vadd.f32 %v11121, %v11161
          %v11163 = vpop.f32.mrb[0].mxu0
          %v11164 = vpop.f32.mrb[0].mxu0
          %v11165 = vadd.f32 %v11124, %v11164
          %v11166 = vpop.f32.mrb[0].mxu0
          %11167 = vdwg.mxu0
          %11168 = vmatprep.subr.bf16.mxu0 0
          %11169 = vmatpush1.bf16.msra.mxu0 %v10787
          %11170 = vmatprep.subr.bf16.mxu0 0
          %11171 = vmatpush1.bf16.msra.mxu0 %v10788
          %11172 = vmatprep.subr.bf16.mxu0 0
          %11173 = vmatpush1.bf16.msra.mxu0 %v10789
          %11174 = vmatprep.subr.bf16.mxu0 0
          %11175 = vmatpush1.bf16.msra.mxu0 %v10790
          %11176 = vmatprep.subr.bf16.mxu0 0
          %11177 = vmatpush1.bf16.msra.mxu0 %v10791
          %11178 = vmatprep.subr.bf16.mxu0 0
          %11179 = vmatpush1.bf16.msra.mxu0 %v10792
          %11180 = vmatprep.subr.bf16.mxu0 0
          %11181 = vmatpush1.bf16.msra.mxu0 %v10793
          %11182 = vmatprep.subr.bf16.mxu0 0
          %11183 = vmatpush1.bf16.msra.mxu0 %v10794
          %11184 = vmatprep.subr.bf16.mxu0 0
          %11185 = vmatpush1.bf16.msra.mxu0 %v10795
          %11186 = vmatprep.subr.bf16.mxu0 0
          %11187 = vmatpush1.bf16.msra.mxu0 %v10796
          %11188 = vmatprep.subr.bf16.mxu0 0
          %11189 = vmatpush1.bf16.msra.mxu0 %v10797
          %11190 = vmatprep.subr.bf16.mxu0 0
          %11191 = vmatpush1.bf16.msra.mxu0 %v10798
          %11192 = vmatprep.subr.bf16.mxu0 0
          %11193 = vmatpush1.bf16.msra.mxu0 %v10799
          %11194 = vmatprep.subr.bf16.mxu0 0
          %11195 = vmatpush1.bf16.msra.mxu0 %v10800
          %11196 = vmatprep.subr.bf16.mxu0 0
          %11197 = vmatpush1.bf16.msra.mxu0 %v10801
          %11198 = vmatprep.subr.bf16.mxu0 0
          %11199 = vmatpush1.bf16.msra.mxu0 %v10802
          %11200 = vmatprep.mubr.bf16.mxu0 %v9934
          %11201 = vmatmul.mubr.bf16.gmra.mrb[0].mxu0 %v9933
          %v11202 = vpop.f32.mrb[0].mxu0
          %v11203 = vadd.f32 %v11162, %v11202
          %v11204 = vpop.f32.mrb[0].mxu0
          %v11205 = vpop.f32.mrb[0].mxu0
          %v11206 = vadd.f32 %v11165, %v11205
          %v11207 = vpop.f32.mrb[0].mxu0
          %11208 = vdwg.mxu0
          %11209 = vmatprep.subr.bf16.mxu0 0
          %11210 = vmatpush1.bf16.msra.mxu0 %v10803
          %11211 = vmatprep.subr.bf16.mxu0 0
          %11212 = vmatpush1.bf16.msra.mxu0 %v10804
          %11213 = vmatprep.subr.bf16.mxu0 0
          %11214 = vmatpush1.bf16.msra.mxu0 %v10805
          %11215 = vmatprep.subr.bf16.mxu0 0
          %11216 = vmatpush1.bf16.msra.mxu0 %v10806
          %11217 = vmatprep.subr.bf16.mxu0 0
          %11218 = vmatpush1.bf16.msra.mxu0 %v10807
          %11219 = vmatprep.subr.bf16.mxu0 0
          %11220 = vmatpush1.bf16.msra.mxu0 %v10808
          %11221 = vmatprep.subr.bf16.mxu0 0
          %11222 = vmatpush1.bf16.msra.mxu0 %v10809
          %11223 = vmatprep.subr.bf16.mxu0 0
          %11224 = vmatpush1.bf16.msra.mxu0 %v10810
          %11225 = vmatprep.subr.bf16.mxu0 0
          %11226 = vmatpush1.bf16.msra.mxu0 %v10811
          %11227 = vmatprep.subr.bf16.mxu0 0
          %11228 = vmatpush1.bf16.msra.mxu0 %v10812
          %11229 = vmatprep.subr.bf16.mxu0 0
          %11230 = vmatpush1.bf16.msra.mxu0 %v10813
          %11231 = vmatprep.subr.bf16.mxu0 0
          %11232 = vmatpush1.bf16.msra.mxu0 %v10814
          %11233 = vmatprep.subr.bf16.mxu0 0
          %11234 = vmatpush1.bf16.msra.mxu0 %v10815
          %11235 = vmatprep.subr.bf16.mxu0 0
          %11236 = vmatpush1.bf16.msra.mxu0 %v10816
          %11237 = vmatprep.subr.bf16.mxu0 0
          %11238 = vmatpush1.bf16.msra.mxu0 %v10817
          %11239 = vmatprep.subr.bf16.mxu0 0
          %11240 = vmatpush1.bf16.msra.mxu0 %v10818
          %11241 = vmatprep.mubr.bf16.mxu0 %v9936
          %11242 = vmatmul.mubr.bf16.gmra.mrb[0].mxu0 %v9935
          %v11243 = vpop.f32.mrb[0].mxu0
          %v11244 = vadd.f32 %v11203, %v11243
          %v11245 = vpop.f32.mrb[0].mxu0
          %v11246 = vpop.f32.mrb[0].mxu0
          %v11247 = vadd.f32 %v11206, %v11246
          %v11248 = vpop.f32.mrb[0].mxu0
          %11249 = vdwg.mxu0
          %11250 = vmatprep.subr.bf16.mxu0 0
          %11251 = vmatpush1.bf16.msra.mxu0 %v10819
          %11252 = vmatprep.subr.bf16.mxu0 0
          %11253 = vmatpush1.bf16.msra.mxu0 %v10820
          %11254 = vmatprep.subr.bf16.mxu0 0
          %11255 = vmatpush1.bf16.msra.mxu0 %v10821
          %11256 = vmatprep.subr.bf16.mxu0 0
          %11257 = vmatpush1.bf16.msra.mxu0 %v10822
          %11258 = vmatprep.subr.bf16.mxu0 0
          %11259 = vmatpush1.bf16.msra.mxu0 %v10823
          %11260 = vmatprep.subr.bf16.mxu0 0
          %11261 = vmatpush1.bf16.msra.mxu0 %v10824
          %11262 = vmatprep.subr.bf16.mxu0 0
          %11263 = vmatpush1.bf16.msra.mxu0 %v10825
          %11264 = vmatprep.subr.bf16.mxu0 0
          %11265 = vmatpush1.bf16.msra.mxu0 %v10826
          %11266 = vmatprep.subr.bf16.mxu0 0
          %11267 = vmatpush1.bf16.msra.mxu0 %v10827
          %11268 = vmatprep.subr.bf16.mxu0 0
          %11269 = vmatpush1.bf16.msra.mxu0 %v10828
          %11270 = vmatprep.subr.bf16.mxu0 0
          %11271 = vmatpush1.bf16.msra.mxu0 %v10829
          %11272 = vmatprep.subr.bf16.mxu0 0
          %11273 = vmatpush1.bf16.msra.mxu0 %v10830
          %11274 = vmatprep.subr.bf16.mxu0 0
          %11275 = vmatpush1.bf16.msra.mxu0 %v10831
          %11276 = vmatprep.subr.bf16.mxu0 0
          %11277 = vmatpush1.bf16.msra.mxu0 %v10832
          %11278 = vmatprep.subr.bf16.mxu0 0
          %11279 = vmatpush1.bf16.msra.mxu0 %v10833
          %11280 = vmatprep.subr.bf16.mxu0 0
          %11281 = vmatpush1.bf16.msra.mxu0 %v10834
          %11282 = vmatprep.mubr.bf16.mxu0 %v9938
          %11283 = vmatmul.mubr.bf16.gmra.mrb[0].mxu0 %v9937
          %v11284 = vpop.f32.mrb[0].mxu0
          %v11285 = vadd.f32 %v11244, %v11284
          %v11286 = vpop.f32.mrb[0].mxu0
          %v11287 = vpop.f32.mrb[0].mxu0
          %v11288 = vadd.f32 %v11247, %v11287
          %v11289 = vpop.f32.mrb[0].mxu0
          %11290 = vdwg.mxu0
          %11291 = vst [vmem:[%s486] sm:$0xff] %v11285
          %11292 = vst [vmem:[%s486 + $0x8] sm:$0xff] %v11288
        $region88: #{vggnet2c_forward.1} parent=47 // pred_fallthru
          _
        %p11293 = scmp.lt.s32.totalorder %s32, 1
        %s11294 = scalar_select %p11293, %s32, 1
        %s11295 = smul.addr %s11294, 2
        %s11296 = smul.addr %s11295, 8
        %s11297 = scalar_lea.vmem %s7, %s11296
        // Predicated region
        $region89: #{vggnet2c_forward.1} parent=47 // pred_check
          %p11298 = pneg %p232
        $region90: #{vggnet2c_forward.1} parent=47 // pred_check_branch
          %11300 = sbr.rel (%p11298) target = $region92
        $region91: #{vggnet2c_forward.1} parent=47 // pred_region
          _
        $region92: #{vggnet2c_forward.1} parent=47 // pred_fallthru
          _
      $region48: #{vggnet2c_forward.1} parent=5 // pred_fallthru
        _
      %p11301 = scmp.le.s32.totalorder 2, %s23
      // Predicated region
      $region93: #{vggnet2c_forward.1} parent=5 // pred_check
        %p11302 = pneg %p11301
      $region94: #{vggnet2c_forward.1} parent=5 // pred_check_branch
        %11304 = sbr.rel (%p11302) target = $region96
      $region95: #{vggnet2c_forward.1} parent=5 // pred_region
        %s11305 = ssub.s32 %s23, 2
        // Predicated region
        $region97: #{vggnet2c_forward.1} parent=95 // pred_check
          %p11306 = pneg %p238
        $region98: #{vggnet2c_forward.1} parent=95 // pred_check_branch
          %11308 = sbr.rel (%p11306) target = $region100
        $region99: #{vggnet2c_forward.1} parent=95 // pred_region
          %p11309 = scmp.lt.s32.totalorder %s34, 1
          %s11310 = scalar_select %p11309, %s34, 1
          %s11311 = smul.addr %s11310, 2
          %s11312 = smul.addr %s11311, 8
          %s11313 = scalar_lea.vmem %s7, %s11312
        $region100: #{vggnet2c_forward.1} parent=95 // pred_fallthru
          _
      $region96: #{vggnet2c_forward.1} parent=5 // pred_fallthru
        _
    $region6: #{vggnet2c_forward.1} parent=1 // loop_footer
      %s27 = sadd.s32 1, %s23
    $region7: #{vggnet2c_forward.1} parent=1 // loop_footer_branch
      %22 = sbr.rel target = $region3
    $region8: #{vggnet2c_forward.1} parent=1 // loop_exit
      _
    %11314 = vsyncpa [#allocation5], 1
    %s11315 = scalar_lea.sflag [#allocation5], 1
    %11316 = vsyncpa %s11315, 1
    %11317 = vsyncpa [#allocation7], 1
    %s11318 = scalar_lea.sflag [#allocation7], 1
    %11319 = vsyncpa %s11318, 1
    %11320 = vsyncpa [#allocation10], 1
    %s11321 = scalar_lea.sflag [#allocation10], 1
    %11322 = vsyncpa %s11321, 1
    %11323 = vsyncpa [#allocation13], 1
    %s11324 = scalar_lea.sflag [#allocation13], 1
    %11325 = vsyncpa %s11324, 1

</llo_original>
